<compile_context>
chip_gen: v7x
topology: tpu7x:2x2x1
jax: 0.10.0
libtpu: 0.0.40
codegen_flags: <defaults>
</compile_context>

<pallas_src>
import functools
import math

import jax
import jax.numpy as jnp
from jax import lax
from jax.experimental import pallas as pl
from jax.experimental.pallas import tpu as pltpu


# ----------------------------------------------------------------------------
# Fused MambaFormer kernel (single grid step = whole batch, full network)
# ----------------------------------------------------------------------------
def _mambaformer_kernel(n_heads, n_blocks,
                        x_ref,
                        # Mamba params, stacked over n_mamba = n_blocks + 1
                        m_rms, m_wxz, m_convw, m_convb, m_wdbc,
                        m_dtw, m_dtb, m_at, m_d, m_ow,
                        # Attention params, stacked over n_blocks
                        a_lnw, a_lnb, a_wqkv, a_bqkv, a_wo, a_bo,
                        # lm_head weight (D, V)
                        lm_w,
                        # outputs
                        hs_ref, logits_ref):
    f32 = jnp.float32

    x = x_ref[...]                                   # (B, S, D) f32
    B, S, D = x.shape
    d_inner = m_ow.shape[1]
    N = m_at.shape[1]                                # d_state
    R = m_dtw.shape[1]                               # dt_rank
    K = m_convw.shape[1]                             # conv kernel size
    H = n_heads
    dh = D // H
    BS = B * S
    V = lm_w.shape[1]
    scale = 1.0 / math.sqrt(dh)

    # Causal mask, hoisted once for all attention layers.
    row = lax.broadcasted_iota(jnp.int32, (S, S), 0)
    col = lax.broadcasted_iota(jnp.int32, (S, S), 1)
    causal = row >= col

    # ------------------------------------------------------------------ Mamba
    def mamba_layer(x, i):
        """Residual Mamba block: x (B,S,D) -> (B,S,D)."""
        x2 = x.reshape(BS, D)

        # RMSNorm (f32)
        var = jnp.mean(x2 * x2, axis=-1, keepdims=True)
        h = x2 * lax.rsqrt(var + 1e-5) * m_rms[i]

        # fused in_proj [x | z]: one (BS,D)@(D,2*Din) matmul
        xz = jnp.dot(h, m_wxz[i], preferred_element_type=f32)
        x_in = xz[:, :d_inner]
        z = xz[:, d_inner:]

        # Causal depthwise conv1d: shift-and-accumulate along S, per batch.
        x_in3 = x_in.reshape(B, S, d_inner)
        cw = m_convw[i]                              # (K, Din)
        conv = x_in3 * cw[K - 1:K]                   # shift 0
        for k in range(K - 1):
            shift = K - 1 - k
            shifted = jnp.concatenate(
                [jnp.zeros((B, shift, d_inner), f32), x_in3[:, :S - shift, :]],
                axis=1)
            conv = conv + shifted * cw[k:k + 1]
        conv = conv + m_convb[i]
        xc = conv * jax.nn.sigmoid(conv)             # SiLU, (B, S, Din)
        xc2 = xc.reshape(BS, d_inner)

        # fused x_proj [dt | B | C]: one (BS,Din)@(Din,R+2N) matmul
        dbc = jnp.dot(xc2, m_wdbc[i], preferred_element_type=f32)
        dt_raw = dbc[:, :R]
        b_mat = dbc[:, R:R + N].reshape(B, S, N)
        c_mat = dbc[:, R + N:R + 2 * N].reshape(B, S, N)

        dt = jnp.dot(dt_raw, m_dtw[i], preferred_element_type=f32) + m_dtb[i]
        dt = jnp.where(dt > 20.0, dt,
                       jnp.log1p(jnp.exp(jnp.minimum(dt, 20.0))))  # softplus
        dt3 = dt.reshape(B, S, d_inner)

        # Hoist everything out of the serial scan: exp (EUP) over (B,S,N,Din)
        # and the B_t * u_t outer product (VPU) computed once for all steps.
        a_mat = m_at[i]                              # (N, Din)
        dA_all = jnp.exp(a_mat[None, None] * dt3[:, :, None, :])   # (B,S,N,Din)
        w_all = dt3 * xc                             # (B, S, Din)
        Bw_all = b_mat[:, :, :, None] * w_all[:, :, None, :]       # (B,S,N,Din)

        # Serial scan: pure VPU FMA per step; states stay in vregs.
        h_state = jnp.zeros((B, N, d_inner), f32)
        h_steps = []
        for t in range(S):
            h_state = dA_all[:, t] * h_state + Bw_all[:, t]
            h_steps.append(h_state)
        h_all = jnp.stack(h_steps, axis=1)           # (B, S, N, Din)

        # y_t = C_t . h_t done as one batched contraction off the scan path.
        y = jnp.sum(c_mat[:, :, :, None] * h_all, axis=2)          # (B,S,Din)
        y = y.reshape(BS, d_inner) + m_d[i] * xc2
        y = y * (z * jax.nn.sigmoid(z))              # gate with silu(z)

        out = jnp.dot(y, m_ow[i], preferred_element_type=f32)      # (BS, D)
        return x + out.reshape(B, S, D)              # residual

    # -------------------------------------------------------------- Attention
    def attn_layer(x, i):
        """ln_1 -> causal MHA -> c_proj (no residual, matching
        `x = ln_1(x); x = attn(x)[0]` in the reference)."""
        x2 = x.reshape(BS, D)
        mu = jnp.mean(x2, axis=-1, keepdims=True)
        var = jnp.mean((x2 - mu) ** 2, axis=-1, keepdims=True)
        h = (x2 - mu) * lax.rsqrt(var + 1e-5) * a_lnw[i] + a_lnb[i]

        # fused qkv (GPT-2 c_attn): one (BS,D)@(D,3D) matmul
        qkv = jnp.dot(h, a_wqkv[i], preferred_element_type=f32) + a_bqkv[i]

        def to_heads(m):
            # (BS, D) -> (B*H, S, dh) with one reshape + transpose
            m4 = jnp.transpose(m.reshape(B, S, H, dh), (0, 2, 1, 3))
            return m4.reshape(B * H, S, dh)

        qh = to_heads(qkv[:, :D])
        kh = to_heads(qkv[:, D:2 * D])
        vh = to_heads(qkv[:, 2 * D:])

        s = jnp.einsum('hqd,hkd->hqk', qh, kh,
                       preferred_element_type=f32) * scale         # (BH,S,S)
        s = jnp.where(causal[None], s, -1e30)
        s = s - jnp.max(s, axis=-1, keepdims=True)
        p = jnp.exp(s)
        p = p / jnp.sum(p, axis=-1, keepdims=True)
        o = jnp.einsum('hqk,hkd->hqd', p, vh,
                       preferred_element_type=f32)                 # (BH,S,dh)
        o = jnp.transpose(o.reshape(B, H, S, dh), (0, 2, 1, 3)).reshape(BS, D)

        out = jnp.dot(o, a_wo[i], preferred_element_type=f32) + a_bo[i]
        return out.reshape(B, S, D)

    # ---------------------------------------------------------------- Forward
    x = mamba_layer(x, 0)
    hs_ref[0] = x
    for blk in range(n_blocks):
        x = attn_layer(x, blk)
        x = mamba_layer(x, blk + 1)
        hs_ref[blk + 1] = x

    logits_ref[...] = jnp.dot(x.reshape(BS, D), lm_w[...],
                              preferred_element_type=f32).reshape(B, S, V)


_MAMBA_KEYS = ['rms_w', 'w_xz', 'conv_w', 'conv_b', 'w_dbc',
               'dtproj_w', 'dtproj_b', 'a_t', 'd', 'out_w']
_ATTN_KEYS = ['ln_w', 'ln_b', 'w_qkv', 'b_qkv', 'wo', 'bo']


def mambaformer_fused(x, params):
    """x: (B, S, D) f32 embeddings. Returns (hidden_states tuple, logits)."""
    B, S, D = x.shape
    n_blocks = params['n_blocks']
    n_hidden = n_blocks + 1
    m = params['mamba']
    a = params['attn']
    lm_w = params['lm_head_w']
    V = lm_w.shape[1]

    def fullspec(arr):
        nd = arr.ndim
        return pl.BlockSpec(arr.shape, lambda i, _nd=nd: (0,) * _nd)

    mamba_args = [m[k] for k in _MAMBA_KEYS]
    attn_args = [a[k] for k in _ATTN_KEYS]

    in_specs = ([fullspec(x)]
                + [fullspec(w) for w in mamba_args]
                + [fullspec(w) for w in attn_args]
                + [fullspec(lm_w)])
    out_shape = (jax.ShapeDtypeStruct((n_hidden, B, S, D), jnp.float32),
                 jax.ShapeDtypeStruct((B, S, V), jnp.float32))
    out_specs = (pl.BlockSpec((n_hidden, B, S, D), lambda i: (0, 0, 0, 0)),
                 pl.BlockSpec((B, S, V), lambda i: (0, 0, 0)))

    hs, logits = pl.pallas_call(
        functools.partial(_mambaformer_kernel, params['n_heads'], n_blocks),
        grid=(1,),                     # batch folded into the kernel body
        in_specs=in_specs,
        out_specs=out_specs,
        out_shape=out_shape,
        compiler_params=pltpu.CompilerParams(
            dimension_semantics=("arbitrary",)),
    )(x, *mamba_args, *attn_args, lm_w)

    hidden_states = tuple(hs[j] for j in range(n_hidden))
    return hidden_states, logits


# ----------------------------------------------------------------------------
# Parameter init (deterministic, synthetic; per-layer params stacked & fused)
# ----------------------------------------------------------------------------
def init_params(key, vocab, D, d_inner, d_state, dt_rank, conv_k, n_heads,
                n_blocks):
    n_mamba = n_blocks + 1
    keys = iter(jax.random.split(key, 64))
    nrm = lambda shape: jax.random.normal(next(keys), shape, jnp.float32) * 0.02

    wte = nrm((vocab, D))

    a_log = jnp.log(jnp.arange(1, d_state + 1, dtype=jnp.float32))
    a_t = -jnp.broadcast_to(jnp.exp(a_log)[:, None], (d_state, d_inner))

    mamba = dict(
        rms_w=jnp.ones((n_mamba, 1, D), jnp.float32),
        # fused in_proj: [wx | wz] -> (D, 2*Din)
        w_xz=jnp.concatenate([nrm((n_mamba, D, d_inner)),
                              nrm((n_mamba, D, d_inner))], axis=-1),
        conv_w=nrm((n_mamba, conv_k, d_inner)),
        conv_b=jnp.zeros((n_mamba, 1, d_inner), jnp.float32),
        # fused x_proj: [wdt | wb | wc] -> (Din, R + 2N)
        w_dbc=jnp.concatenate([nrm((n_mamba, d_inner, dt_rank)),
                               nrm((n_mamba, d_inner, d_state)),
                               nrm((n_mamba, d_inner, d_state))], axis=-1),
        dtproj_w=nrm((n_mamba, dt_rank, d_inner)),
        dtproj_b=jnp.full((n_mamba, 1, d_inner), -4.0, jnp.float32),
        a_t=jnp.broadcast_to(a_t[None], (n_mamba, d_state, d_inner))
            .astype(jnp.float32),
        d=jnp.ones((n_mamba, 1, d_inner), jnp.float32),
        out_w=nrm((n_mamba, d_inner, D)),
    )
    attn = dict(
        ln_w=jnp.ones((n_blocks, 1, D), jnp.float32),
        ln_b=jnp.zeros((n_blocks, 1, D), jnp.float32),
        # fused c_attn: [wq | wk | wv] -> (D, 3D)
        w_qkv=jnp.concatenate([nrm((n_blocks, D, D)),
                               nrm((n_blocks, D, D)),
                               nrm((n_blocks, D, D))], axis=-1),
        b_qkv=jnp.zeros((n_blocks, 1, 3 * D), jnp.float32),
        wo=nrm((n_blocks, D, D)),
        bo=jnp.zeros((n_blocks, 1, D), jnp.float32),
    )
    return dict(wte=wte, mamba=mamba, attn=attn,
                lm_head_w=jnp.transpose(wte),      # tied lm_head (D, V), f32
                n_heads=n_heads, n_blocks=n_blocks)


# ----------------------------------------------------------------------------
# MambaFormer forward (mirrors the PyTorch module's forward)
# ----------------------------------------------------------------------------
def mambaformer_forward(params, input_ids, attention_mask=None):
    # attention_mask accepted but unused, matching the reference forward.
    # TODO(synk): token-embedding gather kept in plain JAX glue (no hot-path gain).
    x = jnp.take(params['wte'], input_ids, axis=0)          # (B, S, D) f32
    return mambaformer_fused(x, params)


if __name__ == "__main__":
    # small, self-consistent config
    VOCAB, D, D_INNER, D_STATE, DT_RANK, CONV_K = 64, 32, 64, 8, 4, 4
    N_HEADS, N_BLOCKS = 4, 2          # n_trans_layers=2, n_mamba_layers=3
    B, S = 2, 8

    root = jax.random.PRNGKey(0)
    k_param, k_ids = jax.random.split(root)
    params = init_params(k_param, VOCAB, D, D_INNER, D_STATE, DT_RANK,
                         CONV_K, N_HEADS, N_BLOCKS)
    input_ids = jax.random.randint(k_ids, (B, S), 0, VOCAB)

    hidden_states, logits = jax.jit(
        lambda ids: mambaformer_forward(params, ids))(input_ids)

    jax.block_until_ready(logits)
    jax.block_until_ready(hidden_states[-1])
    assert logits.shape == (B, S, VOCAB)
    assert len(hidden_states) == N_BLOCKS + 1
    assert all(h.shape == (B, S, D) for h in hidden_states)
    print("KERNEL_OK")
</pallas_src>

<mosaic_0001>
module attributes {stable_mosaic.version = 11 : i64} {
  func.func @_mambaformer_kernel(%arg0: i32, %arg1: memref<2x8x32xf32, #tpu.memory_space<vmem>>, %arg2: memref<3x1x32xf32, #tpu.memory_space<vmem>>, %arg3: memref<3x32x128xf32, #tpu.memory_space<vmem>>, %arg4: memref<3x4x64xf32, #tpu.memory_space<vmem>>, %arg5: memref<3x1x64xf32, #tpu.memory_space<vmem>>, %arg6: memref<3x64x20xf32, #tpu.memory_space<vmem>>, %arg7: memref<3x4x64xf32, #tpu.memory_space<vmem>>, %arg8: memref<3x1x64xf32, #tpu.memory_space<vmem>>, %arg9: memref<3x8x64xf32, #tpu.memory_space<vmem>>, %arg10: memref<3x1x64xf32, #tpu.memory_space<vmem>>, %arg11: memref<3x64x32xf32, #tpu.memory_space<vmem>>, %arg12: memref<2x1x32xf32, #tpu.memory_space<vmem>>, %arg13: memref<2x1x32xf32, #tpu.memory_space<vmem>>, %arg14: memref<2x32x96xf32, #tpu.memory_space<vmem>>, %arg15: memref<2x1x96xf32, #tpu.memory_space<vmem>>, %arg16: memref<2x32x32xf32, #tpu.memory_space<vmem>>, %arg17: memref<2x1x32xf32, #tpu.memory_space<vmem>>, %arg18: memref<32x64xf32, #tpu.memory_space<vmem>>, %arg19: memref<3x2x8x32xf32, #tpu.memory_space<vmem>>, %arg20: memref<2x8x64xf32, #tpu.memory_space<vmem>>) attributes {dimension_semantics = [#tpu.dimension_semantics<arbitrary>], iteration_bounds = array<i64: 1>, scalar_prefetch = 0 : i64, scratch_operands = 0 : i64, tpu.core_type = #tpu.core_type<tc>, window_params = [{pipeline_mode = #tpu.pipeline_mode<synchronous>, transform_indices = @transform_0, window_bounds = array<i64: 2, 8, 32>}, {pipeline_mode = #tpu.pipeline_mode<synchronous>, transform_indices = @transform_1, window_bounds = array<i64: 3, 1, 32>}, {pipeline_mode = #tpu.pipeline_mode<synchronous>, transform_indices = @transform_2, window_bounds = array<i64: 3, 32, 128>}, {pipeline_mode = #tpu.pipeline_mode<synchronous>, transform_indices = @transform_3, window_bounds = array<i64: 3, 4, 64>}, {pipeline_mode = #tpu.pipeline_mode<synchronous>, transform_indices = @transform_4, window_bounds = array<i64: 3, 1, 64>}, {pipeline_mode = #tpu.pipeline_mode<synchronous>, transform_indices = @transform_5, window_bounds = array<i64: 3, 64, 20>}, {pipeline_mode = #tpu.pipeline_mode<synchronous>, transform_indices = @transform_6, window_bounds = array<i64: 3, 4, 64>}, {pipeline_mode = #tpu.pipeline_mode<synchronous>, transform_indices = @transform_7, window_bounds = array<i64: 3, 1, 64>}, {pipeline_mode = #tpu.pipeline_mode<synchronous>, transform_indices = @transform_8, window_bounds = array<i64: 3, 8, 64>}, {pipeline_mode = #tpu.pipeline_mode<synchronous>, transform_indices = @transform_9, window_bounds = array<i64: 3, 1, 64>}, {pipeline_mode = #tpu.pipeline_mode<synchronous>, transform_indices = @transform_10, window_bounds = array<i64: 3, 64, 32>}, {pipeline_mode = #tpu.pipeline_mode<synchronous>, transform_indices = @transform_11, window_bounds = array<i64: 2, 1, 32>}, {pipeline_mode = #tpu.pipeline_mode<synchronous>, transform_indices = @transform_12, window_bounds = array<i64: 2, 1, 32>}, {pipeline_mode = #tpu.pipeline_mode<synchronous>, transform_indices = @transform_13, window_bounds = array<i64: 2, 32, 96>}, {pipeline_mode = #tpu.pipeline_mode<synchronous>, transform_indices = @transform_14, window_bounds = array<i64: 2, 1, 96>}, {pipeline_mode = #tpu.pipeline_mode<synchronous>, transform_indices = @transform_15, window_bounds = array<i64: 2, 32, 32>}, {pipeline_mode = #tpu.pipeline_mode<synchronous>, transform_indices = @transform_16, window_bounds = array<i64: 2, 1, 32>}, {pipeline_mode = #tpu.pipeline_mode<synchronous>, transform_indices = @transform_17, window_bounds = array<i64: 32, 64>}, {pipeline_mode = #tpu.pipeline_mode<synchronous>, transform_indices = @transform_18, window_bounds = array<i64: 3, 2, 8, 32>}, {pipeline_mode = #tpu.pipeline_mode<synchronous>, transform_indices = @transform_19, window_bounds = array<i64: 2, 8, 64>}]} {
    %c0 = arith.constant 0 : index
    %c0_0 = arith.constant 0 : index
    %c0_1 = arith.constant 0 : index
    %0 = vector.load %arg1[%c0, %c0_0, %c0_1] : memref<2x8x32xf32, #tpu.memory_space<vmem>>, vector<2x8x32xf32>
    %1 = tpu.iota {dimensions = array<i32: 0>} : vector<8x8xi32>
    %2 = tpu.iota {dimensions = array<i32: 1>} : vector<8x8xi32>
    %3 = arith.cmpi sge, %1, %2 : vector<8x8xi32>
    %4 = vector.shape_cast %0 : vector<2x8x32xf32> to vector<16x32xf32>
    %5 = arith.mulf %4, %4 : vector<16x32xf32>
    %cst = arith.constant dense<0.000000e+00> : vector<16xf32>
    %6 = vector.multi_reduction <add>, %5, %cst [1] : vector<16x32xf32> to vector<16xf32>
    %7 = vector.shape_cast %6 : vector<16xf32> to vector<16x1xf32>
    %cst_2 = arith.constant 3.200000e+01 : f32
    %8 = vector.broadcast %cst_2 : f32 to vector<16x1xf32>
    %9 = arith.divf %7, %8 : vector<16x1xf32>
    %cst_3 = arith.constant 9.99999974E-6 : f32
    %10 = vector.broadcast %cst_3 : f32 to vector<16x1xf32>
    %11 = arith.addf %9, %10 : vector<16x1xf32>
    %12 = math.rsqrt %11 : vector<16x1xf32>
    %13 = vector.broadcast %12 : vector<16x1xf32> to vector<16x32xf32>
    %14 = arith.mulf %4, %13 : vector<16x32xf32>
    %c0_4 = arith.constant 0 : index
    %c0_5 = arith.constant 0 : index
    %c0_6 = arith.constant 0 : index
    %15 = vector.load %arg2[%c0_4, %c0_5, %c0_6] : memref<3x1x32xf32, #tpu.memory_space<vmem>>, vector<1x1x32xf32>
    %16 = vector.shape_cast %15 : vector<1x1x32xf32> to vector<1x32xf32>
    %17 = vector.broadcast %16 : vector<1x32xf32> to vector<16x32xf32>
    %18 = arith.mulf %14, %17 : vector<16x32xf32>
    %c0_7 = arith.constant 0 : index
    %c0_8 = arith.constant 0 : index
    %c0_9 = arith.constant 0 : index
    %19 = vector.load %arg3[%c0_7, %c0_8, %c0_9] : memref<3x32x128xf32, #tpu.memory_space<vmem>>, vector<1x32x128xf32>
    %20 = vector.shape_cast %19 : vector<1x32x128xf32> to vector<32x128xf32>
    %cst_10 = arith.constant dense<0.000000e+00> : vector<16x128xf32>
    %21 = tpu.matmul %18, %20, %cst_10 {dimension_numbers = #tpu.dot_dimension_numbers<[1], [0], [0], [1], [0, 0, 1, 1], [], []>} : vector<16x32xf32>, vector<32x128xf32>, vector<16x128xf32> -> vector<16x128xf32>
    %22 = vector.extract_strided_slice %21 {offsets = [0, 0], sizes = [16, 64], strides = [1, 1]} : vector<16x128xf32> to vector<16x64xf32>
    %23 = vector.extract_strided_slice %21 {offsets = [0, 64], sizes = [16, 64], strides = [1, 1]} : vector<16x128xf32> to vector<16x64xf32>
    %24 = vector.shape_cast %22 : vector<16x64xf32> to vector<2x8x64xf32>
    %c0_11 = arith.constant 0 : index
    %c0_12 = arith.constant 0 : index
    %c0_13 = arith.constant 0 : index
    %25 = vector.load %arg4[%c0_11, %c0_12, %c0_13] : memref<3x4x64xf32, #tpu.memory_space<vmem>>, vector<1x4x64xf32>
    %26 = vector.shape_cast %25 : vector<1x4x64xf32> to vector<4x64xf32>
    %27 = vector.extract_strided_slice %26 {offsets = [3, 0], sizes = [1, 64], strides = [1, 1]} : vector<4x64xf32> to vector<1x64xf32>
    %28 = vector.shape_cast %27 : vector<1x64xf32> to vector<1x1x64xf32>
    %29 = vector.broadcast %28 : vector<1x1x64xf32> to vector<2x8x64xf32>
    %30 = arith.mulf %24, %29 : vector<2x8x64xf32>
    %cst_14 = arith.constant 0.000000e+00 : f32
    %31 = vector.broadcast %cst_14 : f32 to vector<2x3x64xf32>
    %32 = vector.extract_strided_slice %24 {offsets = [0, 0, 0], sizes = [2, 5, 64], strides = [1, 1, 1]} : vector<2x8x64xf32> to vector<2x5x64xf32>
    %33 = tpu.concatenate %31, %32 in 1 : vector<2x3x64xf32>, vector<2x5x64xf32> -> vector<2x8x64xf32>
    %34 = vector.extract_strided_slice %26 {offsets = [0, 0], sizes = [1, 64], strides = [1, 1]} : vector<4x64xf32> to vector<1x64xf32>
    %35 = vector.shape_cast %34 : vector<1x64xf32> to vector<1x1x64xf32>
    %36 = vector.broadcast %35 : vector<1x1x64xf32> to vector<2x8x64xf32>
    %37 = arith.mulf %33, %36 : vector<2x8x64xf32>
    %38 = arith.addf %30, %37 : vector<2x8x64xf32>
    %cst_15 = arith.constant 0.000000e+00 : f32
    %39 = vector.broadcast %cst_15 : f32 to vector<2x2x64xf32>
    %40 = vector.extract_strided_slice %24 {offsets = [0, 0, 0], sizes = [2, 6, 64], strides = [1, 1, 1]} : vector<2x8x64xf32> to vector<2x6x64xf32>
    %41 = tpu.concatenate %39, %40 in 1 : vector<2x2x64xf32>, vector<2x6x64xf32> -> vector<2x8x64xf32>
    %42 = vector.extract_strided_slice %26 {offsets = [1, 0], sizes = [1, 64], strides = [1, 1]} : vector<4x64xf32> to vector<1x64xf32>
    %43 = vector.shape_cast %42 : vector<1x64xf32> to vector<1x1x64xf32>
    %44 = vector.broadcast %43 : vector<1x1x64xf32> to vector<2x8x64xf32>
    %45 = arith.mulf %41, %44 : vector<2x8x64xf32>
    %46 = arith.addf %38, %45 : vector<2x8x64xf32>
    %cst_16 = arith.constant 0.000000e+00 : f32
    %47 = vector.broadcast %cst_16 : f32 to vector<2x1x64xf32>
    %48 = vector.extract_strided_slice %24 {offsets = [0, 0, 0], sizes = [2, 7, 64], strides = [1, 1, 1]} : vector<2x8x64xf32> to vector<2x7x64xf32>
    %49 = tpu.concatenate %47, %48 in 1 : vector<2x1x64xf32>, vector<2x7x64xf32> -> vector<2x8x64xf32>
    %50 = vector.extract_strided_slice %26 {offsets = [2, 0], sizes = [1, 64], strides = [1, 1]} : vector<4x64xf32> to vector<1x64xf32>
    %51 = vector.shape_cast %50 : vector<1x64xf32> to vector<1x1x64xf32>
    %52 = vector.broadcast %51 : vector<1x1x64xf32> to vector<2x8x64xf32>
    %53 = arith.mulf %49, %52 : vector<2x8x64xf32>
    %54 = arith.addf %46, %53 : vector<2x8x64xf32>
    %c0_17 = arith.constant 0 : index
    %c0_18 = arith.constant 0 : index
    %c0_19 = arith.constant 0 : index
    %55 = vector.load %arg5[%c0_17, %c0_18, %c0_19] : memref<3x1x64xf32, #tpu.memory_space<vmem>>, vector<1x1x64xf32>
    %56 = vector.shape_cast %55 : vector<1x1x64xf32> to vector<1x64xf32>
    %57 = vector.shape_cast %56 : vector<1x64xf32> to vector<1x1x64xf32>
    %58 = vector.broadcast %57 : vector<1x1x64xf32> to vector<2x8x64xf32>
    %59 = arith.addf %54, %58 : vector<2x8x64xf32>
    %60 = arith.negf %59 : vector<2x8x64xf32>
    %61 = math.exp %60 : vector<2x8x64xf32>
    %cst_20 = arith.constant 1.000000e+00 : f32
    %62 = vector.broadcast %cst_20 : f32 to vector<2x8x64xf32>
    %63 = arith.addf %62, %61 : vector<2x8x64xf32>
    %64 = arith.divf %62, %63 : vector<2x8x64xf32>
    %65 = arith.mulf %59, %64 : vector<2x8x64xf32>
    %66 = vector.shape_cast %65 : vector<2x8x64xf32> to vector<16x64xf32>
    %c0_21 = arith.constant 0 : index
    %c0_22 = arith.constant 0 : index
    %c0_23 = arith.constant 0 : index
    %67 = vector.load %arg6[%c0_21, %c0_22, %c0_23] : memref<3x64x20xf32, #tpu.memory_space<vmem>>, vector<1x64x20xf32>
    %68 = vector.shape_cast %67 : vector<1x64x20xf32> to vector<64x20xf32>
    %cst_24 = arith.constant dense<0.000000e+00> : vector<16x20xf32>
    %69 = tpu.matmul %66, %68, %cst_24 {dimension_numbers = #tpu.dot_dimension_numbers<[1], [0], [0], [1], [0, 0, 1, 1], [], []>} : vector<16x64xf32>, vector<64x20xf32>, vector<16x20xf32> -> vector<16x20xf32>
    %70 = vector.extract_strided_slice %69 {offsets = [0, 0], sizes = [16, 4], strides = [1, 1]} : vector<16x20xf32> to vector<16x4xf32>
    %71 = vector.extract_strided_slice %69 {offsets = [0, 4], sizes = [16, 8], strides = [1, 1]} : vector<16x20xf32> to vector<16x8xf32>
    %72 = vector.shape_cast %71 : vector<16x8xf32> to vector<2x8x8xf32>
    %73 = vector.extract_strided_slice %69 {offsets = [0, 12], sizes = [16, 8], strides = [1, 1]} : vector<16x20xf32> to vector<16x8xf32>
    %74 = vector.shape_cast %73 : vector<16x8xf32> to vector<2x8x8xf32>
    %c0_25 = arith.constant 0 : index
    %c0_26 = arith.constant 0 : index
    %c0_27 = arith.constant 0 : index
    %75 = vector.load %arg7[%c0_25, %c0_26, %c0_27] : memref<3x4x64xf32, #tpu.memory_space<vmem>>, vector<1x4x64xf32>
    %76 = vector.shape_cast %75 : vector<1x4x64xf32> to vector<4x64xf32>
    %cst_28 = arith.constant dense<0.000000e+00> : vector<16x64xf32>
    %77 = tpu.matmul %70, %76, %cst_28 {dimension_numbers = #tpu.dot_dimension_numbers<[1], [0], [0], [1], [0, 0, 1, 1], [], []>} : vector<16x4xf32>, vector<4x64xf32>, vector<16x64xf32> -> vector<16x64xf32>
    %c0_29 = arith.constant 0 : index
    %c0_30 = arith.constant 0 : index
    %c0_31 = arith.constant 0 : index
    %78 = vector.load %arg8[%c0_29, %c0_30, %c0_31] : memref<3x1x64xf32, #tpu.memory_space<vmem>>, vector<1x1x64xf32>
    %79 = vector.shape_cast %78 : vector<1x1x64xf32> to vector<1x64xf32>
    %80 = vector.broadcast %79 : vector<1x64xf32> to vector<16x64xf32>
    %81 = arith.addf %77, %80 : vector<16x64xf32>
    %cst_32 = arith.constant 2.000000e+01 : f32
    %82 = vector.broadcast %cst_32 : f32 to vector<16x64xf32>
    %83 = arith.cmpf ogt, %81, %82 : vector<16x64xf32>
    %cst_33 = arith.constant 2.000000e+01 : f32
    %84 = vector.broadcast %cst_33 : f32 to vector<16x64xf32>
    %85 = arith.minimumf %81, %84 : vector<16x64xf32>
    %86 = math.exp %85 : vector<16x64xf32>
    %87 = math.log1p %86 : vector<16x64xf32>
    %88 = arith.select %83, %81, %87 : vector<16x64xi1>, vector<16x64xf32>
    %89 = vector.shape_cast %88 : vector<16x64xf32> to vector<2x8x64xf32>
    %c0_34 = arith.constant 0 : index
    %c0_35 = arith.constant 0 : index
    %c0_36 = arith.constant 0 : index
    %90 = vector.load %arg9[%c0_34, %c0_35, %c0_36] : memref<3x8x64xf32, #tpu.memory_space<vmem>>, vector<1x8x64xf32>
    %91 = vector.shape_cast %90 : vector<1x8x64xf32> to vector<8x64xf32>
    %92 = vector.shape_cast %91 : vector<8x64xf32> to vector<1x1x8x64xf32>
    %93 = vector.shape_cast %89 : vector<2x8x64xf32> to vector<2x8x1x64xf32>
    %94 = vector.broadcast %92 : vector<1x1x8x64xf32> to vector<2x8x8x64xf32>
    %95 = vector.broadcast %93 : vector<2x8x1x64xf32> to vector<2x8x8x64xf32>
    %96 = arith.mulf %94, %95 : vector<2x8x8x64xf32>
    %97 = math.exp %96 : vector<2x8x8x64xf32>
    %98 = arith.mulf %89, %65 : vector<2x8x64xf32>
    %99 = vector.shape_cast %72 : vector<2x8x8xf32> to vector<2x8x8x1xf32>
    %100 = vector.shape_cast %98 : vector<2x8x64xf32> to vector<2x8x1x64xf32>
    %101 = vector.broadcast %99 : vector<2x8x8x1xf32> to vector<2x8x8x64xf32>
    %102 = vector.broadcast %100 : vector<2x8x1x64xf32> to vector<2x8x8x64xf32>
    %103 = arith.mulf %101, %102 : vector<2x8x8x64xf32>
    %cst_37 = arith.constant 0.000000e+00 : f32
    %104 = vector.broadcast %cst_37 : f32 to vector<2x8x64xf32>
    %105 = vector.extract_strided_slice %97 {offsets = [0, 0, 0, 0], sizes = [2, 1, 8, 64], strides = [1, 1, 1, 1]} : vector<2x8x8x64xf32> to vector<2x1x8x64xf32>
    %106 = vector.shape_cast %105 : vector<2x1x8x64xf32> to vector<2x8x64xf32>
    %107 = arith.mulf %106, %104 : vector<2x8x64xf32>
    %108 = vector.extract_strided_slice %103 {offsets = [0, 0, 0, 0], sizes = [2, 1, 8, 64], strides = [1, 1, 1, 1]} : vector<2x8x8x64xf32> to vector<2x1x8x64xf32>
    %109 = vector.shape_cast %108 : vector<2x1x8x64xf32> to vector<2x8x64xf32>
    %110 = arith.addf %107, %109 : vector<2x8x64xf32>
    %111 = vector.extract_strided_slice %97 {offsets = [0, 1, 0, 0], sizes = [2, 1, 8, 64], strides = [1, 1, 1, 1]} : vector<2x8x8x64xf32> to vector<2x1x8x64xf32>
    %112 = vector.shape_cast %111 : vector<2x1x8x64xf32> to vector<2x8x64xf32>
    %113 = arith.mulf %112, %110 : vector<2x8x64xf32>
    %114 = vector.extract_strided_slice %103 {offsets = [0, 1, 0, 0], sizes = [2, 1, 8, 64], strides = [1, 1, 1, 1]} : vector<2x8x8x64xf32> to vector<2x1x8x64xf32>
    %115 = vector.shape_cast %114 : vector<2x1x8x64xf32> to vector<2x8x64xf32>
    %116 = arith.addf %113, %115 : vector<2x8x64xf32>
    %117 = vector.extract_strided_slice %97 {offsets = [0, 2, 0, 0], sizes = [2, 1, 8, 64], strides = [1, 1, 1, 1]} : vector<2x8x8x64xf32> to vector<2x1x8x64xf32>
    %118 = vector.shape_cast %117 : vector<2x1x8x64xf32> to vector<2x8x64xf32>
    %119 = arith.mulf %118, %116 : vector<2x8x64xf32>
    %120 = vector.extract_strided_slice %103 {offsets = [0, 2, 0, 0], sizes = [2, 1, 8, 64], strides = [1, 1, 1, 1]} : vector<2x8x8x64xf32> to vector<2x1x8x64xf32>
    %121 = vector.shape_cast %120 : vector<2x1x8x64xf32> to vector<2x8x64xf32>
    %122 = arith.addf %119, %121 : vector<2x8x64xf32>
    %123 = vector.extract_strided_slice %97 {offsets = [0, 3, 0, 0], sizes = [2, 1, 8, 64], strides = [1, 1, 1, 1]} : vector<2x8x8x64xf32> to vector<2x1x8x64xf32>
    %124 = vector.shape_cast %123 : vector<2x1x8x64xf32> to vector<2x8x64xf32>
    %125 = arith.mulf %124, %122 : vector<2x8x64xf32>
    %126 = vector.extract_strided_slice %103 {offsets = [0, 3, 0, 0], sizes = [2, 1, 8, 64], strides = [1, 1, 1, 1]} : vector<2x8x8x64xf32> to vector<2x1x8x64xf32>
    %127 = vector.shape_cast %126 : vector<2x1x8x64xf32> to vector<2x8x64xf32>
    %128 = arith.addf %125, %127 : vector<2x8x64xf32>
    %129 = vector.extract_strided_slice %97 {offsets = [0, 4, 0, 0], sizes = [2, 1, 8, 64], strides = [1, 1, 1, 1]} : vector<2x8x8x64xf32> to vector<2x1x8x64xf32>
    %130 = vector.shape_cast %129 : vector<2x1x8x64xf32> to vector<2x8x64xf32>
    %131 = arith.mulf %130, %128 : vector<2x8x64xf32>
    %132 = vector.extract_strided_slice %103 {offsets = [0, 4, 0, 0], sizes = [2, 1, 8, 64], strides = [1, 1, 1, 1]} : vector<2x8x8x64xf32> to vector<2x1x8x64xf32>
    %133 = vector.shape_cast %132 : vector<2x1x8x64xf32> to vector<2x8x64xf32>
    %134 = arith.addf %131, %133 : vector<2x8x64xf32>
    %135 = vector.extract_strided_slice %97 {offsets = [0, 5, 0, 0], sizes = [2, 1, 8, 64], strides = [1, 1, 1, 1]} : vector<2x8x8x64xf32> to vector<2x1x8x64xf32>
    %136 = vector.shape_cast %135 : vector<2x1x8x64xf32> to vector<2x8x64xf32>
    %137 = arith.mulf %136, %134 : vector<2x8x64xf32>
    %138 = vector.extract_strided_slice %103 {offsets = [0, 5, 0, 0], sizes = [2, 1, 8, 64], strides = [1, 1, 1, 1]} : vector<2x8x8x64xf32> to vector<2x1x8x64xf32>
    %139 = vector.shape_cast %138 : vector<2x1x8x64xf32> to vector<2x8x64xf32>
    %140 = arith.addf %137, %139 : vector<2x8x64xf32>
    %141 = vector.extract_strided_slice %97 {offsets = [0, 6, 0, 0], sizes = [2, 1, 8, 64], strides = [1, 1, 1, 1]} : vector<2x8x8x64xf32> to vector<2x1x8x64xf32>
    %142 = vector.shape_cast %141 : vector<2x1x8x64xf32> to vector<2x8x64xf32>
    %143 = arith.mulf %142, %140 : vector<2x8x64xf32>
    %144 = vector.extract_strided_slice %103 {offsets = [0, 6, 0, 0], sizes = [2, 1, 8, 64], strides = [1, 1, 1, 1]} : vector<2x8x8x64xf32> to vector<2x1x8x64xf32>
    %145 = vector.shape_cast %144 : vector<2x1x8x64xf32> to vector<2x8x64xf32>
    %146 = arith.addf %143, %145 : vector<2x8x64xf32>
    %147 = vector.extract_strided_slice %97 {offsets = [0, 7, 0, 0], sizes = [2, 1, 8, 64], strides = [1, 1, 1, 1]} : vector<2x8x8x64xf32> to vector<2x1x8x64xf32>
    %148 = vector.shape_cast %147 : vector<2x1x8x64xf32> to vector<2x8x64xf32>
    %149 = arith.mulf %148, %146 : vector<2x8x64xf32>
    %150 = vector.extract_strided_slice %103 {offsets = [0, 7, 0, 0], sizes = [2, 1, 8, 64], strides = [1, 1, 1, 1]} : vector<2x8x8x64xf32> to vector<2x1x8x64xf32>
    %151 = vector.shape_cast %150 : vector<2x1x8x64xf32> to vector<2x8x64xf32>
    %152 = arith.addf %149, %151 : vector<2x8x64xf32>
    %153 = vector.shape_cast %110 : vector<2x8x64xf32> to vector<2x1x8x64xf32>
    %154 = vector.shape_cast %116 : vector<2x8x64xf32> to vector<2x1x8x64xf32>
    %155 = vector.shape_cast %122 : vector<2x8x64xf32> to vector<2x1x8x64xf32>
    %156 = vector.shape_cast %128 : vector<2x8x64xf32> to vector<2x1x8x64xf32>
    %157 = vector.shape_cast %134 : vector<2x8x64xf32> to vector<2x1x8x64xf32>
    %158 = vector.shape_cast %140 : vector<2x8x64xf32> to vector<2x1x8x64xf32>
    %159 = vector.shape_cast %146 : vector<2x8x64xf32> to vector<2x1x8x64xf32>
    %160 = vector.shape_cast %152 : vector<2x8x64xf32> to vector<2x1x8x64xf32>
    %161 = tpu.concatenate %153, %154, %155, %156, %157, %158, %159, %160 in 1 : vector<2x1x8x64xf32>, vector<2x1x8x64xf32>, vector<2x1x8x64xf32>, vector<2x1x8x64xf32>, vector<2x1x8x64xf32>, vector<2x1x8x64xf32>, vector<2x1x8x64xf32>, vector<2x1x8x64xf32> -> vector<2x8x8x64xf32>
    %162 = vector.shape_cast %74 : vector<2x8x8xf32> to vector<2x8x8x1xf32>
    %163 = vector.broadcast %162 : vector<2x8x8x1xf32> to vector<2x8x8x64xf32>
    %164 = arith.mulf %163, %161 : vector<2x8x8x64xf32>
    %cst_38 = arith.constant dense<0.000000e+00> : vector<2x8x64xf32>
    %165 = vector.multi_reduction <add>, %164, %cst_38 [2] : vector<2x8x8x64xf32> to vector<2x8x64xf32>
    %166 = vector.shape_cast %165 : vector<2x8x64xf32> to vector<16x64xf32>
    %c0_39 = arith.constant 0 : index
    %c0_40 = arith.constant 0 : index
    %c0_41 = arith.constant 0 : index
    %167 = vector.load %arg10[%c0_39, %c0_40, %c0_41] : memref<3x1x64xf32, #tpu.memory_space<vmem>>, vector<1x1x64xf32>
    %168 = vector.shape_cast %167 : vector<1x1x64xf32> to vector<1x64xf32>
    %169 = vector.broadcast %168 : vector<1x64xf32> to vector<16x64xf32>
    %170 = arith.mulf %169, %66 : vector<16x64xf32>
    %171 = arith.addf %166, %170 : vector<16x64xf32>
    %172 = arith.negf %23 : vector<16x64xf32>
    %173 = math.exp %172 : vector<16x64xf32>
    %cst_42 = arith.constant 1.000000e+00 : f32
    %174 = vector.broadcast %cst_42 : f32 to vector<16x64xf32>
    %175 = arith.addf %174, %173 : vector<16x64xf32>
    %176 = arith.divf %174, %175 : vector<16x64xf32>
    %177 = arith.mulf %23, %176 : vector<16x64xf32>
    %178 = arith.mulf %171, %177 : vector<16x64xf32>
    %c0_43 = arith.constant 0 : index
    %c0_44 = arith.constant 0 : index
    %c0_45 = arith.constant 0 : index
    %179 = vector.load %arg11[%c0_43, %c0_44, %c0_45] : memref<3x64x32xf32, #tpu.memory_space<vmem>>, vector<1x64x32xf32>
    %180 = vector.shape_cast %179 : vector<1x64x32xf32> to vector<64x32xf32>
    %cst_46 = arith.constant dense<0.000000e+00> : vector<16x32xf32>
    %181 = tpu.matmul %178, %180, %cst_46 {dimension_numbers = #tpu.dot_dimension_numbers<[1], [0], [0], [1], [0, 0, 1, 1], [], []>} : vector<16x64xf32>, vector<64x32xf32>, vector<16x32xf32> -> vector<16x32xf32>
    %182 = vector.shape_cast %181 : vector<16x32xf32> to vector<2x8x32xf32>
    %183 = arith.addf %0, %182 : vector<2x8x32xf32>
    %c0_47 = arith.constant 0 : index
    %c0_48 = arith.constant 0 : index
    %c0_49 = arith.constant 0 : index
    %c0_50 = arith.constant 0 : index
    %184 = vector.load %arg19[%c0_47, %c0_48, %c0_49, %c0_50] : memref<3x2x8x32xf32, #tpu.memory_space<vmem>>, vector<1x2x8x32xf32>
    %185 = vector.shape_cast %184 : vector<1x2x8x32xf32> to vector<2x8x32xf32>
    %186 = vector.shape_cast %183 : vector<2x8x32xf32> to vector<1x2x8x32xf32>
    tpu.vector_store %arg19[%c0_47, %c0_48, %c0_49, %c0_50], %186 {strides = array<i32>} : memref<3x2x8x32xf32, #tpu.memory_space<vmem>>, vector<1x2x8x32xf32>,
    %187 = vector.shape_cast %183 : vector<2x8x32xf32> to vector<16x32xf32>
    %cst_51 = arith.constant dense<0.000000e+00> : vector<16xf32>
    %188 = vector.multi_reduction <add>, %187, %cst_51 [1] : vector<16x32xf32> to vector<16xf32>
    %189 = vector.shape_cast %188 : vector<16xf32> to vector<16x1xf32>
    %cst_52 = arith.constant 3.200000e+01 : f32
    %190 = vector.broadcast %cst_52 : f32 to vector<16x1xf32>
    %191 = arith.divf %189, %190 : vector<16x1xf32>
    %192 = vector.broadcast %191 : vector<16x1xf32> to vector<16x32xf32>
    %193 = arith.subf %187, %192 : vector<16x32xf32>
    %194 = arith.mulf %193, %193 : vector<16x32xf32>
    %cst_53 = arith.constant dense<0.000000e+00> : vector<16xf32>
    %195 = vector.multi_reduction <add>, %194, %cst_53 [1] : vector<16x32xf32> to vector<16xf32>
    %196 = vector.shape_cast %195 : vector<16xf32> to vector<16x1xf32>
    %cst_54 = arith.constant 3.200000e+01 : f32
    %197 = vector.broadcast %cst_54 : f32 to vector<16x1xf32>
    %198 = arith.divf %196, %197 : vector<16x1xf32>
    %199 = vector.broadcast %191 : vector<16x1xf32> to vector<16x32xf32>
    %200 = arith.subf %187, %199 : vector<16x32xf32>
    %cst_55 = arith.constant 9.99999974E-6 : f32
    %201 = vector.broadcast %cst_55 : f32 to vector<16x1xf32>
    %202 = arith.addf %198, %201 : vector<16x1xf32>
    %203 = math.rsqrt %202 : vector<16x1xf32>
    %204 = vector.broadcast %203 : vector<16x1xf32> to vector<16x32xf32>
    %205 = arith.mulf %200, %204 : vector<16x32xf32>
    %c0_56 = arith.constant 0 : index
    %c0_57 = arith.constant 0 : index
    %c0_58 = arith.constant 0 : index
    %206 = vector.load %arg12[%c0_56, %c0_57, %c0_58] : memref<2x1x32xf32, #tpu.memory_space<vmem>>, vector<1x1x32xf32>
    %207 = vector.shape_cast %206 : vector<1x1x32xf32> to vector<1x32xf32>
    %208 = vector.broadcast %207 : vector<1x32xf32> to vector<16x32xf32>
    %209 = arith.mulf %205, %208 : vector<16x32xf32>
    %c0_59 = arith.constant 0 : index
    %c0_60 = arith.constant 0 : index
    %c0_61 = arith.constant 0 : index
    %210 = vector.load %arg13[%c0_59, %c0_60, %c0_61] : memref<2x1x32xf32, #tpu.memory_space<vmem>>, vector<1x1x32xf32>
    %211 = vector.shape_cast %210 : vector<1x1x32xf32> to vector<1x32xf32>
    %212 = vector.broadcast %211 : vector<1x32xf32> to vector<16x32xf32>
    %213 = arith.addf %209, %212 : vector<16x32xf32>
    %c0_62 = arith.constant 0 : index
    %c0_63 = arith.constant 0 : index
    %c0_64 = arith.constant 0 : index
    %214 = vector.load %arg14[%c0_62, %c0_63, %c0_64] : memref<2x32x96xf32, #tpu.memory_space<vmem>>, vector<1x32x96xf32>
    %215 = vector.shape_cast %214 : vector<1x32x96xf32> to vector<32x96xf32>
    %cst_65 = arith.constant dense<0.000000e+00> : vector<16x96xf32>
    %216 = tpu.matmul %213, %215, %cst_65 {dimension_numbers = #tpu.dot_dimension_numbers<[1], [0], [0], [1], [0, 0, 1, 1], [], []>} : vector<16x32xf32>, vector<32x96xf32>, vector<16x96xf32> -> vector<16x96xf32>
    %c0_66 = arith.constant 0 : index
    %c0_67 = arith.constant 0 : index
    %c0_68 = arith.constant 0 : index
    %217 = vector.load %arg15[%c0_66, %c0_67, %c0_68] : memref<2x1x96xf32, #tpu.memory_space<vmem>>, vector<1x1x96xf32>
    %218 = vector.shape_cast %217 : vector<1x1x96xf32> to vector<1x96xf32>
    %219 = vector.broadcast %218 : vector<1x96xf32> to vector<16x96xf32>
    %220 = arith.addf %216, %219 : vector<16x96xf32>
    %221 = vector.extract_strided_slice %220 {offsets = [0, 0], sizes = [16, 32], strides = [1, 1]} : vector<16x96xf32> to vector<16x32xf32>
    %222 = vector.shape_cast %221 : vector<16x32xf32> to vector<2x8x4x8xf32>
    %223 = tpu.transpose %222, [0, 2, 1, 3] : vector<2x8x4x8xf32> -> vector<2x4x8x8xf32>
    %224 = vector.shape_cast %223 : vector<2x4x8x8xf32> to vector<8x8x8xf32>
    %225 = vector.extract_strided_slice %220 {offsets = [0, 32], sizes = [16, 32], strides = [1, 1]} : vector<16x96xf32> to vector<16x32xf32>
    %226 = vector.shape_cast %225 : vector<16x32xf32> to vector<2x8x4x8xf32>
    %227 = tpu.transpose %226, [0, 2, 1, 3] : vector<2x8x4x8xf32> -> vector<2x4x8x8xf32>
    %228 = vector.shape_cast %227 : vector<2x4x8x8xf32> to vector<8x8x8xf32>
    %229 = vector.extract_strided_slice %220 {offsets = [0, 64], sizes = [16, 32], strides = [1, 1]} : vector<16x96xf32> to vector<16x32xf32>
    %230 = vector.shape_cast %229 : vector<16x32xf32> to vector<2x8x4x8xf32>
    %231 = tpu.transpose %230, [0, 2, 1, 3] : vector<2x8x4x8xf32> -> vector<2x4x8x8xf32>
    %232 = vector.shape_cast %231 : vector<2x4x8x8xf32> to vector<8x8x8xf32>
    "tpu.trace_start"() <{level = 10 : i32, message = "hqd,hkd->hqk"}> : () -> ()
    %cst_69 = arith.constant dense<0.000000e+00> : vector<8x8x8xf32>
    %233 = tpu.matmul %224, %228, %cst_69 {dimension_numbers = #tpu.dot_dimension_numbers<[2], [2], [1], [1], [0, 0, 0, 1, 1, 1], [0], [0]>} : vector<8x8x8xf32>, vector<8x8x8xf32>, vector<8x8x8xf32> -> vector<8x8x8xf32>
    "tpu.trace_stop"() : () -> ()
    %cst_70 = arith.constant 0.353553385 : f32
    %234 = vector.broadcast %cst_70 : f32 to vector<8x8x8xf32>
    %235 = arith.mulf %233, %234 : vector<8x8x8xf32>
    %236 = vector.shape_cast %3 : vector<8x8xi1> to vector<1x8x8xi1>
    %cst_71 = arith.constant -1.000000e+30 : f32
    %237 = vector.shape_cast %236 : vector<1x8x8xi1> to vector<1x8x8xi1>
    %238 = vector.broadcast %237 : vector<1x8x8xi1> to vector<8x8x8xi1>
    %239 = vector.broadcast %cst_71 : f32 to vector<8x8x8xf32>
    %240 = arith.select %238, %235, %239 : vector<8x8x8xi1>, vector<8x8x8xf32>
    %cst_72 = arith.constant dense<0xFF800000> : vector<8x8xf32>
    %241 = vector.multi_reduction <maximumf>, %240, %cst_72 [2] : vector<8x8x8xf32> to vector<8x8xf32>
    %242 = vector.shape_cast %241 : vector<8x8xf32> to vector<8x8x1xf32>
    %243 = vector.broadcast %242 : vector<8x8x1xf32> to vector<8x8x8xf32>
    %244 = arith.subf %240, %243 : vector<8x8x8xf32>
    %245 = math.exp %244 : vector<8x8x8xf32>
    %cst_73 = arith.constant dense<0.000000e+00> : vector<8x8xf32>
    %246 = vector.multi_reduction <add>, %245, %cst_73 [2] : vector<8x8x8xf32> to vector<8x8xf32>
    %247 = vector.shape_cast %246 : vector<8x8xf32> to vector<8x8x1xf32>
    %248 = vector.broadcast %247 : vector<8x8x1xf32> to vector<8x8x8xf32>
    %249 = arith.divf %245, %248 : vector<8x8x8xf32>
    "tpu.trace_start"() <{level = 10 : i32, message = "hqk,hkd->hqd"}> : () -> ()
    %cst_74 = arith.constant dense<0.000000e+00> : vector<8x8x8xf32>
    %250 = tpu.matmul %249, %232, %cst_74 {dimension_numbers = #tpu.dot_dimension_numbers<[2], [1], [1], [2], [0, 0, 0, 1, 1, 2], [0], [0]>} : vector<8x8x8xf32>, vector<8x8x8xf32>, vector<8x8x8xf32> -> vector<8x8x8xf32>
    "tpu.trace_stop"() : () -> ()
    %251 = vector.shape_cast %250 : vector<8x8x8xf32> to vector<2x4x8x8xf32>
    %252 = tpu.transpose %251, [0, 2, 1, 3] : vector<2x4x8x8xf32> -> vector<2x8x4x8xf32>
    %253 = vector.shape_cast %252 : vector<2x8x4x8xf32> to vector<16x32xf32>
    %c0_75 = arith.constant 0 : index
    %c0_76 = arith.constant 0 : index
    %c0_77 = arith.constant 0 : index
    %254 = vector.load %arg16[%c0_75, %c0_76, %c0_77] : memref<2x32x32xf32, #tpu.memory_space<vmem>>, vector<1x32x32xf32>
    %255 = vector.shape_cast %254 : vector<1x32x32xf32> to vector<32x32xf32>
    %cst_78 = arith.constant dense<0.000000e+00> : vector<16x32xf32>
    %256 = tpu.matmul %253, %255, %cst_78 {dimension_numbers = #tpu.dot_dimension_numbers<[1], [0], [0], [1], [0, 0, 1, 1], [], []>} : vector<16x32xf32>, vector<32x32xf32>, vector<16x32xf32> -> vector<16x32xf32>
    %c0_79 = arith.constant 0 : index
    %c0_80 = arith.constant 0 : index
    %c0_81 = arith.constant 0 : index
    %257 = vector.load %arg17[%c0_79, %c0_80, %c0_81] : memref<2x1x32xf32, #tpu.memory_space<vmem>>, vector<1x1x32xf32>
    %258 = vector.shape_cast %257 : vector<1x1x32xf32> to vector<1x32xf32>
    %259 = vector.broadcast %258 : vector<1x32xf32> to vector<16x32xf32>
    %260 = arith.addf %256, %259 : vector<16x32xf32>
    %261 = vector.shape_cast %260 : vector<16x32xf32> to vector<2x8x32xf32>
    %262 = vector.shape_cast %261 : vector<2x8x32xf32> to vector<16x32xf32>
    %263 = arith.mulf %262, %262 : vector<16x32xf32>
    %cst_82 = arith.constant dense<0.000000e+00> : vector<16xf32>
    %264 = vector.multi_reduction <add>, %263, %cst_82 [1] : vector<16x32xf32> to vector<16xf32>
    %265 = vector.shape_cast %264 : vector<16xf32> to vector<16x1xf32>
    %cst_83 = arith.constant 3.200000e+01 : f32
    %266 = vector.broadcast %cst_83 : f32 to vector<16x1xf32>
    %267 = arith.divf %265, %266 : vector<16x1xf32>
    %cst_84 = arith.constant 9.99999974E-6 : f32
    %268 = vector.broadcast %cst_84 : f32 to vector<16x1xf32>
    %269 = arith.addf %267, %268 : vector<16x1xf32>
    %270 = math.rsqrt %269 : vector<16x1xf32>
    %271 = vector.broadcast %270 : vector<16x1xf32> to vector<16x32xf32>
    %272 = arith.mulf %262, %271 : vector<16x32xf32>
    %c1 = arith.constant 1 : index
    %c0_85 = arith.constant 0 : index
    %c0_86 = arith.constant 0 : index
    %273 = vector.load %arg2[%c1, %c0_85, %c0_86] : memref<3x1x32xf32, #tpu.memory_space<vmem>>, vector<1x1x32xf32>
    %274 = vector.shape_cast %273 : vector<1x1x32xf32> to vector<1x32xf32>
    %275 = vector.broadcast %274 : vector<1x32xf32> to vector<16x32xf32>
    %276 = arith.mulf %272, %275 : vector<16x32xf32>
    %c1_87 = arith.constant 1 : index
    %c0_88 = arith.constant 0 : index
    %c0_89 = arith.constant 0 : index
    %277 = vector.load %arg3[%c1_87, %c0_88, %c0_89] : memref<3x32x128xf32, #tpu.memory_space<vmem>>, vector<1x32x128xf32>
    %278 = vector.shape_cast %277 : vector<1x32x128xf32> to vector<32x128xf32>
    %cst_90 = arith.constant dense<0.000000e+00> : vector<16x128xf32>
    %279 = tpu.matmul %276, %278, %cst_90 {dimension_numbers = #tpu.dot_dimension_numbers<[1], [0], [0], [1], [0, 0, 1, 1], [], []>} : vector<16x32xf32>, vector<32x128xf32>, vector<16x128xf32> -> vector<16x128xf32>
    %280 = vector.extract_strided_slice %279 {offsets = [0, 0], sizes = [16, 64], strides = [1, 1]} : vector<16x128xf32> to vector<16x64xf32>
    %281 = vector.extract_strided_slice %279 {offsets = [0, 64], sizes = [16, 64], strides = [1, 1]} : vector<16x128xf32> to vector<16x64xf32>
    %282 = vector.shape_cast %280 : vector<16x64xf32> to vector<2x8x64xf32>
    %c1_91 = arith.constant 1 : index
    %c0_92 = arith.constant 0 : index
    %c0_93 = arith.constant 0 : index
    %283 = vector.load %arg4[%c1_91, %c0_92, %c0_93] : memref<3x4x64xf32, #tpu.memory_space<vmem>>, vector<1x4x64xf32>
    %284 = vector.shape_cast %283 : vector<1x4x64xf32> to vector<4x64xf32>
    %285 = vector.extract_strided_slice %284 {offsets = [3, 0], sizes = [1, 64], strides = [1, 1]} : vector<4x64xf32> to vector<1x64xf32>
    %286 = vector.shape_cast %285 : vector<1x64xf32> to vector<1x1x64xf32>
    %287 = vector.broadcast %286 : vector<1x1x64xf32> to vector<2x8x64xf32>
    %288 = arith.mulf %282, %287 : vector<2x8x64xf32>
    %cst_94 = arith.constant 0.000000e+00 : f32
    %289 = vector.broadcast %cst_94 : f32 to vector<2x3x64xf32>
    %290 = vector.extract_strided_slice %282 {offsets = [0, 0, 0], sizes = [2, 5, 64], strides = [1, 1, 1]} : vector<2x8x64xf32> to vector<2x5x64xf32>
    %291 = tpu.concatenate %289, %290 in 1 : vector<2x3x64xf32>, vector<2x5x64xf32> -> vector<2x8x64xf32>
    %292 = vector.extract_strided_slice %284 {offsets = [0, 0], sizes = [1, 64], strides = [1, 1]} : vector<4x64xf32> to vector<1x64xf32>
    %293 = vector.shape_cast %292 : vector<1x64xf32> to vector<1x1x64xf32>
    %294 = vector.broadcast %293 : vector<1x1x64xf32> to vector<2x8x64xf32>
    %295 = arith.mulf %291, %294 : vector<2x8x64xf32>
    %296 = arith.addf %288, %295 : vector<2x8x64xf32>
    %cst_95 = arith.constant 0.000000e+00 : f32
    %297 = vector.broadcast %cst_95 : f32 to vector<2x2x64xf32>
    %298 = vector.extract_strided_slice %282 {offsets = [0, 0, 0], sizes = [2, 6, 64], strides = [1, 1, 1]} : vector<2x8x64xf32> to vector<2x6x64xf32>
    %299 = tpu.concatenate %297, %298 in 1 : vector<2x2x64xf32>, vector<2x6x64xf32> -> vector<2x8x64xf32>
    %300 = vector.extract_strided_slice %284 {offsets = [1, 0], sizes = [1, 64], strides = [1, 1]} : vector<4x64xf32> to vector<1x64xf32>
    %301 = vector.shape_cast %300 : vector<1x64xf32> to vector<1x1x64xf32>
    %302 = vector.broadcast %301 : vector<1x1x64xf32> to vector<2x8x64xf32>
    %303 = arith.mulf %299, %302 : vector<2x8x64xf32>
    %304 = arith.addf %296, %303 : vector<2x8x64xf32>
    %cst_96 = arith.constant 0.000000e+00 : f32
    %305 = vector.broadcast %cst_96 : f32 to vector<2x1x64xf32>
    %306 = vector.extract_strided_slice %282 {offsets = [0, 0, 0], sizes = [2, 7, 64], strides = [1, 1, 1]} : vector<2x8x64xf32> to vector<2x7x64xf32>
    %307 = tpu.concatenate %305, %306 in 1 : vector<2x1x64xf32>, vector<2x7x64xf32> -> vector<2x8x64xf32>
    %308 = vector.extract_strided_slice %284 {offsets = [2, 0], sizes = [1, 64], strides = [1, 1]} : vector<4x64xf32> to vector<1x64xf32>
    %309 = vector.shape_cast %308 : vector<1x64xf32> to vector<1x1x64xf32>
    %310 = vector.broadcast %309 : vector<1x1x64xf32> to vector<2x8x64xf32>
    %311 = arith.mulf %307, %310 : vector<2x8x64xf32>
    %312 = arith.addf %304, %311 : vector<2x8x64xf32>
    %c1_97 = arith.constant 1 : index
    %c0_98 = arith.constant 0 : index
    %c0_99 = arith.constant 0 : index
    %313 = vector.load %arg5[%c1_97, %c0_98, %c0_99] : memref<3x1x64xf32, #tpu.memory_space<vmem>>, vector<1x1x64xf32>
    %314 = vector.shape_cast %313 : vector<1x1x64xf32> to vector<1x64xf32>
    %315 = vector.shape_cast %314 : vector<1x64xf32> to vector<1x1x64xf32>
    %316 = vector.broadcast %315 : vector<1x1x64xf32> to vector<2x8x64xf32>
    %317 = arith.addf %312, %316 : vector<2x8x64xf32>
    %318 = arith.negf %317 : vector<2x8x64xf32>
    %319 = math.exp %318 : vector<2x8x64xf32>
    %cst_100 = arith.constant 1.000000e+00 : f32
    %320 = vector.broadcast %cst_100 : f32 to vector<2x8x64xf32>
    %321 = arith.addf %320, %319 : vector<2x8x64xf32>
    %322 = arith.divf %320, %321 : vector<2x8x64xf32>
    %323 = arith.mulf %317, %322 : vector<2x8x64xf32>
    %324 = vector.shape_cast %323 : vector<2x8x64xf32> to vector<16x64xf32>
    %c1_101 = arith.constant 1 : index
    %c0_102 = arith.constant 0 : index
    %c0_103 = arith.constant 0 : index
    %325 = vector.load %arg6[%c1_101, %c0_102, %c0_103] : memref<3x64x20xf32, #tpu.memory_space<vmem>>, vector<1x64x20xf32>
    %326 = vector.shape_cast %325 : vector<1x64x20xf32> to vector<64x20xf32>
    %cst_104 = arith.constant dense<0.000000e+00> : vector<16x20xf32>
    %327 = tpu.matmul %324, %326, %cst_104 {dimension_numbers = #tpu.dot_dimension_numbers<[1], [0], [0], [1], [0, 0, 1, 1], [], []>} : vector<16x64xf32>, vector<64x20xf32>, vector<16x20xf32> -> vector<16x20xf32>
    %328 = vector.extract_strided_slice %327 {offsets = [0, 0], sizes = [16, 4], strides = [1, 1]} : vector<16x20xf32> to vector<16x4xf32>
    %329 = vector.extract_strided_slice %327 {offsets = [0, 4], sizes = [16, 8], strides = [1, 1]} : vector<16x20xf32> to vector<16x8xf32>
    %330 = vector.shape_cast %329 : vector<16x8xf32> to vector<2x8x8xf32>
    %331 = vector.extract_strided_slice %327 {offsets = [0, 12], sizes = [16, 8], strides = [1, 1]} : vector<16x20xf32> to vector<16x8xf32>
    %332 = vector.shape_cast %331 : vector<16x8xf32> to vector<2x8x8xf32>
    %c1_105 = arith.constant 1 : index
    %c0_106 = arith.constant 0 : index
    %c0_107 = arith.constant 0 : index
    %333 = vector.load %arg7[%c1_105, %c0_106, %c0_107] : memref<3x4x64xf32, #tpu.memory_space<vmem>>, vector<1x4x64xf32>
    %334 = vector.shape_cast %333 : vector<1x4x64xf32> to vector<4x64xf32>
    %cst_108 = arith.constant dense<0.000000e+00> : vector<16x64xf32>
    %335 = tpu.matmul %328, %334, %cst_108 {dimension_numbers = #tpu.dot_dimension_numbers<[1], [0], [0], [1], [0, 0, 1, 1], [], []>} : vector<16x4xf32>, vector<4x64xf32>, vector<16x64xf32> -> vector<16x64xf32>
    %c1_109 = arith.constant 1 : index
    %c0_110 = arith.constant 0 : index
    %c0_111 = arith.constant 0 : index
    %336 = vector.load %arg8[%c1_109, %c0_110, %c0_111] : memref<3x1x64xf32, #tpu.memory_space<vmem>>, vector<1x1x64xf32>
    %337 = vector.shape_cast %336 : vector<1x1x64xf32> to vector<1x64xf32>
    %338 = vector.broadcast %337 : vector<1x64xf32> to vector<16x64xf32>
    %339 = arith.addf %335, %338 : vector<16x64xf32>
    %cst_112 = arith.constant 2.000000e+01 : f32
    %340 = vector.broadcast %cst_112 : f32 to vector<16x64xf32>
    %341 = arith.cmpf ogt, %339, %340 : vector<16x64xf32>
    %cst_113 = arith.constant 2.000000e+01 : f32
    %342 = vector.broadcast %cst_113 : f32 to vector<16x64xf32>
    %343 = arith.minimumf %339, %342 : vector<16x64xf32>
    %344 = math.exp %343 : vector<16x64xf32>
    %345 = math.log1p %344 : vector<16x64xf32>
    %346 = arith.select %341, %339, %345 : vector<16x64xi1>, vector<16x64xf32>
    %347 = vector.shape_cast %346 : vector<16x64xf32> to vector<2x8x64xf32>
    %c1_114 = arith.constant 1 : index
    %c0_115 = arith.constant 0 : index
    %c0_116 = arith.constant 0 : index
    %348 = vector.load %arg9[%c1_114, %c0_115, %c0_116] : memref<3x8x64xf32, #tpu.memory_space<vmem>>, vector<1x8x64xf32>
    %349 = vector.shape_cast %348 : vector<1x8x64xf32> to vector<8x64xf32>
    %350 = vector.shape_cast %349 : vector<8x64xf32> to vector<1x1x8x64xf32>
    %351 = vector.shape_cast %347 : vector<2x8x64xf32> to vector<2x8x1x64xf32>
    %352 = vector.broadcast %350 : vector<1x1x8x64xf32> to vector<2x8x8x64xf32>
    %353 = vector.broadcast %351 : vector<2x8x1x64xf32> to vector<2x8x8x64xf32>
    %354 = arith.mulf %352, %353 : vector<2x8x8x64xf32>
    %355 = math.exp %354 : vector<2x8x8x64xf32>
    %356 = arith.mulf %347, %323 : vector<2x8x64xf32>
    %357 = vector.shape_cast %330 : vector<2x8x8xf32> to vector<2x8x8x1xf32>
    %358 = vector.shape_cast %356 : vector<2x8x64xf32> to vector<2x8x1x64xf32>
    %359 = vector.broadcast %357 : vector<2x8x8x1xf32> to vector<2x8x8x64xf32>
    %360 = vector.broadcast %358 : vector<2x8x1x64xf32> to vector<2x8x8x64xf32>
    %361 = arith.mulf %359, %360 : vector<2x8x8x64xf32>
    %cst_117 = arith.constant 0.000000e+00 : f32
    %362 = vector.broadcast %cst_117 : f32 to vector<2x8x64xf32>
    %363 = vector.extract_strided_slice %355 {offsets = [0, 0, 0, 0], sizes = [2, 1, 8, 64], strides = [1, 1, 1, 1]} : vector<2x8x8x64xf32> to vector<2x1x8x64xf32>
    %364 = vector.shape_cast %363 : vector<2x1x8x64xf32> to vector<2x8x64xf32>
    %365 = arith.mulf %364, %362 : vector<2x8x64xf32>
    %366 = vector.extract_strided_slice %361 {offsets = [0, 0, 0, 0], sizes = [2, 1, 8, 64], strides = [1, 1, 1, 1]} : vector<2x8x8x64xf32> to vector<2x1x8x64xf32>
    %367 = vector.shape_cast %366 : vector<2x1x8x64xf32> to vector<2x8x64xf32>
    %368 = arith.addf %365, %367 : vector<2x8x64xf32>
    %369 = vector.extract_strided_slice %355 {offsets = [0, 1, 0, 0], sizes = [2, 1, 8, 64], strides = [1, 1, 1, 1]} : vector<2x8x8x64xf32> to vector<2x1x8x64xf32>
    %370 = vector.shape_cast %369 : vector<2x1x8x64xf32> to vector<2x8x64xf32>
    %371 = arith.mulf %370, %368 : vector<2x8x64xf32>
    %372 = vector.extract_strided_slice %361 {offsets = [0, 1, 0, 0], sizes = [2, 1, 8, 64], strides = [1, 1, 1, 1]} : vector<2x8x8x64xf32> to vector<2x1x8x64xf32>
    %373 = vector.shape_cast %372 : vector<2x1x8x64xf32> to vector<2x8x64xf32>
    %374 = arith.addf %371, %373 : vector<2x8x64xf32>
    %375 = vector.extract_strided_slice %355 {offsets = [0, 2, 0, 0], sizes = [2, 1, 8, 64], strides = [1, 1, 1, 1]} : vector<2x8x8x64xf32> to vector<2x1x8x64xf32>
    %376 = vector.shape_cast %375 : vector<2x1x8x64xf32> to vector<2x8x64xf32>
    %377 = arith.mulf %376, %374 : vector<2x8x64xf32>
    %378 = vector.extract_strided_slice %361 {offsets = [0, 2, 0, 0], sizes = [2, 1, 8, 64], strides = [1, 1, 1, 1]} : vector<2x8x8x64xf32> to vector<2x1x8x64xf32>
    %379 = vector.shape_cast %378 : vector<2x1x8x64xf32> to vector<2x8x64xf32>
    %380 = arith.addf %377, %379 : vector<2x8x64xf32>
    %381 = vector.extract_strided_slice %355 {offsets = [0, 3, 0, 0], sizes = [2, 1, 8, 64], strides = [1, 1, 1, 1]} : vector<2x8x8x64xf32> to vector<2x1x8x64xf32>
    %382 = vector.shape_cast %381 : vector<2x1x8x64xf32> to vector<2x8x64xf32>
    %383 = arith.mulf %382, %380 : vector<2x8x64xf32>
    %384 = vector.extract_strided_slice %361 {offsets = [0, 3, 0, 0], sizes = [2, 1, 8, 64], strides = [1, 1, 1, 1]} : vector<2x8x8x64xf32> to vector<2x1x8x64xf32>
    %385 = vector.shape_cast %384 : vector<2x1x8x64xf32> to vector<2x8x64xf32>
    %386 = arith.addf %383, %385 : vector<2x8x64xf32>
    %387 = vector.extract_strided_slice %355 {offsets = [0, 4, 0, 0], sizes = [2, 1, 8, 64], strides = [1, 1, 1, 1]} : vector<2x8x8x64xf32> to vector<2x1x8x64xf32>
    %388 = vector.shape_cast %387 : vector<2x1x8x64xf32> to vector<2x8x64xf32>
    %389 = arith.mulf %388, %386 : vector<2x8x64xf32>
    %390 = vector.extract_strided_slice %361 {offsets = [0, 4, 0, 0], sizes = [2, 1, 8, 64], strides = [1, 1, 1, 1]} : vector<2x8x8x64xf32> to vector<2x1x8x64xf32>
    %391 = vector.shape_cast %390 : vector<2x1x8x64xf32> to vector<2x8x64xf32>
    %392 = arith.addf %389, %391 : vector<2x8x64xf32>
    %393 = vector.extract_strided_slice %355 {offsets = [0, 5, 0, 0], sizes = [2, 1, 8, 64], strides = [1, 1, 1, 1]} : vector<2x8x8x64xf32> to vector<2x1x8x64xf32>
    %394 = vector.shape_cast %393 : vector<2x1x8x64xf32> to vector<2x8x64xf32>
    %395 = arith.mulf %394, %392 : vector<2x8x64xf32>
    %396 = vector.extract_strided_slice %361 {offsets = [0, 5, 0, 0], sizes = [2, 1, 8, 64], strides = [1, 1, 1, 1]} : vector<2x8x8x64xf32> to vector<2x1x8x64xf32>
    %397 = vector.shape_cast %396 : vector<2x1x8x64xf32> to vector<2x8x64xf32>
    %398 = arith.addf %395, %397 : vector<2x8x64xf32>
    %399 = vector.extract_strided_slice %355 {offsets = [0, 6, 0, 0], sizes = [2, 1, 8, 64], strides = [1, 1, 1, 1]} : vector<2x8x8x64xf32> to vector<2x1x8x64xf32>
    %400 = vector.shape_cast %399 : vector<2x1x8x64xf32> to vector<2x8x64xf32>
    %401 = arith.mulf %400, %398 : vector<2x8x64xf32>
    %402 = vector.extract_strided_slice %361 {offsets = [0, 6, 0, 0], sizes = [2, 1, 8, 64], strides = [1, 1, 1, 1]} : vector<2x8x8x64xf32> to vector<2x1x8x64xf32>
    %403 = vector.shape_cast %402 : vector<2x1x8x64xf32> to vector<2x8x64xf32>
    %404 = arith.addf %401, %403 : vector<2x8x64xf32>
    %405 = vector.extract_strided_slice %355 {offsets = [0, 7, 0, 0], sizes = [2, 1, 8, 64], strides = [1, 1, 1, 1]} : vector<2x8x8x64xf32> to vector<2x1x8x64xf32>
    %406 = vector.shape_cast %405 : vector<2x1x8x64xf32> to vector<2x8x64xf32>
    %407 = arith.mulf %406, %404 : vector<2x8x64xf32>
    %408 = vector.extract_strided_slice %361 {offsets = [0, 7, 0, 0], sizes = [2, 1, 8, 64], strides = [1, 1, 1, 1]} : vector<2x8x8x64xf32> to vector<2x1x8x64xf32>
    %409 = vector.shape_cast %408 : vector<2x1x8x64xf32> to vector<2x8x64xf32>
    %410 = arith.addf %407, %409 : vector<2x8x64xf32>
    %411 = vector.shape_cast %368 : vector<2x8x64xf32> to vector<2x1x8x64xf32>
    %412 = vector.shape_cast %374 : vector<2x8x64xf32> to vector<2x1x8x64xf32>
    %413 = vector.shape_cast %380 : vector<2x8x64xf32> to vector<2x1x8x64xf32>
    %414 = vector.shape_cast %386 : vector<2x8x64xf32> to vector<2x1x8x64xf32>
    %415 = vector.shape_cast %392 : vector<2x8x64xf32> to vector<2x1x8x64xf32>
    %416 = vector.shape_cast %398 : vector<2x8x64xf32> to vector<2x1x8x64xf32>
    %417 = vector.shape_cast %404 : vector<2x8x64xf32> to vector<2x1x8x64xf32>
    %418 = vector.shape_cast %410 : vector<2x8x64xf32> to vector<2x1x8x64xf32>
    %419 = tpu.concatenate %411, %412, %413, %414, %415, %416, %417, %418 in 1 : vector<2x1x8x64xf32>, vector<2x1x8x64xf32>, vector<2x1x8x64xf32>, vector<2x1x8x64xf32>, vector<2x1x8x64xf32>, vector<2x1x8x64xf32>, vector<2x1x8x64xf32>, vector<2x1x8x64xf32> -> vector<2x8x8x64xf32>
    %420 = vector.shape_cast %332 : vector<2x8x8xf32> to vector<2x8x8x1xf32>
    %421 = vector.broadcast %420 : vector<2x8x8x1xf32> to vector<2x8x8x64xf32>
    %422 = arith.mulf %421, %419 : vector<2x8x8x64xf32>
    %cst_118 = arith.constant dense<0.000000e+00> : vector<2x8x64xf32>
    %423 = vector.multi_reduction <add>, %422, %cst_118 [2] : vector<2x8x8x64xf32> to vector<2x8x64xf32>
    %424 = vector.shape_cast %423 : vector<2x8x64xf32> to vector<16x64xf32>
    %c1_119 = arith.constant 1 : index
    %c0_120 = arith.constant 0 : index
    %c0_121 = arith.constant 0 : index
    %425 = vector.load %arg10[%c1_119, %c0_120, %c0_121] : memref<3x1x64xf32, #tpu.memory_space<vmem>>, vector<1x1x64xf32>
    %426 = vector.shape_cast %425 : vector<1x1x64xf32> to vector<1x64xf32>
    %427 = vector.broadcast %426 : vector<1x64xf32> to vector<16x64xf32>
    %428 = arith.mulf %427, %324 : vector<16x64xf32>
    %429 = arith.addf %424, %428 : vector<16x64xf32>
    %430 = arith.negf %281 : vector<16x64xf32>
    %431 = math.exp %430 : vector<16x64xf32>
    %cst_122 = arith.constant 1.000000e+00 : f32
    %432 = vector.broadcast %cst_122 : f32 to vector<16x64xf32>
    %433 = arith.addf %432, %431 : vector<16x64xf32>
    %434 = arith.divf %432, %433 : vector<16x64xf32>
    %435 = arith.mulf %281, %434 : vector<16x64xf32>
    %436 = arith.mulf %429, %435 : vector<16x64xf32>
    %c1_123 = arith.constant 1 : index
    %c0_124 = arith.constant 0 : index
    %c0_125 = arith.constant 0 : index
    %437 = vector.load %arg11[%c1_123, %c0_124, %c0_125] : memref<3x64x32xf32, #tpu.memory_space<vmem>>, vector<1x64x32xf32>
    %438 = vector.shape_cast %437 : vector<1x64x32xf32> to vector<64x32xf32>
    %cst_126 = arith.constant dense<0.000000e+00> : vector<16x32xf32>
    %439 = tpu.matmul %436, %438, %cst_126 {dimension_numbers = #tpu.dot_dimension_numbers<[1], [0], [0], [1], [0, 0, 1, 1], [], []>} : vector<16x64xf32>, vector<64x32xf32>, vector<16x32xf32> -> vector<16x32xf32>
    %440 = vector.shape_cast %439 : vector<16x32xf32> to vector<2x8x32xf32>
    %441 = arith.addf %261, %440 : vector<2x8x32xf32>
    %c1_127 = arith.constant 1 : index
    %c0_128 = arith.constant 0 : index
    %c0_129 = arith.constant 0 : index
    %c0_130 = arith.constant 0 : index
    %442 = vector.load %arg19[%c1_127, %c0_128, %c0_129, %c0_130] : memref<3x2x8x32xf32, #tpu.memory_space<vmem>>, vector<1x2x8x32xf32>
    %443 = vector.shape_cast %442 : vector<1x2x8x32xf32> to vector<2x8x32xf32>
    %444 = vector.shape_cast %441 : vector<2x8x32xf32> to vector<1x2x8x32xf32>
    tpu.vector_store %arg19[%c1_127, %c0_128, %c0_129, %c0_130], %444 {strides = array<i32>} : memref<3x2x8x32xf32, #tpu.memory_space<vmem>>, vector<1x2x8x32xf32>,
    %445 = vector.shape_cast %441 : vector<2x8x32xf32> to vector<16x32xf32>
    %cst_131 = arith.constant dense<0.000000e+00> : vector<16xf32>
    %446 = vector.multi_reduction <add>, %445, %cst_131 [1] : vector<16x32xf32> to vector<16xf32>
    %447 = vector.shape_cast %446 : vector<16xf32> to vector<16x1xf32>
    %cst_132 = arith.constant 3.200000e+01 : f32
    %448 = vector.broadcast %cst_132 : f32 to vector<16x1xf32>
    %449 = arith.divf %447, %448 : vector<16x1xf32>
    %450 = vector.broadcast %449 : vector<16x1xf32> to vector<16x32xf32>
    %451 = arith.subf %445, %450 : vector<16x32xf32>
    %452 = arith.mulf %451, %451 : vector<16x32xf32>
    %cst_133 = arith.constant dense<0.000000e+00> : vector<16xf32>
    %453 = vector.multi_reduction <add>, %452, %cst_133 [1] : vector<16x32xf32> to vector<16xf32>
    %454 = vector.shape_cast %453 : vector<16xf32> to vector<16x1xf32>
    %cst_134 = arith.constant 3.200000e+01 : f32
    %455 = vector.broadcast %cst_134 : f32 to vector<16x1xf32>
    %456 = arith.divf %454, %455 : vector<16x1xf32>
    %457 = vector.broadcast %449 : vector<16x1xf32> to vector<16x32xf32>
    %458 = arith.subf %445, %457 : vector<16x32xf32>
    %cst_135 = arith.constant 9.99999974E-6 : f32
    %459 = vector.broadcast %cst_135 : f32 to vector<16x1xf32>
    %460 = arith.addf %456, %459 : vector<16x1xf32>
    %461 = math.rsqrt %460 : vector<16x1xf32>
    %462 = vector.broadcast %461 : vector<16x1xf32> to vector<16x32xf32>
    %463 = arith.mulf %458, %462 : vector<16x32xf32>
    %c1_136 = arith.constant 1 : index
    %c0_137 = arith.constant 0 : index
    %c0_138 = arith.constant 0 : index
    %464 = vector.load %arg12[%c1_136, %c0_137, %c0_138] : memref<2x1x32xf32, #tpu.memory_space<vmem>>, vector<1x1x32xf32>
    %465 = vector.shape_cast %464 : vector<1x1x32xf32> to vector<1x32xf32>
    %466 = vector.broadcast %465 : vector<1x32xf32> to vector<16x32xf32>
    %467 = arith.mulf %463, %466 : vector<16x32xf32>
    %c1_139 = arith.constant 1 : index
    %c0_140 = arith.constant 0 : index
    %c0_141 = arith.constant 0 : index
    %468 = vector.load %arg13[%c1_139, %c0_140, %c0_141] : memref<2x1x32xf32, #tpu.memory_space<vmem>>, vector<1x1x32xf32>
    %469 = vector.shape_cast %468 : vector<1x1x32xf32> to vector<1x32xf32>
    %470 = vector.broadcast %469 : vector<1x32xf32> to vector<16x32xf32>
    %471 = arith.addf %467, %470 : vector<16x32xf32>
    %c1_142 = arith.constant 1 : index
    %c0_143 = arith.constant 0 : index
    %c0_144 = arith.constant 0 : index
    %472 = vector.load %arg14[%c1_142, %c0_143, %c0_144] : memref<2x32x96xf32, #tpu.memory_space<vmem>>, vector<1x32x96xf32>
    %473 = vector.shape_cast %472 : vector<1x32x96xf32> to vector<32x96xf32>
    %cst_145 = arith.constant dense<0.000000e+00> : vector<16x96xf32>
    %474 = tpu.matmul %471, %473, %cst_145 {dimension_numbers = #tpu.dot_dimension_numbers<[1], [0], [0], [1], [0, 0, 1, 1], [], []>} : vector<16x32xf32>, vector<32x96xf32>, vector<16x96xf32> -> vector<16x96xf32>
    %c1_146 = arith.constant 1 : index
    %c0_147 = arith.constant 0 : index
    %c0_148 = arith.constant 0 : index
    %475 = vector.load %arg15[%c1_146, %c0_147, %c0_148] : memref<2x1x96xf32, #tpu.memory_space<vmem>>, vector<1x1x96xf32>
    %476 = vector.shape_cast %475 : vector<1x1x96xf32> to vector<1x96xf32>
    %477 = vector.broadcast %476 : vector<1x96xf32> to vector<16x96xf32>
    %478 = arith.addf %474, %477 : vector<16x96xf32>
    %479 = vector.extract_strided_slice %478 {offsets = [0, 0], sizes = [16, 32], strides = [1, 1]} : vector<16x96xf32> to vector<16x32xf32>
    %480 = vector.shape_cast %479 : vector<16x32xf32> to vector<2x8x4x8xf32>
    %481 = tpu.transpose %480, [0, 2, 1, 3] : vector<2x8x4x8xf32> -> vector<2x4x8x8xf32>
    %482 = vector.shape_cast %481 : vector<2x4x8x8xf32> to vector<8x8x8xf32>
    %483 = vector.extract_strided_slice %478 {offsets = [0, 32], sizes = [16, 32], strides = [1, 1]} : vector<16x96xf32> to vector<16x32xf32>
    %484 = vector.shape_cast %483 : vector<16x32xf32> to vector<2x8x4x8xf32>
    %485 = tpu.transpose %484, [0, 2, 1, 3] : vector<2x8x4x8xf32> -> vector<2x4x8x8xf32>
    %486 = vector.shape_cast %485 : vector<2x4x8x8xf32> to vector<8x8x8xf32>
    %487 = vector.extract_strided_slice %478 {offsets = [0, 64], sizes = [16, 32], strides = [1, 1]} : vector<16x96xf32> to vector<16x32xf32>
    %488 = vector.shape_cast %487 : vector<16x32xf32> to vector<2x8x4x8xf32>
    %489 = tpu.transpose %488, [0, 2, 1, 3] : vector<2x8x4x8xf32> -> vector<2x4x8x8xf32>
    %490 = vector.shape_cast %489 : vector<2x4x8x8xf32> to vector<8x8x8xf32>
    "tpu.trace_start"() <{level = 10 : i32, message = "hqd,hkd->hqk"}> : () -> ()
    %cst_149 = arith.constant dense<0.000000e+00> : vector<8x8x8xf32>
    %491 = tpu.matmul %482, %486, %cst_149 {dimension_numbers = #tpu.dot_dimension_numbers<[2], [2], [1], [1], [0, 0, 0, 1, 1, 1], [0], [0]>} : vector<8x8x8xf32>, vector<8x8x8xf32>, vector<8x8x8xf32> -> vector<8x8x8xf32>
    "tpu.trace_stop"() : () -> ()
    %cst_150 = arith.constant 0.353553385 : f32
    %492 = vector.broadcast %cst_150 : f32 to vector<8x8x8xf32>
    %493 = arith.mulf %491, %492 : vector<8x8x8xf32>
    %494 = vector.shape_cast %3 : vector<8x8xi1> to vector<1x8x8xi1>
    %cst_151 = arith.constant -1.000000e+30 : f32
    %495 = vector.shape_cast %494 : vector<1x8x8xi1> to vector<1x8x8xi1>
    %496 = vector.broadcast %495 : vector<1x8x8xi1> to vector<8x8x8xi1>
    %497 = vector.broadcast %cst_151 : f32 to vector<8x8x8xf32>
    %498 = arith.select %496, %493, %497 : vector<8x8x8xi1>, vector<8x8x8xf32>
    %cst_152 = arith.constant dense<0xFF800000> : vector<8x8xf32>
    %499 = vector.multi_reduction <maximumf>, %498, %cst_152 [2] : vector<8x8x8xf32> to vector<8x8xf32>
    %500 = vector.shape_cast %499 : vector<8x8xf32> to vector<8x8x1xf32>
    %501 = vector.broadcast %500 : vector<8x8x1xf32> to vector<8x8x8xf32>
    %502 = arith.subf %498, %501 : vector<8x8x8xf32>
    %503 = math.exp %502 : vector<8x8x8xf32>
    %cst_153 = arith.constant dense<0.000000e+00> : vector<8x8xf32>
    %504 = vector.multi_reduction <add>, %503, %cst_153 [2] : vector<8x8x8xf32> to vector<8x8xf32>
    %505 = vector.shape_cast %504 : vector<8x8xf32> to vector<8x8x1xf32>
    %506 = vector.broadcast %505 : vector<8x8x1xf32> to vector<8x8x8xf32>
    %507 = arith.divf %503, %506 : vector<8x8x8xf32>
    "tpu.trace_start"() <{level = 10 : i32, message = "hqk,hkd->hqd"}> : () -> ()
    %cst_154 = arith.constant dense<0.000000e+00> : vector<8x8x8xf32>
    %508 = tpu.matmul %507, %490, %cst_154 {dimension_numbers = #tpu.dot_dimension_numbers<[2], [1], [1], [2], [0, 0, 0, 1, 1, 2], [0], [0]>} : vector<8x8x8xf32>, vector<8x8x8xf32>, vector<8x8x8xf32> -> vector<8x8x8xf32>
    "tpu.trace_stop"() : () -> ()
    %509 = vector.shape_cast %508 : vector<8x8x8xf32> to vector<2x4x8x8xf32>
    %510 = tpu.transpose %509, [0, 2, 1, 3] : vector<2x4x8x8xf32> -> vector<2x8x4x8xf32>
    %511 = vector.shape_cast %510 : vector<2x8x4x8xf32> to vector<16x32xf32>
    %c1_155 = arith.constant 1 : index
    %c0_156 = arith.constant 0 : index
    %c0_157 = arith.constant 0 : index
    %512 = vector.load %arg16[%c1_155, %c0_156, %c0_157] : memref<2x32x32xf32, #tpu.memory_space<vmem>>, vector<1x32x32xf32>
    %513 = vector.shape_cast %512 : vector<1x32x32xf32> to vector<32x32xf32>
    %cst_158 = arith.constant dense<0.000000e+00> : vector<16x32xf32>
    %514 = tpu.matmul %511, %513, %cst_158 {dimension_numbers = #tpu.dot_dimension_numbers<[1], [0], [0], [1], [0, 0, 1, 1], [], []>} : vector<16x32xf32>, vector<32x32xf32>, vector<16x32xf32> -> vector<16x32xf32>
    %c1_159 = arith.constant 1 : index
    %c0_160 = arith.constant 0 : index
    %c0_161 = arith.constant 0 : index
    %515 = vector.load %arg17[%c1_159, %c0_160, %c0_161] : memref<2x1x32xf32, #tpu.memory_space<vmem>>, vector<1x1x32xf32>
    %516 = vector.shape_cast %515 : vector<1x1x32xf32> to vector<1x32xf32>
    %517 = vector.broadcast %516 : vector<1x32xf32> to vector<16x32xf32>
    %518 = arith.addf %514, %517 : vector<16x32xf32>
    %519 = vector.shape_cast %518 : vector<16x32xf32> to vector<2x8x32xf32>
    %520 = vector.shape_cast %519 : vector<2x8x32xf32> to vector<16x32xf32>
    %521 = arith.mulf %520, %520 : vector<16x32xf32>
    %cst_162 = arith.constant dense<0.000000e+00> : vector<16xf32>
    %522 = vector.multi_reduction <add>, %521, %cst_162 [1] : vector<16x32xf32> to vector<16xf32>
    %523 = vector.shape_cast %522 : vector<16xf32> to vector<16x1xf32>
    %cst_163 = arith.constant 3.200000e+01 : f32
    %524 = vector.broadcast %cst_163 : f32 to vector<16x1xf32>
    %525 = arith.divf %523, %524 : vector<16x1xf32>
    %cst_164 = arith.constant 9.99999974E-6 : f32
    %526 = vector.broadcast %cst_164 : f32 to vector<16x1xf32>
    %527 = arith.addf %525, %526 : vector<16x1xf32>
    %528 = math.rsqrt %527 : vector<16x1xf32>
    %529 = vector.broadcast %528 : vector<16x1xf32> to vector<16x32xf32>
    %530 = arith.mulf %520, %529 : vector<16x32xf32>
    %c2 = arith.constant 2 : index
    %c0_165 = arith.constant 0 : index
    %c0_166 = arith.constant 0 : index
    %531 = vector.load %arg2[%c2, %c0_165, %c0_166] : memref<3x1x32xf32, #tpu.memory_space<vmem>>, vector<1x1x32xf32>
    %532 = vector.shape_cast %531 : vector<1x1x32xf32> to vector<1x32xf32>
    %533 = vector.broadcast %532 : vector<1x32xf32> to vector<16x32xf32>
    %534 = arith.mulf %530, %533 : vector<16x32xf32>
    %c2_167 = arith.constant 2 : index
    %c0_168 = arith.constant 0 : index
    %c0_169 = arith.constant 0 : index
    %535 = vector.load %arg3[%c2_167, %c0_168, %c0_169] : memref<3x32x128xf32, #tpu.memory_space<vmem>>, vector<1x32x128xf32>
    %536 = vector.shape_cast %535 : vector<1x32x128xf32> to vector<32x128xf32>
    %cst_170 = arith.constant dense<0.000000e+00> : vector<16x128xf32>
    %537 = tpu.matmul %534, %536, %cst_170 {dimension_numbers = #tpu.dot_dimension_numbers<[1], [0], [0], [1], [0, 0, 1, 1], [], []>} : vector<16x32xf32>, vector<32x128xf32>, vector<16x128xf32> -> vector<16x128xf32>
    %538 = vector.extract_strided_slice %537 {offsets = [0, 0], sizes = [16, 64], strides = [1, 1]} : vector<16x128xf32> to vector<16x64xf32>
    %539 = vector.extract_strided_slice %537 {offsets = [0, 64], sizes = [16, 64], strides = [1, 1]} : vector<16x128xf32> to vector<16x64xf32>
    %540 = vector.shape_cast %538 : vector<16x64xf32> to vector<2x8x64xf32>
    %c2_171 = arith.constant 2 : index
    %c0_172 = arith.constant 0 : index
    %c0_173 = arith.constant 0 : index
    %541 = vector.load %arg4[%c2_171, %c0_172, %c0_173] : memref<3x4x64xf32, #tpu.memory_space<vmem>>, vector<1x4x64xf32>
    %542 = vector.shape_cast %541 : vector<1x4x64xf32> to vector<4x64xf32>
    %543 = vector.extract_strided_slice %542 {offsets = [3, 0], sizes = [1, 64], strides = [1, 1]} : vector<4x64xf32> to vector<1x64xf32>
    %544 = vector.shape_cast %543 : vector<1x64xf32> to vector<1x1x64xf32>
    %545 = vector.broadcast %544 : vector<1x1x64xf32> to vector<2x8x64xf32>
    %546 = arith.mulf %540, %545 : vector<2x8x64xf32>
    %cst_174 = arith.constant 0.000000e+00 : f32
    %547 = vector.broadcast %cst_174 : f32 to vector<2x3x64xf32>
    %548 = vector.extract_strided_slice %540 {offsets = [0, 0, 0], sizes = [2, 5, 64], strides = [1, 1, 1]} : vector<2x8x64xf32> to vector<2x5x64xf32>
    %549 = tpu.concatenate %547, %548 in 1 : vector<2x3x64xf32>, vector<2x5x64xf32> -> vector<2x8x64xf32>
    %550 = vector.extract_strided_slice %542 {offsets = [0, 0], sizes = [1, 64], strides = [1, 1]} : vector<4x64xf32> to vector<1x64xf32>
    %551 = vector.shape_cast %550 : vector<1x64xf32> to vector<1x1x64xf32>
    %552 = vector.broadcast %551 : vector<1x1x64xf32> to vector<2x8x64xf32>
    %553 = arith.mulf %549, %552 : vector<2x8x64xf32>
    %554 = arith.addf %546, %553 : vector<2x8x64xf32>
    %cst_175 = arith.constant 0.000000e+00 : f32
    %555 = vector.broadcast %cst_175 : f32 to vector<2x2x64xf32>
    %556 = vector.extract_strided_slice %540 {offsets = [0, 0, 0], sizes = [2, 6, 64], strides = [1, 1, 1]} : vector<2x8x64xf32> to vector<2x6x64xf32>
    %557 = tpu.concatenate %555, %556 in 1 : vector<2x2x64xf32>, vector<2x6x64xf32> -> vector<2x8x64xf32>
    %558 = vector.extract_strided_slice %542 {offsets = [1, 0], sizes = [1, 64], strides = [1, 1]} : vector<4x64xf32> to vector<1x64xf32>
    %559 = vector.shape_cast %558 : vector<1x64xf32> to vector<1x1x64xf32>
    %560 = vector.broadcast %559 : vector<1x1x64xf32> to vector<2x8x64xf32>
    %561 = arith.mulf %557, %560 : vector<2x8x64xf32>
    %562 = arith.addf %554, %561 : vector<2x8x64xf32>
    %cst_176 = arith.constant 0.000000e+00 : f32
    %563 = vector.broadcast %cst_176 : f32 to vector<2x1x64xf32>
    %564 = vector.extract_strided_slice %540 {offsets = [0, 0, 0], sizes = [2, 7, 64], strides = [1, 1, 1]} : vector<2x8x64xf32> to vector<2x7x64xf32>
    %565 = tpu.concatenate %563, %564 in 1 : vector<2x1x64xf32>, vector<2x7x64xf32> -> vector<2x8x64xf32>
    %566 = vector.extract_strided_slice %542 {offsets = [2, 0], sizes = [1, 64], strides = [1, 1]} : vector<4x64xf32> to vector<1x64xf32>
    %567 = vector.shape_cast %566 : vector<1x64xf32> to vector<1x1x64xf32>
    %568 = vector.broadcast %567 : vector<1x1x64xf32> to vector<2x8x64xf32>
    %569 = arith.mulf %565, %568 : vector<2x8x64xf32>
    %570 = arith.addf %562, %569 : vector<2x8x64xf32>
    %c2_177 = arith.constant 2 : index
    %c0_178 = arith.constant 0 : index
    %c0_179 = arith.constant 0 : index
    %571 = vector.load %arg5[%c2_177, %c0_178, %c0_179] : memref<3x1x64xf32, #tpu.memory_space<vmem>>, vector<1x1x64xf32>
    %572 = vector.shape_cast %571 : vector<1x1x64xf32> to vector<1x64xf32>
    %573 = vector.shape_cast %572 : vector<1x64xf32> to vector<1x1x64xf32>
    %574 = vector.broadcast %573 : vector<1x1x64xf32> to vector<2x8x64xf32>
    %575 = arith.addf %570, %574 : vector<2x8x64xf32>
    %576 = arith.negf %575 : vector<2x8x64xf32>
    %577 = math.exp %576 : vector<2x8x64xf32>
    %cst_180 = arith.constant 1.000000e+00 : f32
    %578 = vector.broadcast %cst_180 : f32 to vector<2x8x64xf32>
    %579 = arith.addf %578, %577 : vector<2x8x64xf32>
    %580 = arith.divf %578, %579 : vector<2x8x64xf32>
    %581 = arith.mulf %575, %580 : vector<2x8x64xf32>
    %582 = vector.shape_cast %581 : vector<2x8x64xf32> to vector<16x64xf32>
    %c2_181 = arith.constant 2 : index
    %c0_182 = arith.constant 0 : index
    %c0_183 = arith.constant 0 : index
    %583 = vector.load %arg6[%c2_181, %c0_182, %c0_183] : memref<3x64x20xf32, #tpu.memory_space<vmem>>, vector<1x64x20xf32>
    %584 = vector.shape_cast %583 : vector<1x64x20xf32> to vector<64x20xf32>
    %cst_184 = arith.constant dense<0.000000e+00> : vector<16x20xf32>
    %585 = tpu.matmul %582, %584, %cst_184 {dimension_numbers = #tpu.dot_dimension_numbers<[1], [0], [0], [1], [0, 0, 1, 1], [], []>} : vector<16x64xf32>, vector<64x20xf32>, vector<16x20xf32> -> vector<16x20xf32>
    %586 = vector.extract_strided_slice %585 {offsets = [0, 0], sizes = [16, 4], strides = [1, 1]} : vector<16x20xf32> to vector<16x4xf32>
    %587 = vector.extract_strided_slice %585 {offsets = [0, 4], sizes = [16, 8], strides = [1, 1]} : vector<16x20xf32> to vector<16x8xf32>
    %588 = vector.shape_cast %587 : vector<16x8xf32> to vector<2x8x8xf32>
    %589 = vector.extract_strided_slice %585 {offsets = [0, 12], sizes = [16, 8], strides = [1, 1]} : vector<16x20xf32> to vector<16x8xf32>
    %590 = vector.shape_cast %589 : vector<16x8xf32> to vector<2x8x8xf32>
    %c2_185 = arith.constant 2 : index
    %c0_186 = arith.constant 0 : index
    %c0_187 = arith.constant 0 : index
    %591 = vector.load %arg7[%c2_185, %c0_186, %c0_187] : memref<3x4x64xf32, #tpu.memory_space<vmem>>, vector<1x4x64xf32>
    %592 = vector.shape_cast %591 : vector<1x4x64xf32> to vector<4x64xf32>
    %cst_188 = arith.constant dense<0.000000e+00> : vector<16x64xf32>
    %593 = tpu.matmul %586, %592, %cst_188 {dimension_numbers = #tpu.dot_dimension_numbers<[1], [0], [0], [1], [0, 0, 1, 1], [], []>} : vector<16x4xf32>, vector<4x64xf32>, vector<16x64xf32> -> vector<16x64xf32>
    %c2_189 = arith.constant 2 : index
    %c0_190 = arith.constant 0 : index
    %c0_191 = arith.constant 0 : index
    %594 = vector.load %arg8[%c2_189, %c0_190, %c0_191] : memref<3x1x64xf32, #tpu.memory_space<vmem>>, vector<1x1x64xf32>
    %595 = vector.shape_cast %594 : vector<1x1x64xf32> to vector<1x64xf32>
    %596 = vector.broadcast %595 : vector<1x64xf32> to vector<16x64xf32>
    %597 = arith.addf %593, %596 : vector<16x64xf32>
    %cst_192 = arith.constant 2.000000e+01 : f32
    %598 = vector.broadcast %cst_192 : f32 to vector<16x64xf32>
    %599 = arith.cmpf ogt, %597, %598 : vector<16x64xf32>
    %cst_193 = arith.constant 2.000000e+01 : f32
    %600 = vector.broadcast %cst_193 : f32 to vector<16x64xf32>
    %601 = arith.minimumf %597, %600 : vector<16x64xf32>
    %602 = math.exp %601 : vector<16x64xf32>
    %603 = math.log1p %602 : vector<16x64xf32>
    %604 = arith.select %599, %597, %603 : vector<16x64xi1>, vector<16x64xf32>
    %605 = vector.shape_cast %604 : vector<16x64xf32> to vector<2x8x64xf32>
    %c2_194 = arith.constant 2 : index
    %c0_195 = arith.constant 0 : index
    %c0_196 = arith.constant 0 : index
    %606 = vector.load %arg9[%c2_194, %c0_195, %c0_196] : memref<3x8x64xf32, #tpu.memory_space<vmem>>, vector<1x8x64xf32>
    %607 = vector.shape_cast %606 : vector<1x8x64xf32> to vector<8x64xf32>
    %608 = vector.shape_cast %607 : vector<8x64xf32> to vector<1x1x8x64xf32>
    %609 = vector.shape_cast %605 : vector<2x8x64xf32> to vector<2x8x1x64xf32>
    %610 = vector.broadcast %608 : vector<1x1x8x64xf32> to vector<2x8x8x64xf32>
    %611 = vector.broadcast %609 : vector<2x8x1x64xf32> to vector<2x8x8x64xf32>
    %612 = arith.mulf %610, %611 : vector<2x8x8x64xf32>
    %613 = math.exp %612 : vector<2x8x8x64xf32>
    %614 = arith.mulf %605, %581 : vector<2x8x64xf32>
    %615 = vector.shape_cast %588 : vector<2x8x8xf32> to vector<2x8x8x1xf32>
    %616 = vector.shape_cast %614 : vector<2x8x64xf32> to vector<2x8x1x64xf32>
    %617 = vector.broadcast %615 : vector<2x8x8x1xf32> to vector<2x8x8x64xf32>
    %618 = vector.broadcast %616 : vector<2x8x1x64xf32> to vector<2x8x8x64xf32>
    %619 = arith.mulf %617, %618 : vector<2x8x8x64xf32>
    %cst_197 = arith.constant 0.000000e+00 : f32
    %620 = vector.broadcast %cst_197 : f32 to vector<2x8x64xf32>
    %621 = vector.extract_strided_slice %613 {offsets = [0, 0, 0, 0], sizes = [2, 1, 8, 64], strides = [1, 1, 1, 1]} : vector<2x8x8x64xf32> to vector<2x1x8x64xf32>
    %622 = vector.shape_cast %621 : vector<2x1x8x64xf32> to vector<2x8x64xf32>
    %623 = arith.mulf %622, %620 : vector<2x8x64xf32>
    %624 = vector.extract_strided_slice %619 {offsets = [0, 0, 0, 0], sizes = [2, 1, 8, 64], strides = [1, 1, 1, 1]} : vector<2x8x8x64xf32> to vector<2x1x8x64xf32>
    %625 = vector.shape_cast %624 : vector<2x1x8x64xf32> to vector<2x8x64xf32>
    %626 = arith.addf %623, %625 : vector<2x8x64xf32>
    %627 = vector.extract_strided_slice %613 {offsets = [0, 1, 0, 0], sizes = [2, 1, 8, 64], strides = [1, 1, 1, 1]} : vector<2x8x8x64xf32> to vector<2x1x8x64xf32>
    %628 = vector.shape_cast %627 : vector<2x1x8x64xf32> to vector<2x8x64xf32>
    %629 = arith.mulf %628, %626 : vector<2x8x64xf32>
    %630 = vector.extract_strided_slice %619 {offsets = [0, 1, 0, 0], sizes = [2, 1, 8, 64], strides = [1, 1, 1, 1]} : vector<2x8x8x64xf32> to vector<2x1x8x64xf32>
    %631 = vector.shape_cast %630 : vector<2x1x8x64xf32> to vector<2x8x64xf32>
    %632 = arith.addf %629, %631 : vector<2x8x64xf32>
    %633 = vector.extract_strided_slice %613 {offsets = [0, 2, 0, 0], sizes = [2, 1, 8, 64], strides = [1, 1, 1, 1]} : vector<2x8x8x64xf32> to vector<2x1x8x64xf32>
    %634 = vector.shape_cast %633 : vector<2x1x8x64xf32> to vector<2x8x64xf32>
    %635 = arith.mulf %634, %632 : vector<2x8x64xf32>
    %636 = vector.extract_strided_slice %619 {offsets = [0, 2, 0, 0], sizes = [2, 1, 8, 64], strides = [1, 1, 1, 1]} : vector<2x8x8x64xf32> to vector<2x1x8x64xf32>
    %637 = vector.shape_cast %636 : vector<2x1x8x64xf32> to vector<2x8x64xf32>
    %638 = arith.addf %635, %637 : vector<2x8x64xf32>
    %639 = vector.extract_strided_slice %613 {offsets = [0, 3, 0, 0], sizes = [2, 1, 8, 64], strides = [1, 1, 1, 1]} : vector<2x8x8x64xf32> to vector<2x1x8x64xf32>
    %640 = vector.shape_cast %639 : vector<2x1x8x64xf32> to vector<2x8x64xf32>
    %641 = arith.mulf %640, %638 : vector<2x8x64xf32>
    %642 = vector.extract_strided_slice %619 {offsets = [0, 3, 0, 0], sizes = [2, 1, 8, 64], strides = [1, 1, 1, 1]} : vector<2x8x8x64xf32> to vector<2x1x8x64xf32>
    %643 = vector.shape_cast %642 : vector<2x1x8x64xf32> to vector<2x8x64xf32>
    %644 = arith.addf %641, %643 : vector<2x8x64xf32>
    %645 = vector.extract_strided_slice %613 {offsets = [0, 4, 0, 0], sizes = [2, 1, 8, 64], strides = [1, 1, 1, 1]} : vector<2x8x8x64xf32> to vector<2x1x8x64xf32>
    %646 = vector.shape_cast %645 : vector<2x1x8x64xf32> to vector<2x8x64xf32>
    %647 = arith.mulf %646, %644 : vector<2x8x64xf32>
    %648 = vector.extract_strided_slice %619 {offsets = [0, 4, 0, 0], sizes = [2, 1, 8, 64], strides = [1, 1, 1, 1]} : vector<2x8x8x64xf32> to vector<2x1x8x64xf32>
    %649 = vector.shape_cast %648 : vector<2x1x8x64xf32> to vector<2x8x64xf32>
    %650 = arith.addf %647, %649 : vector<2x8x64xf32>
    %651 = vector.extract_strided_slice %613 {offsets = [0, 5, 0, 0], sizes = [2, 1, 8, 64], strides = [1, 1, 1, 1]} : vector<2x8x8x64xf32> to vector<2x1x8x64xf32>
    %652 = vector.shape_cast %651 : vector<2x1x8x64xf32> to vector<2x8x64xf32>
    %653 = arith.mulf %652, %650 : vector<2x8x64xf32>
    %654 = vector.extract_strided_slice %619 {offsets = [0, 5, 0, 0], sizes = [2, 1, 8, 64], strides = [1, 1, 1, 1]} : vector<2x8x8x64xf32> to vector<2x1x8x64xf32>
    %655 = vector.shape_cast %654 : vector<2x1x8x64xf32> to vector<2x8x64xf32>
    %656 = arith.addf %653, %655 : vector<2x8x64xf32>
    %657 = vector.extract_strided_slice %613 {offsets = [0, 6, 0, 0], sizes = [2, 1, 8, 64], strides = [1, 1, 1, 1]} : vector<2x8x8x64xf32> to vector<2x1x8x64xf32>
    %658 = vector.shape_cast %657 : vector<2x1x8x64xf32> to vector<2x8x64xf32>
    %659 = arith.mulf %658, %656 : vector<2x8x64xf32>
    %660 = vector.extract_strided_slice %619 {offsets = [0, 6, 0, 0], sizes = [2, 1, 8, 64], strides = [1, 1, 1, 1]} : vector<2x8x8x64xf32> to vector<2x1x8x64xf32>
    %661 = vector.shape_cast %660 : vector<2x1x8x64xf32> to vector<2x8x64xf32>
    %662 = arith.addf %659, %661 : vector<2x8x64xf32>
    %663 = vector.extract_strided_slice %613 {offsets = [0, 7, 0, 0], sizes = [2, 1, 8, 64], strides = [1, 1, 1, 1]} : vector<2x8x8x64xf32> to vector<2x1x8x64xf32>
    %664 = vector.shape_cast %663 : vector<2x1x8x64xf32> to vector<2x8x64xf32>
    %665 = arith.mulf %664, %662 : vector<2x8x64xf32>
    %666 = vector.extract_strided_slice %619 {offsets = [0, 7, 0, 0], sizes = [2, 1, 8, 64], strides = [1, 1, 1, 1]} : vector<2x8x8x64xf32> to vector<2x1x8x64xf32>
    %667 = vector.shape_cast %666 : vector<2x1x8x64xf32> to vector<2x8x64xf32>
    %668 = arith.addf %665, %667 : vector<2x8x64xf32>
    %669 = vector.shape_cast %626 : vector<2x8x64xf32> to vector<2x1x8x64xf32>
    %670 = vector.shape_cast %632 : vector<2x8x64xf32> to vector<2x1x8x64xf32>
    %671 = vector.shape_cast %638 : vector<2x8x64xf32> to vector<2x1x8x64xf32>
    %672 = vector.shape_cast %644 : vector<2x8x64xf32> to vector<2x1x8x64xf32>
    %673 = vector.shape_cast %650 : vector<2x8x64xf32> to vector<2x1x8x64xf32>
    %674 = vector.shape_cast %656 : vector<2x8x64xf32> to vector<2x1x8x64xf32>
    %675 = vector.shape_cast %662 : vector<2x8x64xf32> to vector<2x1x8x64xf32>
    %676 = vector.shape_cast %668 : vector<2x8x64xf32> to vector<2x1x8x64xf32>
    %677 = tpu.concatenate %669, %670, %671, %672, %673, %674, %675, %676 in 1 : vector<2x1x8x64xf32>, vector<2x1x8x64xf32>, vector<2x1x8x64xf32>, vector<2x1x8x64xf32>, vector<2x1x8x64xf32>, vector<2x1x8x64xf32>, vector<2x1x8x64xf32>, vector<2x1x8x64xf32> -> vector<2x8x8x64xf32>
    %678 = vector.shape_cast %590 : vector<2x8x8xf32> to vector<2x8x8x1xf32>
    %679 = vector.broadcast %678 : vector<2x8x8x1xf32> to vector<2x8x8x64xf32>
    %680 = arith.mulf %679, %677 : vector<2x8x8x64xf32>
    %cst_198 = arith.constant dense<0.000000e+00> : vector<2x8x64xf32>
    %681 = vector.multi_reduction <add>, %680, %cst_198 [2] : vector<2x8x8x64xf32> to vector<2x8x64xf32>
    %682 = vector.shape_cast %681 : vector<2x8x64xf32> to vector<16x64xf32>
    %c2_199 = arith.constant 2 : index
    %c0_200 = arith.constant 0 : index
    %c0_201 = arith.constant 0 : index
    %683 = vector.load %arg10[%c2_199, %c0_200, %c0_201] : memref<3x1x64xf32, #tpu.memory_space<vmem>>, vector<1x1x64xf32>
    %684 = vector.shape_cast %683 : vector<1x1x64xf32> to vector<1x64xf32>
    %685 = vector.broadcast %684 : vector<1x64xf32> to vector<16x64xf32>
    %686 = arith.mulf %685, %582 : vector<16x64xf32>
    %687 = arith.addf %682, %686 : vector<16x64xf32>
    %688 = arith.negf %539 : vector<16x64xf32>
    %689 = math.exp %688 : vector<16x64xf32>
    %cst_202 = arith.constant 1.000000e+00 : f32
    %690 = vector.broadcast %cst_202 : f32 to vector<16x64xf32>
    %691 = arith.addf %690, %689 : vector<16x64xf32>
    %692 = arith.divf %690, %691 : vector<16x64xf32>
    %693 = arith.mulf %539, %692 : vector<16x64xf32>
    %694 = arith.mulf %687, %693 : vector<16x64xf32>
    %c2_203 = arith.constant 2 : index
    %c0_204 = arith.constant 0 : index
    %c0_205 = arith.constant 0 : index
    %695 = vector.load %arg11[%c2_203, %c0_204, %c0_205] : memref<3x64x32xf32, #tpu.memory_space<vmem>>, vector<1x64x32xf32>
    %696 = vector.shape_cast %695 : vector<1x64x32xf32> to vector<64x32xf32>
    %cst_206 = arith.constant dense<0.000000e+00> : vector<16x32xf32>
    %697 = tpu.matmul %694, %696, %cst_206 {dimension_numbers = #tpu.dot_dimension_numbers<[1], [0], [0], [1], [0, 0, 1, 1], [], []>} : vector<16x64xf32>, vector<64x32xf32>, vector<16x32xf32> -> vector<16x32xf32>
    %698 = vector.shape_cast %697 : vector<16x32xf32> to vector<2x8x32xf32>
    %699 = arith.addf %519, %698 : vector<2x8x32xf32>
    %c2_207 = arith.constant 2 : index
    %c0_208 = arith.constant 0 : index
    %c0_209 = arith.constant 0 : index
    %c0_210 = arith.constant 0 : index
    %700 = vector.load %arg19[%c2_207, %c0_208, %c0_209, %c0_210] : memref<3x2x8x32xf32, #tpu.memory_space<vmem>>, vector<1x2x8x32xf32>
    %701 = vector.shape_cast %700 : vector<1x2x8x32xf32> to vector<2x8x32xf32>
    %702 = vector.shape_cast %699 : vector<2x8x32xf32> to vector<1x2x8x32xf32>
    tpu.vector_store %arg19[%c2_207, %c0_208, %c0_209, %c0_210], %702 {strides = array<i32>} : memref<3x2x8x32xf32, #tpu.memory_space<vmem>>, vector<1x2x8x32xf32>,
    %703 = vector.shape_cast %699 : vector<2x8x32xf32> to vector<16x32xf32>
    %c0_211 = arith.constant 0 : index
    %c0_212 = arith.constant 0 : index
    %704 = vector.load %arg18[%c0_211, %c0_212] : memref<32x64xf32, #tpu.memory_space<vmem>>, vector<32x64xf32>
    %cst_213 = arith.constant dense<0.000000e+00> : vector<16x64xf32>
    %705 = tpu.matmul %703, %704, %cst_213 {dimension_numbers = #tpu.dot_dimension_numbers<[1], [0], [0], [1], [0, 0, 1, 1], [], []>} : vector<16x32xf32>, vector<32x64xf32>, vector<16x64xf32> -> vector<16x64xf32>
    %706 = vector.shape_cast %705 : vector<16x64xf32> to vector<2x8x64xf32>
    %c0_214 = arith.constant 0 : index
    %c0_215 = arith.constant 0 : index
    %c0_216 = arith.constant 0 : index
    %707 = vector.load %arg20[%c0_214, %c0_215, %c0_216] : memref<2x8x64xf32, #tpu.memory_space<vmem>>, vector<2x8x64xf32>
    tpu.vector_store %arg20[%c0_214, %c0_215, %c0_216], %706 {strides = array<i32>} : memref<2x8x64xf32, #tpu.memory_space<vmem>>, vector<2x8x64xf32>,
    return
  }
  func.func @transform_0(%arg0: i32) -> (i32, i32, i32) {
    %c0_i32 = arith.constant 0 : i32
    %c0_i32_0 = arith.constant 0 : i32
    %c0_i32_1 = arith.constant 0 : i32
    %c0_i32_2 = arith.constant 0 : i32
    return %c0_i32, %c0_i32_0, %c0_i32_1 : i32, i32, i32
  }
  func.func @transform_1(%arg0: i32) -> (i32, i32, i32) {
    %c0_i32 = arith.constant 0 : i32
    %c0_i32_0 = arith.constant 0 : i32
    %c0_i32_1 = arith.constant 0 : i32
    %c0_i32_2 = arith.constant 0 : i32
    return %c0_i32, %c0_i32_0, %c0_i32_1 : i32, i32, i32
  }
  func.func @transform_2(%arg0: i32) -> (i32, i32, i32) {
    %c0_i32 = arith.constant 0 : i32
    %c0_i32_0 = arith.constant 0 : i32
    %c0_i32_1 = arith.constant 0 : i32
    %c0_i32_2 = arith.constant 0 : i32
    return %c0_i32, %c0_i32_0, %c0_i32_1 : i32, i32, i32
  }
  func.func @transform_3(%arg0: i32) -> (i32, i32, i32) {
    %c0_i32 = arith.constant 0 : i32
    %c0_i32_0 = arith.constant 0 : i32
    %c0_i32_1 = arith.constant 0 : i32
    %c0_i32_2 = arith.constant 0 : i32
    return %c0_i32, %c0_i32_0, %c0_i32_1 : i32, i32, i32
  }
  func.func @transform_4(%arg0: i32) -> (i32, i32, i32) {
    %c0_i32 = arith.constant 0 : i32
    %c0_i32_0 = arith.constant 0 : i32
    %c0_i32_1 = arith.constant 0 : i32
    %c0_i32_2 = arith.constant 0 : i32
    return %c0_i32, %c0_i32_0, %c0_i32_1 : i32, i32, i32
  }
  func.func @transform_5(%arg0: i32) -> (i32, i32, i32) {
    %c0_i32 = arith.constant 0 : i32
    %c0_i32_0 = arith.constant 0 : i32
    %c0_i32_1 = arith.constant 0 : i32
    %c0_i32_2 = arith.constant 0 : i32
    return %c0_i32, %c0_i32_0, %c0_i32_1 : i32, i32, i32
  }
  func.func @transform_6(%arg0: i32) -> (i32, i32, i32) {
    %c0_i32 = arith.constant 0 : i32
    %c0_i32_0 = arith.constant 0 : i32
    %c0_i32_1 = arith.constant 0 : i32
    %c0_i32_2 = arith.constant 0 : i32
    return %c0_i32, %c0_i32_0, %c0_i32_1 : i32, i32, i32
  }
  func.func @transform_7(%arg0: i32) -> (i32, i32, i32) {
    %c0_i32 = arith.constant 0 : i32
    %c0_i32_0 = arith.constant 0 : i32
    %c0_i32_1 = arith.constant 0 : i32
    %c0_i32_2 = arith.constant 0 : i32
    return %c0_i32, %c0_i32_0, %c0_i32_1 : i32, i32, i32
  }
  func.func @transform_8(%arg0: i32) -> (i32, i32, i32) {
    %c0_i32 = arith.constant 0 : i32
    %c0_i32_0 = arith.constant 0 : i32
    %c0_i32_1 = arith.constant 0 : i32
    %c0_i32_2 = arith.constant 0 : i32
    return %c0_i32, %c0_i32_0, %c0_i32_1 : i32, i32, i32
  }
  func.func @transform_9(%arg0: i32) -> (i32, i32, i32) {
    %c0_i32 = arith.constant 0 : i32
    %c0_i32_0 = arith.constant 0 : i32
    %c0_i32_1 = arith.constant 0 : i32
    %c0_i32_2 = arith.constant 0 : i32
    return %c0_i32, %c0_i32_0, %c0_i32_1 : i32, i32, i32
  }
  func.func @transform_10(%arg0: i32) -> (i32, i32, i32) {
    %c0_i32 = arith.constant 0 : i32
    %c0_i32_0 = arith.constant 0 : i32
    %c0_i32_1 = arith.constant 0 : i32
    %c0_i32_2 = arith.constant 0 : i32
    return %c0_i32, %c0_i32_0, %c0_i32_1 : i32, i32, i32
  }
  func.func @transform_11(%arg0: i32) -> (i32, i32, i32) {
    %c0_i32 = arith.constant 0 : i32
    %c0_i32_0 = arith.constant 0 : i32
    %c0_i32_1 = arith.constant 0 : i32
    %c0_i32_2 = arith.constant 0 : i32
    return %c0_i32, %c0_i32_0, %c0_i32_1 : i32, i32, i32
  }
  func.func @transform_12(%arg0: i32) -> (i32, i32, i32) {
    %c0_i32 = arith.constant 0 : i32
    %c0_i32_0 = arith.constant 0 : i32
    %c0_i32_1 = arith.constant 0 : i32
    %c0_i32_2 = arith.constant 0 : i32
    return %c0_i32, %c0_i32_0, %c0_i32_1 : i32, i32, i32
  }
  func.func @transform_13(%arg0: i32) -> (i32, i32, i32) {
    %c0_i32 = arith.constant 0 : i32
    %c0_i32_0 = arith.constant 0 : i32
    %c0_i32_1 = arith.constant 0 : i32
    %c0_i32_2 = arith.constant 0 : i32
    return %c0_i32, %c0_i32_0, %c0_i32_1 : i32, i32, i32
  }
  func.func @transform_14(%arg0: i32) -> (i32, i32, i32) {
    %c0_i32 = arith.constant 0 : i32
    %c0_i32_0 = arith.constant 0 : i32
    %c0_i32_1 = arith.constant 0 : i32
    %c0_i32_2 = arith.constant 0 : i32
    return %c0_i32, %c0_i32_0, %c0_i32_1 : i32, i32, i32
  }
  func.func @transform_15(%arg0: i32) -> (i32, i32, i32) {
    %c0_i32 = arith.constant 0 : i32
    %c0_i32_0 = arith.constant 0 : i32
    %c0_i32_1 = arith.constant 0 : i32
    %c0_i32_2 = arith.constant 0 : i32
    return %c0_i32, %c0_i32_0, %c0_i32_1 : i32, i32, i32
  }
  func.func @transform_16(%arg0: i32) -> (i32, i32, i32) {
    %c0_i32 = arith.constant 0 : i32
    %c0_i32_0 = arith.constant 0 : i32
    %c0_i32_1 = arith.constant 0 : i32
    %c0_i32_2 = arith.constant 0 : i32
    return %c0_i32, %c0_i32_0, %c0_i32_1 : i32, i32, i32
  }
  func.func @transform_17(%arg0: i32) -> (i32, i32) {
    %c0_i32 = arith.constant 0 : i32
    %c0_i32_0 = arith.constant 0 : i32
    %c0_i32_1 = arith.constant 0 : i32
    return %c0_i32, %c0_i32_0 : i32, i32
  }
  func.func @transform_18(%arg0: i32) -> (i32, i32, i32, i32) {
    %c0_i32 = arith.constant 0 : i32
    %c0_i32_0 = arith.constant 0 : i32
    %c0_i32_1 = arith.constant 0 : i32
    %c0_i32_2 = arith.constant 0 : i32
    %c0_i32_3 = arith.constant 0 : i32
    return %c0_i32, %c0_i32_0, %c0_i32_1, %c0_i32_2 : i32, i32, i32, i32
  }
  func.func @transform_19(%arg0: i32) -> (i32, i32, i32) {
    %c0_i32 = arith.constant 0 : i32
    %c0_i32_0 = arith.constant 0 : i32
    %c0_i32_1 = arith.constant 0 : i32
    %c0_i32_2 = arith.constant 0 : i32
    return %c0_i32, %c0_i32_0, %c0_i32_1 : i32, i32, i32
  }
}

</mosaic_0001>

<llo_original>
// kernel: _lambda_.1
$region0: #{_lambda_.1}
  #allocation0 [shape = 'u32[]', space=smem, size = 0x4, offset = 0x4, fixed_abs, tag = 'smem constant byte address 0x4 - core index']
  #allocation1 [shape = 'u32[144,128]{1,0:T(1,128)}', space=vmem, size = 0x12000, scoped, tag = 'internal scratch']
  %s0 = inlined_call_operand.vmem [shape: f32[2,8,32], index: 0, kind: input, shape index: {}]
  %s1 = inlined_call_operand.vmem [shape: f32[3,1,32], index: 1, kind: input, shape index: {}]
  %s2 = inlined_call_operand.hbm [shape: f32[3,32,128], index: 2, kind: input, shape index: {}]
  %s3 = inlined_call_operand.hbm [shape: f32[3,4,64], index: 3, kind: input, shape index: {}]
  %s4 = inlined_call_operand.vmem [shape: f32[3,1,64], index: 4, kind: input, shape index: {}]
  %s5 = inlined_call_operand.hbm [shape: f32[3,64,20], index: 5, kind: input, shape index: {}]
  %s6 = inlined_call_operand.vmem [shape: f32[3,4,64], index: 6, kind: input, shape index: {}]
  %s7 = inlined_call_operand.vmem [shape: f32[3,1,64], index: 7, kind: input, shape index: {}]
  %s8 = inlined_call_operand.hbm [shape: f32[3,8,64], index: 8, kind: input, shape index: {}]
  %s9 = inlined_call_operand.vmem [shape: f32[3,1,64], index: 9, kind: input, shape index: {}]
  %s10 = inlined_call_operand.vmem [shape: f32[3,64,32], index: 10, kind: input, shape index: {}]
  %s11 = inlined_call_operand.vmem [shape: f32[2,1,32], index: 11, kind: input, shape index: {}]
  %s12 = inlined_call_operand.vmem [shape: f32[2,1,32], index: 12, kind: input, shape index: {}, may-alias: {12,16}]
  %s13 = inlined_call_operand.hbm [shape: f32[2,32,96], index: 13, kind: input, shape index: {}]
  %s14 = inlined_call_operand.vmem [shape: f32[2,1,96], index: 14, kind: input, shape index: {}]
  %s15 = inlined_call_operand.hbm [shape: f32[2,32,32], index: 15, kind: input, shape index: {}]
  %s16 = inlined_call_operand.vmem [shape: f32[2,1,32], index: 16, kind: input, shape index: {}, may-alias: {12,16}]
  %s17 = inlined_call_operand.hbm [shape: f32[32,64], index: 17, kind: input, shape index: {}]
  %s18 = inlined_call_operand.vmem [shape: f32[3,2,8,32], index: 18, kind: output, shape index: {0}]
  %s19 = inlined_call_operand.hbm [shape: f32[2,8,64], index: 19, kind: output, shape index: {1}]
  %20 = xla_tuple %s18, %s19
  %s21 = sld [smem:[#allocation0]]
  $region118: #{_lambda_.1} parent=0
    _
  %s23 = ssub.s32 1, %s21
  %s24 = scalar_select 0, %s23, %s21
  $region1: #{_lambda_.1} parent=0
    #allocation2 [shape = 'u8[49152]{0}', space=vmem, size = 0xc000, scoped, tag = 'input window, operand 2, single buffered']
    #allocation3 [shape = 's32[1]{0}', space=sflag, size = 0x4, scoped, tag = 'scoped memory for _lambda_.1']
    #allocation4 [shape = 's32[1]{0}', space=sflag, size = 0x4, scoped, tag = 'scoped memory for _lambda_.1']
    #allocation5 [shape = 'u8[6144]{0}', space=vmem, size = 0x1800, scoped, tag = 'input window, operand 3, single buffered']
    #allocation6 [shape = 's32[1]{0}', space=sflag, size = 0x4, scoped, tag = 'scoped memory for _lambda_.1']
    #allocation7 [shape = 'u8[98304]{0}', space=vmem, size = 0x18000, scoped, tag = 'input window, operand 5, single buffered']
    #allocation8 [shape = 'u8[12288]{0}', space=vmem, size = 0x3000, scoped, tag = 'input window, operand 8, single buffered']
    #allocation9 [shape = 's32[1]{0}', space=sflag, size = 0x4, scoped, tag = 'scoped memory for _lambda_.1']
    #allocation10 [shape = 'u8[32768]{0}', space=vmem, size = 0x8000, scoped, tag = 'input window, operand 13, single buffered']
    #allocation11 [shape = 'u8[32768]{0}', space=vmem, size = 0x8000, scoped, tag = 'input window, operand 15, single buffered']
    #allocation12 [shape = 's32[1]{0}', space=sflag, size = 0x4, scoped, tag = 'scoped memory for _lambda_.1']
    #allocation13 [shape = 'u8[16384]{0}', space=vmem, size = 0x4000, scoped, tag = 'input window, operand 17, single buffered']
    #allocation14 [shape = 'u8[8192]{0}', space=vmem, size = 0x2000, scoped, tag = 'output window, operand 1, single buffered']
    %25 = vsyncpa [#allocation3], 0
    %26 = vsyncpa [#allocation6], 0
    %27 = vsyncpa [#allocation9], 0
    %28 = vsyncpa [#allocation12], 0
    %29 = vsyncpa [#allocation4], 0
    // Predicated region
    $region2: #{_lambda_.1} parent=1 // pred_check
      _
    $region3: #{_lambda_.1} parent=1 // pred_check_branch
      %31 = sbr.rel (0) target = $region5
    $region4: #{_lambda_.1} parent=1 // pred_region
      _
    $region5: #{_lambda_.1} parent=1 // pred_fallthru
      _
    // Predicated region
    $region6: #{_lambda_.1} parent=1 // pred_check
      _
    $region7: #{_lambda_.1} parent=1 // pred_check_branch
      %33 = sbr.rel (0) target = $region9
    $region8: #{_lambda_.1} parent=1 // pred_region
      _
    $region9: #{_lambda_.1} parent=1 // pred_fallthru
      _
    // Predicated region
    $region10: #{_lambda_.1} parent=1 // pred_check
      _
    $region11: #{_lambda_.1} parent=1 // pred_check_branch
      %35 = sbr.rel (0) target = $region13
    $region12: #{_lambda_.1} parent=1 // pred_region
      %s37 = ssub.s32 1536, 1536
      %38 = vsyncadd [#allocation3], %s37
      %s39 = sshll.u32 [#allocation2], 4
      %s40 = int_to_ptr.vmem [resolvable:$true] %s39
      %45 = dma.hbm_to_vmem [thread:$0]  %s2, 1536, %s40, [#allocation3], 128, 128, 8
    $region13: #{_lambda_.1} parent=1 // pred_fallthru
      _
    // Predicated region
    $region14: #{_lambda_.1} parent=1 // pred_check
      _
    $region15: #{_lambda_.1} parent=1 // pred_check_branch
      %47 = sbr.rel (0) target = $region17
    $region16: #{_lambda_.1} parent=1 // pred_region
      %s49 = ssub.s32 192, 192
      %50 = vsyncadd [#allocation6], %s49
      %s51 = sshll.u32 [#allocation5], 4
      %s52 = int_to_ptr.vmem [resolvable:$true] %s51
      %57 = dma.hbm_to_vmem [thread:$0]  %s3, 192, %s52, [#allocation6], 64, 64, 4
    $region17: #{_lambda_.1} parent=1 // pred_fallthru
      _
    // Predicated region
    $region18: #{_lambda_.1} parent=1 // pred_check
      _
    $region19: #{_lambda_.1} parent=1 // pred_check_branch
      %59 = sbr.rel (0) target = $region21
    $region20: #{_lambda_.1} parent=1 // pred_region
      _
    $region21: #{_lambda_.1} parent=1 // pred_fallthru
      _
    // Predicated region
    $region22: #{_lambda_.1} parent=1 // pred_check
      _
    $region23: #{_lambda_.1} parent=1 // pred_check_branch
      %61 = sbr.rel (0) target = $region25
    $region24: #{_lambda_.1} parent=1 // pred_region
      %s63 = ssub.s32 3072, 3072
      %64 = vsyncadd [#allocation6], %s63
      %s65 = sshll.u32 [#allocation7], 4
      %s66 = int_to_ptr.vmem [resolvable:$true] %s65
      %71 = dma.hbm_to_vmem [thread:$0]  %s5, 3072, %s66, [#allocation6], 128, 128, 8
    $region25: #{_lambda_.1} parent=1 // pred_fallthru
      _
    // Predicated region
    $region26: #{_lambda_.1} parent=1 // pred_check
      _
    $region27: #{_lambda_.1} parent=1 // pred_check_branch
      %73 = sbr.rel (0) target = $region29
    $region28: #{_lambda_.1} parent=1 // pred_region
      _
    $region29: #{_lambda_.1} parent=1 // pred_fallthru
      _
    // Predicated region
    $region30: #{_lambda_.1} parent=1 // pred_check
      _
    $region31: #{_lambda_.1} parent=1 // pred_check_branch
      %75 = sbr.rel (0) target = $region33
    $region32: #{_lambda_.1} parent=1 // pred_region
      _
    $region33: #{_lambda_.1} parent=1 // pred_fallthru
      _
    // Predicated region
    $region34: #{_lambda_.1} parent=1 // pred_check
      _
    $region35: #{_lambda_.1} parent=1 // pred_check_branch
      %77 = sbr.rel (0) target = $region37
    $region36: #{_lambda_.1} parent=1 // pred_region
      %s79 = ssub.s32 384, 384
      %80 = vsyncadd [#allocation9], %s79
      %s81 = sshll.u32 [#allocation8], 4
      %s82 = int_to_ptr.vmem [resolvable:$true] %s81
      %87 = dma.hbm_to_vmem [thread:$0]  %s8, 384, %s82, [#allocation9], 128, 128, 8
    $region37: #{_lambda_.1} parent=1 // pred_fallthru
      _
    // Predicated region
    $region38: #{_lambda_.1} parent=1 // pred_check
      _
    $region39: #{_lambda_.1} parent=1 // pred_check_branch
      %89 = sbr.rel (0) target = $region41
    $region40: #{_lambda_.1} parent=1 // pred_region
      _
    $region41: #{_lambda_.1} parent=1 // pred_fallthru
      _
    // Predicated region
    $region42: #{_lambda_.1} parent=1 // pred_check
      _
    $region43: #{_lambda_.1} parent=1 // pred_check_branch
      %91 = sbr.rel (0) target = $region45
    $region44: #{_lambda_.1} parent=1 // pred_region
      _
    $region45: #{_lambda_.1} parent=1 // pred_fallthru
      _
    // Predicated region
    $region46: #{_lambda_.1} parent=1 // pred_check
      _
    $region47: #{_lambda_.1} parent=1 // pred_check_branch
      %93 = sbr.rel (0) target = $region49
    $region48: #{_lambda_.1} parent=1 // pred_region
      _
    $region49: #{_lambda_.1} parent=1 // pred_fallthru
      _
    // Predicated region
    $region50: #{_lambda_.1} parent=1 // pred_check
      _
    $region51: #{_lambda_.1} parent=1 // pred_check_branch
      %95 = sbr.rel (0) target = $region53
    $region52: #{_lambda_.1} parent=1 // pred_region
      _
    $region53: #{_lambda_.1} parent=1 // pred_fallthru
      _
    // Predicated region
    $region54: #{_lambda_.1} parent=1 // pred_check
      _
    $region55: #{_lambda_.1} parent=1 // pred_check_branch
      %97 = sbr.rel (0) target = $region57
    $region56: #{_lambda_.1} parent=1 // pred_region
      %s99 = ssub.s32 1024, 1024
      %100 = vsyncadd [#allocation9], %s99
      %s101 = sshll.u32 [#allocation10], 4
      %s102 = int_to_ptr.vmem [resolvable:$true] %s101
      %107 = dma.hbm_to_vmem [thread:$0]  %s13, 1024, %s102, [#allocation9], 128, 128, 8
    $region57: #{_lambda_.1} parent=1 // pred_fallthru
      _
    // Predicated region
    $region58: #{_lambda_.1} parent=1 // pred_check
      _
    $region59: #{_lambda_.1} parent=1 // pred_check_branch
      %109 = sbr.rel (0) target = $region61
    $region60: #{_lambda_.1} parent=1 // pred_region
      _
    $region61: #{_lambda_.1} parent=1 // pred_fallthru
      _
    // Predicated region
    $region62: #{_lambda_.1} parent=1 // pred_check
      _
    $region63: #{_lambda_.1} parent=1 // pred_check_branch
      %111 = sbr.rel (0) target = $region65
    $region64: #{_lambda_.1} parent=1 // pred_region
      %s113 = ssub.s32 1024, 1024
      %114 = vsyncadd [#allocation12], %s113
      %s115 = sshll.u32 [#allocation11], 4
      %s116 = int_to_ptr.vmem [resolvable:$true] %s115
      %121 = dma.hbm_to_vmem [thread:$0]  %s15, 1024, %s116, [#allocation12], 128, 128, 8
    $region65: #{_lambda_.1} parent=1 // pred_fallthru
      _
    // Predicated region
    $region66: #{_lambda_.1} parent=1 // pred_check
      _
    $region67: #{_lambda_.1} parent=1 // pred_check_branch
      %123 = sbr.rel (0) target = $region69
    $region68: #{_lambda_.1} parent=1 // pred_region
      _
    $region69: #{_lambda_.1} parent=1 // pred_fallthru
      _
    // Predicated region
    $region70: #{_lambda_.1} parent=1 // pred_check
      _
    $region71: #{_lambda_.1} parent=1 // pred_check_branch
      %125 = sbr.rel (0) target = $region73
    $region72: #{_lambda_.1} parent=1 // pred_region
      %s127 = ssub.s32 512, 512
      %128 = vsyncadd [#allocation12], %s127
      %s129 = sshll.u32 [#allocation13], 4
      %s130 = int_to_ptr.vmem [resolvable:$true] %s129
      %135 = dma.hbm_to_vmem [thread:$0]  %s17, 512, %s130, [#allocation12], 128, 128, 8
    $region73: #{_lambda_.1} parent=1 // pred_fallthru
      _
    // Predicated region
    $region74: #{_lambda_.1} parent=1 // pred_check
      _
    $region75: #{_lambda_.1} parent=1 // pred_check_branch
      %137 = sbr.rel (0) target = $region77
    $region76: #{_lambda_.1} parent=1 // pred_region
      %138 = dma.done [#allocation3], 1536
    $region77: #{_lambda_.1} parent=1 // pred_fallthru
      _
    // Predicated region
    $region78: #{_lambda_.1} parent=1 // pred_check
      _
    $region79: #{_lambda_.1} parent=1 // pred_check_branch
      %140 = sbr.rel (0) target = $region81
    $region80: #{_lambda_.1} parent=1 // pred_region
      %141 = dma.done [#allocation6], 192
    $region81: #{_lambda_.1} parent=1 // pred_fallthru
      _
    // Predicated region
    $region82: #{_lambda_.1} parent=1 // pred_check
      _
    $region83: #{_lambda_.1} parent=1 // pred_check_branch
      %143 = sbr.rel (0) target = $region85
    $region84: #{_lambda_.1} parent=1 // pred_region
      %144 = dma.done [#allocation6], 3072
    $region85: #{_lambda_.1} parent=1 // pred_fallthru
      _
    // Predicated region
    $region86: #{_lambda_.1} parent=1 // pred_check
      _
    $region87: #{_lambda_.1} parent=1 // pred_check_branch
      %146 = sbr.rel (0) target = $region89
    $region88: #{_lambda_.1} parent=1 // pred_region
      %147 = dma.done [#allocation9], 384
    $region89: #{_lambda_.1} parent=1 // pred_fallthru
      _
    // Predicated region
    $region90: #{_lambda_.1} parent=1 // pred_check
      _
    $region91: #{_lambda_.1} parent=1 // pred_check_branch
      %149 = sbr.rel (0) target = $region93
    $region92: #{_lambda_.1} parent=1 // pred_region
      %150 = dma.done [#allocation9], 1024
    $region93: #{_lambda_.1} parent=1 // pred_fallthru
      _
    // Predicated region
    $region94: #{_lambda_.1} parent=1 // pred_check
      _
    $region95: #{_lambda_.1} parent=1 // pred_check_branch
      %152 = sbr.rel (0) target = $region97
    $region96: #{_lambda_.1} parent=1 // pred_region
      %153 = dma.done [#allocation12], 1024
    $region97: #{_lambda_.1} parent=1 // pred_fallthru
      _
    // Predicated region
    $region98: #{_lambda_.1} parent=1 // pred_check
      _
    $region99: #{_lambda_.1} parent=1 // pred_check_branch
      %155 = sbr.rel (0) target = $region101
    $region100: #{_lambda_.1} parent=1 // pred_region
      %156 = dma.done [#allocation12], 512
    $region101: #{_lambda_.1} parent=1 // pred_fallthru
      _
    %v157 = vld [vmem:[%s0] sm:$0xff]
    %v158 = vld [vmem:[%s0 + $0x8] sm:$0xff]
    %v159 = vlaneseq
    %v160 = vshrl.u32 %v159, 7
    %v161 = vlaneseq
    %v162 = vand.u32 %v161, 127
    %vm163 = vcmp.ge.s32.totalorder %v160, %v162
    %v164 = vmul.f32 %v157, %v157
    %v165 = vmul.f32 %v158, %v158
    %vm166 = vcmask 261120
    %v167 = vsel %vm166, %v164, 0.0
    %168 = vadd.xlane.f32.xlu0 %v167
    %v169 = vpop.xlane.xlu0 %168
    %v170 = vsel %vm166, %v165, 0.0
    %171 = vadd.xlane.f32.xlu0 %v170
    %v172 = vpop.xlane.xlu0 %171
    %v173 = vrcp.pop 32.0
    %v174 = vmul.f32 %v169, %v173
    %v175 = vmul.f32 %v172, %v173
    %v176 = vadd.f32 %v174, 1e-05
    %v177 = vadd.f32 %v175, 1e-05
    %v178 = vrsqrt.pop %v176
    %v179 = vrsqrt.pop %v177
    %v180 = vmul.f32 %v157, %v178
    %v181 = vmul.f32 %v158, %v179
    %v182 = vld [vmem:[%s1] sm:$0x1]
    %v184 = vlaneseq
    %v185 = vshrl.u32 %v184, 7
    %v186 = vsub.s32 0, %v185
    %v187 = vrot.slane %v182, %v186
    %v189 = vmul.f32 %v180, %v187
    %v190 = vmul.f32 %v181, %v187
    %v191 = vld [vmem:[#allocation2] sm:$0xff]
    %v192 = vld [vmem:[#allocation2 + $0x8] sm:$0xff]
    %v193 = vld [vmem:[#allocation2 + $0x10] sm:$0xff]
    %v194 = vld [vmem:[#allocation2 + $0x18] sm:$0xff]
    %v196 = vsel %vm166, %v189, 0
    %v199 = vsel %vm166, %v190, 0
    %201 = vmatprep.subr.mxu0 0.0
    %202 = vmatpush1.msra.mxu0 %v191
    %203 = vmatprep.subr.mxu0 0.0
    %204 = vmatpush1.msra.mxu0 %v192
    %205 = vmatprep.subr.mxu0 0.0
    %206 = vmatpush1.msra.mxu0 %v193
    %207 = vmatprep.subr.mxu0 0.0
    %208 = vmatpush1.msra.mxu0 %v194
    %209 = vmatprep.subr.mxu0 0.0
    %210 = vmatpush1.msra.mxu0 0.0
    %211 = vmatprep.subr.mxu0 0.0
    %212 = vmatpush1.msra.mxu0 0.0
    %213 = vmatprep.subr.mxu0 0.0
    %214 = vmatpush1.msra.mxu0 0.0
    %215 = vmatprep.subr.mxu0 0.0
    %216 = vmatpush1.msra.mxu0 0.0
    %217 = vmatprep.subr.mxu0 0.0
    %218 = vmatpush1.msra.mxu0 0.0
    %219 = vmatprep.subr.mxu0 0.0
    %220 = vmatpush1.msra.mxu0 0.0
    %221 = vmatprep.subr.mxu0 0.0
    %222 = vmatpush1.msra.mxu0 0.0
    %223 = vmatprep.subr.mxu0 0.0
    %224 = vmatpush1.msra.mxu0 0.0
    %225 = vmatprep.subr.mxu0 0.0
    %226 = vmatpush1.msra.mxu0 0.0
    %227 = vmatprep.subr.mxu0 0.0
    %228 = vmatpush1.msra.mxu0 0.0
    %229 = vmatprep.subr.mxu0 0.0
    %230 = vmatpush1.msra.mxu0 0.0
    %231 = vmatprep.subr.mxu0 0.0
    %232 = vmatpush1.msra.mxu0 0.0
    %233 = vmatprep.subr.mxu0 0.0
    %234 = vmatpush1.msra.mxu0 0.0
    %235 = vmatprep.subr.mxu0 0.0
    %236 = vmatpush1.msra.mxu0 0.0
    %237 = vmatprep.subr.mxu0 0.0
    %238 = vmatpush1.msra.mxu0 0.0
    %239 = vmatprep.subr.mxu0 0.0
    %240 = vmatpush1.msra.mxu0 0.0
    %241 = vmatprep.subr.mxu0 0.0
    %242 = vmatpush1.msra.mxu0 0.0
    %243 = vmatprep.subr.mxu0 0.0
    %244 = vmatpush1.msra.mxu0 0.0
    %245 = vmatprep.subr.mxu0 0.0
    %246 = vmatpush1.msra.mxu0 0.0
    %247 = vmatprep.subr.mxu0 0.0
    %248 = vmatpush1.msra.mxu0 0.0
    %249 = vmatprep.subr.mxu0 0.0
    %250 = vmatpush1.msra.mxu0 0.0
    %251 = vmatprep.subr.mxu0 0.0
    %252 = vmatpush1.msra.mxu0 0.0
    %253 = vmatprep.subr.mxu0 0.0
    %254 = vmatpush1.msra.mxu0 0.0
    %255 = vmatprep.subr.mxu0 0.0
    %256 = vmatpush1.msra.mxu0 0.0
    %257 = vmatprep.subr.mxu0 0.0
    %258 = vmatpush1.msra.mxu0 0.0
    %259 = vmatprep.subr.mxu0 0.0
    %260 = vmatpush1.msra.mxu0 0.0
    %261 = vmatprep.subr.mxu0 0.0
    %262 = vmatpush1.msra.mxu0 0.0
    %263 = vmatprep.subr.mxu0 0.0
    %264 = vmatpush1.msra.mxu0 0.0
    %265 = vmatprep.mubr.f32.mxu0 0.0
    %266 = vmatmul.mubr.f32.gmra.mrb[0].mxu0 %v196
    %v267 = vpop.f32.mrb[0].mxu0
    %v268 = vadd.f32 0.0, %v267
    %v269 = vpop.f32.mrb[0].mxu0
    %270 = vmatprep.mubr.f32.mxu0 0.0
    %271 = vmatmul.mubr.f32.gmra.mrb[0].mxu0 %v199
    %v272 = vpop.f32.mrb[0].mxu0
    %v273 = vadd.f32 0.0, %v272
    %v274 = vpop.f32.mrb[0].mxu0
    %275 = vdwg.mxu0
    %v276 = vld [vmem:[#allocation5] sm:$0xf]
    %v277 = vlaneseq
    %v278 = vshrl.u32 %v277, 7
    %v279 = vsub.s32 3, %v278
    %v280 = vrot.slane %v276, %v279
    %v281 = vmul.f32 %v268, %v280
    %v282 = vmul.f32 %v273, %v280
    %v285 = vrot.slane %v268, 5
    %v286 = vrot.slane %v273, 5
    %vm289 = vcmask 1042432
    %v290 = vsel %vm289, 0.0, %v285
    %v291 = vsel %vm289, 0.0, %v286
    %v292 = vlaneseq
    %v293 = vshrl.u32 %v292, 7
    %v294 = vsub.s32 0, %v293
    %v295 = vrot.slane %v276, %v294
    %v296 = vmul.f32 %v290, %v295
    %v297 = vmul.f32 %v291, %v295
    %v298 = vadd.f32 %v281, %v296
    %v299 = vadd.f32 %v282, %v297
    %v300 = vrot.slane %v268, 6
    %v301 = vrot.slane %v273, 6
    %vm304 = vcmask 1041408
    %v305 = vsel %vm304, 0.0, %v300
    %v306 = vsel %vm304, 0.0, %v301
    %v307 = vlaneseq
    %v308 = vshrl.u32 %v307, 7
    %v309 = vsub.s32 1, %v308
    %v310 = vrot.slane %v276, %v309
    %v311 = vmul.f32 %v305, %v310
    %v312 = vmul.f32 %v306, %v310
    %v313 = vadd.f32 %v298, %v311
    %v314 = vadd.f32 %v299, %v312
    %v315 = vrot.slane %v268, 7
    %v316 = vrot.slane %v273, 7
    %vm319 = vcmask 1040384
    %v320 = vsel %vm319, 0.0, %v315
    %v321 = vsel %vm319, 0.0, %v316
    %v322 = vlaneseq
    %v323 = vshrl.u32 %v322, 7
    %v324 = vsub.s32 2, %v323
    %v325 = vrot.slane %v276, %v324
    %v326 = vmul.f32 %v320, %v325
    %v327 = vmul.f32 %v321, %v325
    %v328 = vadd.f32 %v313, %v326
    %v329 = vadd.f32 %v314, %v327
    %v330 = vld [vmem:[%s4] sm:$0x1]
    %v332 = vlaneseq
    %v333 = vshrl.u32 %v332, 7
    %v334 = vsub.s32 0, %v333
    %v335 = vrot.slane %v330, %v334
    %v337 = vadd.f32 %v328, %v335
    %v338 = vadd.f32 %v329, %v335
    %v339 = vxor.u32 %v337, 2147483648
    %v340 = vxor.u32 %v338, 2147483648
    %v341 = vmul.f32 %v339, 1.442695
    %v342 = vpow.pop %v341
    %v343 = vmul.f32 %v340, 1.442695
    %v344 = vpow.pop %v343
    %v345 = vadd.f32 %v342, 1.0
    %v346 = vadd.f32 %v344, 1.0
    %v347 = vrcp.pop %v345
    %v348 = vmul.f32 1.0, %v347
    %v349 = vrcp.pop %v346
    %v350 = vmul.f32 1.0, %v349
    %v351 = vmul.f32 %v337, %v348
    %v352 = vmul.f32 %v338, %v350
    %v353 = vld [vmem:[#allocation7] sm:$0xff]
    %v354 = vld [vmem:[#allocation7 + $0x8] sm:$0xff]
    %v355 = vld [vmem:[#allocation7 + $0x10] sm:$0xff]
    %v356 = vld [vmem:[#allocation7 + $0x18] sm:$0xff]
    %v357 = vld [vmem:[#allocation7 + $0x20] sm:$0xff]
    %v358 = vld [vmem:[#allocation7 + $0x28] sm:$0xff]
    %v359 = vld [vmem:[#allocation7 + $0x30] sm:$0xff]
    %v360 = vld [vmem:[#allocation7 + $0x38] sm:$0xff]
    %vm361 = vcmask 523264
    %v363 = vsel %vm361, %v351, 0
    %v366 = vsel %vm361, %v352, 0
    %368 = vmatprep.subr.mxu0 0.0
    %369 = vmatpush1.msra.mxu0 %v353
    %370 = vmatprep.subr.mxu0 0.0
    %371 = vmatpush1.msra.mxu0 %v354
    %372 = vmatprep.subr.mxu0 0.0
    %373 = vmatpush1.msra.mxu0 %v355
    %374 = vmatprep.subr.mxu0 0.0
    %375 = vmatpush1.msra.mxu0 %v356
    %376 = vmatprep.subr.mxu0 0.0
    %377 = vmatpush1.msra.mxu0 %v357
    %378 = vmatprep.subr.mxu0 0.0
    %379 = vmatpush1.msra.mxu0 %v358
    %380 = vmatprep.subr.mxu0 0.0
    %381 = vmatpush1.msra.mxu0 %v359
    %382 = vmatprep.subr.mxu0 0.0
    %383 = vmatpush1.msra.mxu0 %v360
    %384 = vmatprep.subr.mxu0 0.0
    %385 = vmatpush1.msra.mxu0 0.0
    %386 = vmatprep.subr.mxu0 0.0
    %387 = vmatpush1.msra.mxu0 0.0
    %388 = vmatprep.subr.mxu0 0.0
    %389 = vmatpush1.msra.mxu0 0.0
    %390 = vmatprep.subr.mxu0 0.0
    %391 = vmatpush1.msra.mxu0 0.0
    %392 = vmatprep.subr.mxu0 0.0
    %393 = vmatpush1.msra.mxu0 0.0
    %394 = vmatprep.subr.mxu0 0.0
    %395 = vmatpush1.msra.mxu0 0.0
    %396 = vmatprep.subr.mxu0 0.0
    %397 = vmatpush1.msra.mxu0 0.0
    %398 = vmatprep.subr.mxu0 0.0
    %399 = vmatpush1.msra.mxu0 0.0
    %400 = vmatprep.subr.mxu0 0.0
    %401 = vmatpush1.msra.mxu0 0.0
    %402 = vmatprep.subr.mxu0 0.0
    %403 = vmatpush1.msra.mxu0 0.0
    %404 = vmatprep.subr.mxu0 0.0
    %405 = vmatpush1.msra.mxu0 0.0
    %406 = vmatprep.subr.mxu0 0.0
    %407 = vmatpush1.msra.mxu0 0.0
    %408 = vmatprep.subr.mxu0 0.0
    %409 = vmatpush1.msra.mxu0 0.0
    %410 = vmatprep.subr.mxu0 0.0
    %411 = vmatpush1.msra.mxu0 0.0
    %412 = vmatprep.subr.mxu0 0.0
    %413 = vmatpush1.msra.mxu0 0.0
    %414 = vmatprep.subr.mxu0 0.0
    %415 = vmatpush1.msra.mxu0 0.0
    %416 = vmatprep.subr.mxu0 0.0
    %417 = vmatpush1.msra.mxu0 0.0
    %418 = vmatprep.subr.mxu0 0.0
    %419 = vmatpush1.msra.mxu0 0.0
    %420 = vmatprep.subr.mxu0 0.0
    %421 = vmatpush1.msra.mxu0 0.0
    %422 = vmatprep.subr.mxu0 0.0
    %423 = vmatpush1.msra.mxu0 0.0
    %424 = vmatprep.subr.mxu0 0.0
    %425 = vmatpush1.msra.mxu0 0.0
    %426 = vmatprep.subr.mxu0 0.0
    %427 = vmatpush1.msra.mxu0 0.0
    %428 = vmatprep.subr.mxu0 0.0
    %429 = vmatpush1.msra.mxu0 0.0
    %430 = vmatprep.subr.mxu0 0.0
    %431 = vmatpush1.msra.mxu0 0.0
    %432 = vmatprep.mubr.f32.mxu0 0.0
    %433 = vmatmul.mubr.f32.gmra.mrb[0].mxu0 %v363
    %v434 = vpop.f32.mrb[0].mxu0
    %v435 = vadd.f32 0.0, %v434
    %v436 = vpop.f32.mrb[0].mxu0
    %437 = vmatprep.mubr.f32.mxu0 0.0
    %438 = vmatmul.mubr.f32.gmra.mrb[0].mxu0 %v366
    %v439 = vpop.f32.mrb[0].mxu0
    %v440 = vadd.f32 0.0, %v439
    %v441 = vpop.f32.mrb[0].mxu0
    %442 = vdwg.mxu0
    %v443 = vld [vmem:[%s6] sm:$0xf]
    %v444 = vld [vmem:[%s7] sm:$0x1]
    %v446 = vlaneseq
    %v447 = vshrl.u32 %v446, 7
    %v448 = vsub.s32 0, %v447
    %v449 = vrot.slane %v444, %v448
    %vm451 = vcmask 31744
    %v453 = vsel %vm451, %v435, 0
    %v456 = vsel %vm451, %v440, 0
    %vm458 = vcmask 1043456
    %v460 = vsel %vm458, %v443, 0
    %462 = vmatprep.subr.mxu0 0.0
    %463 = vmatpush1.msra.mxu0 %v460
    %464 = vmatprep.subr.mxu0 0.0
    %465 = vmatpush1.msra.mxu0 0.0
    %466 = vmatprep.subr.mxu0 0.0
    %467 = vmatpush1.msra.mxu0 0.0
    %468 = vmatprep.subr.mxu0 0.0
    %469 = vmatpush1.msra.mxu0 0.0
    %470 = vmatprep.subr.mxu0 0.0
    %471 = vmatpush1.msra.mxu0 0.0
    %472 = vmatprep.subr.mxu0 0.0
    %473 = vmatpush1.msra.mxu0 0.0
    %474 = vmatprep.subr.mxu0 0.0
    %475 = vmatpush1.msra.mxu0 0.0
    %476 = vmatprep.subr.mxu0 0.0
    %477 = vmatpush1.msra.mxu0 0.0
    %478 = vmatprep.subr.mxu0 0.0
    %479 = vmatpush1.msra.mxu0 0.0
    %480 = vmatprep.subr.mxu0 0.0
    %481 = vmatpush1.msra.mxu0 0.0
    %482 = vmatprep.subr.mxu0 0.0
    %483 = vmatpush1.msra.mxu0 0.0
    %484 = vmatprep.subr.mxu0 0.0
    %485 = vmatpush1.msra.mxu0 0.0
    %486 = vmatprep.subr.mxu0 0.0
    %487 = vmatpush1.msra.mxu0 0.0
    %488 = vmatprep.subr.mxu0 0.0
    %489 = vmatpush1.msra.mxu0 0.0
    %490 = vmatprep.subr.mxu0 0.0
    %491 = vmatpush1.msra.mxu0 0.0
    %492 = vmatprep.subr.mxu0 0.0
    %493 = vmatpush1.msra.mxu0 0.0
    %494 = vmatprep.subr.mxu0 0.0
    %495 = vmatpush1.msra.mxu0 0.0
    %496 = vmatprep.subr.mxu0 0.0
    %497 = vmatpush1.msra.mxu0 0.0
    %498 = vmatprep.subr.mxu0 0.0
    %499 = vmatpush1.msra.mxu0 0.0
    %500 = vmatprep.subr.mxu0 0.0
    %501 = vmatpush1.msra.mxu0 0.0
    %502 = vmatprep.subr.mxu0 0.0
    %503 = vmatpush1.msra.mxu0 0.0
    %504 = vmatprep.subr.mxu0 0.0
    %505 = vmatpush1.msra.mxu0 0.0
    %506 = vmatprep.subr.mxu0 0.0
    %507 = vmatpush1.msra.mxu0 0.0
    %508 = vmatprep.subr.mxu0 0.0
    %509 = vmatpush1.msra.mxu0 0.0
    %510 = vmatprep.subr.mxu0 0.0
    %511 = vmatpush1.msra.mxu0 0.0
    %512 = vmatprep.subr.mxu0 0.0
    %513 = vmatpush1.msra.mxu0 0.0
    %514 = vmatprep.subr.mxu0 0.0
    %515 = vmatpush1.msra.mxu0 0.0
    %516 = vmatprep.subr.mxu0 0.0
    %517 = vmatpush1.msra.mxu0 0.0
    %518 = vmatprep.subr.mxu0 0.0
    %519 = vmatpush1.msra.mxu0 0.0
    %520 = vmatprep.subr.mxu0 0.0
    %521 = vmatpush1.msra.mxu0 0.0
    %522 = vmatprep.subr.mxu0 0.0
    %523 = vmatpush1.msra.mxu0 0.0
    %524 = vmatprep.subr.mxu0 0.0
    %525 = vmatpush1.msra.mxu0 0.0
    %526 = vmatprep.mubr.f32.mxu0 0.0
    %527 = vmatmul.mubr.f32.gmra.mrb[0].mxu0 %v453
    %v528 = vpop.f32.mrb[0].mxu0
    %v529 = vadd.f32 %v449, %v528
    %v530 = vpop.f32.mrb[0].mxu0
    %531 = vmatprep.mubr.f32.mxu0 0.0
    %532 = vmatmul.mubr.f32.gmra.mrb[0].mxu0 %v456
    %v533 = vpop.f32.mrb[0].mxu0
    %v534 = vadd.f32 %v449, %v533
    %v535 = vpop.f32.mrb[0].mxu0
    %536 = vdwg.mxu0
    %vm537 = vcmp.gt.f32.partialorder %v529, 20.0
    %vm538 = vcmp.gt.f32.partialorder %v534, 20.0
    %v539 = vmin.f32 %v529, 20.0
    %v540 = vmin.f32 %v534, 20.0
    %v541 = vmul.f32 %v539, 1.442695
    %v542 = vpow.pop %v541
    %v543 = vmul.f32 %v540, 1.442695
    %v544 = vpow.pop %v543
    %v545 = vadd.f32 %v542, 1.0
    %v546 = vlog2.pop %v545
    %v547 = vmul.f32 %v546, 0.6931472
    %v548 = vmul.f32 -0.5, %v542
    %v549 = vadd.f32 %v548, 1.0
    %v550 = vmul.f32 %v549, %v542
    %v551 = vand.u32 2147483647, %v542
    %vm552 = vcmp.lt.f32.partialorder %v551, 0.0004427343
    %v553 = vsel %vm552, %v550, %v547
    %v554 = vadd.f32 %v544, 1.0
    %v555 = vlog2.pop %v554
    %v556 = vmul.f32 %v555, 0.6931472
    %v557 = vmul.f32 -0.5, %v544
    %v558 = vadd.f32 %v557, 1.0
    %v559 = vmul.f32 %v558, %v544
    %v560 = vand.u32 2147483647, %v544
    %vm561 = vcmp.lt.f32.partialorder %v560, 0.0004427343
    %v562 = vsel %vm561, %v559, %v556
    %v563 = vsel %vm537, %v529, %v553
    %v564 = vsel %vm538, %v534, %v562
    %v565 = vld [vmem:[#allocation8] sm:$0xff]
    %v568 = vcombine.high %v563, %v563
    %v570 = vunpack.c.l.s4 1966171168
    %v571 = vunpack.c.0.s8 %v570
    %v572 = vlaneseq
    %v573 = vshrl.u32 %v572, 7
    %v574 = vsub.s32 %v571, %v573
    %v575 = vrot.slane %v563, %v574
    %v577 = vunpack.c.l.s4 1966171168
    %v578 = vunpack.c.0.s8 %v577
    %v579 = vlaneseq
    %v580 = vshrl.u32 %v579, 7
    %v581 = vsub.s32 %v578, %v580
    %v582 = vrot.slane %v568, %v581
    %v583 = vcombine.high %v575, %v575
    %v584 = vcombine.high %v582, %v582
    %v586 = vunpack.c.l.s4 1966171168
    %v587 = vunpack.c.0.s8 %v586
    %v588 = vlaneseq
    %v589 = vshrl.u32 %v588, 7
    %v590 = vsub.s32 %v587, %v589
    %v591 = vrot.slane %v575, %v590
    %v593 = vunpack.c.l.s4 1966171168
    %v594 = vunpack.c.0.s8 %v593
    %v595 = vlaneseq
    %v596 = vshrl.u32 %v595, 7
    %v597 = vsub.s32 %v594, %v596
    %v598 = vrot.slane %v582, %v597
    %v600 = vunpack.c.l.s4 1966171168
    %v601 = vunpack.c.0.s8 %v600
    %v602 = vlaneseq
    %v603 = vshrl.u32 %v602, 7
    %v604 = vsub.s32 %v601, %v603
    %v605 = vrot.slane %v583, %v604
    %v607 = vunpack.c.l.s4 1966171168
    %v608 = vunpack.c.0.s8 %v607
    %v609 = vlaneseq
    %v610 = vshrl.u32 %v609, 7
    %v611 = vsub.s32 %v608, %v610
    %v612 = vrot.slane %v584, %v611
    %v613 = vcombine.high %v591, %v591
    %v614 = vcombine.high %v598, %v598
    %v615 = vcombine.high %v605, %v605
    %v616 = vcombine.high %v612, %v612
    %v617 = vcombine.high %v564, %v564
    %v619 = vunpack.c.l.s4 1966171168
    %v620 = vunpack.c.0.s8 %v619
    %v621 = vlaneseq
    %v622 = vshrl.u32 %v621, 7
    %v623 = vsub.s32 %v620, %v622
    %v624 = vrot.slane %v564, %v623
    %v626 = vunpack.c.l.s4 1966171168
    %v627 = vunpack.c.0.s8 %v626
    %v628 = vlaneseq
    %v629 = vshrl.u32 %v628, 7
    %v630 = vsub.s32 %v627, %v629
    %v631 = vrot.slane %v617, %v630
    %v632 = vcombine.high %v624, %v624
    %v633 = vcombine.high %v631, %v631
    %v635 = vunpack.c.l.s4 1966171168
    %v636 = vunpack.c.0.s8 %v635
    %v637 = vlaneseq
    %v638 = vshrl.u32 %v637, 7
    %v639 = vsub.s32 %v636, %v638
    %v640 = vrot.slane %v624, %v639
    %v642 = vunpack.c.l.s4 1966171168
    %v643 = vunpack.c.0.s8 %v642
    %v644 = vlaneseq
    %v645 = vshrl.u32 %v644, 7
    %v646 = vsub.s32 %v643, %v645
    %v647 = vrot.slane %v631, %v646
    %v649 = vunpack.c.l.s4 1966171168
    %v650 = vunpack.c.0.s8 %v649
    %v651 = vlaneseq
    %v652 = vshrl.u32 %v651, 7
    %v653 = vsub.s32 %v650, %v652
    %v654 = vrot.slane %v632, %v653
    %v656 = vunpack.c.l.s4 1966171168
    %v657 = vunpack.c.0.s8 %v656
    %v658 = vlaneseq
    %v659 = vshrl.u32 %v658, 7
    %v660 = vsub.s32 %v657, %v659
    %v661 = vrot.slane %v633, %v660
    %v662 = vcombine.high %v640, %v640
    %v663 = vcombine.high %v647, %v647
    %v664 = vcombine.high %v654, %v654
    %v665 = vcombine.high %v661, %v661
    %v666 = vlaneseq
    %v667 = vshrl.u32 %v666, 7
    %v668 = vsub.s32 0, %v667
    %v669 = vrot.slane %v591, %v668
    %v670 = vlaneseq
    %v671 = vshrl.u32 %v670, 7
    %v672 = vsub.s32 0, %v671
    %v673 = vrot.slane %v605, %v672
    %v674 = vlaneseq
    %v675 = vshrl.u32 %v674, 7
    %v676 = vsub.s32 0, %v675
    %v677 = vrot.slane %v613, %v676
    %v678 = vlaneseq
    %v679 = vshrl.u32 %v678, 7
    %v680 = vsub.s32 0, %v679
    %v681 = vrot.slane %v615, %v680
    %v682 = vlaneseq
    %v683 = vshrl.u32 %v682, 7
    %v684 = vsub.s32 0, %v683
    %v685 = vrot.slane %v598, %v684
    %v686 = vlaneseq
    %v687 = vshrl.u32 %v686, 7
    %v688 = vsub.s32 0, %v687
    %v689 = vrot.slane %v612, %v688
    %v690 = vlaneseq
    %v691 = vshrl.u32 %v690, 7
    %v692 = vsub.s32 0, %v691
    %v693 = vrot.slane %v614, %v692
    %v694 = vlaneseq
    %v695 = vshrl.u32 %v694, 7
    %v696 = vsub.s32 0, %v695
    %v697 = vrot.slane %v616, %v696
    %v698 = vlaneseq
    %v699 = vshrl.u32 %v698, 7
    %v700 = vsub.s32 0, %v699
    %v701 = vrot.slane %v640, %v700
    %v702 = vlaneseq
    %v703 = vshrl.u32 %v702, 7
    %v704 = vsub.s32 0, %v703
    %v705 = vrot.slane %v654, %v704
    %v706 = vlaneseq
    %v707 = vshrl.u32 %v706, 7
    %v708 = vsub.s32 0, %v707
    %v709 = vrot.slane %v662, %v708
    %v710 = vlaneseq
    %v711 = vshrl.u32 %v710, 7
    %v712 = vsub.s32 0, %v711
    %v713 = vrot.slane %v664, %v712
    %v714 = vlaneseq
    %v715 = vshrl.u32 %v714, 7
    %v716 = vsub.s32 0, %v715
    %v717 = vrot.slane %v647, %v716
    %v718 = vlaneseq
    %v719 = vshrl.u32 %v718, 7
    %v720 = vsub.s32 0, %v719
    %v721 = vrot.slane %v661, %v720
    %v722 = vlaneseq
    %v723 = vshrl.u32 %v722, 7
    %v724 = vsub.s32 0, %v723
    %v725 = vrot.slane %v663, %v724
    %v726 = vlaneseq
    %v727 = vshrl.u32 %v726, 7
    %v728 = vsub.s32 0, %v727
    %v729 = vrot.slane %v665, %v728
    %v746 = vmul.f32 %v565, %v669
    %v747 = vmul.f32 %v565, %v673
    %v748 = vmul.f32 %v565, %v677
    %v749 = vmul.f32 %v565, %v681
    %v750 = vmul.f32 %v565, %v685
    %v751 = vmul.f32 %v565, %v689
    %v752 = vmul.f32 %v565, %v693
    %v753 = vmul.f32 %v565, %v697
    %v754 = vmul.f32 %v565, %v701
    %v755 = vmul.f32 %v565, %v705
    %v756 = vmul.f32 %v565, %v709
    %v757 = vmul.f32 %v565, %v713
    %v758 = vmul.f32 %v565, %v717
    %v759 = vmul.f32 %v565, %v721
    %v760 = vmul.f32 %v565, %v725
    %v761 = vmul.f32 %v565, %v729
    %v762 = vmul.f32 %v746, 1.442695
    %v763 = vpow.pop %v762
    %v764 = vmul.f32 %v747, 1.442695
    %v765 = vpow.pop %v764
    %v766 = vmul.f32 %v748, 1.442695
    %v767 = vpow.pop %v766
    %v768 = vmul.f32 %v749, 1.442695
    %v769 = vpow.pop %v768
    %v770 = vmul.f32 %v750, 1.442695
    %v771 = vpow.pop %v770
    %v772 = vmul.f32 %v751, 1.442695
    %v773 = vpow.pop %v772
    %v774 = vmul.f32 %v752, 1.442695
    %v775 = vpow.pop %v774
    %v776 = vmul.f32 %v753, 1.442695
    %v777 = vpow.pop %v776
    %v778 = vmul.f32 %v754, 1.442695
    %v779 = vpow.pop %v778
    %v780 = vmul.f32 %v755, 1.442695
    %v781 = vpow.pop %v780
    %v782 = vmul.f32 %v756, 1.442695
    %v783 = vpow.pop %v782
    %v784 = vmul.f32 %v757, 1.442695
    %v785 = vpow.pop %v784
    %v786 = vmul.f32 %v758, 1.442695
    %v787 = vpow.pop %v786
    %v788 = vmul.f32 %v759, 1.442695
    %v789 = vpow.pop %v788
    %v790 = vmul.f32 %v760, 1.442695
    %v791 = vpow.pop %v790
    %v792 = vmul.f32 %v761, 1.442695
    %v793 = vpow.pop %v792
    %v794 = vmul.f32 %v563, %v351
    %v795 = vmul.f32 %v564, %v352
    %v796 = vlaneseq
    %v797 = vshrl.u32 %v796, 7
    %v798 = vsub.s32 0, %v797
    %v799 = vrot.slane %v435, %v798
    %s801 = sor.u32 256, 4
    %802 = vbcast.lane.b32.xlu0 %v799, %s801
    %v803 = vpop.permute.xlu0 %802
    %v804 = vlaneseq
    %v805 = vshrl.u32 %v804, 7
    %v806 = vsub.s32 1, %v805
    %v807 = vrot.slane %v435, %v806
    %s809 = sor.u32 256, 4
    %810 = vbcast.lane.b32.xlu0 %v807, %s809
    %v811 = vpop.permute.xlu0 %810
    %v812 = vlaneseq
    %v813 = vshrl.u32 %v812, 7
    %v814 = vsub.s32 2, %v813
    %v815 = vrot.slane %v435, %v814
    %s817 = sor.u32 256, 4
    %818 = vbcast.lane.b32.xlu0 %v815, %s817
    %v819 = vpop.permute.xlu0 %818
    %v820 = vlaneseq
    %v821 = vshrl.u32 %v820, 7
    %v822 = vsub.s32 3, %v821
    %v823 = vrot.slane %v435, %v822
    %s825 = sor.u32 256, 4
    %826 = vbcast.lane.b32.xlu0 %v823, %s825
    %v827 = vpop.permute.xlu0 %826
    %v828 = vlaneseq
    %v829 = vshrl.u32 %v828, 7
    %v830 = vsub.s32 4, %v829
    %v831 = vrot.slane %v435, %v830
    %s833 = sor.u32 256, 4
    %834 = vbcast.lane.b32.xlu0 %v831, %s833
    %v835 = vpop.permute.xlu0 %834
    %v836 = vlaneseq
    %v837 = vshrl.u32 %v836, 7
    %v838 = vsub.s32 5, %v837
    %v839 = vrot.slane %v435, %v838
    %s841 = sor.u32 256, 4
    %842 = vbcast.lane.b32.xlu0 %v839, %s841
    %v843 = vpop.permute.xlu0 %842
    %v844 = vlaneseq
    %v845 = vshrl.u32 %v844, 7
    %v846 = vsub.s32 6, %v845
    %v847 = vrot.slane %v435, %v846
    %s849 = sor.u32 256, 4
    %850 = vbcast.lane.b32.xlu0 %v847, %s849
    %v851 = vpop.permute.xlu0 %850
    %v852 = vlaneseq
    %v853 = vshrl.u32 %v852, 7
    %v854 = vsub.s32 7, %v853
    %v855 = vrot.slane %v435, %v854
    %s857 = sor.u32 256, 4
    %858 = vbcast.lane.b32.xlu0 %v855, %s857
    %v859 = vpop.permute.xlu0 %858
    %v860 = vlaneseq
    %v861 = vshrl.u32 %v860, 7
    %v862 = vsub.s32 0, %v861
    %v863 = vrot.slane %v440, %v862
    %s865 = sor.u32 256, 4
    %866 = vbcast.lane.b32.xlu0 %v863, %s865
    %v867 = vpop.permute.xlu0 %866
    %v868 = vlaneseq
    %v869 = vshrl.u32 %v868, 7
    %v870 = vsub.s32 1, %v869
    %v871 = vrot.slane %v440, %v870
    %s873 = sor.u32 256, 4
    %874 = vbcast.lane.b32.xlu0 %v871, %s873
    %v875 = vpop.permute.xlu0 %874
    %v876 = vlaneseq
    %v877 = vshrl.u32 %v876, 7
    %v878 = vsub.s32 2, %v877
    %v879 = vrot.slane %v440, %v878
    %s881 = sor.u32 256, 4
    %882 = vbcast.lane.b32.xlu0 %v879, %s881
    %v883 = vpop.permute.xlu0 %882
    %v884 = vlaneseq
    %v885 = vshrl.u32 %v884, 7
    %v886 = vsub.s32 3, %v885
    %v887 = vrot.slane %v440, %v886
    %s889 = sor.u32 256, 4
    %890 = vbcast.lane.b32.xlu0 %v887, %s889
    %v891 = vpop.permute.xlu0 %890
    %v892 = vlaneseq
    %v893 = vshrl.u32 %v892, 7
    %v894 = vsub.s32 4, %v893
    %v895 = vrot.slane %v440, %v894
    %s897 = sor.u32 256, 4
    %898 = vbcast.lane.b32.xlu0 %v895, %s897
    %v899 = vpop.permute.xlu0 %898
    %v900 = vlaneseq
    %v901 = vshrl.u32 %v900, 7
    %v902 = vsub.s32 5, %v901
    %v903 = vrot.slane %v440, %v902
    %s905 = sor.u32 256, 4
    %906 = vbcast.lane.b32.xlu0 %v903, %s905
    %v907 = vpop.permute.xlu0 %906
    %v908 = vlaneseq
    %v909 = vshrl.u32 %v908, 7
    %v910 = vsub.s32 6, %v909
    %v911 = vrot.slane %v440, %v910
    %s913 = sor.u32 256, 4
    %914 = vbcast.lane.b32.xlu0 %v911, %s913
    %v915 = vpop.permute.xlu0 %914
    %v916 = vlaneseq
    %v917 = vshrl.u32 %v916, 7
    %v918 = vsub.s32 7, %v917
    %v919 = vrot.slane %v440, %v918
    %s921 = sor.u32 256, 4
    %922 = vbcast.lane.b32.xlu0 %v919, %s921
    %v923 = vpop.permute.xlu0 %922
    %v926 = vcombine.high %v794, %v794
    %v928 = vunpack.c.l.s4 1966171168
    %v929 = vunpack.c.0.s8 %v928
    %v930 = vlaneseq
    %v931 = vshrl.u32 %v930, 7
    %v932 = vsub.s32 %v929, %v931
    %v933 = vrot.slane %v794, %v932
    %v935 = vunpack.c.l.s4 1966171168
    %v936 = vunpack.c.0.s8 %v935
    %v937 = vlaneseq
    %v938 = vshrl.u32 %v937, 7
    %v939 = vsub.s32 %v936, %v938
    %v940 = vrot.slane %v926, %v939
    %v941 = vcombine.high %v933, %v933
    %v942 = vcombine.high %v940, %v940
    %v944 = vunpack.c.l.s4 1966171168
    %v945 = vunpack.c.0.s8 %v944
    %v946 = vlaneseq
    %v947 = vshrl.u32 %v946, 7
    %v948 = vsub.s32 %v945, %v947
    %v949 = vrot.slane %v933, %v948
    %v951 = vunpack.c.l.s4 1966171168
    %v952 = vunpack.c.0.s8 %v951
    %v953 = vlaneseq
    %v954 = vshrl.u32 %v953, 7
    %v955 = vsub.s32 %v952, %v954
    %v956 = vrot.slane %v940, %v955
    %v958 = vunpack.c.l.s4 1966171168
    %v959 = vunpack.c.0.s8 %v958
    %v960 = vlaneseq
    %v961 = vshrl.u32 %v960, 7
    %v962 = vsub.s32 %v959, %v961
    %v963 = vrot.slane %v941, %v962
    %v965 = vunpack.c.l.s4 1966171168
    %v966 = vunpack.c.0.s8 %v965
    %v967 = vlaneseq
    %v968 = vshrl.u32 %v967, 7
    %v969 = vsub.s32 %v966, %v968
    %v970 = vrot.slane %v942, %v969
    %v971 = vcombine.high %v949, %v949
    %v972 = vcombine.high %v956, %v956
    %v973 = vcombine.high %v963, %v963
    %v974 = vcombine.high %v970, %v970
    %v975 = vcombine.high %v795, %v795
    %v977 = vunpack.c.l.s4 1966171168
    %v978 = vunpack.c.0.s8 %v977
    %v979 = vlaneseq
    %v980 = vshrl.u32 %v979, 7
    %v981 = vsub.s32 %v978, %v980
    %v982 = vrot.slane %v795, %v981
    %v984 = vunpack.c.l.s4 1966171168
    %v985 = vunpack.c.0.s8 %v984
    %v986 = vlaneseq
    %v987 = vshrl.u32 %v986, 7
    %v988 = vsub.s32 %v985, %v987
    %v989 = vrot.slane %v975, %v988
    %v990 = vcombine.high %v982, %v982
    %v991 = vcombine.high %v989, %v989
    %v993 = vunpack.c.l.s4 1966171168
    %v994 = vunpack.c.0.s8 %v993
    %v995 = vlaneseq
    %v996 = vshrl.u32 %v995, 7
    %v997 = vsub.s32 %v994, %v996
    %v998 = vrot.slane %v982, %v997
    %v1000 = vunpack.c.l.s4 1966171168
    %v1001 = vunpack.c.0.s8 %v1000
    %v1002 = vlaneseq
    %v1003 = vshrl.u32 %v1002, 7
    %v1004 = vsub.s32 %v1001, %v1003
    %v1005 = vrot.slane %v989, %v1004
    %v1007 = vunpack.c.l.s4 1966171168
    %v1008 = vunpack.c.0.s8 %v1007
    %v1009 = vlaneseq
    %v1010 = vshrl.u32 %v1009, 7
    %v1011 = vsub.s32 %v1008, %v1010
    %v1012 = vrot.slane %v990, %v1011
    %v1014 = vunpack.c.l.s4 1966171168
    %v1015 = vunpack.c.0.s8 %v1014
    %v1016 = vlaneseq
    %v1017 = vshrl.u32 %v1016, 7
    %v1018 = vsub.s32 %v1015, %v1017
    %v1019 = vrot.slane %v991, %v1018
    %v1020 = vcombine.high %v998, %v998
    %v1021 = vcombine.high %v1005, %v1005
    %v1022 = vcombine.high %v1012, %v1012
    %v1023 = vcombine.high %v1019, %v1019
    %v1024 = vlaneseq
    %v1025 = vshrl.u32 %v1024, 7
    %v1026 = vsub.s32 0, %v1025
    %v1027 = vrot.slane %v949, %v1026
    %v1028 = vlaneseq
    %v1029 = vshrl.u32 %v1028, 7
    %v1030 = vsub.s32 0, %v1029
    %v1031 = vrot.slane %v963, %v1030
    %v1032 = vlaneseq
    %v1033 = vshrl.u32 %v1032, 7
    %v1034 = vsub.s32 0, %v1033
    %v1035 = vrot.slane %v971, %v1034
    %v1036 = vlaneseq
    %v1037 = vshrl.u32 %v1036, 7
    %v1038 = vsub.s32 0, %v1037
    %v1039 = vrot.slane %v973, %v1038
    %v1040 = vlaneseq
    %v1041 = vshrl.u32 %v1040, 7
    %v1042 = vsub.s32 0, %v1041
    %v1043 = vrot.slane %v956, %v1042
    %v1044 = vlaneseq
    %v1045 = vshrl.u32 %v1044, 7
    %v1046 = vsub.s32 0, %v1045
    %v1047 = vrot.slane %v970, %v1046
    %v1048 = vlaneseq
    %v1049 = vshrl.u32 %v1048, 7
    %v1050 = vsub.s32 0, %v1049
    %v1051 = vrot.slane %v972, %v1050
    %v1052 = vlaneseq
    %v1053 = vshrl.u32 %v1052, 7
    %v1054 = vsub.s32 0, %v1053
    %v1055 = vrot.slane %v974, %v1054
    %v1056 = vlaneseq
    %v1057 = vshrl.u32 %v1056, 7
    %v1058 = vsub.s32 0, %v1057
    %v1059 = vrot.slane %v998, %v1058
    %v1060 = vlaneseq
    %v1061 = vshrl.u32 %v1060, 7
    %v1062 = vsub.s32 0, %v1061
    %v1063 = vrot.slane %v1012, %v1062
    %v1064 = vlaneseq
    %v1065 = vshrl.u32 %v1064, 7
    %v1066 = vsub.s32 0, %v1065
    %v1067 = vrot.slane %v1020, %v1066
    %v1068 = vlaneseq
    %v1069 = vshrl.u32 %v1068, 7
    %v1070 = vsub.s32 0, %v1069
    %v1071 = vrot.slane %v1022, %v1070
    %v1072 = vlaneseq
    %v1073 = vshrl.u32 %v1072, 7
    %v1074 = vsub.s32 0, %v1073
    %v1075 = vrot.slane %v1005, %v1074
    %v1076 = vlaneseq
    %v1077 = vshrl.u32 %v1076, 7
    %v1078 = vsub.s32 0, %v1077
    %v1079 = vrot.slane %v1019, %v1078
    %v1080 = vlaneseq
    %v1081 = vshrl.u32 %v1080, 7
    %v1082 = vsub.s32 0, %v1081
    %v1083 = vrot.slane %v1021, %v1082
    %v1084 = vlaneseq
    %v1085 = vshrl.u32 %v1084, 7
    %v1086 = vsub.s32 0, %v1085
    %v1087 = vrot.slane %v1023, %v1086
    %v1104 = vmul.f32 %v803, %v1027
    %v1105 = vmul.f32 %v811, %v1031
    %v1106 = vmul.f32 %v819, %v1035
    %v1107 = vmul.f32 %v827, %v1039
    %v1108 = vmul.f32 %v835, %v1043
    %v1109 = vmul.f32 %v843, %v1047
    %v1110 = vmul.f32 %v851, %v1051
    %v1111 = vmul.f32 %v859, %v1055
    %v1112 = vmul.f32 %v867, %v1059
    %v1113 = vmul.f32 %v875, %v1063
    %v1114 = vmul.f32 %v883, %v1067
    %v1115 = vmul.f32 %v891, %v1071
    %v1116 = vmul.f32 %v899, %v1075
    %v1117 = vmul.f32 %v907, %v1079
    %v1118 = vmul.f32 %v915, %v1083
    %v1119 = vmul.f32 %v923, %v1087
    %v1120 = vmul.f32 %v763, 0.0
    %v1121 = vmul.f32 %v779, 0.0
    %v1122 = vadd.f32 %v1120, %v1104
    %v1123 = vadd.f32 %v1121, %v1112
    %v1124 = vmul.f32 %v765, %v1122
    %v1125 = vmul.f32 %v781, %v1123
    %v1126 = vadd.f32 %v1124, %v1105
    %v1127 = vadd.f32 %v1125, %v1113
    %v1128 = vmul.f32 %v767, %v1126
    %v1129 = vmul.f32 %v783, %v1127
    %v1130 = vadd.f32 %v1128, %v1106
    %v1131 = vadd.f32 %v1129, %v1114
    %v1132 = vmul.f32 %v769, %v1130
    %v1133 = vmul.f32 %v785, %v1131
    %v1134 = vadd.f32 %v1132, %v1107
    %v1135 = vadd.f32 %v1133, %v1115
    %v1136 = vmul.f32 %v771, %v1134
    %v1137 = vmul.f32 %v787, %v1135
    %v1138 = vadd.f32 %v1136, %v1108
    %v1139 = vadd.f32 %v1137, %v1116
    %v1140 = vmul.f32 %v773, %v1138
    %v1141 = vmul.f32 %v789, %v1139
    %v1142 = vadd.f32 %v1140, %v1109
    %v1143 = vadd.f32 %v1141, %v1117
    %v1144 = vmul.f32 %v775, %v1142
    %v1145 = vmul.f32 %v791, %v1143
    %v1146 = vadd.f32 %v1144, %v1110
    %v1147 = vadd.f32 %v1145, %v1118
    %v1148 = vmul.f32 %v777, %v1146
    %v1149 = vmul.f32 %v793, %v1147
    %v1150 = vadd.f32 %v1148, %v1111
    %v1151 = vadd.f32 %v1149, %v1119
    %s1153 = sor.u32 256, 12
    %1154 = vbcast.lane.b32.xlu0 %v799, %s1153
    %v1155 = vpop.permute.xlu0 %1154
    %s1157 = sor.u32 256, 12
    %1158 = vbcast.lane.b32.xlu0 %v807, %s1157
    %v1159 = vpop.permute.xlu0 %1158
    %s1161 = sor.u32 256, 12
    %1162 = vbcast.lane.b32.xlu0 %v815, %s1161
    %v1163 = vpop.permute.xlu0 %1162
    %s1165 = sor.u32 256, 12
    %1166 = vbcast.lane.b32.xlu0 %v823, %s1165
    %v1167 = vpop.permute.xlu0 %1166
    %s1169 = sor.u32 256, 12
    %1170 = vbcast.lane.b32.xlu0 %v831, %s1169
    %v1171 = vpop.permute.xlu0 %1170
    %s1173 = sor.u32 256, 12
    %1174 = vbcast.lane.b32.xlu0 %v839, %s1173
    %v1175 = vpop.permute.xlu0 %1174
    %s1177 = sor.u32 256, 12
    %1178 = vbcast.lane.b32.xlu0 %v847, %s1177
    %v1179 = vpop.permute.xlu0 %1178
    %s1181 = sor.u32 256, 12
    %1182 = vbcast.lane.b32.xlu0 %v855, %s1181
    %v1183 = vpop.permute.xlu0 %1182
    %s1185 = sor.u32 256, 12
    %1186 = vbcast.lane.b32.xlu0 %v863, %s1185
    %v1187 = vpop.permute.xlu0 %1186
    %s1189 = sor.u32 256, 12
    %1190 = vbcast.lane.b32.xlu0 %v871, %s1189
    %v1191 = vpop.permute.xlu0 %1190
    %s1193 = sor.u32 256, 12
    %1194 = vbcast.lane.b32.xlu0 %v879, %s1193
    %v1195 = vpop.permute.xlu0 %1194
    %s1197 = sor.u32 256, 12
    %1198 = vbcast.lane.b32.xlu0 %v887, %s1197
    %v1199 = vpop.permute.xlu0 %1198
    %s1201 = sor.u32 256, 12
    %1202 = vbcast.lane.b32.xlu0 %v895, %s1201
    %v1203 = vpop.permute.xlu0 %1202
    %s1205 = sor.u32 256, 12
    %1206 = vbcast.lane.b32.xlu0 %v903, %s1205
    %v1207 = vpop.permute.xlu0 %1206
    %s1209 = sor.u32 256, 12
    %1210 = vbcast.lane.b32.xlu0 %v911, %s1209
    %v1211 = vpop.permute.xlu0 %1210
    %s1213 = sor.u32 256, 12
    %1214 = vbcast.lane.b32.xlu0 %v919, %s1213
    %v1215 = vpop.permute.xlu0 %1214
    %v1216 = vmul.f32 %v1155, %v1122
    %v1217 = vmul.f32 %v1159, %v1126
    %v1218 = vmul.f32 %v1163, %v1130
    %v1219 = vmul.f32 %v1167, %v1134
    %v1220 = vmul.f32 %v1171, %v1138
    %v1221 = vmul.f32 %v1175, %v1142
    %v1222 = vmul.f32 %v1179, %v1146
    %v1223 = vmul.f32 %v1183, %v1150
    %v1224 = vmul.f32 %v1187, %v1123
    %v1225 = vmul.f32 %v1191, %v1127
    %v1226 = vmul.f32 %v1195, %v1131
    %v1227 = vmul.f32 %v1199, %v1135
    %v1228 = vmul.f32 %v1203, %v1139
    %v1229 = vmul.f32 %v1207, %v1143
    %v1230 = vmul.f32 %v1211, %v1147
    %v1231 = vmul.f32 %v1215, %v1151
    %v1232 = vsel %vm361, %v1216, 0.0
    %v1233 = vrot.slane %v1232, 4
    %v1234 = vadd.f32 %v1232, %v1233
    %v1235 = vrot.slane %v1234, 2
    %v1236 = vadd.f32 %v1234, %v1235
    %v1237 = vrot.slane %v1236, 1
    %v1238 = vadd.f32 %v1236, %v1237
    %v1239 = vsel %vm361, %v1217, 0.0
    %v1240 = vrot.slane %v1239, 4
    %v1241 = vadd.f32 %v1239, %v1240
    %v1242 = vrot.slane %v1241, 2
    %v1243 = vadd.f32 %v1241, %v1242
    %v1244 = vrot.slane %v1243, 1
    %v1245 = vadd.f32 %v1243, %v1244
    %v1246 = vsel %vm361, %v1218, 0.0
    %v1247 = vrot.slane %v1246, 4
    %v1248 = vadd.f32 %v1246, %v1247
    %v1249 = vrot.slane %v1248, 2
    %v1250 = vadd.f32 %v1248, %v1249
    %v1251 = vrot.slane %v1250, 1
    %v1252 = vadd.f32 %v1250, %v1251
    %v1253 = vsel %vm361, %v1219, 0.0
    %v1254 = vrot.slane %v1253, 4
    %v1255 = vadd.f32 %v1253, %v1254
    %v1256 = vrot.slane %v1255, 2
    %v1257 = vadd.f32 %v1255, %v1256
    %v1258 = vrot.slane %v1257, 1
    %v1259 = vadd.f32 %v1257, %v1258
    %v1260 = vsel %vm361, %v1220, 0.0
    %v1261 = vrot.slane %v1260, 4
    %v1262 = vadd.f32 %v1260, %v1261
    %v1263 = vrot.slane %v1262, 2
    %v1264 = vadd.f32 %v1262, %v1263
    %v1265 = vrot.slane %v1264, 1
    %v1266 = vadd.f32 %v1264, %v1265
    %v1267 = vsel %vm361, %v1221, 0.0
    %v1268 = vrot.slane %v1267, 4
    %v1269 = vadd.f32 %v1267, %v1268
    %v1270 = vrot.slane %v1269, 2
    %v1271 = vadd.f32 %v1269, %v1270
    %v1272 = vrot.slane %v1271, 1
    %v1273 = vadd.f32 %v1271, %v1272
    %v1274 = vsel %vm361, %v1222, 0.0
    %v1275 = vrot.slane %v1274, 4
    %v1276 = vadd.f32 %v1274, %v1275
    %v1277 = vrot.slane %v1276, 2
    %v1278 = vadd.f32 %v1276, %v1277
    %v1279 = vrot.slane %v1278, 1
    %v1280 = vadd.f32 %v1278, %v1279
    %v1281 = vsel %vm361, %v1223, 0.0
    %v1282 = vrot.slane %v1281, 4
    %v1283 = vadd.f32 %v1281, %v1282
    %v1284 = vrot.slane %v1283, 2
    %v1285 = vadd.f32 %v1283, %v1284
    %v1286 = vrot.slane %v1285, 1
    %v1287 = vadd.f32 %v1285, %v1286
    %v1288 = vsel %vm361, %v1224, 0.0
    %v1289 = vrot.slane %v1288, 4
    %v1290 = vadd.f32 %v1288, %v1289
    %v1291 = vrot.slane %v1290, 2
    %v1292 = vadd.f32 %v1290, %v1291
    %v1293 = vrot.slane %v1292, 1
    %v1294 = vadd.f32 %v1292, %v1293
    %v1295 = vsel %vm361, %v1225, 0.0
    %v1296 = vrot.slane %v1295, 4
    %v1297 = vadd.f32 %v1295, %v1296
    %v1298 = vrot.slane %v1297, 2
    %v1299 = vadd.f32 %v1297, %v1298
    %v1300 = vrot.slane %v1299, 1
    %v1301 = vadd.f32 %v1299, %v1300
    %v1302 = vsel %vm361, %v1226, 0.0
    %v1303 = vrot.slane %v1302, 4
    %v1304 = vadd.f32 %v1302, %v1303
    %v1305 = vrot.slane %v1304, 2
    %v1306 = vadd.f32 %v1304, %v1305
    %v1307 = vrot.slane %v1306, 1
    %v1308 = vadd.f32 %v1306, %v1307
    %v1309 = vsel %vm361, %v1227, 0.0
    %v1310 = vrot.slane %v1309, 4
    %v1311 = vadd.f32 %v1309, %v1310
    %v1312 = vrot.slane %v1311, 2
    %v1313 = vadd.f32 %v1311, %v1312
    %v1314 = vrot.slane %v1313, 1
    %v1315 = vadd.f32 %v1313, %v1314
    %v1316 = vsel %vm361, %v1228, 0.0
    %v1317 = vrot.slane %v1316, 4
    %v1318 = vadd.f32 %v1316, %v1317
    %v1319 = vrot.slane %v1318, 2
    %v1320 = vadd.f32 %v1318, %v1319
    %v1321 = vrot.slane %v1320, 1
    %v1322 = vadd.f32 %v1320, %v1321
    %v1323 = vsel %vm361, %v1229, 0.0
    %v1324 = vrot.slane %v1323, 4
    %v1325 = vadd.f32 %v1323, %v1324
    %v1326 = vrot.slane %v1325, 2
    %v1327 = vadd.f32 %v1325, %v1326
    %v1328 = vrot.slane %v1327, 1
    %v1329 = vadd.f32 %v1327, %v1328
    %v1330 = vsel %vm361, %v1230, 0.0
    %v1331 = vrot.slane %v1330, 4
    %v1332 = vadd.f32 %v1330, %v1331
    %v1333 = vrot.slane %v1332, 2
    %v1334 = vadd.f32 %v1332, %v1333
    %v1335 = vrot.slane %v1334, 1
    %v1336 = vadd.f32 %v1334, %v1335
    %v1337 = vsel %vm361, %v1231, 0.0
    %v1338 = vrot.slane %v1337, 4
    %v1339 = vadd.f32 %v1337, %v1338
    %v1340 = vrot.slane %v1339, 2
    %v1341 = vadd.f32 %v1339, %v1340
    %v1342 = vrot.slane %v1341, 1
    %v1343 = vadd.f32 %v1341, %v1342
    %v1344 = vld [vmem:[%s9] sm:$0x1]
    %v1346 = vlaneseq
    %v1347 = vshrl.u32 %v1346, 7
    %v1348 = vsub.s32 0, %v1347
    %v1349 = vrot.slane %v1344, %v1348
    %v1351 = vmul.f32 %v1349, %v351
    %v1352 = vmul.f32 %v1349, %v352
    %v1355 = vrot.slane %v1351, 1
    %v1356 = vrot.slane %v1351, 2
    %v1357 = vrot.slane %v1351, 3
    %v1358 = vrot.slane %v1351, 4
    %v1359 = vrot.slane %v1351, 5
    %v1360 = vrot.slane %v1351, 6
    %v1361 = vrot.slane %v1351, 7
    %v1362 = vrot.slane %v1352, 1
    %v1363 = vrot.slane %v1352, 2
    %v1364 = vrot.slane %v1352, 3
    %v1365 = vrot.slane %v1352, 4
    %v1366 = vrot.slane %v1352, 5
    %v1367 = vrot.slane %v1352, 6
    %v1368 = vrot.slane %v1352, 7
    %v1385 = vadd.f32 %v1238, %v1351
    %v1386 = vadd.f32 %v1245, %v1355
    %v1387 = vadd.f32 %v1252, %v1356
    %v1388 = vadd.f32 %v1259, %v1357
    %v1389 = vadd.f32 %v1266, %v1358
    %v1390 = vadd.f32 %v1273, %v1359
    %v1391 = vadd.f32 %v1280, %v1360
    %v1392 = vadd.f32 %v1287, %v1361
    %v1393 = vadd.f32 %v1294, %v1352
    %v1394 = vadd.f32 %v1301, %v1362
    %v1395 = vadd.f32 %v1308, %v1363
    %v1396 = vadd.f32 %v1315, %v1364
    %v1397 = vadd.f32 %v1322, %v1365
    %v1398 = vadd.f32 %v1329, %v1366
    %v1399 = vadd.f32 %v1336, %v1367
    %v1400 = vadd.f32 %v1343, %v1368
    %v1401 = vxor.u32 %v268, 2147483648
    %v1402 = vxor.u32 %v273, 2147483648
    %v1403 = vmul.f32 %v1401, 1.442695
    %v1404 = vpow.pop %v1403
    %v1405 = vmul.f32 %v1402, 1.442695
    %v1406 = vpow.pop %v1405
    %v1407 = vadd.f32 %v1404, 1.0
    %v1408 = vadd.f32 %v1406, 1.0
    %v1409 = vrcp.pop %v1407
    %v1410 = vmul.f32 1.0, %v1409
    %v1411 = vrcp.pop %v1408
    %v1412 = vmul.f32 1.0, %v1411
    %v1413 = vmul.f32 %v268, %v1410
    %v1414 = vmul.f32 %v273, %v1412
    %v1417 = vrot.slane %v1413, 1
    %v1418 = vrot.slane %v1413, 2
    %v1419 = vrot.slane %v1413, 3
    %v1420 = vrot.slane %v1413, 4
    %v1421 = vrot.slane %v1413, 5
    %v1422 = vrot.slane %v1413, 6
    %v1423 = vrot.slane %v1413, 7
    %v1424 = vrot.slane %v1414, 1
    %v1425 = vrot.slane %v1414, 2
    %v1426 = vrot.slane %v1414, 3
    %v1427 = vrot.slane %v1414, 4
    %v1428 = vrot.slane %v1414, 5
    %v1429 = vrot.slane %v1414, 6
    %v1430 = vrot.slane %v1414, 7
    %1431 = vrot.lane.b32.xlu0 %v1413, 64
    %v1432 = vpop.permute.xlu0 %1431
    %1433 = vrot.lane.b32.xlu0 %v1417, 64
    %v1434 = vpop.permute.xlu0 %1433
    %1435 = vrot.lane.b32.xlu0 %v1418, 64
    %v1436 = vpop.permute.xlu0 %1435
    %1437 = vrot.lane.b32.xlu0 %v1419, 64
    %v1438 = vpop.permute.xlu0 %1437
    %1439 = vrot.lane.b32.xlu0 %v1420, 64
    %v1440 = vpop.permute.xlu0 %1439
    %1441 = vrot.lane.b32.xlu0 %v1421, 64
    %v1442 = vpop.permute.xlu0 %1441
    %1443 = vrot.lane.b32.xlu0 %v1422, 64
    %v1444 = vpop.permute.xlu0 %1443
    %1445 = vrot.lane.b32.xlu0 %v1423, 64
    %v1446 = vpop.permute.xlu0 %1445
    %1447 = vrot.lane.b32.xlu0 %v1414, 64
    %v1448 = vpop.permute.xlu0 %1447
    %1449 = vrot.lane.b32.xlu0 %v1424, 64
    %v1450 = vpop.permute.xlu0 %1449
    %1451 = vrot.lane.b32.xlu0 %v1425, 64
    %v1452 = vpop.permute.xlu0 %1451
    %1453 = vrot.lane.b32.xlu0 %v1426, 64
    %v1454 = vpop.permute.xlu0 %1453
    %1455 = vrot.lane.b32.xlu0 %v1427, 64
    %v1456 = vpop.permute.xlu0 %1455
    %1457 = vrot.lane.b32.xlu0 %v1428, 64
    %v1458 = vpop.permute.xlu0 %1457
    %1459 = vrot.lane.b32.xlu0 %v1429, 64
    %v1460 = vpop.permute.xlu0 %1459
    %1461 = vrot.lane.b32.xlu0 %v1430, 64
    %v1462 = vpop.permute.xlu0 %1461
    %v1479 = vmul.f32 %v1385, %v1432
    %v1480 = vmul.f32 %v1386, %v1434
    %v1481 = vmul.f32 %v1387, %v1436
    %v1482 = vmul.f32 %v1388, %v1438
    %v1483 = vmul.f32 %v1389, %v1440
    %v1484 = vmul.f32 %v1390, %v1442
    %v1485 = vmul.f32 %v1391, %v1444
    %v1486 = vmul.f32 %v1392, %v1446
    %v1487 = vmul.f32 %v1393, %v1448
    %v1488 = vmul.f32 %v1394, %v1450
    %v1489 = vmul.f32 %v1395, %v1452
    %v1490 = vmul.f32 %v1396, %v1454
    %v1491 = vmul.f32 %v1397, %v1456
    %v1492 = vmul.f32 %v1398, %v1458
    %v1493 = vmul.f32 %v1399, %v1460
    %v1494 = vmul.f32 %v1400, %v1462
    %v1495 = vld [vmem:[%s10] sm:$0xff]
    %v1496 = vld [vmem:[%s10 + $0x8] sm:$0xff]
    %v1497 = vld [vmem:[%s10 + $0x10] sm:$0xff]
    %v1498 = vld [vmem:[%s10 + $0x18] sm:$0xff]
    %v1499 = vld [vmem:[%s10 + $0x20] sm:$0xff]
    %v1500 = vld [vmem:[%s10 + $0x28] sm:$0xff]
    %v1501 = vld [vmem:[%s10 + $0x30] sm:$0xff]
    %v1502 = vld [vmem:[%s10 + $0x38] sm:$0xff]
    %v1519 = vrot.slane %v1480, 7
    %vm1520 = vcmask 1041409
    %v1521 = vsel %vm1520, %v1519, %v1479
    %v1522 = vrot.slane %v1481, 6
    %vm1523 = vcmask 1042434
    %v1524 = vsel %vm1523, %v1522, %v1521
    %v1525 = vrot.slane %v1482, 5
    %vm1526 = vcmask 1043459
    %v1527 = vsel %vm1526, %v1525, %v1524
    %v1528 = vrot.slane %v1483, 4
    %vm1529 = vcmask 1044484
    %v1530 = vsel %vm1529, %v1528, %v1527
    %v1531 = vrot.slane %v1484, 3
    %vm1532 = vcmask 1045509
    %v1533 = vsel %vm1532, %v1531, %v1530
    %v1534 = vrot.slane %v1485, 2
    %vm1535 = vcmask 1046534
    %v1536 = vsel %vm1535, %v1534, %v1533
    %v1537 = vrot.slane %v1486, 1
    %vm1538 = vcmask 1047559
    %v1539 = vsel %vm1538, %v1537, %v1536
    %v1540 = vrot.slane %v1488, 7
    %v1541 = vsel %vm1520, %v1540, %v1487
    %v1542 = vrot.slane %v1489, 6
    %v1543 = vsel %vm1523, %v1542, %v1541
    %v1544 = vrot.slane %v1490, 5
    %v1545 = vsel %vm1526, %v1544, %v1543
    %v1546 = vrot.slane %v1491, 4
    %v1547 = vsel %vm1529, %v1546, %v1545
    %v1548 = vrot.slane %v1492, 3
    %v1549 = vsel %vm1532, %v1548, %v1547
    %v1550 = vrot.slane %v1493, 2
    %v1551 = vsel %vm1535, %v1550, %v1549
    %v1552 = vrot.slane %v1494, 1
    %v1553 = vsel %vm1538, %v1552, %v1551
    %v1554 = vsel %vm361, %v1539, 0
    %v1556 = vsel %vm361, %v1553, 0
    %1558 = vmatprep.subr.mxu0 0.0
    %1559 = vmatpush1.msra.mxu0 %v1495
    %1560 = vmatprep.subr.mxu0 0.0
    %1561 = vmatpush1.msra.mxu0 %v1496
    %1562 = vmatprep.subr.mxu0 0.0
    %1563 = vmatpush1.msra.mxu0 %v1497
    %1564 = vmatprep.subr.mxu0 0.0
    %1565 = vmatpush1.msra.mxu0 %v1498
    %1566 = vmatprep.subr.mxu0 0.0
    %1567 = vmatpush1.msra.mxu0 %v1499
    %1568 = vmatprep.subr.mxu0 0.0
    %1569 = vmatpush1.msra.mxu0 %v1500
    %1570 = vmatprep.subr.mxu0 0.0
    %1571 = vmatpush1.msra.mxu0 %v1501
    %1572 = vmatprep.subr.mxu0 0.0
    %1573 = vmatpush1.msra.mxu0 %v1502
    %1574 = vmatprep.subr.mxu0 0.0
    %1575 = vmatpush1.msra.mxu0 0.0
    %1576 = vmatprep.subr.mxu0 0.0
    %1577 = vmatpush1.msra.mxu0 0.0
    %1578 = vmatprep.subr.mxu0 0.0
    %1579 = vmatpush1.msra.mxu0 0.0
    %1580 = vmatprep.subr.mxu0 0.0
    %1581 = vmatpush1.msra.mxu0 0.0
    %1582 = vmatprep.subr.mxu0 0.0
    %1583 = vmatpush1.msra.mxu0 0.0
    %1584 = vmatprep.subr.mxu0 0.0
    %1585 = vmatpush1.msra.mxu0 0.0
    %1586 = vmatprep.subr.mxu0 0.0
    %1587 = vmatpush1.msra.mxu0 0.0
    %1588 = vmatprep.subr.mxu0 0.0
    %1589 = vmatpush1.msra.mxu0 0.0
    %1590 = vmatprep.subr.mxu0 0.0
    %1591 = vmatpush1.msra.mxu0 0.0
    %1592 = vmatprep.subr.mxu0 0.0
    %1593 = vmatpush1.msra.mxu0 0.0
    %1594 = vmatprep.subr.mxu0 0.0
    %1595 = vmatpush1.msra.mxu0 0.0
    %1596 = vmatprep.subr.mxu0 0.0
    %1597 = vmatpush1.msra.mxu0 0.0
    %1598 = vmatprep.subr.mxu0 0.0
    %1599 = vmatpush1.msra.mxu0 0.0
    %1600 = vmatprep.subr.mxu0 0.0
    %1601 = vmatpush1.msra.mxu0 0.0
    %1602 = vmatprep.subr.mxu0 0.0
    %1603 = vmatpush1.msra.mxu0 0.0
    %1604 = vmatprep.subr.mxu0 0.0
    %1605 = vmatpush1.msra.mxu0 0.0
    %1606 = vmatprep.subr.mxu0 0.0
    %1607 = vmatpush1.msra.mxu0 0.0
    %1608 = vmatprep.subr.mxu0 0.0
    %1609 = vmatpush1.msra.mxu0 0.0
    %1610 = vmatprep.subr.mxu0 0.0
    %1611 = vmatpush1.msra.mxu0 0.0
    %1612 = vmatprep.subr.mxu0 0.0
    %1613 = vmatpush1.msra.mxu0 0.0
    %1614 = vmatprep.subr.mxu0 0.0
    %1615 = vmatpush1.msra.mxu0 0.0
    %1616 = vmatprep.subr.mxu0 0.0
    %1617 = vmatpush1.msra.mxu0 0.0
    %1618 = vmatprep.subr.mxu0 0.0
    %1619 = vmatpush1.msra.mxu0 0.0
    %1620 = vmatprep.subr.mxu0 0.0
    %1621 = vmatpush1.msra.mxu0 0.0
    %1622 = vmatprep.mubr.f32.mxu0 0.0
    %1623 = vmatmul.mubr.f32.gmra.mrb[0].mxu0 %v1554
    %v1624 = vpop.f32.mrb[0].mxu0
    %v1625 = vadd.f32 0.0, %v1624
    %v1626 = vpop.f32.mrb[0].mxu0
    %1627 = vmatprep.mubr.f32.mxu0 0.0
    %1628 = vmatmul.mubr.f32.gmra.mrb[0].mxu0 %v1556
    %v1629 = vpop.f32.mrb[0].mxu0
    %v1630 = vadd.f32 0.0, %v1629
    %v1631 = vpop.f32.mrb[0].mxu0
    %1632 = vdwg.mxu0
    %v1633 = vadd.f32 %v157, %v1625
    %v1634 = vadd.f32 %v158, %v1630
    %1635 = vst.msk [vmem:[%s18] sm:$0xff] %vm166, %v1633
    %1636 = vst.msk [vmem:[%s18 + $0x8] sm:$0xff] %vm166, %v1634
    %v1637 = vsel %vm166, %v1633, 0.0
    %1638 = vadd.xlane.f32.xlu0 %v1637
    %v1639 = vpop.xlane.xlu0 %1638
    %v1640 = vsel %vm166, %v1634, 0.0
    %1641 = vadd.xlane.f32.xlu0 %v1640
    %v1642 = vpop.xlane.xlu0 %1641
    %v1643 = vmul.f32 %v1639, %v173
    %v1644 = vmul.f32 %v1642, %v173
    %v1645 = vsub.f32 %v1633, %v1643
    %v1646 = vsub.f32 %v1634, %v1644
    %v1647 = vmul.f32 %v1645, %v1645
    %v1648 = vmul.f32 %v1646, %v1646
    %v1649 = vsel %vm166, %v1647, 0.0
    %1650 = vadd.xlane.f32.xlu0 %v1649
    %v1651 = vpop.xlane.xlu0 %1650
    %v1652 = vsel %vm166, %v1648, 0.0
    %1653 = vadd.xlane.f32.xlu0 %v1652
    %v1654 = vpop.xlane.xlu0 %1653
    %v1655 = vmul.f32 %v1651, %v173
    %v1656 = vmul.f32 %v1654, %v173
    %v1657 = vadd.f32 %v1655, 1e-05
    %v1658 = vadd.f32 %v1656, 1e-05
    %v1659 = vrsqrt.pop %v1657
    %v1660 = vrsqrt.pop %v1658
    %v1661 = vmul.f32 %v1645, %v1659
    %v1662 = vmul.f32 %v1646, %v1660
    %v1663 = vld [vmem:[%s11] sm:$0x1]
    %v1665 = vlaneseq
    %v1666 = vshrl.u32 %v1665, 7
    %v1667 = vsub.s32 0, %v1666
    %v1668 = vrot.slane %v1663, %v1667
    %v1670 = vmul.f32 %v1661, %v1668
    %v1671 = vmul.f32 %v1662, %v1668
    %v1672 = vld [vmem:[%s12] sm:$0x1]
    %v1674 = vlaneseq
    %v1675 = vshrl.u32 %v1674, 7
    %v1676 = vsub.s32 0, %v1675
    %v1677 = vrot.slane %v1672, %v1676
    %v1679 = vadd.f32 %v1670, %v1677
    %v1680 = vadd.f32 %v1671, %v1677
    %v1681 = vld [vmem:[#allocation10] sm:$0xff]
    %v1682 = vld [vmem:[#allocation10 + $0x8] sm:$0xff]
    %v1683 = vld [vmem:[#allocation10 + $0x10] sm:$0xff]
    %v1684 = vld [vmem:[#allocation10 + $0x18] sm:$0xff]
    %v1685 = vld [vmem:[%s14] sm:$0x1]
    %v1687 = vlaneseq
    %v1688 = vshrl.u32 %v1687, 7
    %v1689 = vsub.s32 0, %v1688
    %v1690 = vrot.slane %v1685, %v1689
    %v1693 = vsel %vm166, %v1679, 0
    %v1696 = vsel %vm166, %v1680, 0
    %1698 = vmatprep.subr.mxu0 0.0
    %1699 = vmatpush1.msra.mxu0 %v1681
    %1700 = vmatprep.subr.mxu0 0.0
    %1701 = vmatpush1.msra.mxu0 %v1682
    %1702 = vmatprep.subr.mxu0 0.0
    %1703 = vmatpush1.msra.mxu0 %v1683
    %1704 = vmatprep.subr.mxu0 0.0
    %1705 = vmatpush1.msra.mxu0 %v1684
    %1706 = vmatprep.subr.mxu0 0.0
    %1707 = vmatpush1.msra.mxu0 0.0
    %1708 = vmatprep.subr.mxu0 0.0
    %1709 = vmatpush1.msra.mxu0 0.0
    %1710 = vmatprep.subr.mxu0 0.0
    %1711 = vmatpush1.msra.mxu0 0.0
    %1712 = vmatprep.subr.mxu0 0.0
    %1713 = vmatpush1.msra.mxu0 0.0
    %1714 = vmatprep.subr.mxu0 0.0
    %1715 = vmatpush1.msra.mxu0 0.0
    %1716 = vmatprep.subr.mxu0 0.0
    %1717 = vmatpush1.msra.mxu0 0.0
    %1718 = vmatprep.subr.mxu0 0.0
    %1719 = vmatpush1.msra.mxu0 0.0
    %1720 = vmatprep.subr.mxu0 0.0
    %1721 = vmatpush1.msra.mxu0 0.0
    %1722 = vmatprep.subr.mxu0 0.0
    %1723 = vmatpush1.msra.mxu0 0.0
    %1724 = vmatprep.subr.mxu0 0.0
    %1725 = vmatpush1.msra.mxu0 0.0
    %1726 = vmatprep.subr.mxu0 0.0
    %1727 = vmatpush1.msra.mxu0 0.0
    %1728 = vmatprep.subr.mxu0 0.0
    %1729 = vmatpush1.msra.mxu0 0.0
    %1730 = vmatprep.subr.mxu0 0.0
    %1731 = vmatpush1.msra.mxu0 0.0
    %1732 = vmatprep.subr.mxu0 0.0
    %1733 = vmatpush1.msra.mxu0 0.0
    %1734 = vmatprep.subr.mxu0 0.0
    %1735 = vmatpush1.msra.mxu0 0.0
    %1736 = vmatprep.subr.mxu0 0.0
    %1737 = vmatpush1.msra.mxu0 0.0
    %1738 = vmatprep.subr.mxu0 0.0
    %1739 = vmatpush1.msra.mxu0 0.0
    %1740 = vmatprep.subr.mxu0 0.0
    %1741 = vmatpush1.msra.mxu0 0.0
    %1742 = vmatprep.subr.mxu0 0.0
    %1743 = vmatpush1.msra.mxu0 0.0
    %1744 = vmatprep.subr.mxu0 0.0
    %1745 = vmatpush1.msra.mxu0 0.0
    %1746 = vmatprep.subr.mxu0 0.0
    %1747 = vmatpush1.msra.mxu0 0.0
    %1748 = vmatprep.subr.mxu0 0.0
    %1749 = vmatpush1.msra.mxu0 0.0
    %1750 = vmatprep.subr.mxu0 0.0
    %1751 = vmatpush1.msra.mxu0 0.0
    %1752 = vmatprep.subr.mxu0 0.0
    %1753 = vmatpush1.msra.mxu0 0.0
    %1754 = vmatprep.subr.mxu0 0.0
    %1755 = vmatpush1.msra.mxu0 0.0
    %1756 = vmatprep.subr.mxu0 0.0
    %1757 = vmatpush1.msra.mxu0 0.0
    %1758 = vmatprep.subr.mxu0 0.0
    %1759 = vmatpush1.msra.mxu0 0.0
    %1760 = vmatprep.subr.mxu0 0.0
    %1761 = vmatpush1.msra.mxu0 0.0
    %1762 = vmatprep.mubr.f32.mxu0 0.0
    %1763 = vmatmul.mubr.f32.gmra.mrb[0].mxu0 %v1693
    %v1764 = vpop.f32.mrb[0].mxu0
    %v1765 = vadd.f32 %v1690, %v1764
    %v1766 = vpop.f32.mrb[0].mxu0
    %1767 = vmatprep.mubr.f32.mxu0 0.0
    %1768 = vmatmul.mubr.f32.gmra.mrb[0].mxu0 %v1696
    %v1769 = vpop.f32.mrb[0].mxu0
    %v1770 = vadd.f32 %v1690, %v1769
    %v1771 = vpop.f32.mrb[0].mxu0
    %1772 = vdwg.mxu0
    %1775 = vrot.lane.b32.xlu0 %v1765, 120
    %v1776 = vpop.permute.xlu0 %1775
    %1777 = vrot.lane.b32.xlu0 %v1770, 120
    %v1778 = vpop.permute.xlu0 %1777
    %1781 = vrot.lane.b32.xlu0 %v1765, 112
    %v1782 = vpop.permute.xlu0 %1781
    %1783 = vrot.lane.b32.xlu0 %v1770, 112
    %v1784 = vpop.permute.xlu0 %1783
    %1787 = vrot.lane.b32.xlu0 %v1765, 104
    %v1788 = vpop.permute.xlu0 %1787
    %1789 = vrot.lane.b32.xlu0 %v1770, 104
    %v1790 = vpop.permute.xlu0 %1789
    %v1793 = vcombine.low %v1765, %v1782
    %v1794 = vcombine.high %v1765, %v1782
    %v1796 = vunpack.c.l.s4 1983009808
    %v1797 = vunpack.c.0.s8 %v1796
    %v1798 = vlaneseq
    %v1799 = vshrl.u32 %v1798, 7
    %v1800 = vsub.s32 %v1797, %v1799
    %v1801 = vrot.slane %v1793, %v1800
    %v1803 = vunpack.c.l.s4 1983009808
    %v1804 = vunpack.c.0.s8 %v1803
    %v1805 = vlaneseq
    %v1806 = vshrl.u32 %v1805, 7
    %v1807 = vsub.s32 %v1804, %v1806
    %v1808 = vrot.slane %v1794, %v1807
    %v1809 = vcombine.low %v1776, %v1788
    %v1810 = vcombine.high %v1776, %v1788
    %v1812 = vunpack.c.l.s4 1983009808
    %v1813 = vunpack.c.0.s8 %v1812
    %v1814 = vlaneseq
    %v1815 = vshrl.u32 %v1814, 7
    %v1816 = vsub.s32 %v1813, %v1815
    %v1817 = vrot.slane %v1809, %v1816
    %v1819 = vunpack.c.l.s4 1983009808
    %v1820 = vunpack.c.0.s8 %v1819
    %v1821 = vlaneseq
    %v1822 = vshrl.u32 %v1821, 7
    %v1823 = vsub.s32 %v1820, %v1822
    %v1824 = vrot.slane %v1810, %v1823
    %v1825 = vcombine.low %v1801, %v1817
    %v1826 = vcombine.high %v1801, %v1817
    %v1828 = vunpack.c.l.s4 1934713408
    %v1829 = vunpack.c.0.s8 %v1828
    %v1830 = vlaneseq
    %v1831 = vshrl.u32 %v1830, 7
    %v1832 = vsub.s32 %v1829, %v1831
    %v1833 = vrot.slane %v1825, %v1832
    %v1835 = vunpack.c.l.s4 1934713408
    %v1836 = vunpack.c.0.s8 %v1835
    %v1837 = vlaneseq
    %v1838 = vshrl.u32 %v1837, 7
    %v1839 = vsub.s32 %v1836, %v1838
    %v1840 = vrot.slane %v1826, %v1839
    %v1841 = vcombine.low %v1808, %v1824
    %v1842 = vcombine.high %v1808, %v1824
    %v1844 = vunpack.c.l.s4 1934713408
    %v1845 = vunpack.c.0.s8 %v1844
    %v1846 = vlaneseq
    %v1847 = vshrl.u32 %v1846, 7
    %v1848 = vsub.s32 %v1845, %v1847
    %v1849 = vrot.slane %v1841, %v1848
    %v1851 = vunpack.c.l.s4 1934713408
    %v1852 = vunpack.c.0.s8 %v1851
    %v1853 = vlaneseq
    %v1854 = vshrl.u32 %v1853, 7
    %v1855 = vsub.s32 %v1852, %v1854
    %v1856 = vrot.slane %v1842, %v1855
    %v1857 = vcombine.high %v1833, 0.0
    %v1858 = vcombine.high %v1840, 0.0
    %v1859 = vcombine.high %v1849, 0.0
    %v1860 = vcombine.high %v1856, 0.0
    %v1861 = vcombine.low %v1770, %v1784
    %v1862 = vcombine.high %v1770, %v1784
    %v1864 = vunpack.c.l.s4 1983009808
    %v1865 = vunpack.c.0.s8 %v1864
    %v1866 = vlaneseq
    %v1867 = vshrl.u32 %v1866, 7
    %v1868 = vsub.s32 %v1865, %v1867
    %v1869 = vrot.slane %v1861, %v1868
    %v1871 = vunpack.c.l.s4 1983009808
    %v1872 = vunpack.c.0.s8 %v1871
    %v1873 = vlaneseq
    %v1874 = vshrl.u32 %v1873, 7
    %v1875 = vsub.s32 %v1872, %v1874
    %v1876 = vrot.slane %v1862, %v1875
    %v1877 = vcombine.low %v1778, %v1790
    %v1878 = vcombine.high %v1778, %v1790
    %v1880 = vunpack.c.l.s4 1983009808
    %v1881 = vunpack.c.0.s8 %v1880
    %v1882 = vlaneseq
    %v1883 = vshrl.u32 %v1882, 7
    %v1884 = vsub.s32 %v1881, %v1883
    %v1885 = vrot.slane %v1877, %v1884
    %v1887 = vunpack.c.l.s4 1983009808
    %v1888 = vunpack.c.0.s8 %v1887
    %v1889 = vlaneseq
    %v1890 = vshrl.u32 %v1889, 7
    %v1891 = vsub.s32 %v1888, %v1890
    %v1892 = vrot.slane %v1878, %v1891
    %v1893 = vcombine.low %v1869, %v1885
    %v1894 = vcombine.high %v1869, %v1885
    %v1896 = vunpack.c.l.s4 1934713408
    %v1897 = vunpack.c.0.s8 %v1896
    %v1898 = vlaneseq
    %v1899 = vshrl.u32 %v1898, 7
    %v1900 = vsub.s32 %v1897, %v1899
    %v1901 = vrot.slane %v1893, %v1900
    %v1903 = vunpack.c.l.s4 1934713408
    %v1904 = vunpack.c.0.s8 %v1903
    %v1905 = vlaneseq
    %v1906 = vshrl.u32 %v1905, 7
    %v1907 = vsub.s32 %v1904, %v1906
    %v1908 = vrot.slane %v1894, %v1907
    %v1909 = vcombine.low %v1876, %v1892
    %v1910 = vcombine.high %v1876, %v1892
    %v1912 = vunpack.c.l.s4 1934713408
    %v1913 = vunpack.c.0.s8 %v1912
    %v1914 = vlaneseq
    %v1915 = vshrl.u32 %v1914, 7
    %v1916 = vsub.s32 %v1913, %v1915
    %v1917 = vrot.slane %v1909, %v1916
    %v1919 = vunpack.c.l.s4 1934713408
    %v1920 = vunpack.c.0.s8 %v1919
    %v1921 = vlaneseq
    %v1922 = vshrl.u32 %v1921, 7
    %v1923 = vsub.s32 %v1920, %v1922
    %v1924 = vrot.slane %v1910, %v1923
    %v1925 = vcombine.high %v1901, 0.0
    %v1926 = vcombine.high %v1908, 0.0
    %v1927 = vcombine.high %v1917, 0.0
    %v1928 = vcombine.high %v1924, 0.0
    %v1929 = vcombine.low %v1833, %v1840
    %v1931 = vunpack.c.l.s4 1983009808
    %v1932 = vunpack.c.0.s8 %v1931
    %v1933 = vlaneseq
    %v1934 = vshrl.u32 %v1933, 7
    %v1935 = vsub.s32 %v1932, %v1934
    %v1936 = vrot.slane %v1929, %v1935
    %v1937 = vcombine.low %v1857, %v1858
    %v1939 = vunpack.c.l.s4 1983009808
    %v1940 = vunpack.c.0.s8 %v1939
    %v1941 = vlaneseq
    %v1942 = vshrl.u32 %v1941, 7
    %v1943 = vsub.s32 %v1940, %v1942
    %v1944 = vrot.slane %v1937, %v1943
    %v1945 = vcombine.low %v1849, %v1856
    %v1947 = vunpack.c.l.s4 1983009808
    %v1948 = vunpack.c.0.s8 %v1947
    %v1949 = vlaneseq
    %v1950 = vshrl.u32 %v1949, 7
    %v1951 = vsub.s32 %v1948, %v1950
    %v1952 = vrot.slane %v1945, %v1951
    %v1953 = vcombine.low %v1859, %v1860
    %v1955 = vunpack.c.l.s4 1983009808
    %v1956 = vunpack.c.0.s8 %v1955
    %v1957 = vlaneseq
    %v1958 = vshrl.u32 %v1957, 7
    %v1959 = vsub.s32 %v1956, %v1958
    %v1960 = vrot.slane %v1953, %v1959
    %v1961 = vcombine.low %v1936, %v1944
    %v1962 = vcombine.high %v1936, %v1944
    %v1964 = vunpack.c.l.s4 1934713408
    %v1965 = vunpack.c.0.s8 %v1964
    %v1966 = vlaneseq
    %v1967 = vshrl.u32 %v1966, 7
    %v1968 = vsub.s32 %v1965, %v1967
    %v1969 = vrot.slane %v1961, %v1968
    %v1971 = vunpack.c.l.s4 1934713408
    %v1972 = vunpack.c.0.s8 %v1971
    %v1973 = vlaneseq
    %v1974 = vshrl.u32 %v1973, 7
    %v1975 = vsub.s32 %v1972, %v1974
    %v1976 = vrot.slane %v1962, %v1975
    %v1977 = vcombine.low %v1952, %v1960
    %v1978 = vcombine.high %v1952, %v1960
    %v1980 = vunpack.c.l.s4 1934713408
    %v1981 = vunpack.c.0.s8 %v1980
    %v1982 = vlaneseq
    %v1983 = vshrl.u32 %v1982, 7
    %v1984 = vsub.s32 %v1981, %v1983
    %v1985 = vrot.slane %v1977, %v1984
    %v1987 = vunpack.c.l.s4 1934713408
    %v1988 = vunpack.c.0.s8 %v1987
    %v1989 = vlaneseq
    %v1990 = vshrl.u32 %v1989, 7
    %v1991 = vsub.s32 %v1988, %v1990
    %v1992 = vrot.slane %v1978, %v1991
    %v1993 = vcombine.low %v1969, %v1985
    %v1994 = vcombine.high %v1969, %v1985
    %v1995 = vcombine.low %v1976, %v1992
    %v1996 = vcombine.high %v1976, %v1992
    %v1997 = vcombine.low %v1901, %v1908
    %v1999 = vunpack.c.l.s4 1983009808
    %v2000 = vunpack.c.0.s8 %v1999
    %v2001 = vlaneseq
    %v2002 = vshrl.u32 %v2001, 7
    %v2003 = vsub.s32 %v2000, %v2002
    %v2004 = vrot.slane %v1997, %v2003
    %v2005 = vcombine.low %v1925, %v1926
    %v2007 = vunpack.c.l.s4 1983009808
    %v2008 = vunpack.c.0.s8 %v2007
    %v2009 = vlaneseq
    %v2010 = vshrl.u32 %v2009, 7
    %v2011 = vsub.s32 %v2008, %v2010
    %v2012 = vrot.slane %v2005, %v2011
    %v2013 = vcombine.low %v1917, %v1924
    %v2015 = vunpack.c.l.s4 1983009808
    %v2016 = vunpack.c.0.s8 %v2015
    %v2017 = vlaneseq
    %v2018 = vshrl.u32 %v2017, 7
    %v2019 = vsub.s32 %v2016, %v2018
    %v2020 = vrot.slane %v2013, %v2019
    %v2021 = vcombine.low %v1927, %v1928
    %v2023 = vunpack.c.l.s4 1983009808
    %v2024 = vunpack.c.0.s8 %v2023
    %v2025 = vlaneseq
    %v2026 = vshrl.u32 %v2025, 7
    %v2027 = vsub.s32 %v2024, %v2026
    %v2028 = vrot.slane %v2021, %v2027
    %v2029 = vcombine.low %v2004, %v2012
    %v2030 = vcombine.high %v2004, %v2012
    %v2032 = vunpack.c.l.s4 1934713408
    %v2033 = vunpack.c.0.s8 %v2032
    %v2034 = vlaneseq
    %v2035 = vshrl.u32 %v2034, 7
    %v2036 = vsub.s32 %v2033, %v2035
    %v2037 = vrot.slane %v2029, %v2036
    %v2039 = vunpack.c.l.s4 1934713408
    %v2040 = vunpack.c.0.s8 %v2039
    %v2041 = vlaneseq
    %v2042 = vshrl.u32 %v2041, 7
    %v2043 = vsub.s32 %v2040, %v2042
    %v2044 = vrot.slane %v2030, %v2043
    %v2045 = vcombine.low %v2020, %v2028
    %v2046 = vcombine.high %v2020, %v2028
    %v2048 = vunpack.c.l.s4 1934713408
    %v2049 = vunpack.c.0.s8 %v2048
    %v2050 = vlaneseq
    %v2051 = vshrl.u32 %v2050, 7
    %v2052 = vsub.s32 %v2049, %v2051
    %v2053 = vrot.slane %v2045, %v2052
    %v2055 = vunpack.c.l.s4 1934713408
    %v2056 = vunpack.c.0.s8 %v2055
    %v2057 = vlaneseq
    %v2058 = vshrl.u32 %v2057, 7
    %v2059 = vsub.s32 %v2056, %v2058
    %v2060 = vrot.slane %v2046, %v2059
    %v2061 = vcombine.low %v2037, %v2053
    %v2062 = vcombine.high %v2037, %v2053
    %v2063 = vcombine.low %v2044, %v2060
    %v2064 = vcombine.high %v2044, %v2060
    %2065 = vrot.lane.b32.xlu0 %v1765, 96
    %v2066 = vpop.permute.xlu0 %2065
    %2067 = vrot.lane.b32.xlu0 %v1770, 96
    %v2068 = vpop.permute.xlu0 %2067
    %2069 = vrot.lane.b32.xlu0 %v1776, 96
    %v2070 = vpop.permute.xlu0 %2069
    %2071 = vrot.lane.b32.xlu0 %v1778, 96
    %v2072 = vpop.permute.xlu0 %2071
    %2073 = vrot.lane.b32.xlu0 %v1782, 96
    %v2074 = vpop.permute.xlu0 %2073
    %2075 = vrot.lane.b32.xlu0 %v1784, 96
    %v2076 = vpop.permute.xlu0 %2075
    %2077 = vrot.lane.b32.xlu0 %v1788, 96
    %v2078 = vpop.permute.xlu0 %2077
    %2079 = vrot.lane.b32.xlu0 %v1790, 96
    %v2080 = vpop.permute.xlu0 %2079
    %v2089 = vcombine.low %v2066, %v2074
    %v2090 = vcombine.high %v2066, %v2074
    %v2092 = vunpack.c.l.s4 1983009808
    %v2093 = vunpack.c.0.s8 %v2092
    %v2094 = vlaneseq
    %v2095 = vshrl.u32 %v2094, 7
    %v2096 = vsub.s32 %v2093, %v2095
    %v2097 = vrot.slane %v2089, %v2096
    %v2099 = vunpack.c.l.s4 1983009808
    %v2100 = vunpack.c.0.s8 %v2099
    %v2101 = vlaneseq
    %v2102 = vshrl.u32 %v2101, 7
    %v2103 = vsub.s32 %v2100, %v2102
    %v2104 = vrot.slane %v2090, %v2103
    %v2105 = vcombine.low %v2070, %v2078
    %v2106 = vcombine.high %v2070, %v2078
    %v2108 = vunpack.c.l.s4 1983009808
    %v2109 = vunpack.c.0.s8 %v2108
    %v2110 = vlaneseq
    %v2111 = vshrl.u32 %v2110, 7
    %v2112 = vsub.s32 %v2109, %v2111
    %v2113 = vrot.slane %v2105, %v2112
    %v2115 = vunpack.c.l.s4 1983009808
    %v2116 = vunpack.c.0.s8 %v2115
    %v2117 = vlaneseq
    %v2118 = vshrl.u32 %v2117, 7
    %v2119 = vsub.s32 %v2116, %v2118
    %v2120 = vrot.slane %v2106, %v2119
    %v2121 = vcombine.low %v2097, %v2113
    %v2122 = vcombine.high %v2097, %v2113
    %v2124 = vunpack.c.l.s4 1934713408
    %v2125 = vunpack.c.0.s8 %v2124
    %v2126 = vlaneseq
    %v2127 = vshrl.u32 %v2126, 7
    %v2128 = vsub.s32 %v2125, %v2127
    %v2129 = vrot.slane %v2121, %v2128
    %v2131 = vunpack.c.l.s4 1934713408
    %v2132 = vunpack.c.0.s8 %v2131
    %v2133 = vlaneseq
    %v2134 = vshrl.u32 %v2133, 7
    %v2135 = vsub.s32 %v2132, %v2134
    %v2136 = vrot.slane %v2122, %v2135
    %v2137 = vcombine.low %v2104, %v2120
    %v2138 = vcombine.high %v2104, %v2120
    %v2140 = vunpack.c.l.s4 1934713408
    %v2141 = vunpack.c.0.s8 %v2140
    %v2142 = vlaneseq
    %v2143 = vshrl.u32 %v2142, 7
    %v2144 = vsub.s32 %v2141, %v2143
    %v2145 = vrot.slane %v2137, %v2144
    %v2147 = vunpack.c.l.s4 1934713408
    %v2148 = vunpack.c.0.s8 %v2147
    %v2149 = vlaneseq
    %v2150 = vshrl.u32 %v2149, 7
    %v2151 = vsub.s32 %v2148, %v2150
    %v2152 = vrot.slane %v2138, %v2151
    %v2153 = vcombine.high %v2129, 0.0
    %v2154 = vcombine.high %v2136, 0.0
    %v2155 = vcombine.high %v2145, 0.0
    %v2156 = vcombine.high %v2152, 0.0
    %v2157 = vcombine.low %v2068, %v2076
    %v2158 = vcombine.high %v2068, %v2076
    %v2160 = vunpack.c.l.s4 1983009808
    %v2161 = vunpack.c.0.s8 %v2160
    %v2162 = vlaneseq
    %v2163 = vshrl.u32 %v2162, 7
    %v2164 = vsub.s32 %v2161, %v2163
    %v2165 = vrot.slane %v2157, %v2164
    %v2167 = vunpack.c.l.s4 1983009808
    %v2168 = vunpack.c.0.s8 %v2167
    %v2169 = vlaneseq
    %v2170 = vshrl.u32 %v2169, 7
    %v2171 = vsub.s32 %v2168, %v2170
    %v2172 = vrot.slane %v2158, %v2171
    %v2173 = vcombine.low %v2072, %v2080
    %v2174 = vcombine.high %v2072, %v2080
    %v2176 = vunpack.c.l.s4 1983009808
    %v2177 = vunpack.c.0.s8 %v2176
    %v2178 = vlaneseq
    %v2179 = vshrl.u32 %v2178, 7
    %v2180 = vsub.s32 %v2177, %v2179
    %v2181 = vrot.slane %v2173, %v2180
    %v2183 = vunpack.c.l.s4 1983009808
    %v2184 = vunpack.c.0.s8 %v2183
    %v2185 = vlaneseq
    %v2186 = vshrl.u32 %v2185, 7
    %v2187 = vsub.s32 %v2184, %v2186
    %v2188 = vrot.slane %v2174, %v2187
    %v2189 = vcombine.low %v2165, %v2181
    %v2190 = vcombine.high %v2165, %v2181
    %v2192 = vunpack.c.l.s4 1934713408
    %v2193 = vunpack.c.0.s8 %v2192
    %v2194 = vlaneseq
    %v2195 = vshrl.u32 %v2194, 7
    %v2196 = vsub.s32 %v2193, %v2195
    %v2197 = vrot.slane %v2189, %v2196
    %v2199 = vunpack.c.l.s4 1934713408
    %v2200 = vunpack.c.0.s8 %v2199
    %v2201 = vlaneseq
    %v2202 = vshrl.u32 %v2201, 7
    %v2203 = vsub.s32 %v2200, %v2202
    %v2204 = vrot.slane %v2190, %v2203
    %v2205 = vcombine.low %v2172, %v2188
    %v2206 = vcombine.high %v2172, %v2188
    %v2208 = vunpack.c.l.s4 1934713408
    %v2209 = vunpack.c.0.s8 %v2208
    %v2210 = vlaneseq
    %v2211 = vshrl.u32 %v2210, 7
    %v2212 = vsub.s32 %v2209, %v2211
    %v2213 = vrot.slane %v2205, %v2212
    %v2215 = vunpack.c.l.s4 1934713408
    %v2216 = vunpack.c.0.s8 %v2215
    %v2217 = vlaneseq
    %v2218 = vshrl.u32 %v2217, 7
    %v2219 = vsub.s32 %v2216, %v2218
    %v2220 = vrot.slane %v2206, %v2219
    %v2221 = vcombine.high %v2197, 0.0
    %v2222 = vcombine.high %v2204, 0.0
    %v2223 = vcombine.high %v2213, 0.0
    %v2224 = vcombine.high %v2220, 0.0
    %v2225 = vcombine.low %v2129, %v2136
    %v2227 = vunpack.c.l.s4 1983009808
    %v2228 = vunpack.c.0.s8 %v2227
    %v2229 = vlaneseq
    %v2230 = vshrl.u32 %v2229, 7
    %v2231 = vsub.s32 %v2228, %v2230
    %v2232 = vrot.slane %v2225, %v2231
    %v2233 = vcombine.low %v2153, %v2154
    %v2235 = vunpack.c.l.s4 1983009808
    %v2236 = vunpack.c.0.s8 %v2235
    %v2237 = vlaneseq
    %v2238 = vshrl.u32 %v2237, 7
    %v2239 = vsub.s32 %v2236, %v2238
    %v2240 = vrot.slane %v2233, %v2239
    %v2241 = vcombine.low %v2145, %v2152
    %v2243 = vunpack.c.l.s4 1983009808
    %v2244 = vunpack.c.0.s8 %v2243
    %v2245 = vlaneseq
    %v2246 = vshrl.u32 %v2245, 7
    %v2247 = vsub.s32 %v2244, %v2246
    %v2248 = vrot.slane %v2241, %v2247
    %v2249 = vcombine.low %v2155, %v2156
    %v2251 = vunpack.c.l.s4 1983009808
    %v2252 = vunpack.c.0.s8 %v2251
    %v2253 = vlaneseq
    %v2254 = vshrl.u32 %v2253, 7
    %v2255 = vsub.s32 %v2252, %v2254
    %v2256 = vrot.slane %v2249, %v2255
    %v2257 = vcombine.low %v2232, %v2240
    %v2258 = vcombine.high %v2232, %v2240
    %v2260 = vunpack.c.l.s4 1934713408
    %v2261 = vunpack.c.0.s8 %v2260
    %v2262 = vlaneseq
    %v2263 = vshrl.u32 %v2262, 7
    %v2264 = vsub.s32 %v2261, %v2263
    %v2265 = vrot.slane %v2257, %v2264
    %v2267 = vunpack.c.l.s4 1934713408
    %v2268 = vunpack.c.0.s8 %v2267
    %v2269 = vlaneseq
    %v2270 = vshrl.u32 %v2269, 7
    %v2271 = vsub.s32 %v2268, %v2270
    %v2272 = vrot.slane %v2258, %v2271
    %v2273 = vcombine.low %v2248, %v2256
    %v2274 = vcombine.high %v2248, %v2256
    %v2276 = vunpack.c.l.s4 1934713408
    %v2277 = vunpack.c.0.s8 %v2276
    %v2278 = vlaneseq
    %v2279 = vshrl.u32 %v2278, 7
    %v2280 = vsub.s32 %v2277, %v2279
    %v2281 = vrot.slane %v2273, %v2280
    %v2283 = vunpack.c.l.s4 1934713408
    %v2284 = vunpack.c.0.s8 %v2283
    %v2285 = vlaneseq
    %v2286 = vshrl.u32 %v2285, 7
    %v2287 = vsub.s32 %v2284, %v2286
    %v2288 = vrot.slane %v2274, %v2287
    %v2289 = vcombine.low %v2265, %v2281
    %v2290 = vcombine.high %v2265, %v2281
    %v2291 = vcombine.low %v2272, %v2288
    %v2292 = vcombine.high %v2272, %v2288
    %v2293 = vcombine.low %v2197, %v2204
    %v2295 = vunpack.c.l.s4 1983009808
    %v2296 = vunpack.c.0.s8 %v2295
    %v2297 = vlaneseq
    %v2298 = vshrl.u32 %v2297, 7
    %v2299 = vsub.s32 %v2296, %v2298
    %v2300 = vrot.slane %v2293, %v2299
    %v2301 = vcombine.low %v2221, %v2222
    %v2303 = vunpack.c.l.s4 1983009808
    %v2304 = vunpack.c.0.s8 %v2303
    %v2305 = vlaneseq
    %v2306 = vshrl.u32 %v2305, 7
    %v2307 = vsub.s32 %v2304, %v2306
    %v2308 = vrot.slane %v2301, %v2307
    %v2309 = vcombine.low %v2213, %v2220
    %v2311 = vunpack.c.l.s4 1983009808
    %v2312 = vunpack.c.0.s8 %v2311
    %v2313 = vlaneseq
    %v2314 = vshrl.u32 %v2313, 7
    %v2315 = vsub.s32 %v2312, %v2314
    %v2316 = vrot.slane %v2309, %v2315
    %v2317 = vcombine.low %v2223, %v2224
    %v2319 = vunpack.c.l.s4 1983009808
    %v2320 = vunpack.c.0.s8 %v2319
    %v2321 = vlaneseq
    %v2322 = vshrl.u32 %v2321, 7
    %v2323 = vsub.s32 %v2320, %v2322
    %v2324 = vrot.slane %v2317, %v2323
    %v2325 = vcombine.low %v2300, %v2308
    %v2326 = vcombine.high %v2300, %v2308
    %v2328 = vunpack.c.l.s4 1934713408
    %v2329 = vunpack.c.0.s8 %v2328
    %v2330 = vlaneseq
    %v2331 = vshrl.u32 %v2330, 7
    %v2332 = vsub.s32 %v2329, %v2331
    %v2333 = vrot.slane %v2325, %v2332
    %v2335 = vunpack.c.l.s4 1934713408
    %v2336 = vunpack.c.0.s8 %v2335
    %v2337 = vlaneseq
    %v2338 = vshrl.u32 %v2337, 7
    %v2339 = vsub.s32 %v2336, %v2338
    %v2340 = vrot.slane %v2326, %v2339
    %v2341 = vcombine.low %v2316, %v2324
    %v2342 = vcombine.high %v2316, %v2324
    %v2344 = vunpack.c.l.s4 1934713408
    %v2345 = vunpack.c.0.s8 %v2344
    %v2346 = vlaneseq
    %v2347 = vshrl.u32 %v2346, 7
    %v2348 = vsub.s32 %v2345, %v2347
    %v2349 = vrot.slane %v2341, %v2348
    %v2351 = vunpack.c.l.s4 1934713408
    %v2352 = vunpack.c.0.s8 %v2351
    %v2353 = vlaneseq
    %v2354 = vshrl.u32 %v2353, 7
    %v2355 = vsub.s32 %v2352, %v2354
    %v2356 = vrot.slane %v2342, %v2355
    %v2357 = vcombine.low %v2333, %v2349
    %v2358 = vcombine.high %v2333, %v2349
    %v2359 = vcombine.low %v2340, %v2356
    %v2360 = vcombine.high %v2340, %v2356
    %2361 = vrot.lane.b32.xlu0 %v1765, 64
    %v2362 = vpop.permute.xlu0 %2361
    %2363 = vrot.lane.b32.xlu0 %v1770, 64
    %v2364 = vpop.permute.xlu0 %2363
    %2365 = vrot.lane.b32.xlu0 %v1776, 64
    %v2366 = vpop.permute.xlu0 %2365
    %2367 = vrot.lane.b32.xlu0 %v1778, 64
    %v2368 = vpop.permute.xlu0 %2367
    %2369 = vrot.lane.b32.xlu0 %v1782, 64
    %v2370 = vpop.permute.xlu0 %2369
    %2371 = vrot.lane.b32.xlu0 %v1784, 64
    %v2372 = vpop.permute.xlu0 %2371
    %2373 = vrot.lane.b32.xlu0 %v1788, 64
    %v2374 = vpop.permute.xlu0 %2373
    %2375 = vrot.lane.b32.xlu0 %v1790, 64
    %v2376 = vpop.permute.xlu0 %2375
    %v2385 = vcombine.low %v2362, %v2370
    %v2386 = vcombine.high %v2362, %v2370
    %v2388 = vunpack.c.l.s4 1983009808
    %v2389 = vunpack.c.0.s8 %v2388
    %v2390 = vlaneseq
    %v2391 = vshrl.u32 %v2390, 7
    %v2392 = vsub.s32 %v2389, %v2391
    %v2393 = vrot.slane %v2385, %v2392
    %v2395 = vunpack.c.l.s4 1983009808
    %v2396 = vunpack.c.0.s8 %v2395
    %v2397 = vlaneseq
    %v2398 = vshrl.u32 %v2397, 7
    %v2399 = vsub.s32 %v2396, %v2398
    %v2400 = vrot.slane %v2386, %v2399
    %v2401 = vcombine.low %v2366, %v2374
    %v2402 = vcombine.high %v2366, %v2374
    %v2404 = vunpack.c.l.s4 1983009808
    %v2405 = vunpack.c.0.s8 %v2404
    %v2406 = vlaneseq
    %v2407 = vshrl.u32 %v2406, 7
    %v2408 = vsub.s32 %v2405, %v2407
    %v2409 = vrot.slane %v2401, %v2408
    %v2411 = vunpack.c.l.s4 1983009808
    %v2412 = vunpack.c.0.s8 %v2411
    %v2413 = vlaneseq
    %v2414 = vshrl.u32 %v2413, 7
    %v2415 = vsub.s32 %v2412, %v2414
    %v2416 = vrot.slane %v2402, %v2415
    %v2417 = vcombine.low %v2393, %v2409
    %v2418 = vcombine.high %v2393, %v2409
    %v2420 = vunpack.c.l.s4 1934713408
    %v2421 = vunpack.c.0.s8 %v2420
    %v2422 = vlaneseq
    %v2423 = vshrl.u32 %v2422, 7
    %v2424 = vsub.s32 %v2421, %v2423
    %v2425 = vrot.slane %v2417, %v2424
    %v2427 = vunpack.c.l.s4 1934713408
    %v2428 = vunpack.c.0.s8 %v2427
    %v2429 = vlaneseq
    %v2430 = vshrl.u32 %v2429, 7
    %v2431 = vsub.s32 %v2428, %v2430
    %v2432 = vrot.slane %v2418, %v2431
    %v2433 = vcombine.low %v2400, %v2416
    %v2434 = vcombine.high %v2400, %v2416
    %v2436 = vunpack.c.l.s4 1934713408
    %v2437 = vunpack.c.0.s8 %v2436
    %v2438 = vlaneseq
    %v2439 = vshrl.u32 %v2438, 7
    %v2440 = vsub.s32 %v2437, %v2439
    %v2441 = vrot.slane %v2433, %v2440
    %v2443 = vunpack.c.l.s4 1934713408
    %v2444 = vunpack.c.0.s8 %v2443
    %v2445 = vlaneseq
    %v2446 = vshrl.u32 %v2445, 7
    %v2447 = vsub.s32 %v2444, %v2446
    %v2448 = vrot.slane %v2434, %v2447
    %v2449 = vcombine.high %v2425, 0.0
    %v2450 = vcombine.high %v2432, 0.0
    %v2451 = vcombine.high %v2441, 0.0
    %v2452 = vcombine.high %v2448, 0.0
    %v2453 = vcombine.low %v2364, %v2372
    %v2454 = vcombine.high %v2364, %v2372
    %v2456 = vunpack.c.l.s4 1983009808
    %v2457 = vunpack.c.0.s8 %v2456
    %v2458 = vlaneseq
    %v2459 = vshrl.u32 %v2458, 7
    %v2460 = vsub.s32 %v2457, %v2459
    %v2461 = vrot.slane %v2453, %v2460
    %v2463 = vunpack.c.l.s4 1983009808
    %v2464 = vunpack.c.0.s8 %v2463
    %v2465 = vlaneseq
    %v2466 = vshrl.u32 %v2465, 7
    %v2467 = vsub.s32 %v2464, %v2466
    %v2468 = vrot.slane %v2454, %v2467
    %v2469 = vcombine.low %v2368, %v2376
    %v2470 = vcombine.high %v2368, %v2376
    %v2472 = vunpack.c.l.s4 1983009808
    %v2473 = vunpack.c.0.s8 %v2472
    %v2474 = vlaneseq
    %v2475 = vshrl.u32 %v2474, 7
    %v2476 = vsub.s32 %v2473, %v2475
    %v2477 = vrot.slane %v2469, %v2476
    %v2479 = vunpack.c.l.s4 1983009808
    %v2480 = vunpack.c.0.s8 %v2479
    %v2481 = vlaneseq
    %v2482 = vshrl.u32 %v2481, 7
    %v2483 = vsub.s32 %v2480, %v2482
    %v2484 = vrot.slane %v2470, %v2483
    %v2485 = vcombine.low %v2461, %v2477
    %v2486 = vcombine.high %v2461, %v2477
    %v2488 = vunpack.c.l.s4 1934713408
    %v2489 = vunpack.c.0.s8 %v2488
    %v2490 = vlaneseq
    %v2491 = vshrl.u32 %v2490, 7
    %v2492 = vsub.s32 %v2489, %v2491
    %v2493 = vrot.slane %v2485, %v2492
    %v2495 = vunpack.c.l.s4 1934713408
    %v2496 = vunpack.c.0.s8 %v2495
    %v2497 = vlaneseq
    %v2498 = vshrl.u32 %v2497, 7
    %v2499 = vsub.s32 %v2496, %v2498
    %v2500 = vrot.slane %v2486, %v2499
    %v2501 = vcombine.low %v2468, %v2484
    %v2502 = vcombine.high %v2468, %v2484
    %v2504 = vunpack.c.l.s4 1934713408
    %v2505 = vunpack.c.0.s8 %v2504
    %v2506 = vlaneseq
    %v2507 = vshrl.u32 %v2506, 7
    %v2508 = vsub.s32 %v2505, %v2507
    %v2509 = vrot.slane %v2501, %v2508
    %v2511 = vunpack.c.l.s4 1934713408
    %v2512 = vunpack.c.0.s8 %v2511
    %v2513 = vlaneseq
    %v2514 = vshrl.u32 %v2513, 7
    %v2515 = vsub.s32 %v2512, %v2514
    %v2516 = vrot.slane %v2502, %v2515
    %v2517 = vcombine.high %v2493, 0.0
    %v2518 = vcombine.high %v2500, 0.0
    %v2519 = vcombine.high %v2509, 0.0
    %v2520 = vcombine.high %v2516, 0.0
    %v2521 = vcombine.low %v2425, %v2432
    %v2523 = vunpack.c.l.s4 1983009808
    %v2524 = vunpack.c.0.s8 %v2523
    %v2525 = vlaneseq
    %v2526 = vshrl.u32 %v2525, 7
    %v2527 = vsub.s32 %v2524, %v2526
    %v2528 = vrot.slane %v2521, %v2527
    %v2529 = vcombine.low %v2449, %v2450
    %v2531 = vunpack.c.l.s4 1983009808
    %v2532 = vunpack.c.0.s8 %v2531
    %v2533 = vlaneseq
    %v2534 = vshrl.u32 %v2533, 7
    %v2535 = vsub.s32 %v2532, %v2534
    %v2536 = vrot.slane %v2529, %v2535
    %v2537 = vcombine.low %v2441, %v2448
    %v2539 = vunpack.c.l.s4 1983009808
    %v2540 = vunpack.c.0.s8 %v2539
    %v2541 = vlaneseq
    %v2542 = vshrl.u32 %v2541, 7
    %v2543 = vsub.s32 %v2540, %v2542
    %v2544 = vrot.slane %v2537, %v2543
    %v2545 = vcombine.low %v2451, %v2452
    %v2547 = vunpack.c.l.s4 1983009808
    %v2548 = vunpack.c.0.s8 %v2547
    %v2549 = vlaneseq
    %v2550 = vshrl.u32 %v2549, 7
    %v2551 = vsub.s32 %v2548, %v2550
    %v2552 = vrot.slane %v2545, %v2551
    %v2553 = vcombine.low %v2528, %v2536
    %v2554 = vcombine.high %v2528, %v2536
    %v2556 = vunpack.c.l.s4 1934713408
    %v2557 = vunpack.c.0.s8 %v2556
    %v2558 = vlaneseq
    %v2559 = vshrl.u32 %v2558, 7
    %v2560 = vsub.s32 %v2557, %v2559
    %v2561 = vrot.slane %v2553, %v2560
    %v2563 = vunpack.c.l.s4 1934713408
    %v2564 = vunpack.c.0.s8 %v2563
    %v2565 = vlaneseq
    %v2566 = vshrl.u32 %v2565, 7
    %v2567 = vsub.s32 %v2564, %v2566
    %v2568 = vrot.slane %v2554, %v2567
    %v2569 = vcombine.low %v2544, %v2552
    %v2570 = vcombine.high %v2544, %v2552
    %v2572 = vunpack.c.l.s4 1934713408
    %v2573 = vunpack.c.0.s8 %v2572
    %v2574 = vlaneseq
    %v2575 = vshrl.u32 %v2574, 7
    %v2576 = vsub.s32 %v2573, %v2575
    %v2577 = vrot.slane %v2569, %v2576
    %v2579 = vunpack.c.l.s4 1934713408
    %v2580 = vunpack.c.0.s8 %v2579
    %v2581 = vlaneseq
    %v2582 = vshrl.u32 %v2581, 7
    %v2583 = vsub.s32 %v2580, %v2582
    %v2584 = vrot.slane %v2570, %v2583
    %v2585 = vcombine.low %v2561, %v2577
    %v2586 = vcombine.high %v2561, %v2577
    %v2587 = vcombine.low %v2568, %v2584
    %v2588 = vcombine.high %v2568, %v2584
    %v2589 = vcombine.low %v2493, %v2500
    %v2591 = vunpack.c.l.s4 1983009808
    %v2592 = vunpack.c.0.s8 %v2591
    %v2593 = vlaneseq
    %v2594 = vshrl.u32 %v2593, 7
    %v2595 = vsub.s32 %v2592, %v2594
    %v2596 = vrot.slane %v2589, %v2595
    %v2597 = vcombine.low %v2517, %v2518
    %v2599 = vunpack.c.l.s4 1983009808
    %v2600 = vunpack.c.0.s8 %v2599
    %v2601 = vlaneseq
    %v2602 = vshrl.u32 %v2601, 7
    %v2603 = vsub.s32 %v2600, %v2602
    %v2604 = vrot.slane %v2597, %v2603
    %v2605 = vcombine.low %v2509, %v2516
    %v2607 = vunpack.c.l.s4 1983009808
    %v2608 = vunpack.c.0.s8 %v2607
    %v2609 = vlaneseq
    %v2610 = vshrl.u32 %v2609, 7
    %v2611 = vsub.s32 %v2608, %v2610
    %v2612 = vrot.slane %v2605, %v2611
    %v2613 = vcombine.low %v2519, %v2520
    %v2615 = vunpack.c.l.s4 1983009808
    %v2616 = vunpack.c.0.s8 %v2615
    %v2617 = vlaneseq
    %v2618 = vshrl.u32 %v2617, 7
    %v2619 = vsub.s32 %v2616, %v2618
    %v2620 = vrot.slane %v2613, %v2619
    %v2621 = vcombine.low %v2596, %v2604
    %v2622 = vcombine.high %v2596, %v2604
    %v2624 = vunpack.c.l.s4 1934713408
    %v2625 = vunpack.c.0.s8 %v2624
    %v2626 = vlaneseq
    %v2627 = vshrl.u32 %v2626, 7
    %v2628 = vsub.s32 %v2625, %v2627
    %v2629 = vrot.slane %v2621, %v2628
    %v2631 = vunpack.c.l.s4 1934713408
    %v2632 = vunpack.c.0.s8 %v2631
    %v2633 = vlaneseq
    %v2634 = vshrl.u32 %v2633, 7
    %v2635 = vsub.s32 %v2632, %v2634
    %v2636 = vrot.slane %v2622, %v2635
    %v2637 = vcombine.low %v2612, %v2620
    %v2638 = vcombine.high %v2612, %v2620
    %v2640 = vunpack.c.l.s4 1934713408
    %v2641 = vunpack.c.0.s8 %v2640
    %v2642 = vlaneseq
    %v2643 = vshrl.u32 %v2642, 7
    %v2644 = vsub.s32 %v2641, %v2643
    %v2645 = vrot.slane %v2637, %v2644
    %v2647 = vunpack.c.l.s4 1934713408
    %v2648 = vunpack.c.0.s8 %v2647
    %v2649 = vlaneseq
    %v2650 = vshrl.u32 %v2649, 7
    %v2651 = vsub.s32 %v2648, %v2650
    %v2652 = vrot.slane %v2638, %v2651
    %v2653 = vcombine.low %v2629, %v2645
    %v2654 = vcombine.high %v2629, %v2645
    %v2655 = vcombine.low %v2636, %v2652
    %v2656 = vcombine.high %v2636, %v2652
    %vm2657 = vcmask 64512
    %v2659 = vsel %vm2657, %v1993, 0
    %v2662 = vsel %vm2657, %v2289, 0
    %2664 = vmatprep.subr.mxu0 0.0
    %2665 = vmatpush1.xpose.msra.mxu0 %v2662
    %2666 = vmatprep.subr.mxu0 0.0
    %2667 = vmatpush1.xpose.msra.mxu0 0.0
    %2668 = vmatprep.subr.mxu0 0.0
    %2669 = vmatpush1.xpose.msra.mxu0 0.0
    %2670 = vmatprep.subr.mxu0 0.0
    %2671 = vmatpush1.xpose.msra.mxu0 0.0
    %2672 = vmatprep.subr.mxu0 0.0
    %2673 = vmatpush1.xpose.msra.mxu0 0.0
    %2674 = vmatprep.subr.mxu0 0.0
    %2675 = vmatpush1.xpose.msra.mxu0 0.0
    %2676 = vmatprep.subr.mxu0 0.0
    %2677 = vmatpush1.xpose.msra.mxu0 0.0
    %2678 = vmatprep.subr.mxu0 0.0
    %2679 = vmatpush1.xpose.msra.mxu0 0.0
    %2680 = vmatprep.subr.mxu0 0.0
    %2681 = vmatpush1.xpose.msra.mxu0 0.0
    %2682 = vmatprep.subr.mxu0 0.0
    %2683 = vmatpush1.xpose.msra.mxu0 0.0
    %2684 = vmatprep.subr.mxu0 0.0
    %2685 = vmatpush1.xpose.msra.mxu0 0.0
    %2686 = vmatprep.subr.mxu0 0.0
    %2687 = vmatpush1.xpose.msra.mxu0 0.0
    %2688 = vmatprep.subr.mxu0 0.0
    %2689 = vmatpush1.xpose.msra.mxu0 0.0
    %2690 = vmatprep.subr.mxu0 0.0
    %2691 = vmatpush1.xpose.msra.mxu0 0.0
    %2692 = vmatprep.subr.mxu0 0.0
    %2693 = vmatpush1.xpose.msra.mxu0 0.0
    %2694 = vmatprep.subr.mxu0 0.0
    %2695 = vmatpush1.xpose.msra.mxu0 0.0
    %2696 = vmatprep.subr.mxu0 0.0
    %2697 = vmatpush1.xpose.msra.mxu0 0.0
    %2698 = vmatprep.subr.mxu0 0.0
    %2699 = vmatpush1.xpose.msra.mxu0 0.0
    %2700 = vmatprep.subr.mxu0 0.0
    %2701 = vmatpush1.xpose.msra.mxu0 0.0
    %2702 = vmatprep.subr.mxu0 0.0
    %2703 = vmatpush1.xpose.msra.mxu0 0.0
    %2704 = vmatprep.subr.mxu0 0.0
    %2705 = vmatpush1.xpose.msra.mxu0 0.0
    %2706 = vmatprep.subr.mxu0 0.0
    %2707 = vmatpush1.xpose.msra.mxu0 0.0
    %2708 = vmatprep.subr.mxu0 0.0
    %2709 = vmatpush1.xpose.msra.mxu0 0.0
    %2710 = vmatprep.subr.mxu0 0.0
    %2711 = vmatpush1.xpose.msra.mxu0 0.0
    %2712 = vmatprep.subr.mxu0 0.0
    %2713 = vmatpush1.xpose.msra.mxu0 0.0
    %2714 = vmatprep.subr.mxu0 0.0
    %2715 = vmatpush1.xpose.msra.mxu0 0.0
    %2716 = vmatprep.subr.mxu0 0.0
    %2717 = vmatpush1.xpose.msra.mxu0 0.0
    %2718 = vmatprep.subr.mxu0 0.0
    %2719 = vmatpush1.xpose.msra.mxu0 0.0
    %2720 = vmatprep.subr.mxu0 0.0
    %2721 = vmatpush1.xpose.msra.mxu0 0.0
    %2722 = vmatprep.subr.mxu0 0.0
    %2723 = vmatpush1.xpose.msra.mxu0 0.0
    %2724 = vmatprep.subr.mxu0 0.0
    %2725 = vmatpush1.xpose.msra.mxu0 0.0
    %2726 = vmatprep.subr.mxu0 0.0
    %2727 = vmatpush1.xpose.msra.mxu0 0.0
    %2728 = vmatprep.mubr.f32.mxu0 0.0
    %2729 = vmatmul.mubr.f32.gmra.mrb[0].mxu0 %v2659
    %v2730 = vpop.f32.mrb[0].mxu0
    %v2731 = vadd.f32 0.0, %v2730
    %v2732 = vpop.f32.mrb[0].mxu0
    %2733 = vdwg.mxu0
    %v2735 = vsel %vm2657, %v1994, 0
    %v2738 = vsel %vm2657, %v2290, 0
    %2740 = vmatprep.subr.mxu0 0.0
    %2741 = vmatpush1.xpose.msra.mxu0 %v2738
    %2742 = vmatprep.subr.mxu0 0.0
    %2743 = vmatpush1.xpose.msra.mxu0 0.0
    %2744 = vmatprep.subr.mxu0 0.0
    %2745 = vmatpush1.xpose.msra.mxu0 0.0
    %2746 = vmatprep.subr.mxu0 0.0
    %2747 = vmatpush1.xpose.msra.mxu0 0.0
    %2748 = vmatprep.subr.mxu0 0.0
    %2749 = vmatpush1.xpose.msra.mxu0 0.0
    %2750 = vmatprep.subr.mxu0 0.0
    %2751 = vmatpush1.xpose.msra.mxu0 0.0
    %2752 = vmatprep.subr.mxu0 0.0
    %2753 = vmatpush1.xpose.msra.mxu0 0.0
    %2754 = vmatprep.subr.mxu0 0.0
    %2755 = vmatpush1.xpose.msra.mxu0 0.0
    %2756 = vmatprep.subr.mxu0 0.0
    %2757 = vmatpush1.xpose.msra.mxu0 0.0
    %2758 = vmatprep.subr.mxu0 0.0
    %2759 = vmatpush1.xpose.msra.mxu0 0.0
    %2760 = vmatprep.subr.mxu0 0.0
    %2761 = vmatpush1.xpose.msra.mxu0 0.0
    %2762 = vmatprep.subr.mxu0 0.0
    %2763 = vmatpush1.xpose.msra.mxu0 0.0
    %2764 = vmatprep.subr.mxu0 0.0
    %2765 = vmatpush1.xpose.msra.mxu0 0.0
    %2766 = vmatprep.subr.mxu0 0.0
    %2767 = vmatpush1.xpose.msra.mxu0 0.0
    %2768 = vmatprep.subr.mxu0 0.0
    %2769 = vmatpush1.xpose.msra.mxu0 0.0
    %2770 = vmatprep.subr.mxu0 0.0
    %2771 = vmatpush1.xpose.msra.mxu0 0.0
    %2772 = vmatprep.subr.mxu0 0.0
    %2773 = vmatpush1.xpose.msra.mxu0 0.0
    %2774 = vmatprep.subr.mxu0 0.0
    %2775 = vmatpush1.xpose.msra.mxu0 0.0
    %2776 = vmatprep.subr.mxu0 0.0
    %2777 = vmatpush1.xpose.msra.mxu0 0.0
    %2778 = vmatprep.subr.mxu0 0.0
    %2779 = vmatpush1.xpose.msra.mxu0 0.0
    %2780 = vmatprep.subr.mxu0 0.0
    %2781 = vmatpush1.xpose.msra.mxu0 0.0
    %2782 = vmatprep.subr.mxu0 0.0
    %2783 = vmatpush1.xpose.msra.mxu0 0.0
    %2784 = vmatprep.subr.mxu0 0.0
    %2785 = vmatpush1.xpose.msra.mxu0 0.0
    %2786 = vmatprep.subr.mxu0 0.0
    %2787 = vmatpush1.xpose.msra.mxu0 0.0
    %2788 = vmatprep.subr.mxu0 0.0
    %2789 = vmatpush1.xpose.msra.mxu0 0.0
    %2790 = vmatprep.subr.mxu0 0.0
    %2791 = vmatpush1.xpose.msra.mxu0 0.0
    %2792 = vmatprep.subr.mxu0 0.0
    %2793 = vmatpush1.xpose.msra.mxu0 0.0
    %2794 = vmatprep.subr.mxu0 0.0
    %2795 = vmatpush1.xpose.msra.mxu0 0.0
    %2796 = vmatprep.subr.mxu0 0.0
    %2797 = vmatpush1.xpose.msra.mxu0 0.0
    %2798 = vmatprep.subr.mxu0 0.0
    %2799 = vmatpush1.xpose.msra.mxu0 0.0
    %2800 = vmatprep.subr.mxu0 0.0
    %2801 = vmatpush1.xpose.msra.mxu0 0.0
    %2802 = vmatprep.subr.mxu0 0.0
    %2803 = vmatpush1.xpose.msra.mxu0 0.0
    %2804 = vmatprep.mubr.f32.mxu0 0.0
    %2805 = vmatmul.mubr.f32.gmra.mrb[0].mxu0 %v2735
    %v2806 = vpop.f32.mrb[0].mxu0
    %v2807 = vadd.f32 0.0, %v2806
    %v2808 = vpop.f32.mrb[0].mxu0
    %2809 = vdwg.mxu0
    %v2811 = vsel %vm2657, %v1995, 0
    %v2814 = vsel %vm2657, %v2291, 0
    %2816 = vmatprep.subr.mxu0 0.0
    %2817 = vmatpush1.xpose.msra.mxu0 %v2814
    %2818 = vmatprep.subr.mxu0 0.0
    %2819 = vmatpush1.xpose.msra.mxu0 0.0
    %2820 = vmatprep.subr.mxu0 0.0
    %2821 = vmatpush1.xpose.msra.mxu0 0.0
    %2822 = vmatprep.subr.mxu0 0.0
    %2823 = vmatpush1.xpose.msra.mxu0 0.0
    %2824 = vmatprep.subr.mxu0 0.0
    %2825 = vmatpush1.xpose.msra.mxu0 0.0
    %2826 = vmatprep.subr.mxu0 0.0
    %2827 = vmatpush1.xpose.msra.mxu0 0.0
    %2828 = vmatprep.subr.mxu0 0.0
    %2829 = vmatpush1.xpose.msra.mxu0 0.0
    %2830 = vmatprep.subr.mxu0 0.0
    %2831 = vmatpush1.xpose.msra.mxu0 0.0
    %2832 = vmatprep.subr.mxu0 0.0
    %2833 = vmatpush1.xpose.msra.mxu0 0.0
    %2834 = vmatprep.subr.mxu0 0.0
    %2835 = vmatpush1.xpose.msra.mxu0 0.0
    %2836 = vmatprep.subr.mxu0 0.0
    %2837 = vmatpush1.xpose.msra.mxu0 0.0
    %2838 = vmatprep.subr.mxu0 0.0
    %2839 = vmatpush1.xpose.msra.mxu0 0.0
    %2840 = vmatprep.subr.mxu0 0.0
    %2841 = vmatpush1.xpose.msra.mxu0 0.0
    %2842 = vmatprep.subr.mxu0 0.0
    %2843 = vmatpush1.xpose.msra.mxu0 0.0
    %2844 = vmatprep.subr.mxu0 0.0
    %2845 = vmatpush1.xpose.msra.mxu0 0.0
    %2846 = vmatprep.subr.mxu0 0.0
    %2847 = vmatpush1.xpose.msra.mxu0 0.0
    %2848 = vmatprep.subr.mxu0 0.0
    %2849 = vmatpush1.xpose.msra.mxu0 0.0
    %2850 = vmatprep.subr.mxu0 0.0
    %2851 = vmatpush1.xpose.msra.mxu0 0.0
    %2852 = vmatprep.subr.mxu0 0.0
    %2853 = vmatpush1.xpose.msra.mxu0 0.0
    %2854 = vmatprep.subr.mxu0 0.0
    %2855 = vmatpush1.xpose.msra.mxu0 0.0
    %2856 = vmatprep.subr.mxu0 0.0
    %2857 = vmatpush1.xpose.msra.mxu0 0.0
    %2858 = vmatprep.subr.mxu0 0.0
    %2859 = vmatpush1.xpose.msra.mxu0 0.0
    %2860 = vmatprep.subr.mxu0 0.0
    %2861 = vmatpush1.xpose.msra.mxu0 0.0
    %2862 = vmatprep.subr.mxu0 0.0
    %2863 = vmatpush1.xpose.msra.mxu0 0.0
    %2864 = vmatprep.subr.mxu0 0.0
    %2865 = vmatpush1.xpose.msra.mxu0 0.0
    %2866 = vmatprep.subr.mxu0 0.0
    %2867 = vmatpush1.xpose.msra.mxu0 0.0
    %2868 = vmatprep.subr.mxu0 0.0
    %2869 = vmatpush1.xpose.msra.mxu0 0.0
    %2870 = vmatprep.subr.mxu0 0.0
    %2871 = vmatpush1.xpose.msra.mxu0 0.0
    %2872 = vmatprep.subr.mxu0 0.0
    %2873 = vmatpush1.xpose.msra.mxu0 0.0
    %2874 = vmatprep.subr.mxu0 0.0
    %2875 = vmatpush1.xpose.msra.mxu0 0.0
    %2876 = vmatprep.subr.mxu0 0.0
    %2877 = vmatpush1.xpose.msra.mxu0 0.0
    %2878 = vmatprep.subr.mxu0 0.0
    %2879 = vmatpush1.xpose.msra.mxu0 0.0
    %2880 = vmatprep.mubr.f32.mxu0 0.0
    %2881 = vmatmul.mubr.f32.gmra.mrb[0].mxu0 %v2811
    %v2882 = vpop.f32.mrb[0].mxu0
    %v2883 = vadd.f32 0.0, %v2882
    %v2884 = vpop.f32.mrb[0].mxu0
    %2885 = vdwg.mxu0
    %v2887 = vsel %vm2657, %v1996, 0
    %v2890 = vsel %vm2657, %v2292, 0
    %2892 = vmatprep.subr.mxu0 0.0
    %2893 = vmatpush1.xpose.msra.mxu0 %v2890
    %2894 = vmatprep.subr.mxu0 0.0
    %2895 = vmatpush1.xpose.msra.mxu0 0.0
    %2896 = vmatprep.subr.mxu0 0.0
    %2897 = vmatpush1.xpose.msra.mxu0 0.0
    %2898 = vmatprep.subr.mxu0 0.0
    %2899 = vmatpush1.xpose.msra.mxu0 0.0
    %2900 = vmatprep.subr.mxu0 0.0
    %2901 = vmatpush1.xpose.msra.mxu0 0.0
    %2902 = vmatprep.subr.mxu0 0.0
    %2903 = vmatpush1.xpose.msra.mxu0 0.0
    %2904 = vmatprep.subr.mxu0 0.0
    %2905 = vmatpush1.xpose.msra.mxu0 0.0
    %2906 = vmatprep.subr.mxu0 0.0
    %2907 = vmatpush1.xpose.msra.mxu0 0.0
    %2908 = vmatprep.subr.mxu0 0.0
    %2909 = vmatpush1.xpose.msra.mxu0 0.0
    %2910 = vmatprep.subr.mxu0 0.0
    %2911 = vmatpush1.xpose.msra.mxu0 0.0
    %2912 = vmatprep.subr.mxu0 0.0
    %2913 = vmatpush1.xpose.msra.mxu0 0.0
    %2914 = vmatprep.subr.mxu0 0.0
    %2915 = vmatpush1.xpose.msra.mxu0 0.0
    %2916 = vmatprep.subr.mxu0 0.0
    %2917 = vmatpush1.xpose.msra.mxu0 0.0
    %2918 = vmatprep.subr.mxu0 0.0
    %2919 = vmatpush1.xpose.msra.mxu0 0.0
    %2920 = vmatprep.subr.mxu0 0.0
    %2921 = vmatpush1.xpose.msra.mxu0 0.0
    %2922 = vmatprep.subr.mxu0 0.0
    %2923 = vmatpush1.xpose.msra.mxu0 0.0
    %2924 = vmatprep.subr.mxu0 0.0
    %2925 = vmatpush1.xpose.msra.mxu0 0.0
    %2926 = vmatprep.subr.mxu0 0.0
    %2927 = vmatpush1.xpose.msra.mxu0 0.0
    %2928 = vmatprep.subr.mxu0 0.0
    %2929 = vmatpush1.xpose.msra.mxu0 0.0
    %2930 = vmatprep.subr.mxu0 0.0
    %2931 = vmatpush1.xpose.msra.mxu0 0.0
    %2932 = vmatprep.subr.mxu0 0.0
    %2933 = vmatpush1.xpose.msra.mxu0 0.0
    %2934 = vmatprep.subr.mxu0 0.0
    %2935 = vmatpush1.xpose.msra.mxu0 0.0
    %2936 = vmatprep.subr.mxu0 0.0
    %2937 = vmatpush1.xpose.msra.mxu0 0.0
    %2938 = vmatprep.subr.mxu0 0.0
    %2939 = vmatpush1.xpose.msra.mxu0 0.0
    %2940 = vmatprep.subr.mxu0 0.0
    %2941 = vmatpush1.xpose.msra.mxu0 0.0
    %2942 = vmatprep.subr.mxu0 0.0
    %2943 = vmatpush1.xpose.msra.mxu0 0.0
    %2944 = vmatprep.subr.mxu0 0.0
    %2945 = vmatpush1.xpose.msra.mxu0 0.0
    %2946 = vmatprep.subr.mxu0 0.0
    %2947 = vmatpush1.xpose.msra.mxu0 0.0
    %2948 = vmatprep.subr.mxu0 0.0
    %2949 = vmatpush1.xpose.msra.mxu0 0.0
    %2950 = vmatprep.subr.mxu0 0.0
    %2951 = vmatpush1.xpose.msra.mxu0 0.0
    %2952 = vmatprep.subr.mxu0 0.0
    %2953 = vmatpush1.xpose.msra.mxu0 0.0
    %2954 = vmatprep.subr.mxu0 0.0
    %2955 = vmatpush1.xpose.msra.mxu0 0.0
    %2956 = vmatprep.mubr.f32.mxu0 0.0
    %2957 = vmatmul.mubr.f32.gmra.mrb[0].mxu0 %v2887
    %v2958 = vpop.f32.mrb[0].mxu0
    %v2959 = vadd.f32 0.0, %v2958
    %v2960 = vpop.f32.mrb[0].mxu0
    %2961 = vdwg.mxu0
    %v2963 = vsel %vm2657, %v2061, 0
    %v2966 = vsel %vm2657, %v2357, 0
    %2968 = vmatprep.subr.mxu0 0.0
    %2969 = vmatpush1.xpose.msra.mxu0 %v2966
    %2970 = vmatprep.subr.mxu0 0.0
    %2971 = vmatpush1.xpose.msra.mxu0 0.0
    %2972 = vmatprep.subr.mxu0 0.0
    %2973 = vmatpush1.xpose.msra.mxu0 0.0
    %2974 = vmatprep.subr.mxu0 0.0
    %2975 = vmatpush1.xpose.msra.mxu0 0.0
    %2976 = vmatprep.subr.mxu0 0.0
    %2977 = vmatpush1.xpose.msra.mxu0 0.0
    %2978 = vmatprep.subr.mxu0 0.0
    %2979 = vmatpush1.xpose.msra.mxu0 0.0
    %2980 = vmatprep.subr.mxu0 0.0
    %2981 = vmatpush1.xpose.msra.mxu0 0.0
    %2982 = vmatprep.subr.mxu0 0.0
    %2983 = vmatpush1.xpose.msra.mxu0 0.0
    %2984 = vmatprep.subr.mxu0 0.0
    %2985 = vmatpush1.xpose.msra.mxu0 0.0
    %2986 = vmatprep.subr.mxu0 0.0
    %2987 = vmatpush1.xpose.msra.mxu0 0.0
    %2988 = vmatprep.subr.mxu0 0.0
    %2989 = vmatpush1.xpose.msra.mxu0 0.0
    %2990 = vmatprep.subr.mxu0 0.0
    %2991 = vmatpush1.xpose.msra.mxu0 0.0
    %2992 = vmatprep.subr.mxu0 0.0
    %2993 = vmatpush1.xpose.msra.mxu0 0.0
    %2994 = vmatprep.subr.mxu0 0.0
    %2995 = vmatpush1.xpose.msra.mxu0 0.0
    %2996 = vmatprep.subr.mxu0 0.0
    %2997 = vmatpush1.xpose.msra.mxu0 0.0
    %2998 = vmatprep.subr.mxu0 0.0
    %2999 = vmatpush1.xpose.msra.mxu0 0.0
    %3000 = vmatprep.subr.mxu0 0.0
    %3001 = vmatpush1.xpose.msra.mxu0 0.0
    %3002 = vmatprep.subr.mxu0 0.0
    %3003 = vmatpush1.xpose.msra.mxu0 0.0
    %3004 = vmatprep.subr.mxu0 0.0
    %3005 = vmatpush1.xpose.msra.mxu0 0.0
    %3006 = vmatprep.subr.mxu0 0.0
    %3007 = vmatpush1.xpose.msra.mxu0 0.0
    %3008 = vmatprep.subr.mxu0 0.0
    %3009 = vmatpush1.xpose.msra.mxu0 0.0
    %3010 = vmatprep.subr.mxu0 0.0
    %3011 = vmatpush1.xpose.msra.mxu0 0.0
    %3012 = vmatprep.subr.mxu0 0.0
    %3013 = vmatpush1.xpose.msra.mxu0 0.0
    %3014 = vmatprep.subr.mxu0 0.0
    %3015 = vmatpush1.xpose.msra.mxu0 0.0
    %3016 = vmatprep.subr.mxu0 0.0
    %3017 = vmatpush1.xpose.msra.mxu0 0.0
    %3018 = vmatprep.subr.mxu0 0.0
    %3019 = vmatpush1.xpose.msra.mxu0 0.0
    %3020 = vmatprep.subr.mxu0 0.0
    %3021 = vmatpush1.xpose.msra.mxu0 0.0
    %3022 = vmatprep.subr.mxu0 0.0
    %3023 = vmatpush1.xpose.msra.mxu0 0.0
    %3024 = vmatprep.subr.mxu0 0.0
    %3025 = vmatpush1.xpose.msra.mxu0 0.0
    %3026 = vmatprep.subr.mxu0 0.0
    %3027 = vmatpush1.xpose.msra.mxu0 0.0
    %3028 = vmatprep.subr.mxu0 0.0
    %3029 = vmatpush1.xpose.msra.mxu0 0.0
    %3030 = vmatprep.subr.mxu0 0.0
    %3031 = vmatpush1.xpose.msra.mxu0 0.0
    %3032 = vmatprep.mubr.f32.mxu0 0.0
    %3033 = vmatmul.mubr.f32.gmra.mrb[0].mxu0 %v2963
    %v3034 = vpop.f32.mrb[0].mxu0
    %v3035 = vadd.f32 0.0, %v3034
    %v3036 = vpop.f32.mrb[0].mxu0
    %3037 = vdwg.mxu0
    %v3039 = vsel %vm2657, %v2062, 0
    %v3042 = vsel %vm2657, %v2358, 0
    %3044 = vmatprep.subr.mxu0 0.0
    %3045 = vmatpush1.xpose.msra.mxu0 %v3042
    %3046 = vmatprep.subr.mxu0 0.0
    %3047 = vmatpush1.xpose.msra.mxu0 0.0
    %3048 = vmatprep.subr.mxu0 0.0
    %3049 = vmatpush1.xpose.msra.mxu0 0.0
    %3050 = vmatprep.subr.mxu0 0.0
    %3051 = vmatpush1.xpose.msra.mxu0 0.0
    %3052 = vmatprep.subr.mxu0 0.0
    %3053 = vmatpush1.xpose.msra.mxu0 0.0
    %3054 = vmatprep.subr.mxu0 0.0
    %3055 = vmatpush1.xpose.msra.mxu0 0.0
    %3056 = vmatprep.subr.mxu0 0.0
    %3057 = vmatpush1.xpose.msra.mxu0 0.0
    %3058 = vmatprep.subr.mxu0 0.0
    %3059 = vmatpush1.xpose.msra.mxu0 0.0
    %3060 = vmatprep.subr.mxu0 0.0
    %3061 = vmatpush1.xpose.msra.mxu0 0.0
    %3062 = vmatprep.subr.mxu0 0.0
    %3063 = vmatpush1.xpose.msra.mxu0 0.0
    %3064 = vmatprep.subr.mxu0 0.0
    %3065 = vmatpush1.xpose.msra.mxu0 0.0
    %3066 = vmatprep.subr.mxu0 0.0
    %3067 = vmatpush1.xpose.msra.mxu0 0.0
    %3068 = vmatprep.subr.mxu0 0.0
    %3069 = vmatpush1.xpose.msra.mxu0 0.0
    %3070 = vmatprep.subr.mxu0 0.0
    %3071 = vmatpush1.xpose.msra.mxu0 0.0
    %3072 = vmatprep.subr.mxu0 0.0
    %3073 = vmatpush1.xpose.msra.mxu0 0.0
    %3074 = vmatprep.subr.mxu0 0.0
    %3075 = vmatpush1.xpose.msra.mxu0 0.0
    %3076 = vmatprep.subr.mxu0 0.0
    %3077 = vmatpush1.xpose.msra.mxu0 0.0
    %3078 = vmatprep.subr.mxu0 0.0
    %3079 = vmatpush1.xpose.msra.mxu0 0.0
    %3080 = vmatprep.subr.mxu0 0.0
    %3081 = vmatpush1.xpose.msra.mxu0 0.0
    %3082 = vmatprep.subr.mxu0 0.0
    %3083 = vmatpush1.xpose.msra.mxu0 0.0
    %3084 = vmatprep.subr.mxu0 0.0
    %3085 = vmatpush1.xpose.msra.mxu0 0.0
    %3086 = vmatprep.subr.mxu0 0.0
    %3087 = vmatpush1.xpose.msra.mxu0 0.0
    %3088 = vmatprep.subr.mxu0 0.0
    %3089 = vmatpush1.xpose.msra.mxu0 0.0
    %3090 = vmatprep.subr.mxu0 0.0
    %3091 = vmatpush1.xpose.msra.mxu0 0.0
    %3092 = vmatprep.subr.mxu0 0.0
    %3093 = vmatpush1.xpose.msra.mxu0 0.0
    %3094 = vmatprep.subr.mxu0 0.0
    %3095 = vmatpush1.xpose.msra.mxu0 0.0
    %3096 = vmatprep.subr.mxu0 0.0
    %3097 = vmatpush1.xpose.msra.mxu0 0.0
    %3098 = vmatprep.subr.mxu0 0.0
    %3099 = vmatpush1.xpose.msra.mxu0 0.0
    %3100 = vmatprep.subr.mxu0 0.0
    %3101 = vmatpush1.xpose.msra.mxu0 0.0
    %3102 = vmatprep.subr.mxu0 0.0
    %3103 = vmatpush1.xpose.msra.mxu0 0.0
    %3104 = vmatprep.subr.mxu0 0.0
    %3105 = vmatpush1.xpose.msra.mxu0 0.0
    %3106 = vmatprep.subr.mxu0 0.0
    %3107 = vmatpush1.xpose.msra.mxu0 0.0
    %3108 = vmatprep.mubr.f32.mxu0 0.0
    %3109 = vmatmul.mubr.f32.gmra.mrb[0].mxu0 %v3039
    %v3110 = vpop.f32.mrb[0].mxu0
    %v3111 = vadd.f32 0.0, %v3110
    %v3112 = vpop.f32.mrb[0].mxu0
    %3113 = vdwg.mxu0
    %v3115 = vsel %vm2657, %v2063, 0
    %v3118 = vsel %vm2657, %v2359, 0
    %3120 = vmatprep.subr.mxu0 0.0
    %3121 = vmatpush1.xpose.msra.mxu0 %v3118
    %3122 = vmatprep.subr.mxu0 0.0
    %3123 = vmatpush1.xpose.msra.mxu0 0.0
    %3124 = vmatprep.subr.mxu0 0.0
    %3125 = vmatpush1.xpose.msra.mxu0 0.0
    %3126 = vmatprep.subr.mxu0 0.0
    %3127 = vmatpush1.xpose.msra.mxu0 0.0
    %3128 = vmatprep.subr.mxu0 0.0
    %3129 = vmatpush1.xpose.msra.mxu0 0.0
    %3130 = vmatprep.subr.mxu0 0.0
    %3131 = vmatpush1.xpose.msra.mxu0 0.0
    %3132 = vmatprep.subr.mxu0 0.0
    %3133 = vmatpush1.xpose.msra.mxu0 0.0
    %3134 = vmatprep.subr.mxu0 0.0
    %3135 = vmatpush1.xpose.msra.mxu0 0.0
    %3136 = vmatprep.subr.mxu0 0.0
    %3137 = vmatpush1.xpose.msra.mxu0 0.0
    %3138 = vmatprep.subr.mxu0 0.0
    %3139 = vmatpush1.xpose.msra.mxu0 0.0
    %3140 = vmatprep.subr.mxu0 0.0
    %3141 = vmatpush1.xpose.msra.mxu0 0.0
    %3142 = vmatprep.subr.mxu0 0.0
    %3143 = vmatpush1.xpose.msra.mxu0 0.0
    %3144 = vmatprep.subr.mxu0 0.0
    %3145 = vmatpush1.xpose.msra.mxu0 0.0
    %3146 = vmatprep.subr.mxu0 0.0
    %3147 = vmatpush1.xpose.msra.mxu0 0.0
    %3148 = vmatprep.subr.mxu0 0.0
    %3149 = vmatpush1.xpose.msra.mxu0 0.0
    %3150 = vmatprep.subr.mxu0 0.0
    %3151 = vmatpush1.xpose.msra.mxu0 0.0
    %3152 = vmatprep.subr.mxu0 0.0
    %3153 = vmatpush1.xpose.msra.mxu0 0.0
    %3154 = vmatprep.subr.mxu0 0.0
    %3155 = vmatpush1.xpose.msra.mxu0 0.0
    %3156 = vmatprep.subr.mxu0 0.0
    %3157 = vmatpush1.xpose.msra.mxu0 0.0
    %3158 = vmatprep.subr.mxu0 0.0
    %3159 = vmatpush1.xpose.msra.mxu0 0.0
    %3160 = vmatprep.subr.mxu0 0.0
    %3161 = vmatpush1.xpose.msra.mxu0 0.0
    %3162 = vmatprep.subr.mxu0 0.0
    %3163 = vmatpush1.xpose.msra.mxu0 0.0
    %3164 = vmatprep.subr.mxu0 0.0
    %3165 = vmatpush1.xpose.msra.mxu0 0.0
    %3166 = vmatprep.subr.mxu0 0.0
    %3167 = vmatpush1.xpose.msra.mxu0 0.0
    %3168 = vmatprep.subr.mxu0 0.0
    %3169 = vmatpush1.xpose.msra.mxu0 0.0
    %3170 = vmatprep.subr.mxu0 0.0
    %3171 = vmatpush1.xpose.msra.mxu0 0.0
    %3172 = vmatprep.subr.mxu0 0.0
    %3173 = vmatpush1.xpose.msra.mxu0 0.0
    %3174 = vmatprep.subr.mxu0 0.0
    %3175 = vmatpush1.xpose.msra.mxu0 0.0
    %3176 = vmatprep.subr.mxu0 0.0
    %3177 = vmatpush1.xpose.msra.mxu0 0.0
    %3178 = vmatprep.subr.mxu0 0.0
    %3179 = vmatpush1.xpose.msra.mxu0 0.0
    %3180 = vmatprep.subr.mxu0 0.0
    %3181 = vmatpush1.xpose.msra.mxu0 0.0
    %3182 = vmatprep.subr.mxu0 0.0
    %3183 = vmatpush1.xpose.msra.mxu0 0.0
    %3184 = vmatprep.mubr.f32.mxu0 0.0
    %3185 = vmatmul.mubr.f32.gmra.mrb[0].mxu0 %v3115
    %v3186 = vpop.f32.mrb[0].mxu0
    %v3187 = vadd.f32 0.0, %v3186
    %v3188 = vpop.f32.mrb[0].mxu0
    %3189 = vdwg.mxu0
    %v3191 = vsel %vm2657, %v2064, 0
    %v3194 = vsel %vm2657, %v2360, 0
    %3196 = vmatprep.subr.mxu0 0.0
    %3197 = vmatpush1.xpose.msra.mxu0 %v3194
    %3198 = vmatprep.subr.mxu0 0.0
    %3199 = vmatpush1.xpose.msra.mxu0 0.0
    %3200 = vmatprep.subr.mxu0 0.0
    %3201 = vmatpush1.xpose.msra.mxu0 0.0
    %3202 = vmatprep.subr.mxu0 0.0
    %3203 = vmatpush1.xpose.msra.mxu0 0.0
    %3204 = vmatprep.subr.mxu0 0.0
    %3205 = vmatpush1.xpose.msra.mxu0 0.0
    %3206 = vmatprep.subr.mxu0 0.0
    %3207 = vmatpush1.xpose.msra.mxu0 0.0
    %3208 = vmatprep.subr.mxu0 0.0
    %3209 = vmatpush1.xpose.msra.mxu0 0.0
    %3210 = vmatprep.subr.mxu0 0.0
    %3211 = vmatpush1.xpose.msra.mxu0 0.0
    %3212 = vmatprep.subr.mxu0 0.0
    %3213 = vmatpush1.xpose.msra.mxu0 0.0
    %3214 = vmatprep.subr.mxu0 0.0
    %3215 = vmatpush1.xpose.msra.mxu0 0.0
    %3216 = vmatprep.subr.mxu0 0.0
    %3217 = vmatpush1.xpose.msra.mxu0 0.0
    %3218 = vmatprep.subr.mxu0 0.0
    %3219 = vmatpush1.xpose.msra.mxu0 0.0
    %3220 = vmatprep.subr.mxu0 0.0
    %3221 = vmatpush1.xpose.msra.mxu0 0.0
    %3222 = vmatprep.subr.mxu0 0.0
    %3223 = vmatpush1.xpose.msra.mxu0 0.0
    %3224 = vmatprep.subr.mxu0 0.0
    %3225 = vmatpush1.xpose.msra.mxu0 0.0
    %3226 = vmatprep.subr.mxu0 0.0
    %3227 = vmatpush1.xpose.msra.mxu0 0.0
    %3228 = vmatprep.subr.mxu0 0.0
    %3229 = vmatpush1.xpose.msra.mxu0 0.0
    %3230 = vmatprep.subr.mxu0 0.0
    %3231 = vmatpush1.xpose.msra.mxu0 0.0
    %3232 = vmatprep.subr.mxu0 0.0
    %3233 = vmatpush1.xpose.msra.mxu0 0.0
    %3234 = vmatprep.subr.mxu0 0.0
    %3235 = vmatpush1.xpose.msra.mxu0 0.0
    %3236 = vmatprep.subr.mxu0 0.0
    %3237 = vmatpush1.xpose.msra.mxu0 0.0
    %3238 = vmatprep.subr.mxu0 0.0
    %3239 = vmatpush1.xpose.msra.mxu0 0.0
    %3240 = vmatprep.subr.mxu0 0.0
    %3241 = vmatpush1.xpose.msra.mxu0 0.0
    %3242 = vmatprep.subr.mxu0 0.0
    %3243 = vmatpush1.xpose.msra.mxu0 0.0
    %3244 = vmatprep.subr.mxu0 0.0
    %3245 = vmatpush1.xpose.msra.mxu0 0.0
    %3246 = vmatprep.subr.mxu0 0.0
    %3247 = vmatpush1.xpose.msra.mxu0 0.0
    %3248 = vmatprep.subr.mxu0 0.0
    %3249 = vmatpush1.xpose.msra.mxu0 0.0
    %3250 = vmatprep.subr.mxu0 0.0
    %3251 = vmatpush1.xpose.msra.mxu0 0.0
    %3252 = vmatprep.subr.mxu0 0.0
    %3253 = vmatpush1.xpose.msra.mxu0 0.0
    %3254 = vmatprep.subr.mxu0 0.0
    %3255 = vmatpush1.xpose.msra.mxu0 0.0
    %3256 = vmatprep.subr.mxu0 0.0
    %3257 = vmatpush1.xpose.msra.mxu0 0.0
    %3258 = vmatprep.subr.mxu0 0.0
    %3259 = vmatpush1.xpose.msra.mxu0 0.0
    %3260 = vmatprep.mubr.f32.mxu0 0.0
    %3261 = vmatmul.mubr.f32.gmra.mrb[0].mxu0 %v3191
    %v3262 = vpop.f32.mrb[0].mxu0
    %v3263 = vadd.f32 0.0, %v3262
    %v3264 = vpop.f32.mrb[0].mxu0
    %3265 = vdwg.mxu0
    %v3266 = vmul.f32 %v2731, 0.35355338
    %v3267 = vmul.f32 %v2807, 0.35355338
    %v3268 = vmul.f32 %v2883, 0.35355338
    %v3269 = vmul.f32 %v2959, 0.35355338
    %v3270 = vmul.f32 %v3035, 0.35355338
    %v3271 = vmul.f32 %v3111, 0.35355338
    %v3272 = vmul.f32 %v3187, 0.35355338
    %v3273 = vmul.f32 %v3263, 0.35355338
    %v3274 = vsel %vm163, 1, 0
    %vm3275 = vcmp.eq.s32.totalorder %v3274, 1
    %v3276 = vsel %vm3275, %v3266, -1e+30
    %v3277 = vsel %vm3275, %v3267, -1e+30
    %v3278 = vsel %vm3275, %v3268, -1e+30
    %v3279 = vsel %vm3275, %v3269, -1e+30
    %v3280 = vsel %vm3275, %v3270, -1e+30
    %v3281 = vsel %vm3275, %v3271, -1e+30
    %v3282 = vsel %vm3275, %v3272, -1e+30
    %v3283 = vsel %vm3275, %v3273, -1e+30
    %v3284 = vsel %vm2657, %v3276, -inf
    %3285 = vmax.xlane.f32.xlu0 %v3284
    %v3286 = vpop.xlane.xlu0 %3285
    %v3287 = vsel %vm2657, %v3277, -inf
    %3288 = vmax.xlane.f32.xlu0 %v3287
    %v3289 = vpop.xlane.xlu0 %3288
    %v3290 = vsel %vm2657, %v3278, -inf
    %3291 = vmax.xlane.f32.xlu0 %v3290
    %v3292 = vpop.xlane.xlu0 %3291
    %v3293 = vsel %vm2657, %v3279, -inf
    %3294 = vmax.xlane.f32.xlu0 %v3293
    %v3295 = vpop.xlane.xlu0 %3294
    %v3296 = vsel %vm2657, %v3280, -inf
    %3297 = vmax.xlane.f32.xlu0 %v3296
    %v3298 = vpop.xlane.xlu0 %3297
    %v3299 = vsel %vm2657, %v3281, -inf
    %3300 = vmax.xlane.f32.xlu0 %v3299
    %v3301 = vpop.xlane.xlu0 %3300
    %v3302 = vsel %vm2657, %v3282, -inf
    %3303 = vmax.xlane.f32.xlu0 %v3302
    %v3304 = vpop.xlane.xlu0 %3303
    %v3305 = vsel %vm2657, %v3283, -inf
    %3306 = vmax.xlane.f32.xlu0 %v3305
    %v3307 = vpop.xlane.xlu0 %3306
    %v3308 = vsub.f32 %v3276, %v3286
    %v3309 = vsub.f32 %v3277, %v3289
    %v3310 = vsub.f32 %v3278, %v3292
    %v3311 = vsub.f32 %v3279, %v3295
    %v3312 = vsub.f32 %v3280, %v3298
    %v3313 = vsub.f32 %v3281, %v3301
    %v3314 = vsub.f32 %v3282, %v3304
    %v3315 = vsub.f32 %v3283, %v3307
    %v3316 = vmul.f32 %v3308, 1.442695
    %v3317 = vpow.pop %v3316
    %v3318 = vmul.f32 %v3309, 1.442695
    %v3319 = vpow.pop %v3318
    %v3320 = vmul.f32 %v3310, 1.442695
    %v3321 = vpow.pop %v3320
    %v3322 = vmul.f32 %v3311, 1.442695
    %v3323 = vpow.pop %v3322
    %v3324 = vmul.f32 %v3312, 1.442695
    %v3325 = vpow.pop %v3324
    %v3326 = vmul.f32 %v3313, 1.442695
    %v3327 = vpow.pop %v3326
    %v3328 = vmul.f32 %v3314, 1.442695
    %v3329 = vpow.pop %v3328
    %v3330 = vmul.f32 %v3315, 1.442695
    %v3331 = vpow.pop %v3330
    %v3332 = vsel %vm2657, %v3317, 0.0
    %3333 = vadd.xlane.f32.xlu0 %v3332
    %v3334 = vpop.xlane.xlu0 %3333
    %v3335 = vsel %vm2657, %v3319, 0.0
    %3336 = vadd.xlane.f32.xlu0 %v3335
    %v3337 = vpop.xlane.xlu0 %3336
    %v3338 = vsel %vm2657, %v3321, 0.0
    %3339 = vadd.xlane.f32.xlu0 %v3338
    %v3340 = vpop.xlane.xlu0 %3339
    %v3341 = vsel %vm2657, %v3323, 0.0
    %3342 = vadd.xlane.f32.xlu0 %v3341
    %v3343 = vpop.xlane.xlu0 %3342
    %v3344 = vsel %vm2657, %v3325, 0.0
    %3345 = vadd.xlane.f32.xlu0 %v3344
    %v3346 = vpop.xlane.xlu0 %3345
    %v3347 = vsel %vm2657, %v3327, 0.0
    %3348 = vadd.xlane.f32.xlu0 %v3347
    %v3349 = vpop.xlane.xlu0 %3348
    %v3350 = vsel %vm2657, %v3329, 0.0
    %3351 = vadd.xlane.f32.xlu0 %v3350
    %v3352 = vpop.xlane.xlu0 %3351
    %v3353 = vsel %vm2657, %v3331, 0.0
    %3354 = vadd.xlane.f32.xlu0 %v3353
    %v3355 = vpop.xlane.xlu0 %3354
    %v3356 = vrcp.pop %v3334
    %v3357 = vmul.f32 %v3317, %v3356
    %v3358 = vrcp.pop %v3337
    %v3359 = vmul.f32 %v3319, %v3358
    %v3360 = vrcp.pop %v3340
    %v3361 = vmul.f32 %v3321, %v3360
    %v3362 = vrcp.pop %v3343
    %v3363 = vmul.f32 %v3323, %v3362
    %v3364 = vrcp.pop %v3346
    %v3365 = vmul.f32 %v3325, %v3364
    %v3366 = vrcp.pop %v3349
    %v3367 = vmul.f32 %v3327, %v3366
    %v3368 = vrcp.pop %v3352
    %v3369 = vmul.f32 %v3329, %v3368
    %v3370 = vrcp.pop %v3355
    %v3371 = vmul.f32 %v3331, %v3370
    %v3373 = vsel %vm2657, %v3357, 0
    %3375 = vmatprep.subr.mxu0 0.0
    %3376 = vmatpush1.msra.mxu0 %v2585
    %3377 = vmatprep.subr.mxu0 0.0
    %3378 = vmatpush1.msra.mxu0 0.0
    %3379 = vmatprep.subr.mxu0 0.0
    %3380 = vmatpush1.msra.mxu0 0.0
    %3381 = vmatprep.subr.mxu0 0.0
    %3382 = vmatpush1.msra.mxu0 0.0
    %3383 = vmatprep.subr.mxu0 0.0
    %3384 = vmatpush1.msra.mxu0 0.0
    %3385 = vmatprep.subr.mxu0 0.0
    %3386 = vmatpush1.msra.mxu0 0.0
    %3387 = vmatprep.subr.mxu0 0.0
    %3388 = vmatpush1.msra.mxu0 0.0
    %3389 = vmatprep.subr.mxu0 0.0
    %3390 = vmatpush1.msra.mxu0 0.0
    %3391 = vmatprep.subr.mxu0 0.0
    %3392 = vmatpush1.msra.mxu0 0.0
    %3393 = vmatprep.subr.mxu0 0.0
    %3394 = vmatpush1.msra.mxu0 0.0
    %3395 = vmatprep.subr.mxu0 0.0
    %3396 = vmatpush1.msra.mxu0 0.0
    %3397 = vmatprep.subr.mxu0 0.0
    %3398 = vmatpush1.msra.mxu0 0.0
    %3399 = vmatprep.subr.mxu0 0.0
    %3400 = vmatpush1.msra.mxu0 0.0
    %3401 = vmatprep.subr.mxu0 0.0
    %3402 = vmatpush1.msra.mxu0 0.0
    %3403 = vmatprep.subr.mxu0 0.0
    %3404 = vmatpush1.msra.mxu0 0.0
    %3405 = vmatprep.subr.mxu0 0.0
    %3406 = vmatpush1.msra.mxu0 0.0
    %3407 = vmatprep.subr.mxu0 0.0
    %3408 = vmatpush1.msra.mxu0 0.0
    %3409 = vmatprep.subr.mxu0 0.0
    %3410 = vmatpush1.msra.mxu0 0.0
    %3411 = vmatprep.subr.mxu0 0.0
    %3412 = vmatpush1.msra.mxu0 0.0
    %3413 = vmatprep.subr.mxu0 0.0
    %3414 = vmatpush1.msra.mxu0 0.0
    %3415 = vmatprep.subr.mxu0 0.0
    %3416 = vmatpush1.msra.mxu0 0.0
    %3417 = vmatprep.subr.mxu0 0.0
    %3418 = vmatpush1.msra.mxu0 0.0
    %3419 = vmatprep.subr.mxu0 0.0
    %3420 = vmatpush1.msra.mxu0 0.0
    %3421 = vmatprep.subr.mxu0 0.0
    %3422 = vmatpush1.msra.mxu0 0.0
    %3423 = vmatprep.subr.mxu0 0.0
    %3424 = vmatpush1.msra.mxu0 0.0
    %3425 = vmatprep.subr.mxu0 0.0
    %3426 = vmatpush1.msra.mxu0 0.0
    %3427 = vmatprep.subr.mxu0 0.0
    %3428 = vmatpush1.msra.mxu0 0.0
    %3429 = vmatprep.subr.mxu0 0.0
    %3430 = vmatpush1.msra.mxu0 0.0
    %3431 = vmatprep.subr.mxu0 0.0
    %3432 = vmatpush1.msra.mxu0 0.0
    %3433 = vmatprep.subr.mxu0 0.0
    %3434 = vmatpush1.msra.mxu0 0.0
    %3435 = vmatprep.subr.mxu0 0.0
    %3436 = vmatpush1.msra.mxu0 0.0
    %3437 = vmatprep.subr.mxu0 0.0
    %3438 = vmatpush1.msra.mxu0 0.0
    %3439 = vmatprep.mubr.f32.mxu0 0.0
    %3440 = vmatmul.mubr.f32.gmra.mrb[0].mxu0 %v3373
    %v3441 = vpop.f32.mrb[0].mxu0
    %v3442 = vadd.f32 0.0, %v3441
    %v3443 = vpop.f32.mrb[0].mxu0
    %3444 = vdwg.mxu0
    %v3446 = vsel %vm2657, %v3359, 0
    %3448 = vmatprep.subr.mxu0 0.0
    %3449 = vmatpush1.msra.mxu0 %v2586
    %3450 = vmatprep.subr.mxu0 0.0
    %3451 = vmatpush1.msra.mxu0 0.0
    %3452 = vmatprep.subr.mxu0 0.0
    %3453 = vmatpush1.msra.mxu0 0.0
    %3454 = vmatprep.subr.mxu0 0.0
    %3455 = vmatpush1.msra.mxu0 0.0
    %3456 = vmatprep.subr.mxu0 0.0
    %3457 = vmatpush1.msra.mxu0 0.0
    %3458 = vmatprep.subr.mxu0 0.0
    %3459 = vmatpush1.msra.mxu0 0.0
    %3460 = vmatprep.subr.mxu0 0.0
    %3461 = vmatpush1.msra.mxu0 0.0
    %3462 = vmatprep.subr.mxu0 0.0
    %3463 = vmatpush1.msra.mxu0 0.0
    %3464 = vmatprep.subr.mxu0 0.0
    %3465 = vmatpush1.msra.mxu0 0.0
    %3466 = vmatprep.subr.mxu0 0.0
    %3467 = vmatpush1.msra.mxu0 0.0
    %3468 = vmatprep.subr.mxu0 0.0
    %3469 = vmatpush1.msra.mxu0 0.0
    %3470 = vmatprep.subr.mxu0 0.0
    %3471 = vmatpush1.msra.mxu0 0.0
    %3472 = vmatprep.subr.mxu0 0.0
    %3473 = vmatpush1.msra.mxu0 0.0
    %3474 = vmatprep.subr.mxu0 0.0
    %3475 = vmatpush1.msra.mxu0 0.0
    %3476 = vmatprep.subr.mxu0 0.0
    %3477 = vmatpush1.msra.mxu0 0.0
    %3478 = vmatprep.subr.mxu0 0.0
    %3479 = vmatpush1.msra.mxu0 0.0
    %3480 = vmatprep.subr.mxu0 0.0
    %3481 = vmatpush1.msra.mxu0 0.0
    %3482 = vmatprep.subr.mxu0 0.0
    %3483 = vmatpush1.msra.mxu0 0.0
    %3484 = vmatprep.subr.mxu0 0.0
    %3485 = vmatpush1.msra.mxu0 0.0
    %3486 = vmatprep.subr.mxu0 0.0
    %3487 = vmatpush1.msra.mxu0 0.0
    %3488 = vmatprep.subr.mxu0 0.0
    %3489 = vmatpush1.msra.mxu0 0.0
    %3490 = vmatprep.subr.mxu0 0.0
    %3491 = vmatpush1.msra.mxu0 0.0
    %3492 = vmatprep.subr.mxu0 0.0
    %3493 = vmatpush1.msra.mxu0 0.0
    %3494 = vmatprep.subr.mxu0 0.0
    %3495 = vmatpush1.msra.mxu0 0.0
    %3496 = vmatprep.subr.mxu0 0.0
    %3497 = vmatpush1.msra.mxu0 0.0
    %3498 = vmatprep.subr.mxu0 0.0
    %3499 = vmatpush1.msra.mxu0 0.0
    %3500 = vmatprep.subr.mxu0 0.0
    %3501 = vmatpush1.msra.mxu0 0.0
    %3502 = vmatprep.subr.mxu0 0.0
    %3503 = vmatpush1.msra.mxu0 0.0
    %3504 = vmatprep.subr.mxu0 0.0
    %3505 = vmatpush1.msra.mxu0 0.0
    %3506 = vmatprep.subr.mxu0 0.0
    %3507 = vmatpush1.msra.mxu0 0.0
    %3508 = vmatprep.subr.mxu0 0.0
    %3509 = vmatpush1.msra.mxu0 0.0
    %3510 = vmatprep.subr.mxu0 0.0
    %3511 = vmatpush1.msra.mxu0 0.0
    %3512 = vmatprep.mubr.f32.mxu0 0.0
    %3513 = vmatmul.mubr.f32.gmra.mrb[0].mxu0 %v3446
    %v3514 = vpop.f32.mrb[0].mxu0
    %v3515 = vadd.f32 0.0, %v3514
    %v3516 = vpop.f32.mrb[0].mxu0
    %3517 = vdwg.mxu0
    %v3519 = vsel %vm2657, %v3361, 0
    %3521 = vmatprep.subr.mxu0 0.0
    %3522 = vmatpush1.msra.mxu0 %v2587
    %3523 = vmatprep.subr.mxu0 0.0
    %3524 = vmatpush1.msra.mxu0 0.0
    %3525 = vmatprep.subr.mxu0 0.0
    %3526 = vmatpush1.msra.mxu0 0.0
    %3527 = vmatprep.subr.mxu0 0.0
    %3528 = vmatpush1.msra.mxu0 0.0
    %3529 = vmatprep.subr.mxu0 0.0
    %3530 = vmatpush1.msra.mxu0 0.0
    %3531 = vmatprep.subr.mxu0 0.0
    %3532 = vmatpush1.msra.mxu0 0.0
    %3533 = vmatprep.subr.mxu0 0.0
    %3534 = vmatpush1.msra.mxu0 0.0
    %3535 = vmatprep.subr.mxu0 0.0
    %3536 = vmatpush1.msra.mxu0 0.0
    %3537 = vmatprep.subr.mxu0 0.0
    %3538 = vmatpush1.msra.mxu0 0.0
    %3539 = vmatprep.subr.mxu0 0.0
    %3540 = vmatpush1.msra.mxu0 0.0
    %3541 = vmatprep.subr.mxu0 0.0
    %3542 = vmatpush1.msra.mxu0 0.0
    %3543 = vmatprep.subr.mxu0 0.0
    %3544 = vmatpush1.msra.mxu0 0.0
    %3545 = vmatprep.subr.mxu0 0.0
    %3546 = vmatpush1.msra.mxu0 0.0
    %3547 = vmatprep.subr.mxu0 0.0
    %3548 = vmatpush1.msra.mxu0 0.0
    %3549 = vmatprep.subr.mxu0 0.0
    %3550 = vmatpush1.msra.mxu0 0.0
    %3551 = vmatprep.subr.mxu0 0.0
    %3552 = vmatpush1.msra.mxu0 0.0
    %3553 = vmatprep.subr.mxu0 0.0
    %3554 = vmatpush1.msra.mxu0 0.0
    %3555 = vmatprep.subr.mxu0 0.0
    %3556 = vmatpush1.msra.mxu0 0.0
    %3557 = vmatprep.subr.mxu0 0.0
    %3558 = vmatpush1.msra.mxu0 0.0
    %3559 = vmatprep.subr.mxu0 0.0
    %3560 = vmatpush1.msra.mxu0 0.0
    %3561 = vmatprep.subr.mxu0 0.0
    %3562 = vmatpush1.msra.mxu0 0.0
    %3563 = vmatprep.subr.mxu0 0.0
    %3564 = vmatpush1.msra.mxu0 0.0
    %3565 = vmatprep.subr.mxu0 0.0
    %3566 = vmatpush1.msra.mxu0 0.0
    %3567 = vmatprep.subr.mxu0 0.0
    %3568 = vmatpush1.msra.mxu0 0.0
    %3569 = vmatprep.subr.mxu0 0.0
    %3570 = vmatpush1.msra.mxu0 0.0
    %3571 = vmatprep.subr.mxu0 0.0
    %3572 = vmatpush1.msra.mxu0 0.0
    %3573 = vmatprep.subr.mxu0 0.0
    %3574 = vmatpush1.msra.mxu0 0.0
    %3575 = vmatprep.subr.mxu0 0.0
    %3576 = vmatpush1.msra.mxu0 0.0
    %3577 = vmatprep.subr.mxu0 0.0
    %3578 = vmatpush1.msra.mxu0 0.0
    %3579 = vmatprep.subr.mxu0 0.0
    %3580 = vmatpush1.msra.mxu0 0.0
    %3581 = vmatprep.subr.mxu0 0.0
    %3582 = vmatpush1.msra.mxu0 0.0
    %3583 = vmatprep.subr.mxu0 0.0
    %3584 = vmatpush1.msra.mxu0 0.0
    %3585 = vmatprep.mubr.f32.mxu0 0.0
    %3586 = vmatmul.mubr.f32.gmra.mrb[0].mxu0 %v3519
    %v3587 = vpop.f32.mrb[0].mxu0
    %v3588 = vadd.f32 0.0, %v3587
    %v3589 = vpop.f32.mrb[0].mxu0
    %3590 = vdwg.mxu0
    %v3592 = vsel %vm2657, %v3363, 0
    %3594 = vmatprep.subr.mxu0 0.0
    %3595 = vmatpush1.msra.mxu0 %v2588
    %3596 = vmatprep.subr.mxu0 0.0
    %3597 = vmatpush1.msra.mxu0 0.0
    %3598 = vmatprep.subr.mxu0 0.0
    %3599 = vmatpush1.msra.mxu0 0.0
    %3600 = vmatprep.subr.mxu0 0.0
    %3601 = vmatpush1.msra.mxu0 0.0
    %3602 = vmatprep.subr.mxu0 0.0
    %3603 = vmatpush1.msra.mxu0 0.0
    %3604 = vmatprep.subr.mxu0 0.0
    %3605 = vmatpush1.msra.mxu0 0.0
    %3606 = vmatprep.subr.mxu0 0.0
    %3607 = vmatpush1.msra.mxu0 0.0
    %3608 = vmatprep.subr.mxu0 0.0
    %3609 = vmatpush1.msra.mxu0 0.0
    %3610 = vmatprep.subr.mxu0 0.0
    %3611 = vmatpush1.msra.mxu0 0.0
    %3612 = vmatprep.subr.mxu0 0.0
    %3613 = vmatpush1.msra.mxu0 0.0
    %3614 = vmatprep.subr.mxu0 0.0
    %3615 = vmatpush1.msra.mxu0 0.0
    %3616 = vmatprep.subr.mxu0 0.0
    %3617 = vmatpush1.msra.mxu0 0.0
    %3618 = vmatprep.subr.mxu0 0.0
    %3619 = vmatpush1.msra.mxu0 0.0
    %3620 = vmatprep.subr.mxu0 0.0
    %3621 = vmatpush1.msra.mxu0 0.0
    %3622 = vmatprep.subr.mxu0 0.0
    %3623 = vmatpush1.msra.mxu0 0.0
    %3624 = vmatprep.subr.mxu0 0.0
    %3625 = vmatpush1.msra.mxu0 0.0
    %3626 = vmatprep.subr.mxu0 0.0
    %3627 = vmatpush1.msra.mxu0 0.0
    %3628 = vmatprep.subr.mxu0 0.0
    %3629 = vmatpush1.msra.mxu0 0.0
    %3630 = vmatprep.subr.mxu0 0.0
    %3631 = vmatpush1.msra.mxu0 0.0
    %3632 = vmatprep.subr.mxu0 0.0
    %3633 = vmatpush1.msra.mxu0 0.0
    %3634 = vmatprep.subr.mxu0 0.0
    %3635 = vmatpush1.msra.mxu0 0.0
    %3636 = vmatprep.subr.mxu0 0.0
    %3637 = vmatpush1.msra.mxu0 0.0
    %3638 = vmatprep.subr.mxu0 0.0
    %3639 = vmatpush1.msra.mxu0 0.0
    %3640 = vmatprep.subr.mxu0 0.0
    %3641 = vmatpush1.msra.mxu0 0.0
    %3642 = vmatprep.subr.mxu0 0.0
    %3643 = vmatpush1.msra.mxu0 0.0
    %3644 = vmatprep.subr.mxu0 0.0
    %3645 = vmatpush1.msra.mxu0 0.0
    %3646 = vmatprep.subr.mxu0 0.0
    %3647 = vmatpush1.msra.mxu0 0.0
    %3648 = vmatprep.subr.mxu0 0.0
    %3649 = vmatpush1.msra.mxu0 0.0
    %3650 = vmatprep.subr.mxu0 0.0
    %3651 = vmatpush1.msra.mxu0 0.0
    %3652 = vmatprep.subr.mxu0 0.0
    %3653 = vmatpush1.msra.mxu0 0.0
    %3654 = vmatprep.subr.mxu0 0.0
    %3655 = vmatpush1.msra.mxu0 0.0
    %3656 = vmatprep.subr.mxu0 0.0
    %3657 = vmatpush1.msra.mxu0 0.0
    %3658 = vmatprep.mubr.f32.mxu0 0.0
    %3659 = vmatmul.mubr.f32.gmra.mrb[0].mxu0 %v3592
    %v3660 = vpop.f32.mrb[0].mxu0
    %v3661 = vadd.f32 0.0, %v3660
    %v3662 = vpop.f32.mrb[0].mxu0
    %3663 = vdwg.mxu0
    %v3665 = vsel %vm2657, %v3365, 0
    %3667 = vmatprep.subr.mxu0 0.0
    %3668 = vmatpush1.msra.mxu0 %v2653
    %3669 = vmatprep.subr.mxu0 0.0
    %3670 = vmatpush1.msra.mxu0 0.0
    %3671 = vmatprep.subr.mxu0 0.0
    %3672 = vmatpush1.msra.mxu0 0.0
    %3673 = vmatprep.subr.mxu0 0.0
    %3674 = vmatpush1.msra.mxu0 0.0
    %3675 = vmatprep.subr.mxu0 0.0
    %3676 = vmatpush1.msra.mxu0 0.0
    %3677 = vmatprep.subr.mxu0 0.0
    %3678 = vmatpush1.msra.mxu0 0.0
    %3679 = vmatprep.subr.mxu0 0.0
    %3680 = vmatpush1.msra.mxu0 0.0
    %3681 = vmatprep.subr.mxu0 0.0
    %3682 = vmatpush1.msra.mxu0 0.0
    %3683 = vmatprep.subr.mxu0 0.0
    %3684 = vmatpush1.msra.mxu0 0.0
    %3685 = vmatprep.subr.mxu0 0.0
    %3686 = vmatpush1.msra.mxu0 0.0
    %3687 = vmatprep.subr.mxu0 0.0
    %3688 = vmatpush1.msra.mxu0 0.0
    %3689 = vmatprep.subr.mxu0 0.0
    %3690 = vmatpush1.msra.mxu0 0.0
    %3691 = vmatprep.subr.mxu0 0.0
    %3692 = vmatpush1.msra.mxu0 0.0
    %3693 = vmatprep.subr.mxu0 0.0
    %3694 = vmatpush1.msra.mxu0 0.0
    %3695 = vmatprep.subr.mxu0 0.0
    %3696 = vmatpush1.msra.mxu0 0.0
    %3697 = vmatprep.subr.mxu0 0.0
    %3698 = vmatpush1.msra.mxu0 0.0
    %3699 = vmatprep.subr.mxu0 0.0
    %3700 = vmatpush1.msra.mxu0 0.0
    %3701 = vmatprep.subr.mxu0 0.0
    %3702 = vmatpush1.msra.mxu0 0.0
    %3703 = vmatprep.subr.mxu0 0.0
    %3704 = vmatpush1.msra.mxu0 0.0
    %3705 = vmatprep.subr.mxu0 0.0
    %3706 = vmatpush1.msra.mxu0 0.0
    %3707 = vmatprep.subr.mxu0 0.0
    %3708 = vmatpush1.msra.mxu0 0.0
    %3709 = vmatprep.subr.mxu0 0.0
    %3710 = vmatpush1.msra.mxu0 0.0
    %3711 = vmatprep.subr.mxu0 0.0
    %3712 = vmatpush1.msra.mxu0 0.0
    %3713 = vmatprep.subr.mxu0 0.0
    %3714 = vmatpush1.msra.mxu0 0.0
    %3715 = vmatprep.subr.mxu0 0.0
    %3716 = vmatpush1.msra.mxu0 0.0
    %3717 = vmatprep.subr.mxu0 0.0
    %3718 = vmatpush1.msra.mxu0 0.0
    %3719 = vmatprep.subr.mxu0 0.0
    %3720 = vmatpush1.msra.mxu0 0.0
    %3721 = vmatprep.subr.mxu0 0.0
    %3722 = vmatpush1.msra.mxu0 0.0
    %3723 = vmatprep.subr.mxu0 0.0
    %3724 = vmatpush1.msra.mxu0 0.0
    %3725 = vmatprep.subr.mxu0 0.0
    %3726 = vmatpush1.msra.mxu0 0.0
    %3727 = vmatprep.subr.mxu0 0.0
    %3728 = vmatpush1.msra.mxu0 0.0
    %3729 = vmatprep.subr.mxu0 0.0
    %3730 = vmatpush1.msra.mxu0 0.0
    %3731 = vmatprep.mubr.f32.mxu0 0.0
    %3732 = vmatmul.mubr.f32.gmra.mrb[0].mxu0 %v3665
    %v3733 = vpop.f32.mrb[0].mxu0
    %v3734 = vadd.f32 0.0, %v3733
    %v3735 = vpop.f32.mrb[0].mxu0
    %3736 = vdwg.mxu0
    %v3738 = vsel %vm2657, %v3367, 0
    %3740 = vmatprep.subr.mxu0 0.0
    %3741 = vmatpush1.msra.mxu0 %v2654
    %3742 = vmatprep.subr.mxu0 0.0
    %3743 = vmatpush1.msra.mxu0 0.0
    %3744 = vmatprep.subr.mxu0 0.0
    %3745 = vmatpush1.msra.mxu0 0.0
    %3746 = vmatprep.subr.mxu0 0.0
    %3747 = vmatpush1.msra.mxu0 0.0
    %3748 = vmatprep.subr.mxu0 0.0
    %3749 = vmatpush1.msra.mxu0 0.0
    %3750 = vmatprep.subr.mxu0 0.0
    %3751 = vmatpush1.msra.mxu0 0.0
    %3752 = vmatprep.subr.mxu0 0.0
    %3753 = vmatpush1.msra.mxu0 0.0
    %3754 = vmatprep.subr.mxu0 0.0
    %3755 = vmatpush1.msra.mxu0 0.0
    %3756 = vmatprep.subr.mxu0 0.0
    %3757 = vmatpush1.msra.mxu0 0.0
    %3758 = vmatprep.subr.mxu0 0.0
    %3759 = vmatpush1.msra.mxu0 0.0
    %3760 = vmatprep.subr.mxu0 0.0
    %3761 = vmatpush1.msra.mxu0 0.0
    %3762 = vmatprep.subr.mxu0 0.0
    %3763 = vmatpush1.msra.mxu0 0.0
    %3764 = vmatprep.subr.mxu0 0.0
    %3765 = vmatpush1.msra.mxu0 0.0
    %3766 = vmatprep.subr.mxu0 0.0
    %3767 = vmatpush1.msra.mxu0 0.0
    %3768 = vmatprep.subr.mxu0 0.0
    %3769 = vmatpush1.msra.mxu0 0.0
    %3770 = vmatprep.subr.mxu0 0.0
    %3771 = vmatpush1.msra.mxu0 0.0
    %3772 = vmatprep.subr.mxu0 0.0
    %3773 = vmatpush1.msra.mxu0 0.0
    %3774 = vmatprep.subr.mxu0 0.0
    %3775 = vmatpush1.msra.mxu0 0.0
    %3776 = vmatprep.subr.mxu0 0.0
    %3777 = vmatpush1.msra.mxu0 0.0
    %3778 = vmatprep.subr.mxu0 0.0
    %3779 = vmatpush1.msra.mxu0 0.0
    %3780 = vmatprep.subr.mxu0 0.0
    %3781 = vmatpush1.msra.mxu0 0.0
    %3782 = vmatprep.subr.mxu0 0.0
    %3783 = vmatpush1.msra.mxu0 0.0
    %3784 = vmatprep.subr.mxu0 0.0
    %3785 = vmatpush1.msra.mxu0 0.0
    %3786 = vmatprep.subr.mxu0 0.0
    %3787 = vmatpush1.msra.mxu0 0.0
    %3788 = vmatprep.subr.mxu0 0.0
    %3789 = vmatpush1.msra.mxu0 0.0
    %3790 = vmatprep.subr.mxu0 0.0
    %3791 = vmatpush1.msra.mxu0 0.0
    %3792 = vmatprep.subr.mxu0 0.0
    %3793 = vmatpush1.msra.mxu0 0.0
    %3794 = vmatprep.subr.mxu0 0.0
    %3795 = vmatpush1.msra.mxu0 0.0
    %3796 = vmatprep.subr.mxu0 0.0
    %3797 = vmatpush1.msra.mxu0 0.0
    %3798 = vmatprep.subr.mxu0 0.0
    %3799 = vmatpush1.msra.mxu0 0.0
    %3800 = vmatprep.subr.mxu0 0.0
    %3801 = vmatpush1.msra.mxu0 0.0
    %3802 = vmatprep.subr.mxu0 0.0
    %3803 = vmatpush1.msra.mxu0 0.0
    %3804 = vmatprep.mubr.f32.mxu0 0.0
    %3805 = vmatmul.mubr.f32.gmra.mrb[0].mxu0 %v3738
    %v3806 = vpop.f32.mrb[0].mxu0
    %v3807 = vadd.f32 0.0, %v3806
    %v3808 = vpop.f32.mrb[0].mxu0
    %3809 = vdwg.mxu0
    %v3811 = vsel %vm2657, %v3369, 0
    %3813 = vmatprep.subr.mxu0 0.0
    %3814 = vmatpush1.msra.mxu0 %v2655
    %3815 = vmatprep.subr.mxu0 0.0
    %3816 = vmatpush1.msra.mxu0 0.0
    %3817 = vmatprep.subr.mxu0 0.0
    %3818 = vmatpush1.msra.mxu0 0.0
    %3819 = vmatprep.subr.mxu0 0.0
    %3820 = vmatpush1.msra.mxu0 0.0
    %3821 = vmatprep.subr.mxu0 0.0
    %3822 = vmatpush1.msra.mxu0 0.0
    %3823 = vmatprep.subr.mxu0 0.0
    %3824 = vmatpush1.msra.mxu0 0.0
    %3825 = vmatprep.subr.mxu0 0.0
    %3826 = vmatpush1.msra.mxu0 0.0
    %3827 = vmatprep.subr.mxu0 0.0
    %3828 = vmatpush1.msra.mxu0 0.0
    %3829 = vmatprep.subr.mxu0 0.0
    %3830 = vmatpush1.msra.mxu0 0.0
    %3831 = vmatprep.subr.mxu0 0.0
    %3832 = vmatpush1.msra.mxu0 0.0
    %3833 = vmatprep.subr.mxu0 0.0
    %3834 = vmatpush1.msra.mxu0 0.0
    %3835 = vmatprep.subr.mxu0 0.0
    %3836 = vmatpush1.msra.mxu0 0.0
    %3837 = vmatprep.subr.mxu0 0.0
    %3838 = vmatpush1.msra.mxu0 0.0
    %3839 = vmatprep.subr.mxu0 0.0
    %3840 = vmatpush1.msra.mxu0 0.0
    %3841 = vmatprep.subr.mxu0 0.0
    %3842 = vmatpush1.msra.mxu0 0.0
    %3843 = vmatprep.subr.mxu0 0.0
    %3844 = vmatpush1.msra.mxu0 0.0
    %3845 = vmatprep.subr.mxu0 0.0
    %3846 = vmatpush1.msra.mxu0 0.0
    %3847 = vmatprep.subr.mxu0 0.0
    %3848 = vmatpush1.msra.mxu0 0.0
    %3849 = vmatprep.subr.mxu0 0.0
    %3850 = vmatpush1.msra.mxu0 0.0
    %3851 = vmatprep.subr.mxu0 0.0
    %3852 = vmatpush1.msra.mxu0 0.0
    %3853 = vmatprep.subr.mxu0 0.0
    %3854 = vmatpush1.msra.mxu0 0.0
    %3855 = vmatprep.subr.mxu0 0.0
    %3856 = vmatpush1.msra.mxu0 0.0
    %3857 = vmatprep.subr.mxu0 0.0
    %3858 = vmatpush1.msra.mxu0 0.0
    %3859 = vmatprep.subr.mxu0 0.0
    %3860 = vmatpush1.msra.mxu0 0.0
    %3861 = vmatprep.subr.mxu0 0.0
    %3862 = vmatpush1.msra.mxu0 0.0
    %3863 = vmatprep.subr.mxu0 0.0
    %3864 = vmatpush1.msra.mxu0 0.0
    %3865 = vmatprep.subr.mxu0 0.0
    %3866 = vmatpush1.msra.mxu0 0.0
    %3867 = vmatprep.subr.mxu0 0.0
    %3868 = vmatpush1.msra.mxu0 0.0
    %3869 = vmatprep.subr.mxu0 0.0
    %3870 = vmatpush1.msra.mxu0 0.0
    %3871 = vmatprep.subr.mxu0 0.0
    %3872 = vmatpush1.msra.mxu0 0.0
    %3873 = vmatprep.subr.mxu0 0.0
    %3874 = vmatpush1.msra.mxu0 0.0
    %3875 = vmatprep.subr.mxu0 0.0
    %3876 = vmatpush1.msra.mxu0 0.0
    %3877 = vmatprep.mubr.f32.mxu0 0.0
    %3878 = vmatmul.mubr.f32.gmra.mrb[0].mxu0 %v3811
    %v3879 = vpop.f32.mrb[0].mxu0
    %v3880 = vadd.f32 0.0, %v3879
    %v3881 = vpop.f32.mrb[0].mxu0
    %3882 = vdwg.mxu0
    %v3884 = vsel %vm2657, %v3371, 0
    %3886 = vmatprep.subr.mxu0 0.0
    %3887 = vmatpush1.msra.mxu0 %v2656
    %3888 = vmatprep.subr.mxu0 0.0
    %3889 = vmatpush1.msra.mxu0 0.0
    %3890 = vmatprep.subr.mxu0 0.0
    %3891 = vmatpush1.msra.mxu0 0.0
    %3892 = vmatprep.subr.mxu0 0.0
    %3893 = vmatpush1.msra.mxu0 0.0
    %3894 = vmatprep.subr.mxu0 0.0
    %3895 = vmatpush1.msra.mxu0 0.0
    %3896 = vmatprep.subr.mxu0 0.0
    %3897 = vmatpush1.msra.mxu0 0.0
    %3898 = vmatprep.subr.mxu0 0.0
    %3899 = vmatpush1.msra.mxu0 0.0
    %3900 = vmatprep.subr.mxu0 0.0
    %3901 = vmatpush1.msra.mxu0 0.0
    %3902 = vmatprep.subr.mxu0 0.0
    %3903 = vmatpush1.msra.mxu0 0.0
    %3904 = vmatprep.subr.mxu0 0.0
    %3905 = vmatpush1.msra.mxu0 0.0
    %3906 = vmatprep.subr.mxu0 0.0
    %3907 = vmatpush1.msra.mxu0 0.0
    %3908 = vmatprep.subr.mxu0 0.0
    %3909 = vmatpush1.msra.mxu0 0.0
    %3910 = vmatprep.subr.mxu0 0.0
    %3911 = vmatpush1.msra.mxu0 0.0
    %3912 = vmatprep.subr.mxu0 0.0
    %3913 = vmatpush1.msra.mxu0 0.0
    %3914 = vmatprep.subr.mxu0 0.0
    %3915 = vmatpush1.msra.mxu0 0.0
    %3916 = vmatprep.subr.mxu0 0.0
    %3917 = vmatpush1.msra.mxu0 0.0
    %3918 = vmatprep.subr.mxu0 0.0
    %3919 = vmatpush1.msra.mxu0 0.0
    %3920 = vmatprep.subr.mxu0 0.0
    %3921 = vmatpush1.msra.mxu0 0.0
    %3922 = vmatprep.subr.mxu0 0.0
    %3923 = vmatpush1.msra.mxu0 0.0
    %3924 = vmatprep.subr.mxu0 0.0
    %3925 = vmatpush1.msra.mxu0 0.0
    %3926 = vmatprep.subr.mxu0 0.0
    %3927 = vmatpush1.msra.mxu0 0.0
    %3928 = vmatprep.subr.mxu0 0.0
    %3929 = vmatpush1.msra.mxu0 0.0
    %3930 = vmatprep.subr.mxu0 0.0
    %3931 = vmatpush1.msra.mxu0 0.0
    %3932 = vmatprep.subr.mxu0 0.0
    %3933 = vmatpush1.msra.mxu0 0.0
    %3934 = vmatprep.subr.mxu0 0.0
    %3935 = vmatpush1.msra.mxu0 0.0
    %3936 = vmatprep.subr.mxu0 0.0
    %3937 = vmatpush1.msra.mxu0 0.0
    %3938 = vmatprep.subr.mxu0 0.0
    %3939 = vmatpush1.msra.mxu0 0.0
    %3940 = vmatprep.subr.mxu0 0.0
    %3941 = vmatpush1.msra.mxu0 0.0
    %3942 = vmatprep.subr.mxu0 0.0
    %3943 = vmatpush1.msra.mxu0 0.0
    %3944 = vmatprep.subr.mxu0 0.0
    %3945 = vmatpush1.msra.mxu0 0.0
    %3946 = vmatprep.subr.mxu0 0.0
    %3947 = vmatpush1.msra.mxu0 0.0
    %3948 = vmatprep.subr.mxu0 0.0
    %3949 = vmatpush1.msra.mxu0 0.0
    %3950 = vmatprep.mubr.f32.mxu0 0.0
    %3951 = vmatmul.mubr.f32.gmra.mrb[0].mxu0 %v3884
    %v3952 = vpop.f32.mrb[0].mxu0
    %v3953 = vadd.f32 0.0, %v3952
    %v3954 = vpop.f32.mrb[0].mxu0
    %3955 = vdwg.mxu0
    %v3956 = vcombine.low %v3442, %v3588
    %v3957 = vcombine.high %v3442, %v3588
    %v3959 = vunpack.c.l.s4 1983009808
    %v3960 = vunpack.c.0.s8 %v3959
    %v3961 = vlaneseq
    %v3962 = vshrl.u32 %v3961, 7
    %v3963 = vsub.s32 %v3960, %v3962
    %v3964 = vrot.slane %v3956, %v3963
    %v3966 = vunpack.c.l.s4 1983009808
    %v3967 = vunpack.c.0.s8 %v3966
    %v3968 = vlaneseq
    %v3969 = vshrl.u32 %v3968, 7
    %v3970 = vsub.s32 %v3967, %v3969
    %v3971 = vrot.slane %v3957, %v3970
    %v3972 = vcombine.low %v3515, %v3661
    %v3973 = vcombine.high %v3515, %v3661
    %v3975 = vunpack.c.l.s4 1983009808
    %v3976 = vunpack.c.0.s8 %v3975
    %v3977 = vlaneseq
    %v3978 = vshrl.u32 %v3977, 7
    %v3979 = vsub.s32 %v3976, %v3978
    %v3980 = vrot.slane %v3972, %v3979
    %v3982 = vunpack.c.l.s4 1983009808
    %v3983 = vunpack.c.0.s8 %v3982
    %v3984 = vlaneseq
    %v3985 = vshrl.u32 %v3984, 7
    %v3986 = vsub.s32 %v3983, %v3985
    %v3987 = vrot.slane %v3973, %v3986
    %v3988 = vcombine.low %v3964, %v3980
    %v3989 = vcombine.high %v3964, %v3980
    %v3991 = vunpack.c.l.s4 1934713408
    %v3992 = vunpack.c.0.s8 %v3991
    %v3993 = vlaneseq
    %v3994 = vshrl.u32 %v3993, 7
    %v3995 = vsub.s32 %v3992, %v3994
    %v3996 = vrot.slane %v3988, %v3995
    %v3998 = vunpack.c.l.s4 1934713408
    %v3999 = vunpack.c.0.s8 %v3998
    %v4000 = vlaneseq
    %v4001 = vshrl.u32 %v4000, 7
    %v4002 = vsub.s32 %v3999, %v4001
    %v4003 = vrot.slane %v3989, %v4002
    %v4004 = vcombine.low %v3971, %v3987
    %v4005 = vcombine.high %v3971, %v3987
    %v4007 = vunpack.c.l.s4 1934713408
    %v4008 = vunpack.c.0.s8 %v4007
    %v4009 = vlaneseq
    %v4010 = vshrl.u32 %v4009, 7
    %v4011 = vsub.s32 %v4008, %v4010
    %v4012 = vrot.slane %v4004, %v4011
    %v4014 = vunpack.c.l.s4 1934713408
    %v4015 = vunpack.c.0.s8 %v4014
    %v4016 = vlaneseq
    %v4017 = vshrl.u32 %v4016, 7
    %v4018 = vsub.s32 %v4015, %v4017
    %v4019 = vrot.slane %v4005, %v4018
    %v4020 = vcombine.high %v3996, 0.0
    %v4021 = vcombine.high %v4003, 0.0
    %v4022 = vcombine.high %v4012, 0.0
    %v4023 = vcombine.high %v4019, 0.0
    %v4024 = vcombine.low %v3734, %v3880
    %v4025 = vcombine.high %v3734, %v3880
    %v4027 = vunpack.c.l.s4 1983009808
    %v4028 = vunpack.c.0.s8 %v4027
    %v4029 = vlaneseq
    %v4030 = vshrl.u32 %v4029, 7
    %v4031 = vsub.s32 %v4028, %v4030
    %v4032 = vrot.slane %v4024, %v4031
    %v4034 = vunpack.c.l.s4 1983009808
    %v4035 = vunpack.c.0.s8 %v4034
    %v4036 = vlaneseq
    %v4037 = vshrl.u32 %v4036, 7
    %v4038 = vsub.s32 %v4035, %v4037
    %v4039 = vrot.slane %v4025, %v4038
    %v4040 = vcombine.low %v3807, %v3953
    %v4041 = vcombine.high %v3807, %v3953
    %v4043 = vunpack.c.l.s4 1983009808
    %v4044 = vunpack.c.0.s8 %v4043
    %v4045 = vlaneseq
    %v4046 = vshrl.u32 %v4045, 7
    %v4047 = vsub.s32 %v4044, %v4046
    %v4048 = vrot.slane %v4040, %v4047
    %v4050 = vunpack.c.l.s4 1983009808
    %v4051 = vunpack.c.0.s8 %v4050
    %v4052 = vlaneseq
    %v4053 = vshrl.u32 %v4052, 7
    %v4054 = vsub.s32 %v4051, %v4053
    %v4055 = vrot.slane %v4041, %v4054
    %v4056 = vcombine.low %v4032, %v4048
    %v4057 = vcombine.high %v4032, %v4048
    %v4059 = vunpack.c.l.s4 1934713408
    %v4060 = vunpack.c.0.s8 %v4059
    %v4061 = vlaneseq
    %v4062 = vshrl.u32 %v4061, 7
    %v4063 = vsub.s32 %v4060, %v4062
    %v4064 = vrot.slane %v4056, %v4063
    %v4066 = vunpack.c.l.s4 1934713408
    %v4067 = vunpack.c.0.s8 %v4066
    %v4068 = vlaneseq
    %v4069 = vshrl.u32 %v4068, 7
    %v4070 = vsub.s32 %v4067, %v4069
    %v4071 = vrot.slane %v4057, %v4070
    %v4072 = vcombine.low %v4039, %v4055
    %v4073 = vcombine.high %v4039, %v4055
    %v4075 = vunpack.c.l.s4 1934713408
    %v4076 = vunpack.c.0.s8 %v4075
    %v4077 = vlaneseq
    %v4078 = vshrl.u32 %v4077, 7
    %v4079 = vsub.s32 %v4076, %v4078
    %v4080 = vrot.slane %v4072, %v4079
    %v4082 = vunpack.c.l.s4 1934713408
    %v4083 = vunpack.c.0.s8 %v4082
    %v4084 = vlaneseq
    %v4085 = vshrl.u32 %v4084, 7
    %v4086 = vsub.s32 %v4083, %v4085
    %v4087 = vrot.slane %v4073, %v4086
    %v4088 = vcombine.high %v4064, 0.0
    %v4089 = vcombine.high %v4071, 0.0
    %v4090 = vcombine.high %v4080, 0.0
    %v4091 = vcombine.high %v4087, 0.0
    %v4092 = vcombine.low %v3996, %v4003
    %v4094 = vunpack.c.l.s4 1983009808
    %v4095 = vunpack.c.0.s8 %v4094
    %v4096 = vlaneseq
    %v4097 = vshrl.u32 %v4096, 7
    %v4098 = vsub.s32 %v4095, %v4097
    %v4099 = vrot.slane %v4092, %v4098
    %v4100 = vcombine.low %v4020, %v4021
    %v4102 = vunpack.c.l.s4 1983009808
    %v4103 = vunpack.c.0.s8 %v4102
    %v4104 = vlaneseq
    %v4105 = vshrl.u32 %v4104, 7
    %v4106 = vsub.s32 %v4103, %v4105
    %v4107 = vrot.slane %v4100, %v4106
    %v4108 = vcombine.low %v4012, %v4019
    %v4110 = vunpack.c.l.s4 1983009808
    %v4111 = vunpack.c.0.s8 %v4110
    %v4112 = vlaneseq
    %v4113 = vshrl.u32 %v4112, 7
    %v4114 = vsub.s32 %v4111, %v4113
    %v4115 = vrot.slane %v4108, %v4114
    %v4116 = vcombine.low %v4022, %v4023
    %v4118 = vunpack.c.l.s4 1983009808
    %v4119 = vunpack.c.0.s8 %v4118
    %v4120 = vlaneseq
    %v4121 = vshrl.u32 %v4120, 7
    %v4122 = vsub.s32 %v4119, %v4121
    %v4123 = vrot.slane %v4116, %v4122
    %v4124 = vcombine.low %v4099, %v4107
    %v4125 = vcombine.high %v4099, %v4107
    %v4127 = vunpack.c.l.s4 1934713408
    %v4128 = vunpack.c.0.s8 %v4127
    %v4129 = vlaneseq
    %v4130 = vshrl.u32 %v4129, 7
    %v4131 = vsub.s32 %v4128, %v4130
    %v4132 = vrot.slane %v4124, %v4131
    %v4134 = vunpack.c.l.s4 1934713408
    %v4135 = vunpack.c.0.s8 %v4134
    %v4136 = vlaneseq
    %v4137 = vshrl.u32 %v4136, 7
    %v4138 = vsub.s32 %v4135, %v4137
    %v4139 = vrot.slane %v4125, %v4138
    %v4140 = vcombine.low %v4115, %v4123
    %v4141 = vcombine.high %v4115, %v4123
    %v4143 = vunpack.c.l.s4 1934713408
    %v4144 = vunpack.c.0.s8 %v4143
    %v4145 = vlaneseq
    %v4146 = vshrl.u32 %v4145, 7
    %v4147 = vsub.s32 %v4144, %v4146
    %v4148 = vrot.slane %v4140, %v4147
    %v4150 = vunpack.c.l.s4 1934713408
    %v4151 = vunpack.c.0.s8 %v4150
    %v4152 = vlaneseq
    %v4153 = vshrl.u32 %v4152, 7
    %v4154 = vsub.s32 %v4151, %v4153
    %v4155 = vrot.slane %v4141, %v4154
    %v4156 = vcombine.low %v4132, %v4148
    %v4157 = vcombine.high %v4132, %v4148
    %v4158 = vcombine.low %v4139, %v4155
    %v4159 = vcombine.high %v4139, %v4155
    %v4160 = vcombine.low %v4064, %v4071
    %v4162 = vunpack.c.l.s4 1983009808
    %v4163 = vunpack.c.0.s8 %v4162
    %v4164 = vlaneseq
    %v4165 = vshrl.u32 %v4164, 7
    %v4166 = vsub.s32 %v4163, %v4165
    %v4167 = vrot.slane %v4160, %v4166
    %v4168 = vcombine.low %v4088, %v4089
    %v4170 = vunpack.c.l.s4 1983009808
    %v4171 = vunpack.c.0.s8 %v4170
    %v4172 = vlaneseq
    %v4173 = vshrl.u32 %v4172, 7
    %v4174 = vsub.s32 %v4171, %v4173
    %v4175 = vrot.slane %v4168, %v4174
    %v4176 = vcombine.low %v4080, %v4087
    %v4178 = vunpack.c.l.s4 1983009808
    %v4179 = vunpack.c.0.s8 %v4178
    %v4180 = vlaneseq
    %v4181 = vshrl.u32 %v4180, 7
    %v4182 = vsub.s32 %v4179, %v4181
    %v4183 = vrot.slane %v4176, %v4182
    %v4184 = vcombine.low %v4090, %v4091
    %v4186 = vunpack.c.l.s4 1983009808
    %v4187 = vunpack.c.0.s8 %v4186
    %v4188 = vlaneseq
    %v4189 = vshrl.u32 %v4188, 7
    %v4190 = vsub.s32 %v4187, %v4189
    %v4191 = vrot.slane %v4184, %v4190
    %v4192 = vcombine.low %v4167, %v4175
    %v4193 = vcombine.high %v4167, %v4175
    %v4195 = vunpack.c.l.s4 1934713408
    %v4196 = vunpack.c.0.s8 %v4195
    %v4197 = vlaneseq
    %v4198 = vshrl.u32 %v4197, 7
    %v4199 = vsub.s32 %v4196, %v4198
    %v4200 = vrot.slane %v4192, %v4199
    %v4202 = vunpack.c.l.s4 1934713408
    %v4203 = vunpack.c.0.s8 %v4202
    %v4204 = vlaneseq
    %v4205 = vshrl.u32 %v4204, 7
    %v4206 = vsub.s32 %v4203, %v4205
    %v4207 = vrot.slane %v4193, %v4206
    %v4208 = vcombine.low %v4183, %v4191
    %v4209 = vcombine.high %v4183, %v4191
    %v4211 = vunpack.c.l.s4 1934713408
    %v4212 = vunpack.c.0.s8 %v4211
    %v4213 = vlaneseq
    %v4214 = vshrl.u32 %v4213, 7
    %v4215 = vsub.s32 %v4212, %v4214
    %v4216 = vrot.slane %v4208, %v4215
    %v4218 = vunpack.c.l.s4 1934713408
    %v4219 = vunpack.c.0.s8 %v4218
    %v4220 = vlaneseq
    %v4221 = vshrl.u32 %v4220, 7
    %v4222 = vsub.s32 %v4219, %v4221
    %v4223 = vrot.slane %v4209, %v4222
    %v4224 = vcombine.low %v4200, %v4216
    %v4225 = vcombine.high %v4200, %v4216
    %v4226 = vcombine.low %v4207, %v4223
    %v4227 = vcombine.high %v4207, %v4223
    %4230 = vrot.lane.b32.xlu0 %v4157, 8
    %v4231 = vpop.permute.xlu0 %4230
    %4232 = vrot.lane.b32.xlu0 %v4225, 8
    %v4233 = vpop.permute.xlu0 %4232
    %4238 = vrot.lane.b32.xlu0 %v4158, 16
    %v4239 = vpop.permute.xlu0 %4238
    %4240 = vrot.lane.b32.xlu0 %v4226, 16
    %v4241 = vpop.permute.xlu0 %4240
    %4246 = vrot.lane.b32.xlu0 %v4159, 24
    %v4247 = vpop.permute.xlu0 %4246
    %4248 = vrot.lane.b32.xlu0 %v4227, 24
    %v4249 = vpop.permute.xlu0 %4248
    %v4252 = vsel %vm2657, %v4156, %v4231
    %v4253 = vsel %vm2657, %v4224, %v4233
    %vm4254 = vcmask 130048
    %v4255 = vsel %vm4254, %v4252, %v4239
    %v4256 = vsel %vm4254, %v4253, %v4241
    %vm4257 = vcmask 195584
    %v4258 = vsel %vm4257, %v4255, %v4247
    %v4259 = vsel %vm4257, %v4256, %v4249
    %v4260 = vld [vmem:[#allocation11] sm:$0xff]
    %v4261 = vld [vmem:[#allocation11 + $0x8] sm:$0xff]
    %v4262 = vld [vmem:[#allocation11 + $0x10] sm:$0xff]
    %v4263 = vld [vmem:[#allocation11 + $0x18] sm:$0xff]
    %v4264 = vld [vmem:[%s16] sm:$0x1]
    %v4266 = vlaneseq
    %v4267 = vshrl.u32 %v4266, 7
    %v4268 = vsub.s32 0, %v4267
    %v4269 = vrot.slane %v4264, %v4268
    %v4272 = vsel %vm166, %v4258, 0
    %v4275 = vsel %vm166, %v4259, 0
    %4277 = vmatprep.subr.mxu0 0.0
    %4278 = vmatpush1.msra.mxu0 %v4260
    %4279 = vmatprep.subr.mxu0 0.0
    %4280 = vmatpush1.msra.mxu0 %v4261
    %4281 = vmatprep.subr.mxu0 0.0
    %4282 = vmatpush1.msra.mxu0 %v4262
    %4283 = vmatprep.subr.mxu0 0.0
    %4284 = vmatpush1.msra.mxu0 %v4263
    %4285 = vmatprep.subr.mxu0 0.0
    %4286 = vmatpush1.msra.mxu0 0.0
    %4287 = vmatprep.subr.mxu0 0.0
    %4288 = vmatpush1.msra.mxu0 0.0
    %4289 = vmatprep.subr.mxu0 0.0
    %4290 = vmatpush1.msra.mxu0 0.0
    %4291 = vmatprep.subr.mxu0 0.0
    %4292 = vmatpush1.msra.mxu0 0.0
    %4293 = vmatprep.subr.mxu0 0.0
    %4294 = vmatpush1.msra.mxu0 0.0
    %4295 = vmatprep.subr.mxu0 0.0
    %4296 = vmatpush1.msra.mxu0 0.0
    %4297 = vmatprep.subr.mxu0 0.0
    %4298 = vmatpush1.msra.mxu0 0.0
    %4299 = vmatprep.subr.mxu0 0.0
    %4300 = vmatpush1.msra.mxu0 0.0
    %4301 = vmatprep.subr.mxu0 0.0
    %4302 = vmatpush1.msra.mxu0 0.0
    %4303 = vmatprep.subr.mxu0 0.0
    %4304 = vmatpush1.msra.mxu0 0.0
    %4305 = vmatprep.subr.mxu0 0.0
    %4306 = vmatpush1.msra.mxu0 0.0
    %4307 = vmatprep.subr.mxu0 0.0
    %4308 = vmatpush1.msra.mxu0 0.0
    %4309 = vmatprep.subr.mxu0 0.0
    %4310 = vmatpush1.msra.mxu0 0.0
    %4311 = vmatprep.subr.mxu0 0.0
    %4312 = vmatpush1.msra.mxu0 0.0
    %4313 = vmatprep.subr.mxu0 0.0
    %4314 = vmatpush1.msra.mxu0 0.0
    %4315 = vmatprep.subr.mxu0 0.0
    %4316 = vmatpush1.msra.mxu0 0.0
    %4317 = vmatprep.subr.mxu0 0.0
    %4318 = vmatpush1.msra.mxu0 0.0
    %4319 = vmatprep.subr.mxu0 0.0
    %4320 = vmatpush1.msra.mxu0 0.0
    %4321 = vmatprep.subr.mxu0 0.0
    %4322 = vmatpush1.msra.mxu0 0.0
    %4323 = vmatprep.subr.mxu0 0.0
    %4324 = vmatpush1.msra.mxu0 0.0
    %4325 = vmatprep.subr.mxu0 0.0
    %4326 = vmatpush1.msra.mxu0 0.0
    %4327 = vmatprep.subr.mxu0 0.0
    %4328 = vmatpush1.msra.mxu0 0.0
    %4329 = vmatprep.subr.mxu0 0.0
    %4330 = vmatpush1.msra.mxu0 0.0
    %4331 = vmatprep.subr.mxu0 0.0
    %4332 = vmatpush1.msra.mxu0 0.0
    %4333 = vmatprep.subr.mxu0 0.0
    %4334 = vmatpush1.msra.mxu0 0.0
    %4335 = vmatprep.subr.mxu0 0.0
    %4336 = vmatpush1.msra.mxu0 0.0
    %4337 = vmatprep.subr.mxu0 0.0
    %4338 = vmatpush1.msra.mxu0 0.0
    %4339 = vmatprep.subr.mxu0 0.0
    %4340 = vmatpush1.msra.mxu0 0.0
    %4341 = vmatprep.mubr.f32.mxu0 0.0
    %4342 = vmatmul.mubr.f32.gmra.mrb[0].mxu0 %v4272
    %v4343 = vpop.f32.mrb[0].mxu0
    %v4344 = vadd.f32 %v4269, %v4343
    %v4345 = vpop.f32.mrb[0].mxu0
    %4346 = vmatprep.mubr.f32.mxu0 0.0
    %4347 = vmatmul.mubr.f32.gmra.mrb[0].mxu0 %v4275
    %v4348 = vpop.f32.mrb[0].mxu0
    %v4349 = vadd.f32 %v4269, %v4348
    %v4350 = vpop.f32.mrb[0].mxu0
    %4351 = vdwg.mxu0
    %v4352 = vmul.f32 %v4344, %v4344
    %v4353 = vmul.f32 %v4349, %v4349
    %v4354 = vsel %vm166, %v4352, 0.0
    %4355 = vadd.xlane.f32.xlu0 %v4354
    %v4356 = vpop.xlane.xlu0 %4355
    %v4357 = vsel %vm166, %v4353, 0.0
    %4358 = vadd.xlane.f32.xlu0 %v4357
    %v4359 = vpop.xlane.xlu0 %4358
    %v4360 = vmul.f32 %v4356, %v173
    %v4361 = vmul.f32 %v4359, %v173
    %v4362 = vadd.f32 %v4360, 1e-05
    %v4363 = vadd.f32 %v4361, 1e-05
    %v4364 = vrsqrt.pop %v4362
    %v4365 = vrsqrt.pop %v4363
    %v4366 = vmul.f32 %v4344, %v4364
    %v4367 = vmul.f32 %v4349, %v4365
    %s4368 = scalar_lea.vmem %s1, 1
    %v4369 = vld [vmem:[%s4368] sm:$0x1]
    %v4371 = vlaneseq
    %v4372 = vshrl.u32 %v4371, 7
    %v4373 = vsub.s32 0, %v4372
    %v4374 = vrot.slane %v4369, %v4373
    %v4376 = vmul.f32 %v4366, %v4374
    %v4377 = vmul.f32 %v4367, %v4374
    %s4378 = scalar_lea.vmem [#allocation2], 32
    %v4379 = vld [vmem:[%s4378] sm:$0xff]
    %v4380 = vld [vmem:[%s4378 + $0x8] sm:$0xff]
    %v4381 = vld [vmem:[%s4378 + $0x10] sm:$0xff]
    %v4382 = vld [vmem:[%s4378 + $0x18] sm:$0xff]
    %v4384 = vsel %vm166, %v4376, 0
    %v4387 = vsel %vm166, %v4377, 0
    %4389 = vmatprep.subr.mxu0 0.0
    %4390 = vmatpush1.msra.mxu0 %v4379
    %4391 = vmatprep.subr.mxu0 0.0
    %4392 = vmatpush1.msra.mxu0 %v4380
    %4393 = vmatprep.subr.mxu0 0.0
    %4394 = vmatpush1.msra.mxu0 %v4381
    %4395 = vmatprep.subr.mxu0 0.0
    %4396 = vmatpush1.msra.mxu0 %v4382
    %4397 = vmatprep.subr.mxu0 0.0
    %4398 = vmatpush1.msra.mxu0 0.0
    %4399 = vmatprep.subr.mxu0 0.0
    %4400 = vmatpush1.msra.mxu0 0.0
    %4401 = vmatprep.subr.mxu0 0.0
    %4402 = vmatpush1.msra.mxu0 0.0
    %4403 = vmatprep.subr.mxu0 0.0
    %4404 = vmatpush1.msra.mxu0 0.0
    %4405 = vmatprep.subr.mxu0 0.0
    %4406 = vmatpush1.msra.mxu0 0.0
    %4407 = vmatprep.subr.mxu0 0.0
    %4408 = vmatpush1.msra.mxu0 0.0
    %4409 = vmatprep.subr.mxu0 0.0
    %4410 = vmatpush1.msra.mxu0 0.0
    %4411 = vmatprep.subr.mxu0 0.0
    %4412 = vmatpush1.msra.mxu0 0.0
    %4413 = vmatprep.subr.mxu0 0.0
    %4414 = vmatpush1.msra.mxu0 0.0
    %4415 = vmatprep.subr.mxu0 0.0
    %4416 = vmatpush1.msra.mxu0 0.0
    %4417 = vmatprep.subr.mxu0 0.0
    %4418 = vmatpush1.msra.mxu0 0.0
    %4419 = vmatprep.subr.mxu0 0.0
    %4420 = vmatpush1.msra.mxu0 0.0
    %4421 = vmatprep.subr.mxu0 0.0
    %4422 = vmatpush1.msra.mxu0 0.0
    %4423 = vmatprep.subr.mxu0 0.0
    %4424 = vmatpush1.msra.mxu0 0.0
    %4425 = vmatprep.subr.mxu0 0.0
    %4426 = vmatpush1.msra.mxu0 0.0
    %4427 = vmatprep.subr.mxu0 0.0
    %4428 = vmatpush1.msra.mxu0 0.0
    %4429 = vmatprep.subr.mxu0 0.0
    %4430 = vmatpush1.msra.mxu0 0.0
    %4431 = vmatprep.subr.mxu0 0.0
    %4432 = vmatpush1.msra.mxu0 0.0
    %4433 = vmatprep.subr.mxu0 0.0
    %4434 = vmatpush1.msra.mxu0 0.0
    %4435 = vmatprep.subr.mxu0 0.0
    %4436 = vmatpush1.msra.mxu0 0.0
    %4437 = vmatprep.subr.mxu0 0.0
    %4438 = vmatpush1.msra.mxu0 0.0
    %4439 = vmatprep.subr.mxu0 0.0
    %4440 = vmatpush1.msra.mxu0 0.0
    %4441 = vmatprep.subr.mxu0 0.0
    %4442 = vmatpush1.msra.mxu0 0.0
    %4443 = vmatprep.subr.mxu0 0.0
    %4444 = vmatpush1.msra.mxu0 0.0
    %4445 = vmatprep.subr.mxu0 0.0
    %4446 = vmatpush1.msra.mxu0 0.0
    %4447 = vmatprep.subr.mxu0 0.0
    %4448 = vmatpush1.msra.mxu0 0.0
    %4449 = vmatprep.subr.mxu0 0.0
    %4450 = vmatpush1.msra.mxu0 0.0
    %4451 = vmatprep.subr.mxu0 0.0
    %4452 = vmatpush1.msra.mxu0 0.0
    %4453 = vmatprep.mubr.f32.mxu0 0.0
    %4454 = vmatmul.mubr.f32.gmra.mrb[0].mxu0 %v4384
    %v4455 = vpop.f32.mrb[0].mxu0
    %v4456 = vadd.f32 0.0, %v4455
    %v4457 = vpop.f32.mrb[0].mxu0
    %4458 = vmatprep.mubr.f32.mxu0 0.0
    %4459 = vmatmul.mubr.f32.gmra.mrb[0].mxu0 %v4387
    %v4460 = vpop.f32.mrb[0].mxu0
    %v4461 = vadd.f32 0.0, %v4460
    %v4462 = vpop.f32.mrb[0].mxu0
    %4463 = vdwg.mxu0
    %s4464 = scalar_lea.vmem [#allocation5], 4
    %v4465 = vld [vmem:[%s4464] sm:$0xf]
    %v4466 = vlaneseq
    %v4467 = vshrl.u32 %v4466, 7
    %v4468 = vsub.s32 3, %v4467
    %v4469 = vrot.slane %v4465, %v4468
    %v4470 = vmul.f32 %v4456, %v4469
    %v4471 = vmul.f32 %v4461, %v4469
    %v4474 = vrot.slane %v4456, 5
    %v4475 = vrot.slane %v4461, 5
    %v4478 = vsel %vm289, 0.0, %v4474
    %v4479 = vsel %vm289, 0.0, %v4475
    %v4480 = vlaneseq
    %v4481 = vshrl.u32 %v4480, 7
    %v4482 = vsub.s32 0, %v4481
    %v4483 = vrot.slane %v4465, %v4482
    %v4484 = vmul.f32 %v4478, %v4483
    %v4485 = vmul.f32 %v4479, %v4483
    %v4486 = vadd.f32 %v4470, %v4484
    %v4487 = vadd.f32 %v4471, %v4485
    %v4488 = vrot.slane %v4456, 6
    %v4489 = vrot.slane %v4461, 6
    %v4492 = vsel %vm304, 0.0, %v4488
    %v4493 = vsel %vm304, 0.0, %v4489
    %v4494 = vlaneseq
    %v4495 = vshrl.u32 %v4494, 7
    %v4496 = vsub.s32 1, %v4495
    %v4497 = vrot.slane %v4465, %v4496
    %v4498 = vmul.f32 %v4492, %v4497
    %v4499 = vmul.f32 %v4493, %v4497
    %v4500 = vadd.f32 %v4486, %v4498
    %v4501 = vadd.f32 %v4487, %v4499
    %v4502 = vrot.slane %v4456, 7
    %v4503 = vrot.slane %v4461, 7
    %v4506 = vsel %vm319, 0.0, %v4502
    %v4507 = vsel %vm319, 0.0, %v4503
    %v4508 = vlaneseq
    %v4509 = vshrl.u32 %v4508, 7
    %v4510 = vsub.s32 2, %v4509
    %v4511 = vrot.slane %v4465, %v4510
    %v4512 = vmul.f32 %v4506, %v4511
    %v4513 = vmul.f32 %v4507, %v4511
    %v4514 = vadd.f32 %v4500, %v4512
    %v4515 = vadd.f32 %v4501, %v4513
    %s4516 = scalar_lea.vmem %s4, 1
    %v4517 = vld [vmem:[%s4516] sm:$0x1]
    %v4519 = vlaneseq
    %v4520 = vshrl.u32 %v4519, 7
    %v4521 = vsub.s32 0, %v4520
    %v4522 = vrot.slane %v4517, %v4521
    %v4524 = vadd.f32 %v4514, %v4522
    %v4525 = vadd.f32 %v4515, %v4522
    %v4526 = vxor.u32 %v4524, 2147483648
    %v4527 = vxor.u32 %v4525, 2147483648
    %v4528 = vmul.f32 %v4526, 1.442695
    %v4529 = vpow.pop %v4528
    %v4530 = vmul.f32 %v4527, 1.442695
    %v4531 = vpow.pop %v4530
    %v4532 = vadd.f32 %v4529, 1.0
    %v4533 = vadd.f32 %v4531, 1.0
    %v4534 = vrcp.pop %v4532
    %v4535 = vmul.f32 1.0, %v4534
    %v4536 = vrcp.pop %v4533
    %v4537 = vmul.f32 1.0, %v4536
    %v4538 = vmul.f32 %v4524, %v4535
    %v4539 = vmul.f32 %v4525, %v4537
    %s4540 = scalar_lea.vmem [#allocation7], 64
    %v4541 = vld [vmem:[%s4540] sm:$0xff]
    %v4542 = vld [vmem:[%s4540 + $0x8] sm:$0xff]
    %v4543 = vld [vmem:[%s4540 + $0x10] sm:$0xff]
    %v4544 = vld [vmem:[%s4540 + $0x18] sm:$0xff]
    %v4545 = vld [vmem:[%s4540 + $0x20] sm:$0xff]
    %v4546 = vld [vmem:[%s4540 + $0x28] sm:$0xff]
    %v4547 = vld [vmem:[%s4540 + $0x30] sm:$0xff]
    %v4548 = vld [vmem:[%s4540 + $0x38] sm:$0xff]
    %v4550 = vsel %vm361, %v4538, 0
    %v4553 = vsel %vm361, %v4539, 0
    %4555 = vmatprep.subr.mxu0 0.0
    %4556 = vmatpush1.msra.mxu0 %v4541
    %4557 = vmatprep.subr.mxu0 0.0
    %4558 = vmatpush1.msra.mxu0 %v4542
    %4559 = vmatprep.subr.mxu0 0.0
    %4560 = vmatpush1.msra.mxu0 %v4543
    %4561 = vmatprep.subr.mxu0 0.0
    %4562 = vmatpush1.msra.mxu0 %v4544
    %4563 = vmatprep.subr.mxu0 0.0
    %4564 = vmatpush1.msra.mxu0 %v4545
    %4565 = vmatprep.subr.mxu0 0.0
    %4566 = vmatpush1.msra.mxu0 %v4546
    %4567 = vmatprep.subr.mxu0 0.0
    %4568 = vmatpush1.msra.mxu0 %v4547
    %4569 = vmatprep.subr.mxu0 0.0
    %4570 = vmatpush1.msra.mxu0 %v4548
    %4571 = vmatprep.subr.mxu0 0.0
    %4572 = vmatpush1.msra.mxu0 0.0
    %4573 = vmatprep.subr.mxu0 0.0
    %4574 = vmatpush1.msra.mxu0 0.0
    %4575 = vmatprep.subr.mxu0 0.0
    %4576 = vmatpush1.msra.mxu0 0.0
    %4577 = vmatprep.subr.mxu0 0.0
    %4578 = vmatpush1.msra.mxu0 0.0
    %4579 = vmatprep.subr.mxu0 0.0
    %4580 = vmatpush1.msra.mxu0 0.0
    %4581 = vmatprep.subr.mxu0 0.0
    %4582 = vmatpush1.msra.mxu0 0.0
    %4583 = vmatprep.subr.mxu0 0.0
    %4584 = vmatpush1.msra.mxu0 0.0
    %4585 = vmatprep.subr.mxu0 0.0
    %4586 = vmatpush1.msra.mxu0 0.0
    %4587 = vmatprep.subr.mxu0 0.0
    %4588 = vmatpush1.msra.mxu0 0.0
    %4589 = vmatprep.subr.mxu0 0.0
    %4590 = vmatpush1.msra.mxu0 0.0
    %4591 = vmatprep.subr.mxu0 0.0
    %4592 = vmatpush1.msra.mxu0 0.0
    %4593 = vmatprep.subr.mxu0 0.0
    %4594 = vmatpush1.msra.mxu0 0.0
    %4595 = vmatprep.subr.mxu0 0.0
    %4596 = vmatpush1.msra.mxu0 0.0
    %4597 = vmatprep.subr.mxu0 0.0
    %4598 = vmatpush1.msra.mxu0 0.0
    %4599 = vmatprep.subr.mxu0 0.0
    %4600 = vmatpush1.msra.mxu0 0.0
    %4601 = vmatprep.subr.mxu0 0.0
    %4602 = vmatpush1.msra.mxu0 0.0
    %4603 = vmatprep.subr.mxu0 0.0
    %4604 = vmatpush1.msra.mxu0 0.0
    %4605 = vmatprep.subr.mxu0 0.0
    %4606 = vmatpush1.msra.mxu0 0.0
    %4607 = vmatprep.subr.mxu0 0.0
    %4608 = vmatpush1.msra.mxu0 0.0
    %4609 = vmatprep.subr.mxu0 0.0
    %4610 = vmatpush1.msra.mxu0 0.0
    %4611 = vmatprep.subr.mxu0 0.0
    %4612 = vmatpush1.msra.mxu0 0.0
    %4613 = vmatprep.subr.mxu0 0.0
    %4614 = vmatpush1.msra.mxu0 0.0
    %4615 = vmatprep.subr.mxu0 0.0
    %4616 = vmatpush1.msra.mxu0 0.0
    %4617 = vmatprep.subr.mxu0 0.0
    %4618 = vmatpush1.msra.mxu0 0.0
    %4619 = vmatprep.mubr.f32.mxu0 0.0
    %4620 = vmatmul.mubr.f32.gmra.mrb[0].mxu0 %v4550
    %v4621 = vpop.f32.mrb[0].mxu0
    %v4622 = vadd.f32 0.0, %v4621
    %v4623 = vpop.f32.mrb[0].mxu0
    %4624 = vmatprep.mubr.f32.mxu0 0.0
    %4625 = vmatmul.mubr.f32.gmra.mrb[0].mxu0 %v4553
    %v4626 = vpop.f32.mrb[0].mxu0
    %v4627 = vadd.f32 0.0, %v4626
    %v4628 = vpop.f32.mrb[0].mxu0
    %4629 = vdwg.mxu0
    %s4630 = scalar_lea.vmem %s6, 4
    %v4631 = vld [vmem:[%s4630] sm:$0xf]
    %s4632 = scalar_lea.vmem %s7, 1
    %v4633 = vld [vmem:[%s4632] sm:$0x1]
    %v4635 = vlaneseq
    %v4636 = vshrl.u32 %v4635, 7
    %v4637 = vsub.s32 0, %v4636
    %v4638 = vrot.slane %v4633, %v4637
    %v4641 = vsel %vm451, %v4622, 0
    %v4644 = vsel %vm451, %v4627, 0
    %v4647 = vsel %vm458, %v4631, 0
    %4649 = vmatprep.subr.mxu0 0.0
    %4650 = vmatpush1.msra.mxu0 %v4647
    %4651 = vmatprep.subr.mxu0 0.0
    %4652 = vmatpush1.msra.mxu0 0.0
    %4653 = vmatprep.subr.mxu0 0.0
    %4654 = vmatpush1.msra.mxu0 0.0
    %4655 = vmatprep.subr.mxu0 0.0
    %4656 = vmatpush1.msra.mxu0 0.0
    %4657 = vmatprep.subr.mxu0 0.0
    %4658 = vmatpush1.msra.mxu0 0.0
    %4659 = vmatprep.subr.mxu0 0.0
    %4660 = vmatpush1.msra.mxu0 0.0
    %4661 = vmatprep.subr.mxu0 0.0
    %4662 = vmatpush1.msra.mxu0 0.0
    %4663 = vmatprep.subr.mxu0 0.0
    %4664 = vmatpush1.msra.mxu0 0.0
    %4665 = vmatprep.subr.mxu0 0.0
    %4666 = vmatpush1.msra.mxu0 0.0
    %4667 = vmatprep.subr.mxu0 0.0
    %4668 = vmatpush1.msra.mxu0 0.0
    %4669 = vmatprep.subr.mxu0 0.0
    %4670 = vmatpush1.msra.mxu0 0.0
    %4671 = vmatprep.subr.mxu0 0.0
    %4672 = vmatpush1.msra.mxu0 0.0
    %4673 = vmatprep.subr.mxu0 0.0
    %4674 = vmatpush1.msra.mxu0 0.0
    %4675 = vmatprep.subr.mxu0 0.0
    %4676 = vmatpush1.msra.mxu0 0.0
    %4677 = vmatprep.subr.mxu0 0.0
    %4678 = vmatpush1.msra.mxu0 0.0
    %4679 = vmatprep.subr.mxu0 0.0
    %4680 = vmatpush1.msra.mxu0 0.0
    %4681 = vmatprep.subr.mxu0 0.0
    %4682 = vmatpush1.msra.mxu0 0.0
    %4683 = vmatprep.subr.mxu0 0.0
    %4684 = vmatpush1.msra.mxu0 0.0
    %4685 = vmatprep.subr.mxu0 0.0
    %4686 = vmatpush1.msra.mxu0 0.0
    %4687 = vmatprep.subr.mxu0 0.0
    %4688 = vmatpush1.msra.mxu0 0.0
    %4689 = vmatprep.subr.mxu0 0.0
    %4690 = vmatpush1.msra.mxu0 0.0
    %4691 = vmatprep.subr.mxu0 0.0
    %4692 = vmatpush1.msra.mxu0 0.0
    %4693 = vmatprep.subr.mxu0 0.0
    %4694 = vmatpush1.msra.mxu0 0.0
    %4695 = vmatprep.subr.mxu0 0.0
    %4696 = vmatpush1.msra.mxu0 0.0
    %4697 = vmatprep.subr.mxu0 0.0
    %4698 = vmatpush1.msra.mxu0 0.0
    %4699 = vmatprep.subr.mxu0 0.0
    %4700 = vmatpush1.msra.mxu0 0.0
    %4701 = vmatprep.subr.mxu0 0.0
    %4702 = vmatpush1.msra.mxu0 0.0
    %4703 = vmatprep.subr.mxu0 0.0
    %4704 = vmatpush1.msra.mxu0 0.0
    %4705 = vmatprep.subr.mxu0 0.0
    %4706 = vmatpush1.msra.mxu0 0.0
    %4707 = vmatprep.subr.mxu0 0.0
    %4708 = vmatpush1.msra.mxu0 0.0
    %4709 = vmatprep.subr.mxu0 0.0
    %4710 = vmatpush1.msra.mxu0 0.0
    %4711 = vmatprep.subr.mxu0 0.0
    %4712 = vmatpush1.msra.mxu0 0.0
    %4713 = vmatprep.mubr.f32.mxu0 0.0
    %4714 = vmatmul.mubr.f32.gmra.mrb[0].mxu0 %v4641
    %v4715 = vpop.f32.mrb[0].mxu0
    %v4716 = vadd.f32 %v4638, %v4715
    %v4717 = vpop.f32.mrb[0].mxu0
    %4718 = vmatprep.mubr.f32.mxu0 0.0
    %4719 = vmatmul.mubr.f32.gmra.mrb[0].mxu0 %v4644
    %v4720 = vpop.f32.mrb[0].mxu0
    %v4721 = vadd.f32 %v4638, %v4720
    %v4722 = vpop.f32.mrb[0].mxu0
    %4723 = vdwg.mxu0
    %vm4724 = vcmp.gt.f32.partialorder %v4716, 20.0
    %vm4725 = vcmp.gt.f32.partialorder %v4721, 20.0
    %v4726 = vmin.f32 %v4716, 20.0
    %v4727 = vmin.f32 %v4721, 20.0
    %v4728 = vmul.f32 %v4726, 1.442695
    %v4729 = vpow.pop %v4728
    %v4730 = vmul.f32 %v4727, 1.442695
    %v4731 = vpow.pop %v4730
    %v4732 = vadd.f32 %v4729, 1.0
    %v4733 = vlog2.pop %v4732
    %v4734 = vmul.f32 %v4733, 0.6931472
    %v4735 = vmul.f32 -0.5, %v4729
    %v4736 = vadd.f32 %v4735, 1.0
    %v4737 = vmul.f32 %v4736, %v4729
    %v4738 = vand.u32 2147483647, %v4729
    %vm4739 = vcmp.lt.f32.partialorder %v4738, 0.0004427343
    %v4740 = vsel %vm4739, %v4737, %v4734
    %v4741 = vadd.f32 %v4731, 1.0
    %v4742 = vlog2.pop %v4741
    %v4743 = vmul.f32 %v4742, 0.6931472
    %v4744 = vmul.f32 -0.5, %v4731
    %v4745 = vadd.f32 %v4744, 1.0
    %v4746 = vmul.f32 %v4745, %v4731
    %v4747 = vand.u32 2147483647, %v4731
    %vm4748 = vcmp.lt.f32.partialorder %v4747, 0.0004427343
    %v4749 = vsel %vm4748, %v4746, %v4743
    %v4750 = vsel %vm4724, %v4716, %v4740
    %v4751 = vsel %vm4725, %v4721, %v4749
    %s4752 = scalar_lea.vmem [#allocation8], 8
    %v4753 = vld [vmem:[%s4752] sm:$0xff]
    %v4756 = vcombine.high %v4750, %v4750
    %v4758 = vunpack.c.l.s4 1966171168
    %v4759 = vunpack.c.0.s8 %v4758
    %v4760 = vlaneseq
    %v4761 = vshrl.u32 %v4760, 7
    %v4762 = vsub.s32 %v4759, %v4761
    %v4763 = vrot.slane %v4750, %v4762
    %v4765 = vunpack.c.l.s4 1966171168
    %v4766 = vunpack.c.0.s8 %v4765
    %v4767 = vlaneseq
    %v4768 = vshrl.u32 %v4767, 7
    %v4769 = vsub.s32 %v4766, %v4768
    %v4770 = vrot.slane %v4756, %v4769
    %v4771 = vcombine.high %v4763, %v4763
    %v4772 = vcombine.high %v4770, %v4770
    %v4774 = vunpack.c.l.s4 1966171168
    %v4775 = vunpack.c.0.s8 %v4774
    %v4776 = vlaneseq
    %v4777 = vshrl.u32 %v4776, 7
    %v4778 = vsub.s32 %v4775, %v4777
    %v4779 = vrot.slane %v4763, %v4778
    %v4781 = vunpack.c.l.s4 1966171168
    %v4782 = vunpack.c.0.s8 %v4781
    %v4783 = vlaneseq
    %v4784 = vshrl.u32 %v4783, 7
    %v4785 = vsub.s32 %v4782, %v4784
    %v4786 = vrot.slane %v4770, %v4785
    %v4788 = vunpack.c.l.s4 1966171168
    %v4789 = vunpack.c.0.s8 %v4788
    %v4790 = vlaneseq
    %v4791 = vshrl.u32 %v4790, 7
    %v4792 = vsub.s32 %v4789, %v4791
    %v4793 = vrot.slane %v4771, %v4792
    %v4795 = vunpack.c.l.s4 1966171168
    %v4796 = vunpack.c.0.s8 %v4795
    %v4797 = vlaneseq
    %v4798 = vshrl.u32 %v4797, 7
    %v4799 = vsub.s32 %v4796, %v4798
    %v4800 = vrot.slane %v4772, %v4799
    %v4801 = vcombine.high %v4779, %v4779
    %v4802 = vcombine.high %v4786, %v4786
    %v4803 = vcombine.high %v4793, %v4793
    %v4804 = vcombine.high %v4800, %v4800
    %v4805 = vcombine.high %v4751, %v4751
    %v4807 = vunpack.c.l.s4 1966171168
    %v4808 = vunpack.c.0.s8 %v4807
    %v4809 = vlaneseq
    %v4810 = vshrl.u32 %v4809, 7
    %v4811 = vsub.s32 %v4808, %v4810
    %v4812 = vrot.slane %v4751, %v4811
    %v4814 = vunpack.c.l.s4 1966171168
    %v4815 = vunpack.c.0.s8 %v4814
    %v4816 = vlaneseq
    %v4817 = vshrl.u32 %v4816, 7
    %v4818 = vsub.s32 %v4815, %v4817
    %v4819 = vrot.slane %v4805, %v4818
    %v4820 = vcombine.high %v4812, %v4812
    %v4821 = vcombine.high %v4819, %v4819
    %v4823 = vunpack.c.l.s4 1966171168
    %v4824 = vunpack.c.0.s8 %v4823
    %v4825 = vlaneseq
    %v4826 = vshrl.u32 %v4825, 7
    %v4827 = vsub.s32 %v4824, %v4826
    %v4828 = vrot.slane %v4812, %v4827
    %v4830 = vunpack.c.l.s4 1966171168
    %v4831 = vunpack.c.0.s8 %v4830
    %v4832 = vlaneseq
    %v4833 = vshrl.u32 %v4832, 7
    %v4834 = vsub.s32 %v4831, %v4833
    %v4835 = vrot.slane %v4819, %v4834
    %v4837 = vunpack.c.l.s4 1966171168
    %v4838 = vunpack.c.0.s8 %v4837
    %v4839 = vlaneseq
    %v4840 = vshrl.u32 %v4839, 7
    %v4841 = vsub.s32 %v4838, %v4840
    %v4842 = vrot.slane %v4820, %v4841
    %v4844 = vunpack.c.l.s4 1966171168
    %v4845 = vunpack.c.0.s8 %v4844
    %v4846 = vlaneseq
    %v4847 = vshrl.u32 %v4846, 7
    %v4848 = vsub.s32 %v4845, %v4847
    %v4849 = vrot.slane %v4821, %v4848
    %v4850 = vcombine.high %v4828, %v4828
    %v4851 = vcombine.high %v4835, %v4835
    %v4852 = vcombine.high %v4842, %v4842
    %v4853 = vcombine.high %v4849, %v4849
    %v4854 = vlaneseq
    %v4855 = vshrl.u32 %v4854, 7
    %v4856 = vsub.s32 0, %v4855
    %v4857 = vrot.slane %v4779, %v4856
    %v4858 = vlaneseq
    %v4859 = vshrl.u32 %v4858, 7
    %v4860 = vsub.s32 0, %v4859
    %v4861 = vrot.slane %v4793, %v4860
    %v4862 = vlaneseq
    %v4863 = vshrl.u32 %v4862, 7
    %v4864 = vsub.s32 0, %v4863
    %v4865 = vrot.slane %v4801, %v4864
    %v4866 = vlaneseq
    %v4867 = vshrl.u32 %v4866, 7
    %v4868 = vsub.s32 0, %v4867
    %v4869 = vrot.slane %v4803, %v4868
    %v4870 = vlaneseq
    %v4871 = vshrl.u32 %v4870, 7
    %v4872 = vsub.s32 0, %v4871
    %v4873 = vrot.slane %v4786, %v4872
    %v4874 = vlaneseq
    %v4875 = vshrl.u32 %v4874, 7
    %v4876 = vsub.s32 0, %v4875
    %v4877 = vrot.slane %v4800, %v4876
    %v4878 = vlaneseq
    %v4879 = vshrl.u32 %v4878, 7
    %v4880 = vsub.s32 0, %v4879
    %v4881 = vrot.slane %v4802, %v4880
    %v4882 = vlaneseq
    %v4883 = vshrl.u32 %v4882, 7
    %v4884 = vsub.s32 0, %v4883
    %v4885 = vrot.slane %v4804, %v4884
    %v4886 = vlaneseq
    %v4887 = vshrl.u32 %v4886, 7
    %v4888 = vsub.s32 0, %v4887
    %v4889 = vrot.slane %v4828, %v4888
    %v4890 = vlaneseq
    %v4891 = vshrl.u32 %v4890, 7
    %v4892 = vsub.s32 0, %v4891
    %v4893 = vrot.slane %v4842, %v4892
    %v4894 = vlaneseq
    %v4895 = vshrl.u32 %v4894, 7
    %v4896 = vsub.s32 0, %v4895
    %v4897 = vrot.slane %v4850, %v4896
    %v4898 = vlaneseq
    %v4899 = vshrl.u32 %v4898, 7
    %v4900 = vsub.s32 0, %v4899
    %v4901 = vrot.slane %v4852, %v4900
    %v4902 = vlaneseq
    %v4903 = vshrl.u32 %v4902, 7
    %v4904 = vsub.s32 0, %v4903
    %v4905 = vrot.slane %v4835, %v4904
    %v4906 = vlaneseq
    %v4907 = vshrl.u32 %v4906, 7
    %v4908 = vsub.s32 0, %v4907
    %v4909 = vrot.slane %v4849, %v4908
    %v4910 = vlaneseq
    %v4911 = vshrl.u32 %v4910, 7
    %v4912 = vsub.s32 0, %v4911
    %v4913 = vrot.slane %v4851, %v4912
    %v4914 = vlaneseq
    %v4915 = vshrl.u32 %v4914, 7
    %v4916 = vsub.s32 0, %v4915
    %v4917 = vrot.slane %v4853, %v4916
    %v4934 = vmul.f32 %v4753, %v4857
    %v4935 = vmul.f32 %v4753, %v4861
    %v4936 = vmul.f32 %v4753, %v4865
    %v4937 = vmul.f32 %v4753, %v4869
    %v4938 = vmul.f32 %v4753, %v4873
    %v4939 = vmul.f32 %v4753, %v4877
    %v4940 = vmul.f32 %v4753, %v4881
    %v4941 = vmul.f32 %v4753, %v4885
    %v4942 = vmul.f32 %v4753, %v4889
    %v4943 = vmul.f32 %v4753, %v4893
    %v4944 = vmul.f32 %v4753, %v4897
    %v4945 = vmul.f32 %v4753, %v4901
    %v4946 = vmul.f32 %v4753, %v4905
    %v4947 = vmul.f32 %v4753, %v4909
    %v4948 = vmul.f32 %v4753, %v4913
    %v4949 = vmul.f32 %v4753, %v4917
    %v4950 = vmul.f32 %v4934, 1.442695
    %v4951 = vpow.pop %v4950
    %v4952 = vmul.f32 %v4935, 1.442695
    %v4953 = vpow.pop %v4952
    %v4954 = vmul.f32 %v4936, 1.442695
    %v4955 = vpow.pop %v4954
    %v4956 = vmul.f32 %v4937, 1.442695
    %v4957 = vpow.pop %v4956
    %v4958 = vmul.f32 %v4938, 1.442695
    %v4959 = vpow.pop %v4958
    %v4960 = vmul.f32 %v4939, 1.442695
    %v4961 = vpow.pop %v4960
    %v4962 = vmul.f32 %v4940, 1.442695
    %v4963 = vpow.pop %v4962
    %v4964 = vmul.f32 %v4941, 1.442695
    %v4965 = vpow.pop %v4964
    %v4966 = vmul.f32 %v4942, 1.442695
    %v4967 = vpow.pop %v4966
    %v4968 = vmul.f32 %v4943, 1.442695
    %v4969 = vpow.pop %v4968
    %v4970 = vmul.f32 %v4944, 1.442695
    %v4971 = vpow.pop %v4970
    %v4972 = vmul.f32 %v4945, 1.442695
    %v4973 = vpow.pop %v4972
    %v4974 = vmul.f32 %v4946, 1.442695
    %v4975 = vpow.pop %v4974
    %v4976 = vmul.f32 %v4947, 1.442695
    %v4977 = vpow.pop %v4976
    %v4978 = vmul.f32 %v4948, 1.442695
    %v4979 = vpow.pop %v4978
    %v4980 = vmul.f32 %v4949, 1.442695
    %v4981 = vpow.pop %v4980
    %v4982 = vmul.f32 %v4750, %v4538
    %v4983 = vmul.f32 %v4751, %v4539
    %v4984 = vlaneseq
    %v4985 = vshrl.u32 %v4984, 7
    %v4986 = vsub.s32 0, %v4985
    %v4987 = vrot.slane %v4622, %v4986
    %s4989 = sor.u32 256, 4
    %4990 = vbcast.lane.b32.xlu0 %v4987, %s4989
    %v4991 = vpop.permute.xlu0 %4990
    %v4992 = vlaneseq
    %v4993 = vshrl.u32 %v4992, 7
    %v4994 = vsub.s32 1, %v4993
    %v4995 = vrot.slane %v4622, %v4994
    %s4997 = sor.u32 256, 4
    %4998 = vbcast.lane.b32.xlu0 %v4995, %s4997
    %v4999 = vpop.permute.xlu0 %4998
    %v5000 = vlaneseq
    %v5001 = vshrl.u32 %v5000, 7
    %v5002 = vsub.s32 2, %v5001
    %v5003 = vrot.slane %v4622, %v5002
    %s5005 = sor.u32 256, 4
    %5006 = vbcast.lane.b32.xlu0 %v5003, %s5005
    %v5007 = vpop.permute.xlu0 %5006
    %v5008 = vlaneseq
    %v5009 = vshrl.u32 %v5008, 7
    %v5010 = vsub.s32 3, %v5009
    %v5011 = vrot.slane %v4622, %v5010
    %s5013 = sor.u32 256, 4
    %5014 = vbcast.lane.b32.xlu0 %v5011, %s5013
    %v5015 = vpop.permute.xlu0 %5014
    %v5016 = vlaneseq
    %v5017 = vshrl.u32 %v5016, 7
    %v5018 = vsub.s32 4, %v5017
    %v5019 = vrot.slane %v4622, %v5018
    %s5021 = sor.u32 256, 4
    %5022 = vbcast.lane.b32.xlu0 %v5019, %s5021
    %v5023 = vpop.permute.xlu0 %5022
    %v5024 = vlaneseq
    %v5025 = vshrl.u32 %v5024, 7
    %v5026 = vsub.s32 5, %v5025
    %v5027 = vrot.slane %v4622, %v5026
    %s5029 = sor.u32 256, 4
    %5030 = vbcast.lane.b32.xlu0 %v5027, %s5029
    %v5031 = vpop.permute.xlu0 %5030
    %v5032 = vlaneseq
    %v5033 = vshrl.u32 %v5032, 7
    %v5034 = vsub.s32 6, %v5033
    %v5035 = vrot.slane %v4622, %v5034
    %s5037 = sor.u32 256, 4
    %5038 = vbcast.lane.b32.xlu0 %v5035, %s5037
    %v5039 = vpop.permute.xlu0 %5038
    %v5040 = vlaneseq
    %v5041 = vshrl.u32 %v5040, 7
    %v5042 = vsub.s32 7, %v5041
    %v5043 = vrot.slane %v4622, %v5042
    %s5045 = sor.u32 256, 4
    %5046 = vbcast.lane.b32.xlu0 %v5043, %s5045
    %v5047 = vpop.permute.xlu0 %5046
    %v5048 = vlaneseq
    %v5049 = vshrl.u32 %v5048, 7
    %v5050 = vsub.s32 0, %v5049
    %v5051 = vrot.slane %v4627, %v5050
    %s5053 = sor.u32 256, 4
    %5054 = vbcast.lane.b32.xlu0 %v5051, %s5053
    %v5055 = vpop.permute.xlu0 %5054
    %v5056 = vlaneseq
    %v5057 = vshrl.u32 %v5056, 7
    %v5058 = vsub.s32 1, %v5057
    %v5059 = vrot.slane %v4627, %v5058
    %s5061 = sor.u32 256, 4
    %5062 = vbcast.lane.b32.xlu0 %v5059, %s5061
    %v5063 = vpop.permute.xlu0 %5062
    %v5064 = vlaneseq
    %v5065 = vshrl.u32 %v5064, 7
    %v5066 = vsub.s32 2, %v5065
    %v5067 = vrot.slane %v4627, %v5066
    %s5069 = sor.u32 256, 4
    %5070 = vbcast.lane.b32.xlu0 %v5067, %s5069
    %v5071 = vpop.permute.xlu0 %5070
    %v5072 = vlaneseq
    %v5073 = vshrl.u32 %v5072, 7
    %v5074 = vsub.s32 3, %v5073
    %v5075 = vrot.slane %v4627, %v5074
    %s5077 = sor.u32 256, 4
    %5078 = vbcast.lane.b32.xlu0 %v5075, %s5077
    %v5079 = vpop.permute.xlu0 %5078
    %v5080 = vlaneseq
    %v5081 = vshrl.u32 %v5080, 7
    %v5082 = vsub.s32 4, %v5081
    %v5083 = vrot.slane %v4627, %v5082
    %s5085 = sor.u32 256, 4
    %5086 = vbcast.lane.b32.xlu0 %v5083, %s5085
    %v5087 = vpop.permute.xlu0 %5086
    %v5088 = vlaneseq
    %v5089 = vshrl.u32 %v5088, 7
    %v5090 = vsub.s32 5, %v5089
    %v5091 = vrot.slane %v4627, %v5090
    %s5093 = sor.u32 256, 4
    %5094 = vbcast.lane.b32.xlu0 %v5091, %s5093
    %v5095 = vpop.permute.xlu0 %5094
    %v5096 = vlaneseq
    %v5097 = vshrl.u32 %v5096, 7
    %v5098 = vsub.s32 6, %v5097
    %v5099 = vrot.slane %v4627, %v5098
    %s5101 = sor.u32 256, 4
    %5102 = vbcast.lane.b32.xlu0 %v5099, %s5101
    %v5103 = vpop.permute.xlu0 %5102
    %v5104 = vlaneseq
    %v5105 = vshrl.u32 %v5104, 7
    %v5106 = vsub.s32 7, %v5105
    %v5107 = vrot.slane %v4627, %v5106
    %s5109 = sor.u32 256, 4
    %5110 = vbcast.lane.b32.xlu0 %v5107, %s5109
    %v5111 = vpop.permute.xlu0 %5110
    %v5114 = vcombine.high %v4982, %v4982
    %v5116 = vunpack.c.l.s4 1966171168
    %v5117 = vunpack.c.0.s8 %v5116
    %v5118 = vlaneseq
    %v5119 = vshrl.u32 %v5118, 7
    %v5120 = vsub.s32 %v5117, %v5119
    %v5121 = vrot.slane %v4982, %v5120
    %v5123 = vunpack.c.l.s4 1966171168
    %v5124 = vunpack.c.0.s8 %v5123
    %v5125 = vlaneseq
    %v5126 = vshrl.u32 %v5125, 7
    %v5127 = vsub.s32 %v5124, %v5126
    %v5128 = vrot.slane %v5114, %v5127
    %v5129 = vcombine.high %v5121, %v5121
    %v5130 = vcombine.high %v5128, %v5128
    %v5132 = vunpack.c.l.s4 1966171168
    %v5133 = vunpack.c.0.s8 %v5132
    %v5134 = vlaneseq
    %v5135 = vshrl.u32 %v5134, 7
    %v5136 = vsub.s32 %v5133, %v5135
    %v5137 = vrot.slane %v5121, %v5136
    %v5139 = vunpack.c.l.s4 1966171168
    %v5140 = vunpack.c.0.s8 %v5139
    %v5141 = vlaneseq
    %v5142 = vshrl.u32 %v5141, 7
    %v5143 = vsub.s32 %v5140, %v5142
    %v5144 = vrot.slane %v5128, %v5143
    %v5146 = vunpack.c.l.s4 1966171168
    %v5147 = vunpack.c.0.s8 %v5146
    %v5148 = vlaneseq
    %v5149 = vshrl.u32 %v5148, 7
    %v5150 = vsub.s32 %v5147, %v5149
    %v5151 = vrot.slane %v5129, %v5150
    %v5153 = vunpack.c.l.s4 1966171168
    %v5154 = vunpack.c.0.s8 %v5153
    %v5155 = vlaneseq
    %v5156 = vshrl.u32 %v5155, 7
    %v5157 = vsub.s32 %v5154, %v5156
    %v5158 = vrot.slane %v5130, %v5157
    %v5159 = vcombine.high %v5137, %v5137
    %v5160 = vcombine.high %v5144, %v5144
    %v5161 = vcombine.high %v5151, %v5151
    %v5162 = vcombine.high %v5158, %v5158
    %v5163 = vcombine.high %v4983, %v4983
    %v5165 = vunpack.c.l.s4 1966171168
    %v5166 = vunpack.c.0.s8 %v5165
    %v5167 = vlaneseq
    %v5168 = vshrl.u32 %v5167, 7
    %v5169 = vsub.s32 %v5166, %v5168
    %v5170 = vrot.slane %v4983, %v5169
    %v5172 = vunpack.c.l.s4 1966171168
    %v5173 = vunpack.c.0.s8 %v5172
    %v5174 = vlaneseq
    %v5175 = vshrl.u32 %v5174, 7
    %v5176 = vsub.s32 %v5173, %v5175
    %v5177 = vrot.slane %v5163, %v5176
    %v5178 = vcombine.high %v5170, %v5170
    %v5179 = vcombine.high %v5177, %v5177
    %v5181 = vunpack.c.l.s4 1966171168
    %v5182 = vunpack.c.0.s8 %v5181
    %v5183 = vlaneseq
    %v5184 = vshrl.u32 %v5183, 7
    %v5185 = vsub.s32 %v5182, %v5184
    %v5186 = vrot.slane %v5170, %v5185
    %v5188 = vunpack.c.l.s4 1966171168
    %v5189 = vunpack.c.0.s8 %v5188
    %v5190 = vlaneseq
    %v5191 = vshrl.u32 %v5190, 7
    %v5192 = vsub.s32 %v5189, %v5191
    %v5193 = vrot.slane %v5177, %v5192
    %v5195 = vunpack.c.l.s4 1966171168
    %v5196 = vunpack.c.0.s8 %v5195
    %v5197 = vlaneseq
    %v5198 = vshrl.u32 %v5197, 7
    %v5199 = vsub.s32 %v5196, %v5198
    %v5200 = vrot.slane %v5178, %v5199
    %v5202 = vunpack.c.l.s4 1966171168
    %v5203 = vunpack.c.0.s8 %v5202
    %v5204 = vlaneseq
    %v5205 = vshrl.u32 %v5204, 7
    %v5206 = vsub.s32 %v5203, %v5205
    %v5207 = vrot.slane %v5179, %v5206
    %v5208 = vcombine.high %v5186, %v5186
    %v5209 = vcombine.high %v5193, %v5193
    %v5210 = vcombine.high %v5200, %v5200
    %v5211 = vcombine.high %v5207, %v5207
    %v5212 = vlaneseq
    %v5213 = vshrl.u32 %v5212, 7
    %v5214 = vsub.s32 0, %v5213
    %v5215 = vrot.slane %v5137, %v5214
    %v5216 = vlaneseq
    %v5217 = vshrl.u32 %v5216, 7
    %v5218 = vsub.s32 0, %v5217
    %v5219 = vrot.slane %v5151, %v5218
    %v5220 = vlaneseq
    %v5221 = vshrl.u32 %v5220, 7
    %v5222 = vsub.s32 0, %v5221
    %v5223 = vrot.slane %v5159, %v5222
    %v5224 = vlaneseq
    %v5225 = vshrl.u32 %v5224, 7
    %v5226 = vsub.s32 0, %v5225
    %v5227 = vrot.slane %v5161, %v5226
    %v5228 = vlaneseq
    %v5229 = vshrl.u32 %v5228, 7
    %v5230 = vsub.s32 0, %v5229
    %v5231 = vrot.slane %v5144, %v5230
    %v5232 = vlaneseq
    %v5233 = vshrl.u32 %v5232, 7
    %v5234 = vsub.s32 0, %v5233
    %v5235 = vrot.slane %v5158, %v5234
    %v5236 = vlaneseq
    %v5237 = vshrl.u32 %v5236, 7
    %v5238 = vsub.s32 0, %v5237
    %v5239 = vrot.slane %v5160, %v5238
    %v5240 = vlaneseq
    %v5241 = vshrl.u32 %v5240, 7
    %v5242 = vsub.s32 0, %v5241
    %v5243 = vrot.slane %v5162, %v5242
    %v5244 = vlaneseq
    %v5245 = vshrl.u32 %v5244, 7
    %v5246 = vsub.s32 0, %v5245
    %v5247 = vrot.slane %v5186, %v5246
    %v5248 = vlaneseq
    %v5249 = vshrl.u32 %v5248, 7
    %v5250 = vsub.s32 0, %v5249
    %v5251 = vrot.slane %v5200, %v5250
    %v5252 = vlaneseq
    %v5253 = vshrl.u32 %v5252, 7
    %v5254 = vsub.s32 0, %v5253
    %v5255 = vrot.slane %v5208, %v5254
    %v5256 = vlaneseq
    %v5257 = vshrl.u32 %v5256, 7
    %v5258 = vsub.s32 0, %v5257
    %v5259 = vrot.slane %v5210, %v5258
    %v5260 = vlaneseq
    %v5261 = vshrl.u32 %v5260, 7
    %v5262 = vsub.s32 0, %v5261
    %v5263 = vrot.slane %v5193, %v5262
    %v5264 = vlaneseq
    %v5265 = vshrl.u32 %v5264, 7
    %v5266 = vsub.s32 0, %v5265
    %v5267 = vrot.slane %v5207, %v5266
    %v5268 = vlaneseq
    %v5269 = vshrl.u32 %v5268, 7
    %v5270 = vsub.s32 0, %v5269
    %v5271 = vrot.slane %v5209, %v5270
    %v5272 = vlaneseq
    %v5273 = vshrl.u32 %v5272, 7
    %v5274 = vsub.s32 0, %v5273
    %v5275 = vrot.slane %v5211, %v5274
    %v5292 = vmul.f32 %v4991, %v5215
    %v5293 = vmul.f32 %v4999, %v5219
    %v5294 = vmul.f32 %v5007, %v5223
    %v5295 = vmul.f32 %v5015, %v5227
    %v5296 = vmul.f32 %v5023, %v5231
    %v5297 = vmul.f32 %v5031, %v5235
    %v5298 = vmul.f32 %v5039, %v5239
    %v5299 = vmul.f32 %v5047, %v5243
    %v5300 = vmul.f32 %v5055, %v5247
    %v5301 = vmul.f32 %v5063, %v5251
    %v5302 = vmul.f32 %v5071, %v5255
    %v5303 = vmul.f32 %v5079, %v5259
    %v5304 = vmul.f32 %v5087, %v5263
    %v5305 = vmul.f32 %v5095, %v5267
    %v5306 = vmul.f32 %v5103, %v5271
    %v5307 = vmul.f32 %v5111, %v5275
    %v5308 = vmul.f32 %v4951, 0.0
    %v5309 = vmul.f32 %v4967, 0.0
    %v5310 = vadd.f32 %v5308, %v5292
    %v5311 = vadd.f32 %v5309, %v5300
    %v5312 = vmul.f32 %v4953, %v5310
    %v5313 = vmul.f32 %v4969, %v5311
    %v5314 = vadd.f32 %v5312, %v5293
    %v5315 = vadd.f32 %v5313, %v5301
    %v5316 = vmul.f32 %v4955, %v5314
    %v5317 = vmul.f32 %v4971, %v5315
    %v5318 = vadd.f32 %v5316, %v5294
    %v5319 = vadd.f32 %v5317, %v5302
    %v5320 = vmul.f32 %v4957, %v5318
    %v5321 = vmul.f32 %v4973, %v5319
    %v5322 = vadd.f32 %v5320, %v5295
    %v5323 = vadd.f32 %v5321, %v5303
    %v5324 = vmul.f32 %v4959, %v5322
    %v5325 = vmul.f32 %v4975, %v5323
    %v5326 = vadd.f32 %v5324, %v5296
    %v5327 = vadd.f32 %v5325, %v5304
    %v5328 = vmul.f32 %v4961, %v5326
    %v5329 = vmul.f32 %v4977, %v5327
    %v5330 = vadd.f32 %v5328, %v5297
    %v5331 = vadd.f32 %v5329, %v5305
    %v5332 = vmul.f32 %v4963, %v5330
    %v5333 = vmul.f32 %v4979, %v5331
    %v5334 = vadd.f32 %v5332, %v5298
    %v5335 = vadd.f32 %v5333, %v5306
    %v5336 = vmul.f32 %v4965, %v5334
    %v5337 = vmul.f32 %v4981, %v5335
    %v5338 = vadd.f32 %v5336, %v5299
    %v5339 = vadd.f32 %v5337, %v5307
    %s5341 = sor.u32 256, 12
    %5342 = vbcast.lane.b32.xlu0 %v4987, %s5341
    %v5343 = vpop.permute.xlu0 %5342
    %s5345 = sor.u32 256, 12
    %5346 = vbcast.lane.b32.xlu0 %v4995, %s5345
    %v5347 = vpop.permute.xlu0 %5346
    %s5349 = sor.u32 256, 12
    %5350 = vbcast.lane.b32.xlu0 %v5003, %s5349
    %v5351 = vpop.permute.xlu0 %5350
    %s5353 = sor.u32 256, 12
    %5354 = vbcast.lane.b32.xlu0 %v5011, %s5353
    %v5355 = vpop.permute.xlu0 %5354
    %s5357 = sor.u32 256, 12
    %5358 = vbcast.lane.b32.xlu0 %v5019, %s5357
    %v5359 = vpop.permute.xlu0 %5358
    %s5361 = sor.u32 256, 12
    %5362 = vbcast.lane.b32.xlu0 %v5027, %s5361
    %v5363 = vpop.permute.xlu0 %5362
    %s5365 = sor.u32 256, 12
    %5366 = vbcast.lane.b32.xlu0 %v5035, %s5365
    %v5367 = vpop.permute.xlu0 %5366
    %s5369 = sor.u32 256, 12
    %5370 = vbcast.lane.b32.xlu0 %v5043, %s5369
    %v5371 = vpop.permute.xlu0 %5370
    %s5373 = sor.u32 256, 12
    %5374 = vbcast.lane.b32.xlu0 %v5051, %s5373
    %v5375 = vpop.permute.xlu0 %5374
    %s5377 = sor.u32 256, 12
    %5378 = vbcast.lane.b32.xlu0 %v5059, %s5377
    %v5379 = vpop.permute.xlu0 %5378
    %s5381 = sor.u32 256, 12
    %5382 = vbcast.lane.b32.xlu0 %v5067, %s5381
    %v5383 = vpop.permute.xlu0 %5382
    %s5385 = sor.u32 256, 12
    %5386 = vbcast.lane.b32.xlu0 %v5075, %s5385
    %v5387 = vpop.permute.xlu0 %5386
    %s5389 = sor.u32 256, 12
    %5390 = vbcast.lane.b32.xlu0 %v5083, %s5389
    %v5391 = vpop.permute.xlu0 %5390
    %s5393 = sor.u32 256, 12
    %5394 = vbcast.lane.b32.xlu0 %v5091, %s5393
    %v5395 = vpop.permute.xlu0 %5394
    %s5397 = sor.u32 256, 12
    %5398 = vbcast.lane.b32.xlu0 %v5099, %s5397
    %v5399 = vpop.permute.xlu0 %5398
    %s5401 = sor.u32 256, 12
    %5402 = vbcast.lane.b32.xlu0 %v5107, %s5401
    %v5403 = vpop.permute.xlu0 %5402
    %v5404 = vmul.f32 %v5343, %v5310
    %v5405 = vmul.f32 %v5347, %v5314
    %v5406 = vmul.f32 %v5351, %v5318
    %v5407 = vmul.f32 %v5355, %v5322
    %v5408 = vmul.f32 %v5359, %v5326
    %v5409 = vmul.f32 %v5363, %v5330
    %v5410 = vmul.f32 %v5367, %v5334
    %v5411 = vmul.f32 %v5371, %v5338
    %v5412 = vmul.f32 %v5375, %v5311
    %v5413 = vmul.f32 %v5379, %v5315
    %v5414 = vmul.f32 %v5383, %v5319
    %v5415 = vmul.f32 %v5387, %v5323
    %v5416 = vmul.f32 %v5391, %v5327
    %v5417 = vmul.f32 %v5395, %v5331
    %v5418 = vmul.f32 %v5399, %v5335
    %v5419 = vmul.f32 %v5403, %v5339
    %v5420 = vsel %vm361, %v5404, 0.0
    %v5421 = vrot.slane %v5420, 4
    %v5422 = vadd.f32 %v5420, %v5421
    %v5423 = vrot.slane %v5422, 2
    %v5424 = vadd.f32 %v5422, %v5423
    %v5425 = vrot.slane %v5424, 1
    %v5426 = vadd.f32 %v5424, %v5425
    %v5427 = vsel %vm361, %v5405, 0.0
    %v5428 = vrot.slane %v5427, 4
    %v5429 = vadd.f32 %v5427, %v5428
    %v5430 = vrot.slane %v5429, 2
    %v5431 = vadd.f32 %v5429, %v5430
    %v5432 = vrot.slane %v5431, 1
    %v5433 = vadd.f32 %v5431, %v5432
    %v5434 = vsel %vm361, %v5406, 0.0
    %v5435 = vrot.slane %v5434, 4
    %v5436 = vadd.f32 %v5434, %v5435
    %v5437 = vrot.slane %v5436, 2
    %v5438 = vadd.f32 %v5436, %v5437
    %v5439 = vrot.slane %v5438, 1
    %v5440 = vadd.f32 %v5438, %v5439
    %v5441 = vsel %vm361, %v5407, 0.0
    %v5442 = vrot.slane %v5441, 4
    %v5443 = vadd.f32 %v5441, %v5442
    %v5444 = vrot.slane %v5443, 2
    %v5445 = vadd.f32 %v5443, %v5444
    %v5446 = vrot.slane %v5445, 1
    %v5447 = vadd.f32 %v5445, %v5446
    %v5448 = vsel %vm361, %v5408, 0.0
    %v5449 = vrot.slane %v5448, 4
    %v5450 = vadd.f32 %v5448, %v5449
    %v5451 = vrot.slane %v5450, 2
    %v5452 = vadd.f32 %v5450, %v5451
    %v5453 = vrot.slane %v5452, 1
    %v5454 = vadd.f32 %v5452, %v5453
    %v5455 = vsel %vm361, %v5409, 0.0
    %v5456 = vrot.slane %v5455, 4
    %v5457 = vadd.f32 %v5455, %v5456
    %v5458 = vrot.slane %v5457, 2
    %v5459 = vadd.f32 %v5457, %v5458
    %v5460 = vrot.slane %v5459, 1
    %v5461 = vadd.f32 %v5459, %v5460
    %v5462 = vsel %vm361, %v5410, 0.0
    %v5463 = vrot.slane %v5462, 4
    %v5464 = vadd.f32 %v5462, %v5463
    %v5465 = vrot.slane %v5464, 2
    %v5466 = vadd.f32 %v5464, %v5465
    %v5467 = vrot.slane %v5466, 1
    %v5468 = vadd.f32 %v5466, %v5467
    %v5469 = vsel %vm361, %v5411, 0.0
    %v5470 = vrot.slane %v5469, 4
    %v5471 = vadd.f32 %v5469, %v5470
    %v5472 = vrot.slane %v5471, 2
    %v5473 = vadd.f32 %v5471, %v5472
    %v5474 = vrot.slane %v5473, 1
    %v5475 = vadd.f32 %v5473, %v5474
    %v5476 = vsel %vm361, %v5412, 0.0
    %v5477 = vrot.slane %v5476, 4
    %v5478 = vadd.f32 %v5476, %v5477
    %v5479 = vrot.slane %v5478, 2
    %v5480 = vadd.f32 %v5478, %v5479
    %v5481 = vrot.slane %v5480, 1
    %v5482 = vadd.f32 %v5480, %v5481
    %v5483 = vsel %vm361, %v5413, 0.0
    %v5484 = vrot.slane %v5483, 4
    %v5485 = vadd.f32 %v5483, %v5484
    %v5486 = vrot.slane %v5485, 2
    %v5487 = vadd.f32 %v5485, %v5486
    %v5488 = vrot.slane %v5487, 1
    %v5489 = vadd.f32 %v5487, %v5488
    %v5490 = vsel %vm361, %v5414, 0.0
    %v5491 = vrot.slane %v5490, 4
    %v5492 = vadd.f32 %v5490, %v5491
    %v5493 = vrot.slane %v5492, 2
    %v5494 = vadd.f32 %v5492, %v5493
    %v5495 = vrot.slane %v5494, 1
    %v5496 = vadd.f32 %v5494, %v5495
    %v5497 = vsel %vm361, %v5415, 0.0
    %v5498 = vrot.slane %v5497, 4
    %v5499 = vadd.f32 %v5497, %v5498
    %v5500 = vrot.slane %v5499, 2
    %v5501 = vadd.f32 %v5499, %v5500
    %v5502 = vrot.slane %v5501, 1
    %v5503 = vadd.f32 %v5501, %v5502
    %v5504 = vsel %vm361, %v5416, 0.0
    %v5505 = vrot.slane %v5504, 4
    %v5506 = vadd.f32 %v5504, %v5505
    %v5507 = vrot.slane %v5506, 2
    %v5508 = vadd.f32 %v5506, %v5507
    %v5509 = vrot.slane %v5508, 1
    %v5510 = vadd.f32 %v5508, %v5509
    %v5511 = vsel %vm361, %v5417, 0.0
    %v5512 = vrot.slane %v5511, 4
    %v5513 = vadd.f32 %v5511, %v5512
    %v5514 = vrot.slane %v5513, 2
    %v5515 = vadd.f32 %v5513, %v5514
    %v5516 = vrot.slane %v5515, 1
    %v5517 = vadd.f32 %v5515, %v5516
    %v5518 = vsel %vm361, %v5418, 0.0
    %v5519 = vrot.slane %v5518, 4
    %v5520 = vadd.f32 %v5518, %v5519
    %v5521 = vrot.slane %v5520, 2
    %v5522 = vadd.f32 %v5520, %v5521
    %v5523 = vrot.slane %v5522, 1
    %v5524 = vadd.f32 %v5522, %v5523
    %v5525 = vsel %vm361, %v5419, 0.0
    %v5526 = vrot.slane %v5525, 4
    %v5527 = vadd.f32 %v5525, %v5526
    %v5528 = vrot.slane %v5527, 2
    %v5529 = vadd.f32 %v5527, %v5528
    %v5530 = vrot.slane %v5529, 1
    %v5531 = vadd.f32 %v5529, %v5530
    %s5532 = scalar_lea.vmem %s9, 1
    %v5533 = vld [vmem:[%s5532] sm:$0x1]
    %v5535 = vlaneseq
    %v5536 = vshrl.u32 %v5535, 7
    %v5537 = vsub.s32 0, %v5536
    %v5538 = vrot.slane %v5533, %v5537
    %v5540 = vmul.f32 %v5538, %v4538
    %v5541 = vmul.f32 %v5538, %v4539
    %v5544 = vrot.slane %v5540, 1
    %v5545 = vrot.slane %v5540, 2
    %v5546 = vrot.slane %v5540, 3
    %v5547 = vrot.slane %v5540, 4
    %v5548 = vrot.slane %v5540, 5
    %v5549 = vrot.slane %v5540, 6
    %v5550 = vrot.slane %v5540, 7
    %v5551 = vrot.slane %v5541, 1
    %v5552 = vrot.slane %v5541, 2
    %v5553 = vrot.slane %v5541, 3
    %v5554 = vrot.slane %v5541, 4
    %v5555 = vrot.slane %v5541, 5
    %v5556 = vrot.slane %v5541, 6
    %v5557 = vrot.slane %v5541, 7
    %v5574 = vadd.f32 %v5426, %v5540
    %v5575 = vadd.f32 %v5433, %v5544
    %v5576 = vadd.f32 %v5440, %v5545
    %v5577 = vadd.f32 %v5447, %v5546
    %v5578 = vadd.f32 %v5454, %v5547
    %v5579 = vadd.f32 %v5461, %v5548
    %v5580 = vadd.f32 %v5468, %v5549
    %v5581 = vadd.f32 %v5475, %v5550
    %v5582 = vadd.f32 %v5482, %v5541
    %v5583 = vadd.f32 %v5489, %v5551
    %v5584 = vadd.f32 %v5496, %v5552
    %v5585 = vadd.f32 %v5503, %v5553
    %v5586 = vadd.f32 %v5510, %v5554
    %v5587 = vadd.f32 %v5517, %v5555
    %v5588 = vadd.f32 %v5524, %v5556
    %v5589 = vadd.f32 %v5531, %v5557
    %v5590 = vxor.u32 %v4456, 2147483648
    %v5591 = vxor.u32 %v4461, 2147483648
    %v5592 = vmul.f32 %v5590, 1.442695
    %v5593 = vpow.pop %v5592
    %v5594 = vmul.f32 %v5591, 1.442695
    %v5595 = vpow.pop %v5594
    %v5596 = vadd.f32 %v5593, 1.0
    %v5597 = vadd.f32 %v5595, 1.0
    %v5598 = vrcp.pop %v5596
    %v5599 = vmul.f32 1.0, %v5598
    %v5600 = vrcp.pop %v5597
    %v5601 = vmul.f32 1.0, %v5600
    %v5602 = vmul.f32 %v4456, %v5599
    %v5603 = vmul.f32 %v4461, %v5601
    %v5606 = vrot.slane %v5602, 1
    %v5607 = vrot.slane %v5602, 2
    %v5608 = vrot.slane %v5602, 3
    %v5609 = vrot.slane %v5602, 4
    %v5610 = vrot.slane %v5602, 5
    %v5611 = vrot.slane %v5602, 6
    %v5612 = vrot.slane %v5602, 7
    %v5613 = vrot.slane %v5603, 1
    %v5614 = vrot.slane %v5603, 2
    %v5615 = vrot.slane %v5603, 3
    %v5616 = vrot.slane %v5603, 4
    %v5617 = vrot.slane %v5603, 5
    %v5618 = vrot.slane %v5603, 6
    %v5619 = vrot.slane %v5603, 7
    %5620 = vrot.lane.b32.xlu0 %v5602, 64
    %v5621 = vpop.permute.xlu0 %5620
    %5622 = vrot.lane.b32.xlu0 %v5606, 64
    %v5623 = vpop.permute.xlu0 %5622
    %5624 = vrot.lane.b32.xlu0 %v5607, 64
    %v5625 = vpop.permute.xlu0 %5624
    %5626 = vrot.lane.b32.xlu0 %v5608, 64
    %v5627 = vpop.permute.xlu0 %5626
    %5628 = vrot.lane.b32.xlu0 %v5609, 64
    %v5629 = vpop.permute.xlu0 %5628
    %5630 = vrot.lane.b32.xlu0 %v5610, 64
    %v5631 = vpop.permute.xlu0 %5630
    %5632 = vrot.lane.b32.xlu0 %v5611, 64
    %v5633 = vpop.permute.xlu0 %5632
    %5634 = vrot.lane.b32.xlu0 %v5612, 64
    %v5635 = vpop.permute.xlu0 %5634
    %5636 = vrot.lane.b32.xlu0 %v5603, 64
    %v5637 = vpop.permute.xlu0 %5636
    %5638 = vrot.lane.b32.xlu0 %v5613, 64
    %v5639 = vpop.permute.xlu0 %5638
    %5640 = vrot.lane.b32.xlu0 %v5614, 64
    %v5641 = vpop.permute.xlu0 %5640
    %5642 = vrot.lane.b32.xlu0 %v5615, 64
    %v5643 = vpop.permute.xlu0 %5642
    %5644 = vrot.lane.b32.xlu0 %v5616, 64
    %v5645 = vpop.permute.xlu0 %5644
    %5646 = vrot.lane.b32.xlu0 %v5617, 64
    %v5647 = vpop.permute.xlu0 %5646
    %5648 = vrot.lane.b32.xlu0 %v5618, 64
    %v5649 = vpop.permute.xlu0 %5648
    %5650 = vrot.lane.b32.xlu0 %v5619, 64
    %v5651 = vpop.permute.xlu0 %5650
    %v5668 = vmul.f32 %v5574, %v5621
    %v5669 = vmul.f32 %v5575, %v5623
    %v5670 = vmul.f32 %v5576, %v5625
    %v5671 = vmul.f32 %v5577, %v5627
    %v5672 = vmul.f32 %v5578, %v5629
    %v5673 = vmul.f32 %v5579, %v5631
    %v5674 = vmul.f32 %v5580, %v5633
    %v5675 = vmul.f32 %v5581, %v5635
    %v5676 = vmul.f32 %v5582, %v5637
    %v5677 = vmul.f32 %v5583, %v5639
    %v5678 = vmul.f32 %v5584, %v5641
    %v5679 = vmul.f32 %v5585, %v5643
    %v5680 = vmul.f32 %v5586, %v5645
    %v5681 = vmul.f32 %v5587, %v5647
    %v5682 = vmul.f32 %v5588, %v5649
    %v5683 = vmul.f32 %v5589, %v5651
    %s5684 = scalar_lea.vmem %s10, 64
    %v5685 = vld [vmem:[%s5684] sm:$0xff]
    %v5686 = vld [vmem:[%s5684 + $0x8] sm:$0xff]
    %v5687 = vld [vmem:[%s5684 + $0x10] sm:$0xff]
    %v5688 = vld [vmem:[%s5684 + $0x18] sm:$0xff]
    %v5689 = vld [vmem:[%s5684 + $0x20] sm:$0xff]
    %v5690 = vld [vmem:[%s5684 + $0x28] sm:$0xff]
    %v5691 = vld [vmem:[%s5684 + $0x30] sm:$0xff]
    %v5692 = vld [vmem:[%s5684 + $0x38] sm:$0xff]
    %v5709 = vrot.slane %v5669, 7
    %v5710 = vsel %vm1520, %v5709, %v5668
    %v5711 = vrot.slane %v5670, 6
    %v5712 = vsel %vm1523, %v5711, %v5710
    %v5713 = vrot.slane %v5671, 5
    %v5714 = vsel %vm1526, %v5713, %v5712
    %v5715 = vrot.slane %v5672, 4
    %v5716 = vsel %vm1529, %v5715, %v5714
    %v5717 = vrot.slane %v5673, 3
    %v5718 = vsel %vm1532, %v5717, %v5716
    %v5719 = vrot.slane %v5674, 2
    %v5720 = vsel %vm1535, %v5719, %v5718
    %v5721 = vrot.slane %v5675, 1
    %v5722 = vsel %vm1538, %v5721, %v5720
    %v5723 = vrot.slane %v5677, 7
    %v5724 = vsel %vm1520, %v5723, %v5676
    %v5725 = vrot.slane %v5678, 6
    %v5726 = vsel %vm1523, %v5725, %v5724
    %v5727 = vrot.slane %v5679, 5
    %v5728 = vsel %vm1526, %v5727, %v5726
    %v5729 = vrot.slane %v5680, 4
    %v5730 = vsel %vm1529, %v5729, %v5728
    %v5731 = vrot.slane %v5681, 3
    %v5732 = vsel %vm1532, %v5731, %v5730
    %v5733 = vrot.slane %v5682, 2
    %v5734 = vsel %vm1535, %v5733, %v5732
    %v5735 = vrot.slane %v5683, 1
    %v5736 = vsel %vm1538, %v5735, %v5734
    %v5737 = vsel %vm361, %v5722, 0
    %v5739 = vsel %vm361, %v5736, 0
    %5741 = vmatprep.subr.mxu0 0.0
    %5742 = vmatpush1.msra.mxu0 %v5685
    %5743 = vmatprep.subr.mxu0 0.0
    %5744 = vmatpush1.msra.mxu0 %v5686
    %5745 = vmatprep.subr.mxu0 0.0
    %5746 = vmatpush1.msra.mxu0 %v5687
    %5747 = vmatprep.subr.mxu0 0.0
    %5748 = vmatpush1.msra.mxu0 %v5688
    %5749 = vmatprep.subr.mxu0 0.0
    %5750 = vmatpush1.msra.mxu0 %v5689
    %5751 = vmatprep.subr.mxu0 0.0
    %5752 = vmatpush1.msra.mxu0 %v5690
    %5753 = vmatprep.subr.mxu0 0.0
    %5754 = vmatpush1.msra.mxu0 %v5691
    %5755 = vmatprep.subr.mxu0 0.0
    %5756 = vmatpush1.msra.mxu0 %v5692
    %5757 = vmatprep.subr.mxu0 0.0
    %5758 = vmatpush1.msra.mxu0 0.0
    %5759 = vmatprep.subr.mxu0 0.0
    %5760 = vmatpush1.msra.mxu0 0.0
    %5761 = vmatprep.subr.mxu0 0.0
    %5762 = vmatpush1.msra.mxu0 0.0
    %5763 = vmatprep.subr.mxu0 0.0
    %5764 = vmatpush1.msra.mxu0 0.0
    %5765 = vmatprep.subr.mxu0 0.0
    %5766 = vmatpush1.msra.mxu0 0.0
    %5767 = vmatprep.subr.mxu0 0.0
    %5768 = vmatpush1.msra.mxu0 0.0
    %5769 = vmatprep.subr.mxu0 0.0
    %5770 = vmatpush1.msra.mxu0 0.0
    %5771 = vmatprep.subr.mxu0 0.0
    %5772 = vmatpush1.msra.mxu0 0.0
    %5773 = vmatprep.subr.mxu0 0.0
    %5774 = vmatpush1.msra.mxu0 0.0
    %5775 = vmatprep.subr.mxu0 0.0
    %5776 = vmatpush1.msra.mxu0 0.0
    %5777 = vmatprep.subr.mxu0 0.0
    %5778 = vmatpush1.msra.mxu0 0.0
    %5779 = vmatprep.subr.mxu0 0.0
    %5780 = vmatpush1.msra.mxu0 0.0
    %5781 = vmatprep.subr.mxu0 0.0
    %5782 = vmatpush1.msra.mxu0 0.0
    %5783 = vmatprep.subr.mxu0 0.0
    %5784 = vmatpush1.msra.mxu0 0.0
    %5785 = vmatprep.subr.mxu0 0.0
    %5786 = vmatpush1.msra.mxu0 0.0
    %5787 = vmatprep.subr.mxu0 0.0
    %5788 = vmatpush1.msra.mxu0 0.0
    %5789 = vmatprep.subr.mxu0 0.0
    %5790 = vmatpush1.msra.mxu0 0.0
    %5791 = vmatprep.subr.mxu0 0.0
    %5792 = vmatpush1.msra.mxu0 0.0
    %5793 = vmatprep.subr.mxu0 0.0
    %5794 = vmatpush1.msra.mxu0 0.0
    %5795 = vmatprep.subr.mxu0 0.0
    %5796 = vmatpush1.msra.mxu0 0.0
    %5797 = vmatprep.subr.mxu0 0.0
    %5798 = vmatpush1.msra.mxu0 0.0
    %5799 = vmatprep.subr.mxu0 0.0
    %5800 = vmatpush1.msra.mxu0 0.0
    %5801 = vmatprep.subr.mxu0 0.0
    %5802 = vmatpush1.msra.mxu0 0.0
    %5803 = vmatprep.subr.mxu0 0.0
    %5804 = vmatpush1.msra.mxu0 0.0
    %5805 = vmatprep.mubr.f32.mxu0 0.0
    %5806 = vmatmul.mubr.f32.gmra.mrb[0].mxu0 %v5737
    %v5807 = vpop.f32.mrb[0].mxu0
    %v5808 = vadd.f32 0.0, %v5807
    %v5809 = vpop.f32.mrb[0].mxu0
    %5810 = vmatprep.mubr.f32.mxu0 0.0
    %5811 = vmatmul.mubr.f32.gmra.mrb[0].mxu0 %v5739
    %v5812 = vpop.f32.mrb[0].mxu0
    %v5813 = vadd.f32 0.0, %v5812
    %v5814 = vpop.f32.mrb[0].mxu0
    %5815 = vdwg.mxu0
    %v5816 = vadd.f32 %v4344, %v5808
    %v5817 = vadd.f32 %v4349, %v5813
    %s5818 = scalar_lea.vmem %s18, 16
    %5819 = vst.msk [vmem:[%s5818] sm:$0xff] %vm166, %v5816
    %5820 = vst.msk [vmem:[%s5818 + $0x8] sm:$0xff] %vm166, %v5817
    %v5821 = vsel %vm166, %v5816, 0.0
    %5822 = vadd.xlane.f32.xlu0 %v5821
    %v5823 = vpop.xlane.xlu0 %5822
    %v5824 = vsel %vm166, %v5817, 0.0
    %5825 = vadd.xlane.f32.xlu0 %v5824
    %v5826 = vpop.xlane.xlu0 %5825
    %v5827 = vmul.f32 %v5823, %v173
    %v5828 = vmul.f32 %v5826, %v173
    %v5829 = vsub.f32 %v5816, %v5827
    %v5830 = vsub.f32 %v5817, %v5828
    %v5831 = vmul.f32 %v5829, %v5829
    %v5832 = vmul.f32 %v5830, %v5830
    %v5833 = vsel %vm166, %v5831, 0.0
    %5834 = vadd.xlane.f32.xlu0 %v5833
    %v5835 = vpop.xlane.xlu0 %5834
    %v5836 = vsel %vm166, %v5832, 0.0
    %5837 = vadd.xlane.f32.xlu0 %v5836
    %v5838 = vpop.xlane.xlu0 %5837
    %v5839 = vmul.f32 %v5835, %v173
    %v5840 = vmul.f32 %v5838, %v173
    %v5841 = vadd.f32 %v5839, 1e-05
    %v5842 = vadd.f32 %v5840, 1e-05
    %v5843 = vrsqrt.pop %v5841
    %v5844 = vrsqrt.pop %v5842
    %v5845 = vmul.f32 %v5829, %v5843
    %v5846 = vmul.f32 %v5830, %v5844
    %s5847 = scalar_lea.vmem %s11, 1
    %v5848 = vld [vmem:[%s5847] sm:$0x1]
    %v5850 = vlaneseq
    %v5851 = vshrl.u32 %v5850, 7
    %v5852 = vsub.s32 0, %v5851
    %v5853 = vrot.slane %v5848, %v5852
    %v5855 = vmul.f32 %v5845, %v5853
    %v5856 = vmul.f32 %v5846, %v5853
    %s5857 = scalar_lea.vmem %s12, 1
    %v5858 = vld [vmem:[%s5857] sm:$0x1]
    %v5860 = vlaneseq
    %v5861 = vshrl.u32 %v5860, 7
    %v5862 = vsub.s32 0, %v5861
    %v5863 = vrot.slane %v5858, %v5862
    %v5865 = vadd.f32 %v5855, %v5863
    %v5866 = vadd.f32 %v5856, %v5863
    %s5867 = scalar_lea.vmem [#allocation10], 32
    %v5868 = vld [vmem:[%s5867] sm:$0xff]
    %v5869 = vld [vmem:[%s5867 + $0x8] sm:$0xff]
    %v5870 = vld [vmem:[%s5867 + $0x10] sm:$0xff]
    %v5871 = vld [vmem:[%s5867 + $0x18] sm:$0xff]
    %s5872 = scalar_lea.vmem %s14, 1
    %v5873 = vld [vmem:[%s5872] sm:$0x1]
    %v5875 = vlaneseq
    %v5876 = vshrl.u32 %v5875, 7
    %v5877 = vsub.s32 0, %v5876
    %v5878 = vrot.slane %v5873, %v5877
    %v5881 = vsel %vm166, %v5865, 0
    %v5884 = vsel %vm166, %v5866, 0
    %5886 = vmatprep.subr.mxu0 0.0
    %5887 = vmatpush1.msra.mxu0 %v5868
    %5888 = vmatprep.subr.mxu0 0.0
    %5889 = vmatpush1.msra.mxu0 %v5869
    %5890 = vmatprep.subr.mxu0 0.0
    %5891 = vmatpush1.msra.mxu0 %v5870
    %5892 = vmatprep.subr.mxu0 0.0
    %5893 = vmatpush1.msra.mxu0 %v5871
    %5894 = vmatprep.subr.mxu0 0.0
    %5895 = vmatpush1.msra.mxu0 0.0
    %5896 = vmatprep.subr.mxu0 0.0
    %5897 = vmatpush1.msra.mxu0 0.0
    %5898 = vmatprep.subr.mxu0 0.0
    %5899 = vmatpush1.msra.mxu0 0.0
    %5900 = vmatprep.subr.mxu0 0.0
    %5901 = vmatpush1.msra.mxu0 0.0
    %5902 = vmatprep.subr.mxu0 0.0
    %5903 = vmatpush1.msra.mxu0 0.0
    %5904 = vmatprep.subr.mxu0 0.0
    %5905 = vmatpush1.msra.mxu0 0.0
    %5906 = vmatprep.subr.mxu0 0.0
    %5907 = vmatpush1.msra.mxu0 0.0
    %5908 = vmatprep.subr.mxu0 0.0
    %5909 = vmatpush1.msra.mxu0 0.0
    %5910 = vmatprep.subr.mxu0 0.0
    %5911 = vmatpush1.msra.mxu0 0.0
    %5912 = vmatprep.subr.mxu0 0.0
    %5913 = vmatpush1.msra.mxu0 0.0
    %5914 = vmatprep.subr.mxu0 0.0
    %5915 = vmatpush1.msra.mxu0 0.0
    %5916 = vmatprep.subr.mxu0 0.0
    %5917 = vmatpush1.msra.mxu0 0.0
    %5918 = vmatprep.subr.mxu0 0.0
    %5919 = vmatpush1.msra.mxu0 0.0
    %5920 = vmatprep.subr.mxu0 0.0
    %5921 = vmatpush1.msra.mxu0 0.0
    %5922 = vmatprep.subr.mxu0 0.0
    %5923 = vmatpush1.msra.mxu0 0.0
    %5924 = vmatprep.subr.mxu0 0.0
    %5925 = vmatpush1.msra.mxu0 0.0
    %5926 = vmatprep.subr.mxu0 0.0
    %5927 = vmatpush1.msra.mxu0 0.0
    %5928 = vmatprep.subr.mxu0 0.0
    %5929 = vmatpush1.msra.mxu0 0.0
    %5930 = vmatprep.subr.mxu0 0.0
    %5931 = vmatpush1.msra.mxu0 0.0
    %5932 = vmatprep.subr.mxu0 0.0
    %5933 = vmatpush1.msra.mxu0 0.0
    %5934 = vmatprep.subr.mxu0 0.0
    %5935 = vmatpush1.msra.mxu0 0.0
    %5936 = vmatprep.subr.mxu0 0.0
    %5937 = vmatpush1.msra.mxu0 0.0
    %5938 = vmatprep.subr.mxu0 0.0
    %5939 = vmatpush1.msra.mxu0 0.0
    %5940 = vmatprep.subr.mxu0 0.0
    %5941 = vmatpush1.msra.mxu0 0.0
    %5942 = vmatprep.subr.mxu0 0.0
    %5943 = vmatpush1.msra.mxu0 0.0
    %5944 = vmatprep.subr.mxu0 0.0
    %5945 = vmatpush1.msra.mxu0 0.0
    %5946 = vmatprep.subr.mxu0 0.0
    %5947 = vmatpush1.msra.mxu0 0.0
    %5948 = vmatprep.subr.mxu0 0.0
    %5949 = vmatpush1.msra.mxu0 0.0
    %5950 = vmatprep.mubr.f32.mxu0 0.0
    %5951 = vmatmul.mubr.f32.gmra.mrb[0].mxu0 %v5881
    %v5952 = vpop.f32.mrb[0].mxu0
    %v5953 = vadd.f32 %v5878, %v5952
    %v5954 = vpop.f32.mrb[0].mxu0
    %5955 = vmatprep.mubr.f32.mxu0 0.0
    %5956 = vmatmul.mubr.f32.gmra.mrb[0].mxu0 %v5884
    %v5957 = vpop.f32.mrb[0].mxu0
    %v5958 = vadd.f32 %v5878, %v5957
    %v5959 = vpop.f32.mrb[0].mxu0
    %5960 = vdwg.mxu0
    %5963 = vrot.lane.b32.xlu0 %v5953, 120
    %v5964 = vpop.permute.xlu0 %5963
    %5965 = vrot.lane.b32.xlu0 %v5958, 120
    %v5966 = vpop.permute.xlu0 %5965
    %5969 = vrot.lane.b32.xlu0 %v5953, 112
    %v5970 = vpop.permute.xlu0 %5969
    %5971 = vrot.lane.b32.xlu0 %v5958, 112
    %v5972 = vpop.permute.xlu0 %5971
    %5975 = vrot.lane.b32.xlu0 %v5953, 104
    %v5976 = vpop.permute.xlu0 %5975
    %5977 = vrot.lane.b32.xlu0 %v5958, 104
    %v5978 = vpop.permute.xlu0 %5977
    %v5981 = vcombine.low %v5953, %v5970
    %v5982 = vcombine.high %v5953, %v5970
    %v5984 = vunpack.c.l.s4 1983009808
    %v5985 = vunpack.c.0.s8 %v5984
    %v5986 = vlaneseq
    %v5987 = vshrl.u32 %v5986, 7
    %v5988 = vsub.s32 %v5985, %v5987
    %v5989 = vrot.slane %v5981, %v5988
    %v5991 = vunpack.c.l.s4 1983009808
    %v5992 = vunpack.c.0.s8 %v5991
    %v5993 = vlaneseq
    %v5994 = vshrl.u32 %v5993, 7
    %v5995 = vsub.s32 %v5992, %v5994
    %v5996 = vrot.slane %v5982, %v5995
    %v5997 = vcombine.low %v5964, %v5976
    %v5998 = vcombine.high %v5964, %v5976
    %v6000 = vunpack.c.l.s4 1983009808
    %v6001 = vunpack.c.0.s8 %v6000
    %v6002 = vlaneseq
    %v6003 = vshrl.u32 %v6002, 7
    %v6004 = vsub.s32 %v6001, %v6003
    %v6005 = vrot.slane %v5997, %v6004
    %v6007 = vunpack.c.l.s4 1983009808
    %v6008 = vunpack.c.0.s8 %v6007
    %v6009 = vlaneseq
    %v6010 = vshrl.u32 %v6009, 7
    %v6011 = vsub.s32 %v6008, %v6010
    %v6012 = vrot.slane %v5998, %v6011
    %v6013 = vcombine.low %v5989, %v6005
    %v6014 = vcombine.high %v5989, %v6005
    %v6016 = vunpack.c.l.s4 1934713408
    %v6017 = vunpack.c.0.s8 %v6016
    %v6018 = vlaneseq
    %v6019 = vshrl.u32 %v6018, 7
    %v6020 = vsub.s32 %v6017, %v6019
    %v6021 = vrot.slane %v6013, %v6020
    %v6023 = vunpack.c.l.s4 1934713408
    %v6024 = vunpack.c.0.s8 %v6023
    %v6025 = vlaneseq
    %v6026 = vshrl.u32 %v6025, 7
    %v6027 = vsub.s32 %v6024, %v6026
    %v6028 = vrot.slane %v6014, %v6027
    %v6029 = vcombine.low %v5996, %v6012
    %v6030 = vcombine.high %v5996, %v6012
    %v6032 = vunpack.c.l.s4 1934713408
    %v6033 = vunpack.c.0.s8 %v6032
    %v6034 = vlaneseq
    %v6035 = vshrl.u32 %v6034, 7
    %v6036 = vsub.s32 %v6033, %v6035
    %v6037 = vrot.slane %v6029, %v6036
    %v6039 = vunpack.c.l.s4 1934713408
    %v6040 = vunpack.c.0.s8 %v6039
    %v6041 = vlaneseq
    %v6042 = vshrl.u32 %v6041, 7
    %v6043 = vsub.s32 %v6040, %v6042
    %v6044 = vrot.slane %v6030, %v6043
    %v6045 = vcombine.high %v6021, 0.0
    %v6046 = vcombine.high %v6028, 0.0
    %v6047 = vcombine.high %v6037, 0.0
    %v6048 = vcombine.high %v6044, 0.0
    %v6049 = vcombine.low %v5958, %v5972
    %v6050 = vcombine.high %v5958, %v5972
    %v6052 = vunpack.c.l.s4 1983009808
    %v6053 = vunpack.c.0.s8 %v6052
    %v6054 = vlaneseq
    %v6055 = vshrl.u32 %v6054, 7
    %v6056 = vsub.s32 %v6053, %v6055
    %v6057 = vrot.slane %v6049, %v6056
    %v6059 = vunpack.c.l.s4 1983009808
    %v6060 = vunpack.c.0.s8 %v6059
    %v6061 = vlaneseq
    %v6062 = vshrl.u32 %v6061, 7
    %v6063 = vsub.s32 %v6060, %v6062
    %v6064 = vrot.slane %v6050, %v6063
    %v6065 = vcombine.low %v5966, %v5978
    %v6066 = vcombine.high %v5966, %v5978
    %v6068 = vunpack.c.l.s4 1983009808
    %v6069 = vunpack.c.0.s8 %v6068
    %v6070 = vlaneseq
    %v6071 = vshrl.u32 %v6070, 7
    %v6072 = vsub.s32 %v6069, %v6071
    %v6073 = vrot.slane %v6065, %v6072
    %v6075 = vunpack.c.l.s4 1983009808
    %v6076 = vunpack.c.0.s8 %v6075
    %v6077 = vlaneseq
    %v6078 = vshrl.u32 %v6077, 7
    %v6079 = vsub.s32 %v6076, %v6078
    %v6080 = vrot.slane %v6066, %v6079
    %v6081 = vcombine.low %v6057, %v6073
    %v6082 = vcombine.high %v6057, %v6073
    %v6084 = vunpack.c.l.s4 1934713408
    %v6085 = vunpack.c.0.s8 %v6084
    %v6086 = vlaneseq
    %v6087 = vshrl.u32 %v6086, 7
    %v6088 = vsub.s32 %v6085, %v6087
    %v6089 = vrot.slane %v6081, %v6088
    %v6091 = vunpack.c.l.s4 1934713408
    %v6092 = vunpack.c.0.s8 %v6091
    %v6093 = vlaneseq
    %v6094 = vshrl.u32 %v6093, 7
    %v6095 = vsub.s32 %v6092, %v6094
    %v6096 = vrot.slane %v6082, %v6095
    %v6097 = vcombine.low %v6064, %v6080
    %v6098 = vcombine.high %v6064, %v6080
    %v6100 = vunpack.c.l.s4 1934713408
    %v6101 = vunpack.c.0.s8 %v6100
    %v6102 = vlaneseq
    %v6103 = vshrl.u32 %v6102, 7
    %v6104 = vsub.s32 %v6101, %v6103
    %v6105 = vrot.slane %v6097, %v6104
    %v6107 = vunpack.c.l.s4 1934713408
    %v6108 = vunpack.c.0.s8 %v6107
    %v6109 = vlaneseq
    %v6110 = vshrl.u32 %v6109, 7
    %v6111 = vsub.s32 %v6108, %v6110
    %v6112 = vrot.slane %v6098, %v6111
    %v6113 = vcombine.high %v6089, 0.0
    %v6114 = vcombine.high %v6096, 0.0
    %v6115 = vcombine.high %v6105, 0.0
    %v6116 = vcombine.high %v6112, 0.0
    %v6117 = vcombine.low %v6021, %v6028
    %v6119 = vunpack.c.l.s4 1983009808
    %v6120 = vunpack.c.0.s8 %v6119
    %v6121 = vlaneseq
    %v6122 = vshrl.u32 %v6121, 7
    %v6123 = vsub.s32 %v6120, %v6122
    %v6124 = vrot.slane %v6117, %v6123
    %v6125 = vcombine.low %v6045, %v6046
    %v6127 = vunpack.c.l.s4 1983009808
    %v6128 = vunpack.c.0.s8 %v6127
    %v6129 = vlaneseq
    %v6130 = vshrl.u32 %v6129, 7
    %v6131 = vsub.s32 %v6128, %v6130
    %v6132 = vrot.slane %v6125, %v6131
    %v6133 = vcombine.low %v6037, %v6044
    %v6135 = vunpack.c.l.s4 1983009808
    %v6136 = vunpack.c.0.s8 %v6135
    %v6137 = vlaneseq
    %v6138 = vshrl.u32 %v6137, 7
    %v6139 = vsub.s32 %v6136, %v6138
    %v6140 = vrot.slane %v6133, %v6139
    %v6141 = vcombine.low %v6047, %v6048
    %v6143 = vunpack.c.l.s4 1983009808
    %v6144 = vunpack.c.0.s8 %v6143
    %v6145 = vlaneseq
    %v6146 = vshrl.u32 %v6145, 7
    %v6147 = vsub.s32 %v6144, %v6146
    %v6148 = vrot.slane %v6141, %v6147
    %v6149 = vcombine.low %v6124, %v6132
    %v6150 = vcombine.high %v6124, %v6132
    %v6152 = vunpack.c.l.s4 1934713408
    %v6153 = vunpack.c.0.s8 %v6152
    %v6154 = vlaneseq
    %v6155 = vshrl.u32 %v6154, 7
    %v6156 = vsub.s32 %v6153, %v6155
    %v6157 = vrot.slane %v6149, %v6156
    %v6159 = vunpack.c.l.s4 1934713408
    %v6160 = vunpack.c.0.s8 %v6159
    %v6161 = vlaneseq
    %v6162 = vshrl.u32 %v6161, 7
    %v6163 = vsub.s32 %v6160, %v6162
    %v6164 = vrot.slane %v6150, %v6163
    %v6165 = vcombine.low %v6140, %v6148
    %v6166 = vcombine.high %v6140, %v6148
    %v6168 = vunpack.c.l.s4 1934713408
    %v6169 = vunpack.c.0.s8 %v6168
    %v6170 = vlaneseq
    %v6171 = vshrl.u32 %v6170, 7
    %v6172 = vsub.s32 %v6169, %v6171
    %v6173 = vrot.slane %v6165, %v6172
    %v6175 = vunpack.c.l.s4 1934713408
    %v6176 = vunpack.c.0.s8 %v6175
    %v6177 = vlaneseq
    %v6178 = vshrl.u32 %v6177, 7
    %v6179 = vsub.s32 %v6176, %v6178
    %v6180 = vrot.slane %v6166, %v6179
    %v6181 = vcombine.low %v6157, %v6173
    %v6182 = vcombine.high %v6157, %v6173
    %v6183 = vcombine.low %v6164, %v6180
    %v6184 = vcombine.high %v6164, %v6180
    %v6185 = vcombine.low %v6089, %v6096
    %v6187 = vunpack.c.l.s4 1983009808
    %v6188 = vunpack.c.0.s8 %v6187
    %v6189 = vlaneseq
    %v6190 = vshrl.u32 %v6189, 7
    %v6191 = vsub.s32 %v6188, %v6190
    %v6192 = vrot.slane %v6185, %v6191
    %v6193 = vcombine.low %v6113, %v6114
    %v6195 = vunpack.c.l.s4 1983009808
    %v6196 = vunpack.c.0.s8 %v6195
    %v6197 = vlaneseq
    %v6198 = vshrl.u32 %v6197, 7
    %v6199 = vsub.s32 %v6196, %v6198
    %v6200 = vrot.slane %v6193, %v6199
    %v6201 = vcombine.low %v6105, %v6112
    %v6203 = vunpack.c.l.s4 1983009808
    %v6204 = vunpack.c.0.s8 %v6203
    %v6205 = vlaneseq
    %v6206 = vshrl.u32 %v6205, 7
    %v6207 = vsub.s32 %v6204, %v6206
    %v6208 = vrot.slane %v6201, %v6207
    %v6209 = vcombine.low %v6115, %v6116
    %v6211 = vunpack.c.l.s4 1983009808
    %v6212 = vunpack.c.0.s8 %v6211
    %v6213 = vlaneseq
    %v6214 = vshrl.u32 %v6213, 7
    %v6215 = vsub.s32 %v6212, %v6214
    %v6216 = vrot.slane %v6209, %v6215
    %v6217 = vcombine.low %v6192, %v6200
    %v6218 = vcombine.high %v6192, %v6200
    %v6220 = vunpack.c.l.s4 1934713408
    %v6221 = vunpack.c.0.s8 %v6220
    %v6222 = vlaneseq
    %v6223 = vshrl.u32 %v6222, 7
    %v6224 = vsub.s32 %v6221, %v6223
    %v6225 = vrot.slane %v6217, %v6224
    %v6227 = vunpack.c.l.s4 1934713408
    %v6228 = vunpack.c.0.s8 %v6227
    %v6229 = vlaneseq
    %v6230 = vshrl.u32 %v6229, 7
    %v6231 = vsub.s32 %v6228, %v6230
    %v6232 = vrot.slane %v6218, %v6231
    %v6233 = vcombine.low %v6208, %v6216
    %v6234 = vcombine.high %v6208, %v6216
    %v6236 = vunpack.c.l.s4 1934713408
    %v6237 = vunpack.c.0.s8 %v6236
    %v6238 = vlaneseq
    %v6239 = vshrl.u32 %v6238, 7
    %v6240 = vsub.s32 %v6237, %v6239
    %v6241 = vrot.slane %v6233, %v6240
    %v6243 = vunpack.c.l.s4 1934713408
    %v6244 = vunpack.c.0.s8 %v6243
    %v6245 = vlaneseq
    %v6246 = vshrl.u32 %v6245, 7
    %v6247 = vsub.s32 %v6244, %v6246
    %v6248 = vrot.slane %v6234, %v6247
    %v6249 = vcombine.low %v6225, %v6241
    %v6250 = vcombine.high %v6225, %v6241
    %v6251 = vcombine.low %v6232, %v6248
    %v6252 = vcombine.high %v6232, %v6248
    %6253 = vrot.lane.b32.xlu0 %v5953, 96
    %v6254 = vpop.permute.xlu0 %6253
    %6255 = vrot.lane.b32.xlu0 %v5958, 96
    %v6256 = vpop.permute.xlu0 %6255
    %6257 = vrot.lane.b32.xlu0 %v5964, 96
    %v6258 = vpop.permute.xlu0 %6257
    %6259 = vrot.lane.b32.xlu0 %v5966, 96
    %v6260 = vpop.permute.xlu0 %6259
    %6261 = vrot.lane.b32.xlu0 %v5970, 96
    %v6262 = vpop.permute.xlu0 %6261
    %6263 = vrot.lane.b32.xlu0 %v5972, 96
    %v6264 = vpop.permute.xlu0 %6263
    %6265 = vrot.lane.b32.xlu0 %v5976, 96
    %v6266 = vpop.permute.xlu0 %6265
    %6267 = vrot.lane.b32.xlu0 %v5978, 96
    %v6268 = vpop.permute.xlu0 %6267
    %v6277 = vcombine.low %v6254, %v6262
    %v6278 = vcombine.high %v6254, %v6262
    %v6280 = vunpack.c.l.s4 1983009808
    %v6281 = vunpack.c.0.s8 %v6280
    %v6282 = vlaneseq
    %v6283 = vshrl.u32 %v6282, 7
    %v6284 = vsub.s32 %v6281, %v6283
    %v6285 = vrot.slane %v6277, %v6284
    %v6287 = vunpack.c.l.s4 1983009808
    %v6288 = vunpack.c.0.s8 %v6287
    %v6289 = vlaneseq
    %v6290 = vshrl.u32 %v6289, 7
    %v6291 = vsub.s32 %v6288, %v6290
    %v6292 = vrot.slane %v6278, %v6291
    %v6293 = vcombine.low %v6258, %v6266
    %v6294 = vcombine.high %v6258, %v6266
    %v6296 = vunpack.c.l.s4 1983009808
    %v6297 = vunpack.c.0.s8 %v6296
    %v6298 = vlaneseq
    %v6299 = vshrl.u32 %v6298, 7
    %v6300 = vsub.s32 %v6297, %v6299
    %v6301 = vrot.slane %v6293, %v6300
    %v6303 = vunpack.c.l.s4 1983009808
    %v6304 = vunpack.c.0.s8 %v6303
    %v6305 = vlaneseq
    %v6306 = vshrl.u32 %v6305, 7
    %v6307 = vsub.s32 %v6304, %v6306
    %v6308 = vrot.slane %v6294, %v6307
    %v6309 = vcombine.low %v6285, %v6301
    %v6310 = vcombine.high %v6285, %v6301
    %v6312 = vunpack.c.l.s4 1934713408
    %v6313 = vunpack.c.0.s8 %v6312
    %v6314 = vlaneseq
    %v6315 = vshrl.u32 %v6314, 7
    %v6316 = vsub.s32 %v6313, %v6315
    %v6317 = vrot.slane %v6309, %v6316
    %v6319 = vunpack.c.l.s4 1934713408
    %v6320 = vunpack.c.0.s8 %v6319
    %v6321 = vlaneseq
    %v6322 = vshrl.u32 %v6321, 7
    %v6323 = vsub.s32 %v6320, %v6322
    %v6324 = vrot.slane %v6310, %v6323
    %v6325 = vcombine.low %v6292, %v6308
    %v6326 = vcombine.high %v6292, %v6308
    %v6328 = vunpack.c.l.s4 1934713408
    %v6329 = vunpack.c.0.s8 %v6328
    %v6330 = vlaneseq
    %v6331 = vshrl.u32 %v6330, 7
    %v6332 = vsub.s32 %v6329, %v6331
    %v6333 = vrot.slane %v6325, %v6332
    %v6335 = vunpack.c.l.s4 1934713408
    %v6336 = vunpack.c.0.s8 %v6335
    %v6337 = vlaneseq
    %v6338 = vshrl.u32 %v6337, 7
    %v6339 = vsub.s32 %v6336, %v6338
    %v6340 = vrot.slane %v6326, %v6339
    %v6341 = vcombine.high %v6317, 0.0
    %v6342 = vcombine.high %v6324, 0.0
    %v6343 = vcombine.high %v6333, 0.0
    %v6344 = vcombine.high %v6340, 0.0
    %v6345 = vcombine.low %v6256, %v6264
    %v6346 = vcombine.high %v6256, %v6264
    %v6348 = vunpack.c.l.s4 1983009808
    %v6349 = vunpack.c.0.s8 %v6348
    %v6350 = vlaneseq
    %v6351 = vshrl.u32 %v6350, 7
    %v6352 = vsub.s32 %v6349, %v6351
    %v6353 = vrot.slane %v6345, %v6352
    %v6355 = vunpack.c.l.s4 1983009808
    %v6356 = vunpack.c.0.s8 %v6355
    %v6357 = vlaneseq
    %v6358 = vshrl.u32 %v6357, 7
    %v6359 = vsub.s32 %v6356, %v6358
    %v6360 = vrot.slane %v6346, %v6359
    %v6361 = vcombine.low %v6260, %v6268
    %v6362 = vcombine.high %v6260, %v6268
    %v6364 = vunpack.c.l.s4 1983009808
    %v6365 = vunpack.c.0.s8 %v6364
    %v6366 = vlaneseq
    %v6367 = vshrl.u32 %v6366, 7
    %v6368 = vsub.s32 %v6365, %v6367
    %v6369 = vrot.slane %v6361, %v6368
    %v6371 = vunpack.c.l.s4 1983009808
    %v6372 = vunpack.c.0.s8 %v6371
    %v6373 = vlaneseq
    %v6374 = vshrl.u32 %v6373, 7
    %v6375 = vsub.s32 %v6372, %v6374
    %v6376 = vrot.slane %v6362, %v6375
    %v6377 = vcombine.low %v6353, %v6369
    %v6378 = vcombine.high %v6353, %v6369
    %v6380 = vunpack.c.l.s4 1934713408
    %v6381 = vunpack.c.0.s8 %v6380
    %v6382 = vlaneseq
    %v6383 = vshrl.u32 %v6382, 7
    %v6384 = vsub.s32 %v6381, %v6383
    %v6385 = vrot.slane %v6377, %v6384
    %v6387 = vunpack.c.l.s4 1934713408
    %v6388 = vunpack.c.0.s8 %v6387
    %v6389 = vlaneseq
    %v6390 = vshrl.u32 %v6389, 7
    %v6391 = vsub.s32 %v6388, %v6390
    %v6392 = vrot.slane %v6378, %v6391
    %v6393 = vcombine.low %v6360, %v6376
    %v6394 = vcombine.high %v6360, %v6376
    %v6396 = vunpack.c.l.s4 1934713408
    %v6397 = vunpack.c.0.s8 %v6396
    %v6398 = vlaneseq
    %v6399 = vshrl.u32 %v6398, 7
    %v6400 = vsub.s32 %v6397, %v6399
    %v6401 = vrot.slane %v6393, %v6400
    %v6403 = vunpack.c.l.s4 1934713408
    %v6404 = vunpack.c.0.s8 %v6403
    %v6405 = vlaneseq
    %v6406 = vshrl.u32 %v6405, 7
    %v6407 = vsub.s32 %v6404, %v6406
    %v6408 = vrot.slane %v6394, %v6407
    %v6409 = vcombine.high %v6385, 0.0
    %v6410 = vcombine.high %v6392, 0.0
    %v6411 = vcombine.high %v6401, 0.0
    %v6412 = vcombine.high %v6408, 0.0
    %v6413 = vcombine.low %v6317, %v6324
    %v6415 = vunpack.c.l.s4 1983009808
    %v6416 = vunpack.c.0.s8 %v6415
    %v6417 = vlaneseq
    %v6418 = vshrl.u32 %v6417, 7
    %v6419 = vsub.s32 %v6416, %v6418
    %v6420 = vrot.slane %v6413, %v6419
    %v6421 = vcombine.low %v6341, %v6342
    %v6423 = vunpack.c.l.s4 1983009808
    %v6424 = vunpack.c.0.s8 %v6423
    %v6425 = vlaneseq
    %v6426 = vshrl.u32 %v6425, 7
    %v6427 = vsub.s32 %v6424, %v6426
    %v6428 = vrot.slane %v6421, %v6427
    %v6429 = vcombine.low %v6333, %v6340
    %v6431 = vunpack.c.l.s4 1983009808
    %v6432 = vunpack.c.0.s8 %v6431
    %v6433 = vlaneseq
    %v6434 = vshrl.u32 %v6433, 7
    %v6435 = vsub.s32 %v6432, %v6434
    %v6436 = vrot.slane %v6429, %v6435
    %v6437 = vcombine.low %v6343, %v6344
    %v6439 = vunpack.c.l.s4 1983009808
    %v6440 = vunpack.c.0.s8 %v6439
    %v6441 = vlaneseq
    %v6442 = vshrl.u32 %v6441, 7
    %v6443 = vsub.s32 %v6440, %v6442
    %v6444 = vrot.slane %v6437, %v6443
    %v6445 = vcombine.low %v6420, %v6428
    %v6446 = vcombine.high %v6420, %v6428
    %v6448 = vunpack.c.l.s4 1934713408
    %v6449 = vunpack.c.0.s8 %v6448
    %v6450 = vlaneseq
    %v6451 = vshrl.u32 %v6450, 7
    %v6452 = vsub.s32 %v6449, %v6451
    %v6453 = vrot.slane %v6445, %v6452
    %v6455 = vunpack.c.l.s4 1934713408
    %v6456 = vunpack.c.0.s8 %v6455
    %v6457 = vlaneseq
    %v6458 = vshrl.u32 %v6457, 7
    %v6459 = vsub.s32 %v6456, %v6458
    %v6460 = vrot.slane %v6446, %v6459
    %v6461 = vcombine.low %v6436, %v6444
    %v6462 = vcombine.high %v6436, %v6444
    %v6464 = vunpack.c.l.s4 1934713408
    %v6465 = vunpack.c.0.s8 %v6464
    %v6466 = vlaneseq
    %v6467 = vshrl.u32 %v6466, 7
    %v6468 = vsub.s32 %v6465, %v6467
    %v6469 = vrot.slane %v6461, %v6468
    %v6471 = vunpack.c.l.s4 1934713408
    %v6472 = vunpack.c.0.s8 %v6471
    %v6473 = vlaneseq
    %v6474 = vshrl.u32 %v6473, 7
    %v6475 = vsub.s32 %v6472, %v6474
    %v6476 = vrot.slane %v6462, %v6475
    %v6477 = vcombine.low %v6453, %v6469
    %v6478 = vcombine.high %v6453, %v6469
    %v6479 = vcombine.low %v6460, %v6476
    %v6480 = vcombine.high %v6460, %v6476
    %v6481 = vcombine.low %v6385, %v6392
    %v6483 = vunpack.c.l.s4 1983009808
    %v6484 = vunpack.c.0.s8 %v6483
    %v6485 = vlaneseq
    %v6486 = vshrl.u32 %v6485, 7
    %v6487 = vsub.s32 %v6484, %v6486
    %v6488 = vrot.slane %v6481, %v6487
    %v6489 = vcombine.low %v6409, %v6410
    %v6491 = vunpack.c.l.s4 1983009808
    %v6492 = vunpack.c.0.s8 %v6491
    %v6493 = vlaneseq
    %v6494 = vshrl.u32 %v6493, 7
    %v6495 = vsub.s32 %v6492, %v6494
    %v6496 = vrot.slane %v6489, %v6495
    %v6497 = vcombine.low %v6401, %v6408
    %v6499 = vunpack.c.l.s4 1983009808
    %v6500 = vunpack.c.0.s8 %v6499
    %v6501 = vlaneseq
    %v6502 = vshrl.u32 %v6501, 7
    %v6503 = vsub.s32 %v6500, %v6502
    %v6504 = vrot.slane %v6497, %v6503
    %v6505 = vcombine.low %v6411, %v6412
    %v6507 = vunpack.c.l.s4 1983009808
    %v6508 = vunpack.c.0.s8 %v6507
    %v6509 = vlaneseq
    %v6510 = vshrl.u32 %v6509, 7
    %v6511 = vsub.s32 %v6508, %v6510
    %v6512 = vrot.slane %v6505, %v6511
    %v6513 = vcombine.low %v6488, %v6496
    %v6514 = vcombine.high %v6488, %v6496
    %v6516 = vunpack.c.l.s4 1934713408
    %v6517 = vunpack.c.0.s8 %v6516
    %v6518 = vlaneseq
    %v6519 = vshrl.u32 %v6518, 7
    %v6520 = vsub.s32 %v6517, %v6519
    %v6521 = vrot.slane %v6513, %v6520
    %v6523 = vunpack.c.l.s4 1934713408
    %v6524 = vunpack.c.0.s8 %v6523
    %v6525 = vlaneseq
    %v6526 = vshrl.u32 %v6525, 7
    %v6527 = vsub.s32 %v6524, %v6526
    %v6528 = vrot.slane %v6514, %v6527
    %v6529 = vcombine.low %v6504, %v6512
    %v6530 = vcombine.high %v6504, %v6512
    %v6532 = vunpack.c.l.s4 1934713408
    %v6533 = vunpack.c.0.s8 %v6532
    %v6534 = vlaneseq
    %v6535 = vshrl.u32 %v6534, 7
    %v6536 = vsub.s32 %v6533, %v6535
    %v6537 = vrot.slane %v6529, %v6536
    %v6539 = vunpack.c.l.s4 1934713408
    %v6540 = vunpack.c.0.s8 %v6539
    %v6541 = vlaneseq
    %v6542 = vshrl.u32 %v6541, 7
    %v6543 = vsub.s32 %v6540, %v6542
    %v6544 = vrot.slane %v6530, %v6543
    %v6545 = vcombine.low %v6521, %v6537
    %v6546 = vcombine.high %v6521, %v6537
    %v6547 = vcombine.low %v6528, %v6544
    %v6548 = vcombine.high %v6528, %v6544
    %6549 = vrot.lane.b32.xlu0 %v5953, 64
    %v6550 = vpop.permute.xlu0 %6549
    %6551 = vrot.lane.b32.xlu0 %v5958, 64
    %v6552 = vpop.permute.xlu0 %6551
    %6553 = vrot.lane.b32.xlu0 %v5964, 64
    %v6554 = vpop.permute.xlu0 %6553
    %6555 = vrot.lane.b32.xlu0 %v5966, 64
    %v6556 = vpop.permute.xlu0 %6555
    %6557 = vrot.lane.b32.xlu0 %v5970, 64
    %v6558 = vpop.permute.xlu0 %6557
    %6559 = vrot.lane.b32.xlu0 %v5972, 64
    %v6560 = vpop.permute.xlu0 %6559
    %6561 = vrot.lane.b32.xlu0 %v5976, 64
    %v6562 = vpop.permute.xlu0 %6561
    %6563 = vrot.lane.b32.xlu0 %v5978, 64
    %v6564 = vpop.permute.xlu0 %6563
    %v6573 = vcombine.low %v6550, %v6558
    %v6574 = vcombine.high %v6550, %v6558
    %v6576 = vunpack.c.l.s4 1983009808
    %v6577 = vunpack.c.0.s8 %v6576
    %v6578 = vlaneseq
    %v6579 = vshrl.u32 %v6578, 7
    %v6580 = vsub.s32 %v6577, %v6579
    %v6581 = vrot.slane %v6573, %v6580
    %v6583 = vunpack.c.l.s4 1983009808
    %v6584 = vunpack.c.0.s8 %v6583
    %v6585 = vlaneseq
    %v6586 = vshrl.u32 %v6585, 7
    %v6587 = vsub.s32 %v6584, %v6586
    %v6588 = vrot.slane %v6574, %v6587
    %v6589 = vcombine.low %v6554, %v6562
    %v6590 = vcombine.high %v6554, %v6562
    %v6592 = vunpack.c.l.s4 1983009808
    %v6593 = vunpack.c.0.s8 %v6592
    %v6594 = vlaneseq
    %v6595 = vshrl.u32 %v6594, 7
    %v6596 = vsub.s32 %v6593, %v6595
    %v6597 = vrot.slane %v6589, %v6596
    %v6599 = vunpack.c.l.s4 1983009808
    %v6600 = vunpack.c.0.s8 %v6599
    %v6601 = vlaneseq
    %v6602 = vshrl.u32 %v6601, 7
    %v6603 = vsub.s32 %v6600, %v6602
    %v6604 = vrot.slane %v6590, %v6603
    %v6605 = vcombine.low %v6581, %v6597
    %v6606 = vcombine.high %v6581, %v6597
    %v6608 = vunpack.c.l.s4 1934713408
    %v6609 = vunpack.c.0.s8 %v6608
    %v6610 = vlaneseq
    %v6611 = vshrl.u32 %v6610, 7
    %v6612 = vsub.s32 %v6609, %v6611
    %v6613 = vrot.slane %v6605, %v6612
    %v6615 = vunpack.c.l.s4 1934713408
    %v6616 = vunpack.c.0.s8 %v6615
    %v6617 = vlaneseq
    %v6618 = vshrl.u32 %v6617, 7
    %v6619 = vsub.s32 %v6616, %v6618
    %v6620 = vrot.slane %v6606, %v6619
    %v6621 = vcombine.low %v6588, %v6604
    %v6622 = vcombine.high %v6588, %v6604
    %v6624 = vunpack.c.l.s4 1934713408
    %v6625 = vunpack.c.0.s8 %v6624
    %v6626 = vlaneseq
    %v6627 = vshrl.u32 %v6626, 7
    %v6628 = vsub.s32 %v6625, %v6627
    %v6629 = vrot.slane %v6621, %v6628
    %v6631 = vunpack.c.l.s4 1934713408
    %v6632 = vunpack.c.0.s8 %v6631
    %v6633 = vlaneseq
    %v6634 = vshrl.u32 %v6633, 7
    %v6635 = vsub.s32 %v6632, %v6634
    %v6636 = vrot.slane %v6622, %v6635
    %v6637 = vcombine.high %v6613, 0.0
    %v6638 = vcombine.high %v6620, 0.0
    %v6639 = vcombine.high %v6629, 0.0
    %v6640 = vcombine.high %v6636, 0.0
    %v6641 = vcombine.low %v6552, %v6560
    %v6642 = vcombine.high %v6552, %v6560
    %v6644 = vunpack.c.l.s4 1983009808
    %v6645 = vunpack.c.0.s8 %v6644
    %v6646 = vlaneseq
    %v6647 = vshrl.u32 %v6646, 7
    %v6648 = vsub.s32 %v6645, %v6647
    %v6649 = vrot.slane %v6641, %v6648
    %v6651 = vunpack.c.l.s4 1983009808
    %v6652 = vunpack.c.0.s8 %v6651
    %v6653 = vlaneseq
    %v6654 = vshrl.u32 %v6653, 7
    %v6655 = vsub.s32 %v6652, %v6654
    %v6656 = vrot.slane %v6642, %v6655
    %v6657 = vcombine.low %v6556, %v6564
    %v6658 = vcombine.high %v6556, %v6564
    %v6660 = vunpack.c.l.s4 1983009808
    %v6661 = vunpack.c.0.s8 %v6660
    %v6662 = vlaneseq
    %v6663 = vshrl.u32 %v6662, 7
    %v6664 = vsub.s32 %v6661, %v6663
    %v6665 = vrot.slane %v6657, %v6664
    %v6667 = vunpack.c.l.s4 1983009808
    %v6668 = vunpack.c.0.s8 %v6667
    %v6669 = vlaneseq
    %v6670 = vshrl.u32 %v6669, 7
    %v6671 = vsub.s32 %v6668, %v6670
    %v6672 = vrot.slane %v6658, %v6671
    %v6673 = vcombine.low %v6649, %v6665
    %v6674 = vcombine.high %v6649, %v6665
    %v6676 = vunpack.c.l.s4 1934713408
    %v6677 = vunpack.c.0.s8 %v6676
    %v6678 = vlaneseq
    %v6679 = vshrl.u32 %v6678, 7
    %v6680 = vsub.s32 %v6677, %v6679
    %v6681 = vrot.slane %v6673, %v6680
    %v6683 = vunpack.c.l.s4 1934713408
    %v6684 = vunpack.c.0.s8 %v6683
    %v6685 = vlaneseq
    %v6686 = vshrl.u32 %v6685, 7
    %v6687 = vsub.s32 %v6684, %v6686
    %v6688 = vrot.slane %v6674, %v6687
    %v6689 = vcombine.low %v6656, %v6672
    %v6690 = vcombine.high %v6656, %v6672
    %v6692 = vunpack.c.l.s4 1934713408
    %v6693 = vunpack.c.0.s8 %v6692
    %v6694 = vlaneseq
    %v6695 = vshrl.u32 %v6694, 7
    %v6696 = vsub.s32 %v6693, %v6695
    %v6697 = vrot.slane %v6689, %v6696
    %v6699 = vunpack.c.l.s4 1934713408
    %v6700 = vunpack.c.0.s8 %v6699
    %v6701 = vlaneseq
    %v6702 = vshrl.u32 %v6701, 7
    %v6703 = vsub.s32 %v6700, %v6702
    %v6704 = vrot.slane %v6690, %v6703
    %v6705 = vcombine.high %v6681, 0.0
    %v6706 = vcombine.high %v6688, 0.0
    %v6707 = vcombine.high %v6697, 0.0
    %v6708 = vcombine.high %v6704, 0.0
    %v6709 = vcombine.low %v6613, %v6620
    %v6711 = vunpack.c.l.s4 1983009808
    %v6712 = vunpack.c.0.s8 %v6711
    %v6713 = vlaneseq
    %v6714 = vshrl.u32 %v6713, 7
    %v6715 = vsub.s32 %v6712, %v6714
    %v6716 = vrot.slane %v6709, %v6715
    %v6717 = vcombine.low %v6637, %v6638
    %v6719 = vunpack.c.l.s4 1983009808
    %v6720 = vunpack.c.0.s8 %v6719
    %v6721 = vlaneseq
    %v6722 = vshrl.u32 %v6721, 7
    %v6723 = vsub.s32 %v6720, %v6722
    %v6724 = vrot.slane %v6717, %v6723
    %v6725 = vcombine.low %v6629, %v6636
    %v6727 = vunpack.c.l.s4 1983009808
    %v6728 = vunpack.c.0.s8 %v6727
    %v6729 = vlaneseq
    %v6730 = vshrl.u32 %v6729, 7
    %v6731 = vsub.s32 %v6728, %v6730
    %v6732 = vrot.slane %v6725, %v6731
    %v6733 = vcombine.low %v6639, %v6640
    %v6735 = vunpack.c.l.s4 1983009808
    %v6736 = vunpack.c.0.s8 %v6735
    %v6737 = vlaneseq
    %v6738 = vshrl.u32 %v6737, 7
    %v6739 = vsub.s32 %v6736, %v6738
    %v6740 = vrot.slane %v6733, %v6739
    %v6741 = vcombine.low %v6716, %v6724
    %v6742 = vcombine.high %v6716, %v6724
    %v6744 = vunpack.c.l.s4 1934713408
    %v6745 = vunpack.c.0.s8 %v6744
    %v6746 = vlaneseq
    %v6747 = vshrl.u32 %v6746, 7
    %v6748 = vsub.s32 %v6745, %v6747
    %v6749 = vrot.slane %v6741, %v6748
    %v6751 = vunpack.c.l.s4 1934713408
    %v6752 = vunpack.c.0.s8 %v6751
    %v6753 = vlaneseq
    %v6754 = vshrl.u32 %v6753, 7
    %v6755 = vsub.s32 %v6752, %v6754
    %v6756 = vrot.slane %v6742, %v6755
    %v6757 = vcombine.low %v6732, %v6740
    %v6758 = vcombine.high %v6732, %v6740
    %v6760 = vunpack.c.l.s4 1934713408
    %v6761 = vunpack.c.0.s8 %v6760
    %v6762 = vlaneseq
    %v6763 = vshrl.u32 %v6762, 7
    %v6764 = vsub.s32 %v6761, %v6763
    %v6765 = vrot.slane %v6757, %v6764
    %v6767 = vunpack.c.l.s4 1934713408
    %v6768 = vunpack.c.0.s8 %v6767
    %v6769 = vlaneseq
    %v6770 = vshrl.u32 %v6769, 7
    %v6771 = vsub.s32 %v6768, %v6770
    %v6772 = vrot.slane %v6758, %v6771
    %v6773 = vcombine.low %v6749, %v6765
    %v6774 = vcombine.high %v6749, %v6765
    %v6775 = vcombine.low %v6756, %v6772
    %v6776 = vcombine.high %v6756, %v6772
    %v6777 = vcombine.low %v6681, %v6688
    %v6779 = vunpack.c.l.s4 1983009808
    %v6780 = vunpack.c.0.s8 %v6779
    %v6781 = vlaneseq
    %v6782 = vshrl.u32 %v6781, 7
    %v6783 = vsub.s32 %v6780, %v6782
    %v6784 = vrot.slane %v6777, %v6783
    %v6785 = vcombine.low %v6705, %v6706
    %v6787 = vunpack.c.l.s4 1983009808
    %v6788 = vunpack.c.0.s8 %v6787
    %v6789 = vlaneseq
    %v6790 = vshrl.u32 %v6789, 7
    %v6791 = vsub.s32 %v6788, %v6790
    %v6792 = vrot.slane %v6785, %v6791
    %v6793 = vcombine.low %v6697, %v6704
    %v6795 = vunpack.c.l.s4 1983009808
    %v6796 = vunpack.c.0.s8 %v6795
    %v6797 = vlaneseq
    %v6798 = vshrl.u32 %v6797, 7
    %v6799 = vsub.s32 %v6796, %v6798
    %v6800 = vrot.slane %v6793, %v6799
    %v6801 = vcombine.low %v6707, %v6708
    %v6803 = vunpack.c.l.s4 1983009808
    %v6804 = vunpack.c.0.s8 %v6803
    %v6805 = vlaneseq
    %v6806 = vshrl.u32 %v6805, 7
    %v6807 = vsub.s32 %v6804, %v6806
    %v6808 = vrot.slane %v6801, %v6807
    %v6809 = vcombine.low %v6784, %v6792
    %v6810 = vcombine.high %v6784, %v6792
    %v6812 = vunpack.c.l.s4 1934713408
    %v6813 = vunpack.c.0.s8 %v6812
    %v6814 = vlaneseq
    %v6815 = vshrl.u32 %v6814, 7
    %v6816 = vsub.s32 %v6813, %v6815
    %v6817 = vrot.slane %v6809, %v6816
    %v6819 = vunpack.c.l.s4 1934713408
    %v6820 = vunpack.c.0.s8 %v6819
    %v6821 = vlaneseq
    %v6822 = vshrl.u32 %v6821, 7
    %v6823 = vsub.s32 %v6820, %v6822
    %v6824 = vrot.slane %v6810, %v6823
    %v6825 = vcombine.low %v6800, %v6808
    %v6826 = vcombine.high %v6800, %v6808
    %v6828 = vunpack.c.l.s4 1934713408
    %v6829 = vunpack.c.0.s8 %v6828
    %v6830 = vlaneseq
    %v6831 = vshrl.u32 %v6830, 7
    %v6832 = vsub.s32 %v6829, %v6831
    %v6833 = vrot.slane %v6825, %v6832
    %v6835 = vunpack.c.l.s4 1934713408
    %v6836 = vunpack.c.0.s8 %v6835
    %v6837 = vlaneseq
    %v6838 = vshrl.u32 %v6837, 7
    %v6839 = vsub.s32 %v6836, %v6838
    %v6840 = vrot.slane %v6826, %v6839
    %v6841 = vcombine.low %v6817, %v6833
    %v6842 = vcombine.high %v6817, %v6833
    %v6843 = vcombine.low %v6824, %v6840
    %v6844 = vcombine.high %v6824, %v6840
    %v6846 = vsel %vm2657, %v6181, 0
    %v6849 = vsel %vm2657, %v6477, 0
    %6851 = vmatprep.subr.mxu0 0.0
    %6852 = vmatpush1.xpose.msra.mxu0 %v6849
    %6853 = vmatprep.subr.mxu0 0.0
    %6854 = vmatpush1.xpose.msra.mxu0 0.0
    %6855 = vmatprep.subr.mxu0 0.0
    %6856 = vmatpush1.xpose.msra.mxu0 0.0
    %6857 = vmatprep.subr.mxu0 0.0
    %6858 = vmatpush1.xpose.msra.mxu0 0.0
    %6859 = vmatprep.subr.mxu0 0.0
    %6860 = vmatpush1.xpose.msra.mxu0 0.0
    %6861 = vmatprep.subr.mxu0 0.0
    %6862 = vmatpush1.xpose.msra.mxu0 0.0
    %6863 = vmatprep.subr.mxu0 0.0
    %6864 = vmatpush1.xpose.msra.mxu0 0.0
    %6865 = vmatprep.subr.mxu0 0.0
    %6866 = vmatpush1.xpose.msra.mxu0 0.0
    %6867 = vmatprep.subr.mxu0 0.0
    %6868 = vmatpush1.xpose.msra.mxu0 0.0
    %6869 = vmatprep.subr.mxu0 0.0
    %6870 = vmatpush1.xpose.msra.mxu0 0.0
    %6871 = vmatprep.subr.mxu0 0.0
    %6872 = vmatpush1.xpose.msra.mxu0 0.0
    %6873 = vmatprep.subr.mxu0 0.0
    %6874 = vmatpush1.xpose.msra.mxu0 0.0
    %6875 = vmatprep.subr.mxu0 0.0
    %6876 = vmatpush1.xpose.msra.mxu0 0.0
    %6877 = vmatprep.subr.mxu0 0.0
    %6878 = vmatpush1.xpose.msra.mxu0 0.0
    %6879 = vmatprep.subr.mxu0 0.0
    %6880 = vmatpush1.xpose.msra.mxu0 0.0
    %6881 = vmatprep.subr.mxu0 0.0
    %6882 = vmatpush1.xpose.msra.mxu0 0.0
    %6883 = vmatprep.subr.mxu0 0.0
    %6884 = vmatpush1.xpose.msra.mxu0 0.0
    %6885 = vmatprep.subr.mxu0 0.0
    %6886 = vmatpush1.xpose.msra.mxu0 0.0
    %6887 = vmatprep.subr.mxu0 0.0
    %6888 = vmatpush1.xpose.msra.mxu0 0.0
    %6889 = vmatprep.subr.mxu0 0.0
    %6890 = vmatpush1.xpose.msra.mxu0 0.0
    %6891 = vmatprep.subr.mxu0 0.0
    %6892 = vmatpush1.xpose.msra.mxu0 0.0
    %6893 = vmatprep.subr.mxu0 0.0
    %6894 = vmatpush1.xpose.msra.mxu0 0.0
    %6895 = vmatprep.subr.mxu0 0.0
    %6896 = vmatpush1.xpose.msra.mxu0 0.0
    %6897 = vmatprep.subr.mxu0 0.0
    %6898 = vmatpush1.xpose.msra.mxu0 0.0
    %6899 = vmatprep.subr.mxu0 0.0
    %6900 = vmatpush1.xpose.msra.mxu0 0.0
    %6901 = vmatprep.subr.mxu0 0.0
    %6902 = vmatpush1.xpose.msra.mxu0 0.0
    %6903 = vmatprep.subr.mxu0 0.0
    %6904 = vmatpush1.xpose.msra.mxu0 0.0
    %6905 = vmatprep.subr.mxu0 0.0
    %6906 = vmatpush1.xpose.msra.mxu0 0.0
    %6907 = vmatprep.subr.mxu0 0.0
    %6908 = vmatpush1.xpose.msra.mxu0 0.0
    %6909 = vmatprep.subr.mxu0 0.0
    %6910 = vmatpush1.xpose.msra.mxu0 0.0
    %6911 = vmatprep.subr.mxu0 0.0
    %6912 = vmatpush1.xpose.msra.mxu0 0.0
    %6913 = vmatprep.subr.mxu0 0.0
    %6914 = vmatpush1.xpose.msra.mxu0 0.0
    %6915 = vmatprep.mubr.f32.mxu0 0.0
    %6916 = vmatmul.mubr.f32.gmra.mrb[0].mxu0 %v6846
    %v6917 = vpop.f32.mrb[0].mxu0
    %v6918 = vadd.f32 0.0, %v6917
    %v6919 = vpop.f32.mrb[0].mxu0
    %6920 = vdwg.mxu0
    %v6922 = vsel %vm2657, %v6182, 0
    %v6925 = vsel %vm2657, %v6478, 0
    %6927 = vmatprep.subr.mxu0 0.0
    %6928 = vmatpush1.xpose.msra.mxu0 %v6925
    %6929 = vmatprep.subr.mxu0 0.0
    %6930 = vmatpush1.xpose.msra.mxu0 0.0
    %6931 = vmatprep.subr.mxu0 0.0
    %6932 = vmatpush1.xpose.msra.mxu0 0.0
    %6933 = vmatprep.subr.mxu0 0.0
    %6934 = vmatpush1.xpose.msra.mxu0 0.0
    %6935 = vmatprep.subr.mxu0 0.0
    %6936 = vmatpush1.xpose.msra.mxu0 0.0
    %6937 = vmatprep.subr.mxu0 0.0
    %6938 = vmatpush1.xpose.msra.mxu0 0.0
    %6939 = vmatprep.subr.mxu0 0.0
    %6940 = vmatpush1.xpose.msra.mxu0 0.0
    %6941 = vmatprep.subr.mxu0 0.0
    %6942 = vmatpush1.xpose.msra.mxu0 0.0
    %6943 = vmatprep.subr.mxu0 0.0
    %6944 = vmatpush1.xpose.msra.mxu0 0.0
    %6945 = vmatprep.subr.mxu0 0.0
    %6946 = vmatpush1.xpose.msra.mxu0 0.0
    %6947 = vmatprep.subr.mxu0 0.0
    %6948 = vmatpush1.xpose.msra.mxu0 0.0
    %6949 = vmatprep.subr.mxu0 0.0
    %6950 = vmatpush1.xpose.msra.mxu0 0.0
    %6951 = vmatprep.subr.mxu0 0.0
    %6952 = vmatpush1.xpose.msra.mxu0 0.0
    %6953 = vmatprep.subr.mxu0 0.0
    %6954 = vmatpush1.xpose.msra.mxu0 0.0
    %6955 = vmatprep.subr.mxu0 0.0
    %6956 = vmatpush1.xpose.msra.mxu0 0.0
    %6957 = vmatprep.subr.mxu0 0.0
    %6958 = vmatpush1.xpose.msra.mxu0 0.0
    %6959 = vmatprep.subr.mxu0 0.0
    %6960 = vmatpush1.xpose.msra.mxu0 0.0
    %6961 = vmatprep.subr.mxu0 0.0
    %6962 = vmatpush1.xpose.msra.mxu0 0.0
    %6963 = vmatprep.subr.mxu0 0.0
    %6964 = vmatpush1.xpose.msra.mxu0 0.0
    %6965 = vmatprep.subr.mxu0 0.0
    %6966 = vmatpush1.xpose.msra.mxu0 0.0
    %6967 = vmatprep.subr.mxu0 0.0
    %6968 = vmatpush1.xpose.msra.mxu0 0.0
    %6969 = vmatprep.subr.mxu0 0.0
    %6970 = vmatpush1.xpose.msra.mxu0 0.0
    %6971 = vmatprep.subr.mxu0 0.0
    %6972 = vmatpush1.xpose.msra.mxu0 0.0
    %6973 = vmatprep.subr.mxu0 0.0
    %6974 = vmatpush1.xpose.msra.mxu0 0.0
    %6975 = vmatprep.subr.mxu0 0.0
    %6976 = vmatpush1.xpose.msra.mxu0 0.0
    %6977 = vmatprep.subr.mxu0 0.0
    %6978 = vmatpush1.xpose.msra.mxu0 0.0
    %6979 = vmatprep.subr.mxu0 0.0
    %6980 = vmatpush1.xpose.msra.mxu0 0.0
    %6981 = vmatprep.subr.mxu0 0.0
    %6982 = vmatpush1.xpose.msra.mxu0 0.0
    %6983 = vmatprep.subr.mxu0 0.0
    %6984 = vmatpush1.xpose.msra.mxu0 0.0
    %6985 = vmatprep.subr.mxu0 0.0
    %6986 = vmatpush1.xpose.msra.mxu0 0.0
    %6987 = vmatprep.subr.mxu0 0.0
    %6988 = vmatpush1.xpose.msra.mxu0 0.0
    %6989 = vmatprep.subr.mxu0 0.0
    %6990 = vmatpush1.xpose.msra.mxu0 0.0
    %6991 = vmatprep.mubr.f32.mxu0 0.0
    %6992 = vmatmul.mubr.f32.gmra.mrb[0].mxu0 %v6922
    %v6993 = vpop.f32.mrb[0].mxu0
    %v6994 = vadd.f32 0.0, %v6993
    %v6995 = vpop.f32.mrb[0].mxu0
    %6996 = vdwg.mxu0
    %v6998 = vsel %vm2657, %v6183, 0
    %v7001 = vsel %vm2657, %v6479, 0
    %7003 = vmatprep.subr.mxu0 0.0
    %7004 = vmatpush1.xpose.msra.mxu0 %v7001
    %7005 = vmatprep.subr.mxu0 0.0
    %7006 = vmatpush1.xpose.msra.mxu0 0.0
    %7007 = vmatprep.subr.mxu0 0.0
    %7008 = vmatpush1.xpose.msra.mxu0 0.0
    %7009 = vmatprep.subr.mxu0 0.0
    %7010 = vmatpush1.xpose.msra.mxu0 0.0
    %7011 = vmatprep.subr.mxu0 0.0
    %7012 = vmatpush1.xpose.msra.mxu0 0.0
    %7013 = vmatprep.subr.mxu0 0.0
    %7014 = vmatpush1.xpose.msra.mxu0 0.0
    %7015 = vmatprep.subr.mxu0 0.0
    %7016 = vmatpush1.xpose.msra.mxu0 0.0
    %7017 = vmatprep.subr.mxu0 0.0
    %7018 = vmatpush1.xpose.msra.mxu0 0.0
    %7019 = vmatprep.subr.mxu0 0.0
    %7020 = vmatpush1.xpose.msra.mxu0 0.0
    %7021 = vmatprep.subr.mxu0 0.0
    %7022 = vmatpush1.xpose.msra.mxu0 0.0
    %7023 = vmatprep.subr.mxu0 0.0
    %7024 = vmatpush1.xpose.msra.mxu0 0.0
    %7025 = vmatprep.subr.mxu0 0.0
    %7026 = vmatpush1.xpose.msra.mxu0 0.0
    %7027 = vmatprep.subr.mxu0 0.0
    %7028 = vmatpush1.xpose.msra.mxu0 0.0
    %7029 = vmatprep.subr.mxu0 0.0
    %7030 = vmatpush1.xpose.msra.mxu0 0.0
    %7031 = vmatprep.subr.mxu0 0.0
    %7032 = vmatpush1.xpose.msra.mxu0 0.0
    %7033 = vmatprep.subr.mxu0 0.0
    %7034 = vmatpush1.xpose.msra.mxu0 0.0
    %7035 = vmatprep.subr.mxu0 0.0
    %7036 = vmatpush1.xpose.msra.mxu0 0.0
    %7037 = vmatprep.subr.mxu0 0.0
    %7038 = vmatpush1.xpose.msra.mxu0 0.0
    %7039 = vmatprep.subr.mxu0 0.0
    %7040 = vmatpush1.xpose.msra.mxu0 0.0
    %7041 = vmatprep.subr.mxu0 0.0
    %7042 = vmatpush1.xpose.msra.mxu0 0.0
    %7043 = vmatprep.subr.mxu0 0.0
    %7044 = vmatpush1.xpose.msra.mxu0 0.0
    %7045 = vmatprep.subr.mxu0 0.0
    %7046 = vmatpush1.xpose.msra.mxu0 0.0
    %7047 = vmatprep.subr.mxu0 0.0
    %7048 = vmatpush1.xpose.msra.mxu0 0.0
    %7049 = vmatprep.subr.mxu0 0.0
    %7050 = vmatpush1.xpose.msra.mxu0 0.0
    %7051 = vmatprep.subr.mxu0 0.0
    %7052 = vmatpush1.xpose.msra.mxu0 0.0
    %7053 = vmatprep.subr.mxu0 0.0
    %7054 = vmatpush1.xpose.msra.mxu0 0.0
    %7055 = vmatprep.subr.mxu0 0.0
    %7056 = vmatpush1.xpose.msra.mxu0 0.0
    %7057 = vmatprep.subr.mxu0 0.0
    %7058 = vmatpush1.xpose.msra.mxu0 0.0
    %7059 = vmatprep.subr.mxu0 0.0
    %7060 = vmatpush1.xpose.msra.mxu0 0.0
    %7061 = vmatprep.subr.mxu0 0.0
    %7062 = vmatpush1.xpose.msra.mxu0 0.0
    %7063 = vmatprep.subr.mxu0 0.0
    %7064 = vmatpush1.xpose.msra.mxu0 0.0
    %7065 = vmatprep.subr.mxu0 0.0
    %7066 = vmatpush1.xpose.msra.mxu0 0.0
    %7067 = vmatprep.mubr.f32.mxu0 0.0
    %7068 = vmatmul.mubr.f32.gmra.mrb[0].mxu0 %v6998
    %v7069 = vpop.f32.mrb[0].mxu0
    %v7070 = vadd.f32 0.0, %v7069
    %v7071 = vpop.f32.mrb[0].mxu0
    %7072 = vdwg.mxu0
    %v7074 = vsel %vm2657, %v6184, 0
    %v7077 = vsel %vm2657, %v6480, 0
    %7079 = vmatprep.subr.mxu0 0.0
    %7080 = vmatpush1.xpose.msra.mxu0 %v7077
    %7081 = vmatprep.subr.mxu0 0.0
    %7082 = vmatpush1.xpose.msra.mxu0 0.0
    %7083 = vmatprep.subr.mxu0 0.0
    %7084 = vmatpush1.xpose.msra.mxu0 0.0
    %7085 = vmatprep.subr.mxu0 0.0
    %7086 = vmatpush1.xpose.msra.mxu0 0.0
    %7087 = vmatprep.subr.mxu0 0.0
    %7088 = vmatpush1.xpose.msra.mxu0 0.0
    %7089 = vmatprep.subr.mxu0 0.0
    %7090 = vmatpush1.xpose.msra.mxu0 0.0
    %7091 = vmatprep.subr.mxu0 0.0
    %7092 = vmatpush1.xpose.msra.mxu0 0.0
    %7093 = vmatprep.subr.mxu0 0.0
    %7094 = vmatpush1.xpose.msra.mxu0 0.0
    %7095 = vmatprep.subr.mxu0 0.0
    %7096 = vmatpush1.xpose.msra.mxu0 0.0
    %7097 = vmatprep.subr.mxu0 0.0
    %7098 = vmatpush1.xpose.msra.mxu0 0.0
    %7099 = vmatprep.subr.mxu0 0.0
    %7100 = vmatpush1.xpose.msra.mxu0 0.0
    %7101 = vmatprep.subr.mxu0 0.0
    %7102 = vmatpush1.xpose.msra.mxu0 0.0
    %7103 = vmatprep.subr.mxu0 0.0
    %7104 = vmatpush1.xpose.msra.mxu0 0.0
    %7105 = vmatprep.subr.mxu0 0.0
    %7106 = vmatpush1.xpose.msra.mxu0 0.0
    %7107 = vmatprep.subr.mxu0 0.0
    %7108 = vmatpush1.xpose.msra.mxu0 0.0
    %7109 = vmatprep.subr.mxu0 0.0
    %7110 = vmatpush1.xpose.msra.mxu0 0.0
    %7111 = vmatprep.subr.mxu0 0.0
    %7112 = vmatpush1.xpose.msra.mxu0 0.0
    %7113 = vmatprep.subr.mxu0 0.0
    %7114 = vmatpush1.xpose.msra.mxu0 0.0
    %7115 = vmatprep.subr.mxu0 0.0
    %7116 = vmatpush1.xpose.msra.mxu0 0.0
    %7117 = vmatprep.subr.mxu0 0.0
    %7118 = vmatpush1.xpose.msra.mxu0 0.0
    %7119 = vmatprep.subr.mxu0 0.0
    %7120 = vmatpush1.xpose.msra.mxu0 0.0
    %7121 = vmatprep.subr.mxu0 0.0
    %7122 = vmatpush1.xpose.msra.mxu0 0.0
    %7123 = vmatprep.subr.mxu0 0.0
    %7124 = vmatpush1.xpose.msra.mxu0 0.0
    %7125 = vmatprep.subr.mxu0 0.0
    %7126 = vmatpush1.xpose.msra.mxu0 0.0
    %7127 = vmatprep.subr.mxu0 0.0
    %7128 = vmatpush1.xpose.msra.mxu0 0.0
    %7129 = vmatprep.subr.mxu0 0.0
    %7130 = vmatpush1.xpose.msra.mxu0 0.0
    %7131 = vmatprep.subr.mxu0 0.0
    %7132 = vmatpush1.xpose.msra.mxu0 0.0
    %7133 = vmatprep.subr.mxu0 0.0
    %7134 = vmatpush1.xpose.msra.mxu0 0.0
    %7135 = vmatprep.subr.mxu0 0.0
    %7136 = vmatpush1.xpose.msra.mxu0 0.0
    %7137 = vmatprep.subr.mxu0 0.0
    %7138 = vmatpush1.xpose.msra.mxu0 0.0
    %7139 = vmatprep.subr.mxu0 0.0
    %7140 = vmatpush1.xpose.msra.mxu0 0.0
    %7141 = vmatprep.subr.mxu0 0.0
    %7142 = vmatpush1.xpose.msra.mxu0 0.0
    %7143 = vmatprep.mubr.f32.mxu0 0.0
    %7144 = vmatmul.mubr.f32.gmra.mrb[0].mxu0 %v7074
    %v7145 = vpop.f32.mrb[0].mxu0
    %v7146 = vadd.f32 0.0, %v7145
    %v7147 = vpop.f32.mrb[0].mxu0
    %7148 = vdwg.mxu0
    %v7150 = vsel %vm2657, %v6249, 0
    %v7153 = vsel %vm2657, %v6545, 0
    %7155 = vmatprep.subr.mxu0 0.0
    %7156 = vmatpush1.xpose.msra.mxu0 %v7153
    %7157 = vmatprep.subr.mxu0 0.0
    %7158 = vmatpush1.xpose.msra.mxu0 0.0
    %7159 = vmatprep.subr.mxu0 0.0
    %7160 = vmatpush1.xpose.msra.mxu0 0.0
    %7161 = vmatprep.subr.mxu0 0.0
    %7162 = vmatpush1.xpose.msra.mxu0 0.0
    %7163 = vmatprep.subr.mxu0 0.0
    %7164 = vmatpush1.xpose.msra.mxu0 0.0
    %7165 = vmatprep.subr.mxu0 0.0
    %7166 = vmatpush1.xpose.msra.mxu0 0.0
    %7167 = vmatprep.subr.mxu0 0.0
    %7168 = vmatpush1.xpose.msra.mxu0 0.0
    %7169 = vmatprep.subr.mxu0 0.0
    %7170 = vmatpush1.xpose.msra.mxu0 0.0
    %7171 = vmatprep.subr.mxu0 0.0
    %7172 = vmatpush1.xpose.msra.mxu0 0.0
    %7173 = vmatprep.subr.mxu0 0.0
    %7174 = vmatpush1.xpose.msra.mxu0 0.0
    %7175 = vmatprep.subr.mxu0 0.0
    %7176 = vmatpush1.xpose.msra.mxu0 0.0
    %7177 = vmatprep.subr.mxu0 0.0
    %7178 = vmatpush1.xpose.msra.mxu0 0.0
    %7179 = vmatprep.subr.mxu0 0.0
    %7180 = vmatpush1.xpose.msra.mxu0 0.0
    %7181 = vmatprep.subr.mxu0 0.0
    %7182 = vmatpush1.xpose.msra.mxu0 0.0
    %7183 = vmatprep.subr.mxu0 0.0
    %7184 = vmatpush1.xpose.msra.mxu0 0.0
    %7185 = vmatprep.subr.mxu0 0.0
    %7186 = vmatpush1.xpose.msra.mxu0 0.0
    %7187 = vmatprep.subr.mxu0 0.0
    %7188 = vmatpush1.xpose.msra.mxu0 0.0
    %7189 = vmatprep.subr.mxu0 0.0
    %7190 = vmatpush1.xpose.msra.mxu0 0.0
    %7191 = vmatprep.subr.mxu0 0.0
    %7192 = vmatpush1.xpose.msra.mxu0 0.0
    %7193 = vmatprep.subr.mxu0 0.0
    %7194 = vmatpush1.xpose.msra.mxu0 0.0
    %7195 = vmatprep.subr.mxu0 0.0
    %7196 = vmatpush1.xpose.msra.mxu0 0.0
    %7197 = vmatprep.subr.mxu0 0.0
    %7198 = vmatpush1.xpose.msra.mxu0 0.0
    %7199 = vmatprep.subr.mxu0 0.0
    %7200 = vmatpush1.xpose.msra.mxu0 0.0
    %7201 = vmatprep.subr.mxu0 0.0
    %7202 = vmatpush1.xpose.msra.mxu0 0.0
    %7203 = vmatprep.subr.mxu0 0.0
    %7204 = vmatpush1.xpose.msra.mxu0 0.0
    %7205 = vmatprep.subr.mxu0 0.0
    %7206 = vmatpush1.xpose.msra.mxu0 0.0
    %7207 = vmatprep.subr.mxu0 0.0
    %7208 = vmatpush1.xpose.msra.mxu0 0.0
    %7209 = vmatprep.subr.mxu0 0.0
    %7210 = vmatpush1.xpose.msra.mxu0 0.0
    %7211 = vmatprep.subr.mxu0 0.0
    %7212 = vmatpush1.xpose.msra.mxu0 0.0
    %7213 = vmatprep.subr.mxu0 0.0
    %7214 = vmatpush1.xpose.msra.mxu0 0.0
    %7215 = vmatprep.subr.mxu0 0.0
    %7216 = vmatpush1.xpose.msra.mxu0 0.0
    %7217 = vmatprep.subr.mxu0 0.0
    %7218 = vmatpush1.xpose.msra.mxu0 0.0
    %7219 = vmatprep.mubr.f32.mxu0 0.0
    %7220 = vmatmul.mubr.f32.gmra.mrb[0].mxu0 %v7150
    %v7221 = vpop.f32.mrb[0].mxu0
    %v7222 = vadd.f32 0.0, %v7221
    %v7223 = vpop.f32.mrb[0].mxu0
    %7224 = vdwg.mxu0
    %v7226 = vsel %vm2657, %v6250, 0
    %v7229 = vsel %vm2657, %v6546, 0
    %7231 = vmatprep.subr.mxu0 0.0
    %7232 = vmatpush1.xpose.msra.mxu0 %v7229
    %7233 = vmatprep.subr.mxu0 0.0
    %7234 = vmatpush1.xpose.msra.mxu0 0.0
    %7235 = vmatprep.subr.mxu0 0.0
    %7236 = vmatpush1.xpose.msra.mxu0 0.0
    %7237 = vmatprep.subr.mxu0 0.0
    %7238 = vmatpush1.xpose.msra.mxu0 0.0
    %7239 = vmatprep.subr.mxu0 0.0
    %7240 = vmatpush1.xpose.msra.mxu0 0.0
    %7241 = vmatprep.subr.mxu0 0.0
    %7242 = vmatpush1.xpose.msra.mxu0 0.0
    %7243 = vmatprep.subr.mxu0 0.0
    %7244 = vmatpush1.xpose.msra.mxu0 0.0
    %7245 = vmatprep.subr.mxu0 0.0
    %7246 = vmatpush1.xpose.msra.mxu0 0.0
    %7247 = vmatprep.subr.mxu0 0.0
    %7248 = vmatpush1.xpose.msra.mxu0 0.0
    %7249 = vmatprep.subr.mxu0 0.0
    %7250 = vmatpush1.xpose.msra.mxu0 0.0
    %7251 = vmatprep.subr.mxu0 0.0
    %7252 = vmatpush1.xpose.msra.mxu0 0.0
    %7253 = vmatprep.subr.mxu0 0.0
    %7254 = vmatpush1.xpose.msra.mxu0 0.0
    %7255 = vmatprep.subr.mxu0 0.0
    %7256 = vmatpush1.xpose.msra.mxu0 0.0
    %7257 = vmatprep.subr.mxu0 0.0
    %7258 = vmatpush1.xpose.msra.mxu0 0.0
    %7259 = vmatprep.subr.mxu0 0.0
    %7260 = vmatpush1.xpose.msra.mxu0 0.0
    %7261 = vmatprep.subr.mxu0 0.0
    %7262 = vmatpush1.xpose.msra.mxu0 0.0
    %7263 = vmatprep.subr.mxu0 0.0
    %7264 = vmatpush1.xpose.msra.mxu0 0.0
    %7265 = vmatprep.subr.mxu0 0.0
    %7266 = vmatpush1.xpose.msra.mxu0 0.0
    %7267 = vmatprep.subr.mxu0 0.0
    %7268 = vmatpush1.xpose.msra.mxu0 0.0
    %7269 = vmatprep.subr.mxu0 0.0
    %7270 = vmatpush1.xpose.msra.mxu0 0.0
    %7271 = vmatprep.subr.mxu0 0.0
    %7272 = vmatpush1.xpose.msra.mxu0 0.0
    %7273 = vmatprep.subr.mxu0 0.0
    %7274 = vmatpush1.xpose.msra.mxu0 0.0
    %7275 = vmatprep.subr.mxu0 0.0
    %7276 = vmatpush1.xpose.msra.mxu0 0.0
    %7277 = vmatprep.subr.mxu0 0.0
    %7278 = vmatpush1.xpose.msra.mxu0 0.0
    %7279 = vmatprep.subr.mxu0 0.0
    %7280 = vmatpush1.xpose.msra.mxu0 0.0
    %7281 = vmatprep.subr.mxu0 0.0
    %7282 = vmatpush1.xpose.msra.mxu0 0.0
    %7283 = vmatprep.subr.mxu0 0.0
    %7284 = vmatpush1.xpose.msra.mxu0 0.0
    %7285 = vmatprep.subr.mxu0 0.0
    %7286 = vmatpush1.xpose.msra.mxu0 0.0
    %7287 = vmatprep.subr.mxu0 0.0
    %7288 = vmatpush1.xpose.msra.mxu0 0.0
    %7289 = vmatprep.subr.mxu0 0.0
    %7290 = vmatpush1.xpose.msra.mxu0 0.0
    %7291 = vmatprep.subr.mxu0 0.0
    %7292 = vmatpush1.xpose.msra.mxu0 0.0
    %7293 = vmatprep.subr.mxu0 0.0
    %7294 = vmatpush1.xpose.msra.mxu0 0.0
    %7295 = vmatprep.mubr.f32.mxu0 0.0
    %7296 = vmatmul.mubr.f32.gmra.mrb[0].mxu0 %v7226
    %v7297 = vpop.f32.mrb[0].mxu0
    %v7298 = vadd.f32 0.0, %v7297
    %v7299 = vpop.f32.mrb[0].mxu0
    %7300 = vdwg.mxu0
    %v7302 = vsel %vm2657, %v6251, 0
    %v7305 = vsel %vm2657, %v6547, 0
    %7307 = vmatprep.subr.mxu0 0.0
    %7308 = vmatpush1.xpose.msra.mxu0 %v7305
    %7309 = vmatprep.subr.mxu0 0.0
    %7310 = vmatpush1.xpose.msra.mxu0 0.0
    %7311 = vmatprep.subr.mxu0 0.0
    %7312 = vmatpush1.xpose.msra.mxu0 0.0
    %7313 = vmatprep.subr.mxu0 0.0
    %7314 = vmatpush1.xpose.msra.mxu0 0.0
    %7315 = vmatprep.subr.mxu0 0.0
    %7316 = vmatpush1.xpose.msra.mxu0 0.0
    %7317 = vmatprep.subr.mxu0 0.0
    %7318 = vmatpush1.xpose.msra.mxu0 0.0
    %7319 = vmatprep.subr.mxu0 0.0
    %7320 = vmatpush1.xpose.msra.mxu0 0.0
    %7321 = vmatprep.subr.mxu0 0.0
    %7322 = vmatpush1.xpose.msra.mxu0 0.0
    %7323 = vmatprep.subr.mxu0 0.0
    %7324 = vmatpush1.xpose.msra.mxu0 0.0
    %7325 = vmatprep.subr.mxu0 0.0
    %7326 = vmatpush1.xpose.msra.mxu0 0.0
    %7327 = vmatprep.subr.mxu0 0.0
    %7328 = vmatpush1.xpose.msra.mxu0 0.0
    %7329 = vmatprep.subr.mxu0 0.0
    %7330 = vmatpush1.xpose.msra.mxu0 0.0
    %7331 = vmatprep.subr.mxu0 0.0
    %7332 = vmatpush1.xpose.msra.mxu0 0.0
    %7333 = vmatprep.subr.mxu0 0.0
    %7334 = vmatpush1.xpose.msra.mxu0 0.0
    %7335 = vmatprep.subr.mxu0 0.0
    %7336 = vmatpush1.xpose.msra.mxu0 0.0
    %7337 = vmatprep.subr.mxu0 0.0
    %7338 = vmatpush1.xpose.msra.mxu0 0.0
    %7339 = vmatprep.subr.mxu0 0.0
    %7340 = vmatpush1.xpose.msra.mxu0 0.0
    %7341 = vmatprep.subr.mxu0 0.0
    %7342 = vmatpush1.xpose.msra.mxu0 0.0
    %7343 = vmatprep.subr.mxu0 0.0
    %7344 = vmatpush1.xpose.msra.mxu0 0.0
    %7345 = vmatprep.subr.mxu0 0.0
    %7346 = vmatpush1.xpose.msra.mxu0 0.0
    %7347 = vmatprep.subr.mxu0 0.0
    %7348 = vmatpush1.xpose.msra.mxu0 0.0
    %7349 = vmatprep.subr.mxu0 0.0
    %7350 = vmatpush1.xpose.msra.mxu0 0.0
    %7351 = vmatprep.subr.mxu0 0.0
    %7352 = vmatpush1.xpose.msra.mxu0 0.0
    %7353 = vmatprep.subr.mxu0 0.0
    %7354 = vmatpush1.xpose.msra.mxu0 0.0
    %7355 = vmatprep.subr.mxu0 0.0
    %7356 = vmatpush1.xpose.msra.mxu0 0.0
    %7357 = vmatprep.subr.mxu0 0.0
    %7358 = vmatpush1.xpose.msra.mxu0 0.0
    %7359 = vmatprep.subr.mxu0 0.0
    %7360 = vmatpush1.xpose.msra.mxu0 0.0
    %7361 = vmatprep.subr.mxu0 0.0
    %7362 = vmatpush1.xpose.msra.mxu0 0.0
    %7363 = vmatprep.subr.mxu0 0.0
    %7364 = vmatpush1.xpose.msra.mxu0 0.0
    %7365 = vmatprep.subr.mxu0 0.0
    %7366 = vmatpush1.xpose.msra.mxu0 0.0
    %7367 = vmatprep.subr.mxu0 0.0
    %7368 = vmatpush1.xpose.msra.mxu0 0.0
    %7369 = vmatprep.subr.mxu0 0.0
    %7370 = vmatpush1.xpose.msra.mxu0 0.0
    %7371 = vmatprep.mubr.f32.mxu0 0.0
    %7372 = vmatmul.mubr.f32.gmra.mrb[0].mxu0 %v7302
    %v7373 = vpop.f32.mrb[0].mxu0
    %v7374 = vadd.f32 0.0, %v7373
    %v7375 = vpop.f32.mrb[0].mxu0
    %7376 = vdwg.mxu0
    %v7378 = vsel %vm2657, %v6252, 0
    %v7381 = vsel %vm2657, %v6548, 0
    %7383 = vmatprep.subr.mxu0 0.0
    %7384 = vmatpush1.xpose.msra.mxu0 %v7381
    %7385 = vmatprep.subr.mxu0 0.0
    %7386 = vmatpush1.xpose.msra.mxu0 0.0
    %7387 = vmatprep.subr.mxu0 0.0
    %7388 = vmatpush1.xpose.msra.mxu0 0.0
    %7389 = vmatprep.subr.mxu0 0.0
    %7390 = vmatpush1.xpose.msra.mxu0 0.0
    %7391 = vmatprep.subr.mxu0 0.0
    %7392 = vmatpush1.xpose.msra.mxu0 0.0
    %7393 = vmatprep.subr.mxu0 0.0
    %7394 = vmatpush1.xpose.msra.mxu0 0.0
    %7395 = vmatprep.subr.mxu0 0.0
    %7396 = vmatpush1.xpose.msra.mxu0 0.0
    %7397 = vmatprep.subr.mxu0 0.0
    %7398 = vmatpush1.xpose.msra.mxu0 0.0
    %7399 = vmatprep.subr.mxu0 0.0
    %7400 = vmatpush1.xpose.msra.mxu0 0.0
    %7401 = vmatprep.subr.mxu0 0.0
    %7402 = vmatpush1.xpose.msra.mxu0 0.0
    %7403 = vmatprep.subr.mxu0 0.0
    %7404 = vmatpush1.xpose.msra.mxu0 0.0
    %7405 = vmatprep.subr.mxu0 0.0
    %7406 = vmatpush1.xpose.msra.mxu0 0.0
    %7407 = vmatprep.subr.mxu0 0.0
    %7408 = vmatpush1.xpose.msra.mxu0 0.0
    %7409 = vmatprep.subr.mxu0 0.0
    %7410 = vmatpush1.xpose.msra.mxu0 0.0
    %7411 = vmatprep.subr.mxu0 0.0
    %7412 = vmatpush1.xpose.msra.mxu0 0.0
    %7413 = vmatprep.subr.mxu0 0.0
    %7414 = vmatpush1.xpose.msra.mxu0 0.0
    %7415 = vmatprep.subr.mxu0 0.0
    %7416 = vmatpush1.xpose.msra.mxu0 0.0
    %7417 = vmatprep.subr.mxu0 0.0
    %7418 = vmatpush1.xpose.msra.mxu0 0.0
    %7419 = vmatprep.subr.mxu0 0.0
    %7420 = vmatpush1.xpose.msra.mxu0 0.0
    %7421 = vmatprep.subr.mxu0 0.0
    %7422 = vmatpush1.xpose.msra.mxu0 0.0
    %7423 = vmatprep.subr.mxu0 0.0
    %7424 = vmatpush1.xpose.msra.mxu0 0.0
    %7425 = vmatprep.subr.mxu0 0.0
    %7426 = vmatpush1.xpose.msra.mxu0 0.0
    %7427 = vmatprep.subr.mxu0 0.0
    %7428 = vmatpush1.xpose.msra.mxu0 0.0
    %7429 = vmatprep.subr.mxu0 0.0
    %7430 = vmatpush1.xpose.msra.mxu0 0.0
    %7431 = vmatprep.subr.mxu0 0.0
    %7432 = vmatpush1.xpose.msra.mxu0 0.0
    %7433 = vmatprep.subr.mxu0 0.0
    %7434 = vmatpush1.xpose.msra.mxu0 0.0
    %7435 = vmatprep.subr.mxu0 0.0
    %7436 = vmatpush1.xpose.msra.mxu0 0.0
    %7437 = vmatprep.subr.mxu0 0.0
    %7438 = vmatpush1.xpose.msra.mxu0 0.0
    %7439 = vmatprep.subr.mxu0 0.0
    %7440 = vmatpush1.xpose.msra.mxu0 0.0
    %7441 = vmatprep.subr.mxu0 0.0
    %7442 = vmatpush1.xpose.msra.mxu0 0.0
    %7443 = vmatprep.subr.mxu0 0.0
    %7444 = vmatpush1.xpose.msra.mxu0 0.0
    %7445 = vmatprep.subr.mxu0 0.0
    %7446 = vmatpush1.xpose.msra.mxu0 0.0
    %7447 = vmatprep.mubr.f32.mxu0 0.0
    %7448 = vmatmul.mubr.f32.gmra.mrb[0].mxu0 %v7378
    %v7449 = vpop.f32.mrb[0].mxu0
    %v7450 = vadd.f32 0.0, %v7449
    %v7451 = vpop.f32.mrb[0].mxu0
    %7452 = vdwg.mxu0
    %v7453 = vmul.f32 %v6918, 0.35355338
    %v7454 = vmul.f32 %v6994, 0.35355338
    %v7455 = vmul.f32 %v7070, 0.35355338
    %v7456 = vmul.f32 %v7146, 0.35355338
    %v7457 = vmul.f32 %v7222, 0.35355338
    %v7458 = vmul.f32 %v7298, 0.35355338
    %v7459 = vmul.f32 %v7374, 0.35355338
    %v7460 = vmul.f32 %v7450, 0.35355338
    %v7461 = vsel %vm3275, %v7453, -1e+30
    %v7462 = vsel %vm3275, %v7454, -1e+30
    %v7463 = vsel %vm3275, %v7455, -1e+30
    %v7464 = vsel %vm3275, %v7456, -1e+30
    %v7465 = vsel %vm3275, %v7457, -1e+30
    %v7466 = vsel %vm3275, %v7458, -1e+30
    %v7467 = vsel %vm3275, %v7459, -1e+30
    %v7468 = vsel %vm3275, %v7460, -1e+30
    %v7469 = vsel %vm2657, %v7461, -inf
    %7470 = vmax.xlane.f32.xlu0 %v7469
    %v7471 = vpop.xlane.xlu0 %7470
    %v7472 = vsel %vm2657, %v7462, -inf
    %7473 = vmax.xlane.f32.xlu0 %v7472
    %v7474 = vpop.xlane.xlu0 %7473
    %v7475 = vsel %vm2657, %v7463, -inf
    %7476 = vmax.xlane.f32.xlu0 %v7475
    %v7477 = vpop.xlane.xlu0 %7476
    %v7478 = vsel %vm2657, %v7464, -inf
    %7479 = vmax.xlane.f32.xlu0 %v7478
    %v7480 = vpop.xlane.xlu0 %7479
    %v7481 = vsel %vm2657, %v7465, -inf
    %7482 = vmax.xlane.f32.xlu0 %v7481
    %v7483 = vpop.xlane.xlu0 %7482
    %v7484 = vsel %vm2657, %v7466, -inf
    %7485 = vmax.xlane.f32.xlu0 %v7484
    %v7486 = vpop.xlane.xlu0 %7485
    %v7487 = vsel %vm2657, %v7467, -inf
    %7488 = vmax.xlane.f32.xlu0 %v7487
    %v7489 = vpop.xlane.xlu0 %7488
    %v7490 = vsel %vm2657, %v7468, -inf
    %7491 = vmax.xlane.f32.xlu0 %v7490
    %v7492 = vpop.xlane.xlu0 %7491
    %v7493 = vsub.f32 %v7461, %v7471
    %v7494 = vsub.f32 %v7462, %v7474
    %v7495 = vsub.f32 %v7463, %v7477
    %v7496 = vsub.f32 %v7464, %v7480
    %v7497 = vsub.f32 %v7465, %v7483
    %v7498 = vsub.f32 %v7466, %v7486
    %v7499 = vsub.f32 %v7467, %v7489
    %v7500 = vsub.f32 %v7468, %v7492
    %v7501 = vmul.f32 %v7493, 1.442695
    %v7502 = vpow.pop %v7501
    %v7503 = vmul.f32 %v7494, 1.442695
    %v7504 = vpow.pop %v7503
    %v7505 = vmul.f32 %v7495, 1.442695
    %v7506 = vpow.pop %v7505
    %v7507 = vmul.f32 %v7496, 1.442695
    %v7508 = vpow.pop %v7507
    %v7509 = vmul.f32 %v7497, 1.442695
    %v7510 = vpow.pop %v7509
    %v7511 = vmul.f32 %v7498, 1.442695
    %v7512 = vpow.pop %v7511
    %v7513 = vmul.f32 %v7499, 1.442695
    %v7514 = vpow.pop %v7513
    %v7515 = vmul.f32 %v7500, 1.442695
    %v7516 = vpow.pop %v7515
    %v7517 = vsel %vm2657, %v7502, 0.0
    %7518 = vadd.xlane.f32.xlu0 %v7517
    %v7519 = vpop.xlane.xlu0 %7518
    %v7520 = vsel %vm2657, %v7504, 0.0
    %7521 = vadd.xlane.f32.xlu0 %v7520
    %v7522 = vpop.xlane.xlu0 %7521
    %v7523 = vsel %vm2657, %v7506, 0.0
    %7524 = vadd.xlane.f32.xlu0 %v7523
    %v7525 = vpop.xlane.xlu0 %7524
    %v7526 = vsel %vm2657, %v7508, 0.0
    %7527 = vadd.xlane.f32.xlu0 %v7526
    %v7528 = vpop.xlane.xlu0 %7527
    %v7529 = vsel %vm2657, %v7510, 0.0
    %7530 = vadd.xlane.f32.xlu0 %v7529
    %v7531 = vpop.xlane.xlu0 %7530
    %v7532 = vsel %vm2657, %v7512, 0.0
    %7533 = vadd.xlane.f32.xlu0 %v7532
    %v7534 = vpop.xlane.xlu0 %7533
    %v7535 = vsel %vm2657, %v7514, 0.0
    %7536 = vadd.xlane.f32.xlu0 %v7535
    %v7537 = vpop.xlane.xlu0 %7536
    %v7538 = vsel %vm2657, %v7516, 0.0
    %7539 = vadd.xlane.f32.xlu0 %v7538
    %v7540 = vpop.xlane.xlu0 %7539
    %v7541 = vrcp.pop %v7519
    %v7542 = vmul.f32 %v7502, %v7541
    %v7543 = vrcp.pop %v7522
    %v7544 = vmul.f32 %v7504, %v7543
    %v7545 = vrcp.pop %v7525
    %v7546 = vmul.f32 %v7506, %v7545
    %v7547 = vrcp.pop %v7528
    %v7548 = vmul.f32 %v7508, %v7547
    %v7549 = vrcp.pop %v7531
    %v7550 = vmul.f32 %v7510, %v7549
    %v7551 = vrcp.pop %v7534
    %v7552 = vmul.f32 %v7512, %v7551
    %v7553 = vrcp.pop %v7537
    %v7554 = vmul.f32 %v7514, %v7553
    %v7555 = vrcp.pop %v7540
    %v7556 = vmul.f32 %v7516, %v7555
    %v7558 = vsel %vm2657, %v7542, 0
    %7560 = vmatprep.subr.mxu0 0.0
    %7561 = vmatpush1.msra.mxu0 %v6773
    %7562 = vmatprep.subr.mxu0 0.0
    %7563 = vmatpush1.msra.mxu0 0.0
    %7564 = vmatprep.subr.mxu0 0.0
    %7565 = vmatpush1.msra.mxu0 0.0
    %7566 = vmatprep.subr.mxu0 0.0
    %7567 = vmatpush1.msra.mxu0 0.0
    %7568 = vmatprep.subr.mxu0 0.0
    %7569 = vmatpush1.msra.mxu0 0.0
    %7570 = vmatprep.subr.mxu0 0.0
    %7571 = vmatpush1.msra.mxu0 0.0
    %7572 = vmatprep.subr.mxu0 0.0
    %7573 = vmatpush1.msra.mxu0 0.0
    %7574 = vmatprep.subr.mxu0 0.0
    %7575 = vmatpush1.msra.mxu0 0.0
    %7576 = vmatprep.subr.mxu0 0.0
    %7577 = vmatpush1.msra.mxu0 0.0
    %7578 = vmatprep.subr.mxu0 0.0
    %7579 = vmatpush1.msra.mxu0 0.0
    %7580 = vmatprep.subr.mxu0 0.0
    %7581 = vmatpush1.msra.mxu0 0.0
    %7582 = vmatprep.subr.mxu0 0.0
    %7583 = vmatpush1.msra.mxu0 0.0
    %7584 = vmatprep.subr.mxu0 0.0
    %7585 = vmatpush1.msra.mxu0 0.0
    %7586 = vmatprep.subr.mxu0 0.0
    %7587 = vmatpush1.msra.mxu0 0.0
    %7588 = vmatprep.subr.mxu0 0.0
    %7589 = vmatpush1.msra.mxu0 0.0
    %7590 = vmatprep.subr.mxu0 0.0
    %7591 = vmatpush1.msra.mxu0 0.0
    %7592 = vmatprep.subr.mxu0 0.0
    %7593 = vmatpush1.msra.mxu0 0.0
    %7594 = vmatprep.subr.mxu0 0.0
    %7595 = vmatpush1.msra.mxu0 0.0
    %7596 = vmatprep.subr.mxu0 0.0
    %7597 = vmatpush1.msra.mxu0 0.0
    %7598 = vmatprep.subr.mxu0 0.0
    %7599 = vmatpush1.msra.mxu0 0.0
    %7600 = vmatprep.subr.mxu0 0.0
    %7601 = vmatpush1.msra.mxu0 0.0
    %7602 = vmatprep.subr.mxu0 0.0
    %7603 = vmatpush1.msra.mxu0 0.0
    %7604 = vmatprep.subr.mxu0 0.0
    %7605 = vmatpush1.msra.mxu0 0.0
    %7606 = vmatprep.subr.mxu0 0.0
    %7607 = vmatpush1.msra.mxu0 0.0
    %7608 = vmatprep.subr.mxu0 0.0
    %7609 = vmatpush1.msra.mxu0 0.0
    %7610 = vmatprep.subr.mxu0 0.0
    %7611 = vmatpush1.msra.mxu0 0.0
    %7612 = vmatprep.subr.mxu0 0.0
    %7613 = vmatpush1.msra.mxu0 0.0
    %7614 = vmatprep.subr.mxu0 0.0
    %7615 = vmatpush1.msra.mxu0 0.0
    %7616 = vmatprep.subr.mxu0 0.0
    %7617 = vmatpush1.msra.mxu0 0.0
    %7618 = vmatprep.subr.mxu0 0.0
    %7619 = vmatpush1.msra.mxu0 0.0
    %7620 = vmatprep.subr.mxu0 0.0
    %7621 = vmatpush1.msra.mxu0 0.0
    %7622 = vmatprep.subr.mxu0 0.0
    %7623 = vmatpush1.msra.mxu0 0.0
    %7624 = vmatprep.mubr.f32.mxu0 0.0
    %7625 = vmatmul.mubr.f32.gmra.mrb[0].mxu0 %v7558
    %v7626 = vpop.f32.mrb[0].mxu0
    %v7627 = vadd.f32 0.0, %v7626
    %v7628 = vpop.f32.mrb[0].mxu0
    %7629 = vdwg.mxu0
    %v7631 = vsel %vm2657, %v7544, 0
    %7633 = vmatprep.subr.mxu0 0.0
    %7634 = vmatpush1.msra.mxu0 %v6774
    %7635 = vmatprep.subr.mxu0 0.0
    %7636 = vmatpush1.msra.mxu0 0.0
    %7637 = vmatprep.subr.mxu0 0.0
    %7638 = vmatpush1.msra.mxu0 0.0
    %7639 = vmatprep.subr.mxu0 0.0
    %7640 = vmatpush1.msra.mxu0 0.0
    %7641 = vmatprep.subr.mxu0 0.0
    %7642 = vmatpush1.msra.mxu0 0.0
    %7643 = vmatprep.subr.mxu0 0.0
    %7644 = vmatpush1.msra.mxu0 0.0
    %7645 = vmatprep.subr.mxu0 0.0
    %7646 = vmatpush1.msra.mxu0 0.0
    %7647 = vmatprep.subr.mxu0 0.0
    %7648 = vmatpush1.msra.mxu0 0.0
    %7649 = vmatprep.subr.mxu0 0.0
    %7650 = vmatpush1.msra.mxu0 0.0
    %7651 = vmatprep.subr.mxu0 0.0
    %7652 = vmatpush1.msra.mxu0 0.0
    %7653 = vmatprep.subr.mxu0 0.0
    %7654 = vmatpush1.msra.mxu0 0.0
    %7655 = vmatprep.subr.mxu0 0.0
    %7656 = vmatpush1.msra.mxu0 0.0
    %7657 = vmatprep.subr.mxu0 0.0
    %7658 = vmatpush1.msra.mxu0 0.0
    %7659 = vmatprep.subr.mxu0 0.0
    %7660 = vmatpush1.msra.mxu0 0.0
    %7661 = vmatprep.subr.mxu0 0.0
    %7662 = vmatpush1.msra.mxu0 0.0
    %7663 = vmatprep.subr.mxu0 0.0
    %7664 = vmatpush1.msra.mxu0 0.0
    %7665 = vmatprep.subr.mxu0 0.0
    %7666 = vmatpush1.msra.mxu0 0.0
    %7667 = vmatprep.subr.mxu0 0.0
    %7668 = vmatpush1.msra.mxu0 0.0
    %7669 = vmatprep.subr.mxu0 0.0
    %7670 = vmatpush1.msra.mxu0 0.0
    %7671 = vmatprep.subr.mxu0 0.0
    %7672 = vmatpush1.msra.mxu0 0.0
    %7673 = vmatprep.subr.mxu0 0.0
    %7674 = vmatpush1.msra.mxu0 0.0
    %7675 = vmatprep.subr.mxu0 0.0
    %7676 = vmatpush1.msra.mxu0 0.0
    %7677 = vmatprep.subr.mxu0 0.0
    %7678 = vmatpush1.msra.mxu0 0.0
    %7679 = vmatprep.subr.mxu0 0.0
    %7680 = vmatpush1.msra.mxu0 0.0
    %7681 = vmatprep.subr.mxu0 0.0
    %7682 = vmatpush1.msra.mxu0 0.0
    %7683 = vmatprep.subr.mxu0 0.0
    %7684 = vmatpush1.msra.mxu0 0.0
    %7685 = vmatprep.subr.mxu0 0.0
    %7686 = vmatpush1.msra.mxu0 0.0
    %7687 = vmatprep.subr.mxu0 0.0
    %7688 = vmatpush1.msra.mxu0 0.0
    %7689 = vmatprep.subr.mxu0 0.0
    %7690 = vmatpush1.msra.mxu0 0.0
    %7691 = vmatprep.subr.mxu0 0.0
    %7692 = vmatpush1.msra.mxu0 0.0
    %7693 = vmatprep.subr.mxu0 0.0
    %7694 = vmatpush1.msra.mxu0 0.0
    %7695 = vmatprep.subr.mxu0 0.0
    %7696 = vmatpush1.msra.mxu0 0.0
    %7697 = vmatprep.mubr.f32.mxu0 0.0
    %7698 = vmatmul.mubr.f32.gmra.mrb[0].mxu0 %v7631
    %v7699 = vpop.f32.mrb[0].mxu0
    %v7700 = vadd.f32 0.0, %v7699
    %v7701 = vpop.f32.mrb[0].mxu0
    %7702 = vdwg.mxu0
    %v7704 = vsel %vm2657, %v7546, 0
    %7706 = vmatprep.subr.mxu0 0.0
    %7707 = vmatpush1.msra.mxu0 %v6775
    %7708 = vmatprep.subr.mxu0 0.0
    %7709 = vmatpush1.msra.mxu0 0.0
    %7710 = vmatprep.subr.mxu0 0.0
    %7711 = vmatpush1.msra.mxu0 0.0
    %7712 = vmatprep.subr.mxu0 0.0
    %7713 = vmatpush1.msra.mxu0 0.0
    %7714 = vmatprep.subr.mxu0 0.0
    %7715 = vmatpush1.msra.mxu0 0.0
    %7716 = vmatprep.subr.mxu0 0.0
    %7717 = vmatpush1.msra.mxu0 0.0
    %7718 = vmatprep.subr.mxu0 0.0
    %7719 = vmatpush1.msra.mxu0 0.0
    %7720 = vmatprep.subr.mxu0 0.0
    %7721 = vmatpush1.msra.mxu0 0.0
    %7722 = vmatprep.subr.mxu0 0.0
    %7723 = vmatpush1.msra.mxu0 0.0
    %7724 = vmatprep.subr.mxu0 0.0
    %7725 = vmatpush1.msra.mxu0 0.0
    %7726 = vmatprep.subr.mxu0 0.0
    %7727 = vmatpush1.msra.mxu0 0.0
    %7728 = vmatprep.subr.mxu0 0.0
    %7729 = vmatpush1.msra.mxu0 0.0
    %7730 = vmatprep.subr.mxu0 0.0
    %7731 = vmatpush1.msra.mxu0 0.0
    %7732 = vmatprep.subr.mxu0 0.0
    %7733 = vmatpush1.msra.mxu0 0.0
    %7734 = vmatprep.subr.mxu0 0.0
    %7735 = vmatpush1.msra.mxu0 0.0
    %7736 = vmatprep.subr.mxu0 0.0
    %7737 = vmatpush1.msra.mxu0 0.0
    %7738 = vmatprep.subr.mxu0 0.0
    %7739 = vmatpush1.msra.mxu0 0.0
    %7740 = vmatprep.subr.mxu0 0.0
    %7741 = vmatpush1.msra.mxu0 0.0
    %7742 = vmatprep.subr.mxu0 0.0
    %7743 = vmatpush1.msra.mxu0 0.0
    %7744 = vmatprep.subr.mxu0 0.0
    %7745 = vmatpush1.msra.mxu0 0.0
    %7746 = vmatprep.subr.mxu0 0.0
    %7747 = vmatpush1.msra.mxu0 0.0
    %7748 = vmatprep.subr.mxu0 0.0
    %7749 = vmatpush1.msra.mxu0 0.0
    %7750 = vmatprep.subr.mxu0 0.0
    %7751 = vmatpush1.msra.mxu0 0.0
    %7752 = vmatprep.subr.mxu0 0.0
    %7753 = vmatpush1.msra.mxu0 0.0
    %7754 = vmatprep.subr.mxu0 0.0
    %7755 = vmatpush1.msra.mxu0 0.0
    %7756 = vmatprep.subr.mxu0 0.0
    %7757 = vmatpush1.msra.mxu0 0.0
    %7758 = vmatprep.subr.mxu0 0.0
    %7759 = vmatpush1.msra.mxu0 0.0
    %7760 = vmatprep.subr.mxu0 0.0
    %7761 = vmatpush1.msra.mxu0 0.0
    %7762 = vmatprep.subr.mxu0 0.0
    %7763 = vmatpush1.msra.mxu0 0.0
    %7764 = vmatprep.subr.mxu0 0.0
    %7765 = vmatpush1.msra.mxu0 0.0
    %7766 = vmatprep.subr.mxu0 0.0
    %7767 = vmatpush1.msra.mxu0 0.0
    %7768 = vmatprep.subr.mxu0 0.0
    %7769 = vmatpush1.msra.mxu0 0.0
    %7770 = vmatprep.mubr.f32.mxu0 0.0
    %7771 = vmatmul.mubr.f32.gmra.mrb[0].mxu0 %v7704
    %v7772 = vpop.f32.mrb[0].mxu0
    %v7773 = vadd.f32 0.0, %v7772
    %v7774 = vpop.f32.mrb[0].mxu0
    %7775 = vdwg.mxu0
    %v7777 = vsel %vm2657, %v7548, 0
    %7779 = vmatprep.subr.mxu0 0.0
    %7780 = vmatpush1.msra.mxu0 %v6776
    %7781 = vmatprep.subr.mxu0 0.0
    %7782 = vmatpush1.msra.mxu0 0.0
    %7783 = vmatprep.subr.mxu0 0.0
    %7784 = vmatpush1.msra.mxu0 0.0
    %7785 = vmatprep.subr.mxu0 0.0
    %7786 = vmatpush1.msra.mxu0 0.0
    %7787 = vmatprep.subr.mxu0 0.0
    %7788 = vmatpush1.msra.mxu0 0.0
    %7789 = vmatprep.subr.mxu0 0.0
    %7790 = vmatpush1.msra.mxu0 0.0
    %7791 = vmatprep.subr.mxu0 0.0
    %7792 = vmatpush1.msra.mxu0 0.0
    %7793 = vmatprep.subr.mxu0 0.0
    %7794 = vmatpush1.msra.mxu0 0.0
    %7795 = vmatprep.subr.mxu0 0.0
    %7796 = vmatpush1.msra.mxu0 0.0
    %7797 = vmatprep.subr.mxu0 0.0
    %7798 = vmatpush1.msra.mxu0 0.0
    %7799 = vmatprep.subr.mxu0 0.0
    %7800 = vmatpush1.msra.mxu0 0.0
    %7801 = vmatprep.subr.mxu0 0.0
    %7802 = vmatpush1.msra.mxu0 0.0
    %7803 = vmatprep.subr.mxu0 0.0
    %7804 = vmatpush1.msra.mxu0 0.0
    %7805 = vmatprep.subr.mxu0 0.0
    %7806 = vmatpush1.msra.mxu0 0.0
    %7807 = vmatprep.subr.mxu0 0.0
    %7808 = vmatpush1.msra.mxu0 0.0
    %7809 = vmatprep.subr.mxu0 0.0
    %7810 = vmatpush1.msra.mxu0 0.0
    %7811 = vmatprep.subr.mxu0 0.0
    %7812 = vmatpush1.msra.mxu0 0.0
    %7813 = vmatprep.subr.mxu0 0.0
    %7814 = vmatpush1.msra.mxu0 0.0
    %7815 = vmatprep.subr.mxu0 0.0
    %7816 = vmatpush1.msra.mxu0 0.0
    %7817 = vmatprep.subr.mxu0 0.0
    %7818 = vmatpush1.msra.mxu0 0.0
    %7819 = vmatprep.subr.mxu0 0.0
    %7820 = vmatpush1.msra.mxu0 0.0
    %7821 = vmatprep.subr.mxu0 0.0
    %7822 = vmatpush1.msra.mxu0 0.0
    %7823 = vmatprep.subr.mxu0 0.0
    %7824 = vmatpush1.msra.mxu0 0.0
    %7825 = vmatprep.subr.mxu0 0.0
    %7826 = vmatpush1.msra.mxu0 0.0
    %7827 = vmatprep.subr.mxu0 0.0
    %7828 = vmatpush1.msra.mxu0 0.0
    %7829 = vmatprep.subr.mxu0 0.0
    %7830 = vmatpush1.msra.mxu0 0.0
    %7831 = vmatprep.subr.mxu0 0.0
    %7832 = vmatpush1.msra.mxu0 0.0
    %7833 = vmatprep.subr.mxu0 0.0
    %7834 = vmatpush1.msra.mxu0 0.0
    %7835 = vmatprep.subr.mxu0 0.0
    %7836 = vmatpush1.msra.mxu0 0.0
    %7837 = vmatprep.subr.mxu0 0.0
    %7838 = vmatpush1.msra.mxu0 0.0
    %7839 = vmatprep.subr.mxu0 0.0
    %7840 = vmatpush1.msra.mxu0 0.0
    %7841 = vmatprep.subr.mxu0 0.0
    %7842 = vmatpush1.msra.mxu0 0.0
    %7843 = vmatprep.mubr.f32.mxu0 0.0
    %7844 = vmatmul.mubr.f32.gmra.mrb[0].mxu0 %v7777
    %v7845 = vpop.f32.mrb[0].mxu0
    %v7846 = vadd.f32 0.0, %v7845
    %v7847 = vpop.f32.mrb[0].mxu0
    %7848 = vdwg.mxu0
    %v7850 = vsel %vm2657, %v7550, 0
    %7852 = vmatprep.subr.mxu0 0.0
    %7853 = vmatpush1.msra.mxu0 %v6841
    %7854 = vmatprep.subr.mxu0 0.0
    %7855 = vmatpush1.msra.mxu0 0.0
    %7856 = vmatprep.subr.mxu0 0.0
    %7857 = vmatpush1.msra.mxu0 0.0
    %7858 = vmatprep.subr.mxu0 0.0
    %7859 = vmatpush1.msra.mxu0 0.0
    %7860 = vmatprep.subr.mxu0 0.0
    %7861 = vmatpush1.msra.mxu0 0.0
    %7862 = vmatprep.subr.mxu0 0.0
    %7863 = vmatpush1.msra.mxu0 0.0
    %7864 = vmatprep.subr.mxu0 0.0
    %7865 = vmatpush1.msra.mxu0 0.0
    %7866 = vmatprep.subr.mxu0 0.0
    %7867 = vmatpush1.msra.mxu0 0.0
    %7868 = vmatprep.subr.mxu0 0.0
    %7869 = vmatpush1.msra.mxu0 0.0
    %7870 = vmatprep.subr.mxu0 0.0
    %7871 = vmatpush1.msra.mxu0 0.0
    %7872 = vmatprep.subr.mxu0 0.0
    %7873 = vmatpush1.msra.mxu0 0.0
    %7874 = vmatprep.subr.mxu0 0.0
    %7875 = vmatpush1.msra.mxu0 0.0
    %7876 = vmatprep.subr.mxu0 0.0
    %7877 = vmatpush1.msra.mxu0 0.0
    %7878 = vmatprep.subr.mxu0 0.0
    %7879 = vmatpush1.msra.mxu0 0.0
    %7880 = vmatprep.subr.mxu0 0.0
    %7881 = vmatpush1.msra.mxu0 0.0
    %7882 = vmatprep.subr.mxu0 0.0
    %7883 = vmatpush1.msra.mxu0 0.0
    %7884 = vmatprep.subr.mxu0 0.0
    %7885 = vmatpush1.msra.mxu0 0.0
    %7886 = vmatprep.subr.mxu0 0.0
    %7887 = vmatpush1.msra.mxu0 0.0
    %7888 = vmatprep.subr.mxu0 0.0
    %7889 = vmatpush1.msra.mxu0 0.0
    %7890 = vmatprep.subr.mxu0 0.0
    %7891 = vmatpush1.msra.mxu0 0.0
    %7892 = vmatprep.subr.mxu0 0.0
    %7893 = vmatpush1.msra.mxu0 0.0
    %7894 = vmatprep.subr.mxu0 0.0
    %7895 = vmatpush1.msra.mxu0 0.0
    %7896 = vmatprep.subr.mxu0 0.0
    %7897 = vmatpush1.msra.mxu0 0.0
    %7898 = vmatprep.subr.mxu0 0.0
    %7899 = vmatpush1.msra.mxu0 0.0
    %7900 = vmatprep.subr.mxu0 0.0
    %7901 = vmatpush1.msra.mxu0 0.0
    %7902 = vmatprep.subr.mxu0 0.0
    %7903 = vmatpush1.msra.mxu0 0.0
    %7904 = vmatprep.subr.mxu0 0.0
    %7905 = vmatpush1.msra.mxu0 0.0
    %7906 = vmatprep.subr.mxu0 0.0
    %7907 = vmatpush1.msra.mxu0 0.0
    %7908 = vmatprep.subr.mxu0 0.0
    %7909 = vmatpush1.msra.mxu0 0.0
    %7910 = vmatprep.subr.mxu0 0.0
    %7911 = vmatpush1.msra.mxu0 0.0
    %7912 = vmatprep.subr.mxu0 0.0
    %7913 = vmatpush1.msra.mxu0 0.0
    %7914 = vmatprep.subr.mxu0 0.0
    %7915 = vmatpush1.msra.mxu0 0.0
    %7916 = vmatprep.mubr.f32.mxu0 0.0
    %7917 = vmatmul.mubr.f32.gmra.mrb[0].mxu0 %v7850
    %v7918 = vpop.f32.mrb[0].mxu0
    %v7919 = vadd.f32 0.0, %v7918
    %v7920 = vpop.f32.mrb[0].mxu0
    %7921 = vdwg.mxu0
    %v7923 = vsel %vm2657, %v7552, 0
    %7925 = vmatprep.subr.mxu0 0.0
    %7926 = vmatpush1.msra.mxu0 %v6842
    %7927 = vmatprep.subr.mxu0 0.0
    %7928 = vmatpush1.msra.mxu0 0.0
    %7929 = vmatprep.subr.mxu0 0.0
    %7930 = vmatpush1.msra.mxu0 0.0
    %7931 = vmatprep.subr.mxu0 0.0
    %7932 = vmatpush1.msra.mxu0 0.0
    %7933 = vmatprep.subr.mxu0 0.0
    %7934 = vmatpush1.msra.mxu0 0.0
    %7935 = vmatprep.subr.mxu0 0.0
    %7936 = vmatpush1.msra.mxu0 0.0
    %7937 = vmatprep.subr.mxu0 0.0
    %7938 = vmatpush1.msra.mxu0 0.0
    %7939 = vmatprep.subr.mxu0 0.0
    %7940 = vmatpush1.msra.mxu0 0.0
    %7941 = vmatprep.subr.mxu0 0.0
    %7942 = vmatpush1.msra.mxu0 0.0
    %7943 = vmatprep.subr.mxu0 0.0
    %7944 = vmatpush1.msra.mxu0 0.0
    %7945 = vmatprep.subr.mxu0 0.0
    %7946 = vmatpush1.msra.mxu0 0.0
    %7947 = vmatprep.subr.mxu0 0.0
    %7948 = vmatpush1.msra.mxu0 0.0
    %7949 = vmatprep.subr.mxu0 0.0
    %7950 = vmatpush1.msra.mxu0 0.0
    %7951 = vmatprep.subr.mxu0 0.0
    %7952 = vmatpush1.msra.mxu0 0.0
    %7953 = vmatprep.subr.mxu0 0.0
    %7954 = vmatpush1.msra.mxu0 0.0
    %7955 = vmatprep.subr.mxu0 0.0
    %7956 = vmatpush1.msra.mxu0 0.0
    %7957 = vmatprep.subr.mxu0 0.0
    %7958 = vmatpush1.msra.mxu0 0.0
    %7959 = vmatprep.subr.mxu0 0.0
    %7960 = vmatpush1.msra.mxu0 0.0
    %7961 = vmatprep.subr.mxu0 0.0
    %7962 = vmatpush1.msra.mxu0 0.0
    %7963 = vmatprep.subr.mxu0 0.0
    %7964 = vmatpush1.msra.mxu0 0.0
    %7965 = vmatprep.subr.mxu0 0.0
    %7966 = vmatpush1.msra.mxu0 0.0
    %7967 = vmatprep.subr.mxu0 0.0
    %7968 = vmatpush1.msra.mxu0 0.0
    %7969 = vmatprep.subr.mxu0 0.0
    %7970 = vmatpush1.msra.mxu0 0.0
    %7971 = vmatprep.subr.mxu0 0.0
    %7972 = vmatpush1.msra.mxu0 0.0
    %7973 = vmatprep.subr.mxu0 0.0
    %7974 = vmatpush1.msra.mxu0 0.0
    %7975 = vmatprep.subr.mxu0 0.0
    %7976 = vmatpush1.msra.mxu0 0.0
    %7977 = vmatprep.subr.mxu0 0.0
    %7978 = vmatpush1.msra.mxu0 0.0
    %7979 = vmatprep.subr.mxu0 0.0
    %7980 = vmatpush1.msra.mxu0 0.0
    %7981 = vmatprep.subr.mxu0 0.0
    %7982 = vmatpush1.msra.mxu0 0.0
    %7983 = vmatprep.subr.mxu0 0.0
    %7984 = vmatpush1.msra.mxu0 0.0
    %7985 = vmatprep.subr.mxu0 0.0
    %7986 = vmatpush1.msra.mxu0 0.0
    %7987 = vmatprep.subr.mxu0 0.0
    %7988 = vmatpush1.msra.mxu0 0.0
    %7989 = vmatprep.mubr.f32.mxu0 0.0
    %7990 = vmatmul.mubr.f32.gmra.mrb[0].mxu0 %v7923
    %v7991 = vpop.f32.mrb[0].mxu0
    %v7992 = vadd.f32 0.0, %v7991
    %v7993 = vpop.f32.mrb[0].mxu0
    %7994 = vdwg.mxu0
    %v7996 = vsel %vm2657, %v7554, 0
    %7998 = vmatprep.subr.mxu0 0.0
    %7999 = vmatpush1.msra.mxu0 %v6843
    %8000 = vmatprep.subr.mxu0 0.0
    %8001 = vmatpush1.msra.mxu0 0.0
    %8002 = vmatprep.subr.mxu0 0.0
    %8003 = vmatpush1.msra.mxu0 0.0
    %8004 = vmatprep.subr.mxu0 0.0
    %8005 = vmatpush1.msra.mxu0 0.0
    %8006 = vmatprep.subr.mxu0 0.0
    %8007 = vmatpush1.msra.mxu0 0.0
    %8008 = vmatprep.subr.mxu0 0.0
    %8009 = vmatpush1.msra.mxu0 0.0
    %8010 = vmatprep.subr.mxu0 0.0
    %8011 = vmatpush1.msra.mxu0 0.0
    %8012 = vmatprep.subr.mxu0 0.0
    %8013 = vmatpush1.msra.mxu0 0.0
    %8014 = vmatprep.subr.mxu0 0.0
    %8015 = vmatpush1.msra.mxu0 0.0
    %8016 = vmatprep.subr.mxu0 0.0
    %8017 = vmatpush1.msra.mxu0 0.0
    %8018 = vmatprep.subr.mxu0 0.0
    %8019 = vmatpush1.msra.mxu0 0.0
    %8020 = vmatprep.subr.mxu0 0.0
    %8021 = vmatpush1.msra.mxu0 0.0
    %8022 = vmatprep.subr.mxu0 0.0
    %8023 = vmatpush1.msra.mxu0 0.0
    %8024 = vmatprep.subr.mxu0 0.0
    %8025 = vmatpush1.msra.mxu0 0.0
    %8026 = vmatprep.subr.mxu0 0.0
    %8027 = vmatpush1.msra.mxu0 0.0
    %8028 = vmatprep.subr.mxu0 0.0
    %8029 = vmatpush1.msra.mxu0 0.0
    %8030 = vmatprep.subr.mxu0 0.0
    %8031 = vmatpush1.msra.mxu0 0.0
    %8032 = vmatprep.subr.mxu0 0.0
    %8033 = vmatpush1.msra.mxu0 0.0
    %8034 = vmatprep.subr.mxu0 0.0
    %8035 = vmatpush1.msra.mxu0 0.0
    %8036 = vmatprep.subr.mxu0 0.0
    %8037 = vmatpush1.msra.mxu0 0.0
    %8038 = vmatprep.subr.mxu0 0.0
    %8039 = vmatpush1.msra.mxu0 0.0
    %8040 = vmatprep.subr.mxu0 0.0
    %8041 = vmatpush1.msra.mxu0 0.0
    %8042 = vmatprep.subr.mxu0 0.0
    %8043 = vmatpush1.msra.mxu0 0.0
    %8044 = vmatprep.subr.mxu0 0.0
    %8045 = vmatpush1.msra.mxu0 0.0
    %8046 = vmatprep.subr.mxu0 0.0
    %8047 = vmatpush1.msra.mxu0 0.0
    %8048 = vmatprep.subr.mxu0 0.0
    %8049 = vmatpush1.msra.mxu0 0.0
    %8050 = vmatprep.subr.mxu0 0.0
    %8051 = vmatpush1.msra.mxu0 0.0
    %8052 = vmatprep.subr.mxu0 0.0
    %8053 = vmatpush1.msra.mxu0 0.0
    %8054 = vmatprep.subr.mxu0 0.0
    %8055 = vmatpush1.msra.mxu0 0.0
    %8056 = vmatprep.subr.mxu0 0.0
    %8057 = vmatpush1.msra.mxu0 0.0
    %8058 = vmatprep.subr.mxu0 0.0
    %8059 = vmatpush1.msra.mxu0 0.0
    %8060 = vmatprep.subr.mxu0 0.0
    %8061 = vmatpush1.msra.mxu0 0.0
    %8062 = vmatprep.mubr.f32.mxu0 0.0
    %8063 = vmatmul.mubr.f32.gmra.mrb[0].mxu0 %v7996
    %v8064 = vpop.f32.mrb[0].mxu0
    %v8065 = vadd.f32 0.0, %v8064
    %v8066 = vpop.f32.mrb[0].mxu0
    %8067 = vdwg.mxu0
    %v8069 = vsel %vm2657, %v7556, 0
    %8071 = vmatprep.subr.mxu0 0.0
    %8072 = vmatpush1.msra.mxu0 %v6844
    %8073 = vmatprep.subr.mxu0 0.0
    %8074 = vmatpush1.msra.mxu0 0.0
    %8075 = vmatprep.subr.mxu0 0.0
    %8076 = vmatpush1.msra.mxu0 0.0
    %8077 = vmatprep.subr.mxu0 0.0
    %8078 = vmatpush1.msra.mxu0 0.0
    %8079 = vmatprep.subr.mxu0 0.0
    %8080 = vmatpush1.msra.mxu0 0.0
    %8081 = vmatprep.subr.mxu0 0.0
    %8082 = vmatpush1.msra.mxu0 0.0
    %8083 = vmatprep.subr.mxu0 0.0
    %8084 = vmatpush1.msra.mxu0 0.0
    %8085 = vmatprep.subr.mxu0 0.0
    %8086 = vmatpush1.msra.mxu0 0.0
    %8087 = vmatprep.subr.mxu0 0.0
    %8088 = vmatpush1.msra.mxu0 0.0
    %8089 = vmatprep.subr.mxu0 0.0
    %8090 = vmatpush1.msra.mxu0 0.0
    %8091 = vmatprep.subr.mxu0 0.0
    %8092 = vmatpush1.msra.mxu0 0.0
    %8093 = vmatprep.subr.mxu0 0.0
    %8094 = vmatpush1.msra.mxu0 0.0
    %8095 = vmatprep.subr.mxu0 0.0
    %8096 = vmatpush1.msra.mxu0 0.0
    %8097 = vmatprep.subr.mxu0 0.0
    %8098 = vmatpush1.msra.mxu0 0.0
    %8099 = vmatprep.subr.mxu0 0.0
    %8100 = vmatpush1.msra.mxu0 0.0
    %8101 = vmatprep.subr.mxu0 0.0
    %8102 = vmatpush1.msra.mxu0 0.0
    %8103 = vmatprep.subr.mxu0 0.0
    %8104 = vmatpush1.msra.mxu0 0.0
    %8105 = vmatprep.subr.mxu0 0.0
    %8106 = vmatpush1.msra.mxu0 0.0
    %8107 = vmatprep.subr.mxu0 0.0
    %8108 = vmatpush1.msra.mxu0 0.0
    %8109 = vmatprep.subr.mxu0 0.0
    %8110 = vmatpush1.msra.mxu0 0.0
    %8111 = vmatprep.subr.mxu0 0.0
    %8112 = vmatpush1.msra.mxu0 0.0
    %8113 = vmatprep.subr.mxu0 0.0
    %8114 = vmatpush1.msra.mxu0 0.0
    %8115 = vmatprep.subr.mxu0 0.0
    %8116 = vmatpush1.msra.mxu0 0.0
    %8117 = vmatprep.subr.mxu0 0.0
    %8118 = vmatpush1.msra.mxu0 0.0
    %8119 = vmatprep.subr.mxu0 0.0
    %8120 = vmatpush1.msra.mxu0 0.0
    %8121 = vmatprep.subr.mxu0 0.0
    %8122 = vmatpush1.msra.mxu0 0.0
    %8123 = vmatprep.subr.mxu0 0.0
    %8124 = vmatpush1.msra.mxu0 0.0
    %8125 = vmatprep.subr.mxu0 0.0
    %8126 = vmatpush1.msra.mxu0 0.0
    %8127 = vmatprep.subr.mxu0 0.0
    %8128 = vmatpush1.msra.mxu0 0.0
    %8129 = vmatprep.subr.mxu0 0.0
    %8130 = vmatpush1.msra.mxu0 0.0
    %8131 = vmatprep.subr.mxu0 0.0
    %8132 = vmatpush1.msra.mxu0 0.0
    %8133 = vmatprep.subr.mxu0 0.0
    %8134 = vmatpush1.msra.mxu0 0.0
    %8135 = vmatprep.mubr.f32.mxu0 0.0
    %8136 = vmatmul.mubr.f32.gmra.mrb[0].mxu0 %v8069
    %v8137 = vpop.f32.mrb[0].mxu0
    %v8138 = vadd.f32 0.0, %v8137
    %v8139 = vpop.f32.mrb[0].mxu0
    %8140 = vdwg.mxu0
    %v8141 = vcombine.low %v7627, %v7773
    %v8142 = vcombine.high %v7627, %v7773
    %v8144 = vunpack.c.l.s4 1983009808
    %v8145 = vunpack.c.0.s8 %v8144
    %v8146 = vlaneseq
    %v8147 = vshrl.u32 %v8146, 7
    %v8148 = vsub.s32 %v8145, %v8147
    %v8149 = vrot.slane %v8141, %v8148
    %v8151 = vunpack.c.l.s4 1983009808
    %v8152 = vunpack.c.0.s8 %v8151
    %v8153 = vlaneseq
    %v8154 = vshrl.u32 %v8153, 7
    %v8155 = vsub.s32 %v8152, %v8154
    %v8156 = vrot.slane %v8142, %v8155
    %v8157 = vcombine.low %v7700, %v7846
    %v8158 = vcombine.high %v7700, %v7846
    %v8160 = vunpack.c.l.s4 1983009808
    %v8161 = vunpack.c.0.s8 %v8160
    %v8162 = vlaneseq
    %v8163 = vshrl.u32 %v8162, 7
    %v8164 = vsub.s32 %v8161, %v8163
    %v8165 = vrot.slane %v8157, %v8164
    %v8167 = vunpack.c.l.s4 1983009808
    %v8168 = vunpack.c.0.s8 %v8167
    %v8169 = vlaneseq
    %v8170 = vshrl.u32 %v8169, 7
    %v8171 = vsub.s32 %v8168, %v8170
    %v8172 = vrot.slane %v8158, %v8171
    %v8173 = vcombine.low %v8149, %v8165
    %v8174 = vcombine.high %v8149, %v8165
    %v8176 = vunpack.c.l.s4 1934713408
    %v8177 = vunpack.c.0.s8 %v8176
    %v8178 = vlaneseq
    %v8179 = vshrl.u32 %v8178, 7
    %v8180 = vsub.s32 %v8177, %v8179
    %v8181 = vrot.slane %v8173, %v8180
    %v8183 = vunpack.c.l.s4 1934713408
    %v8184 = vunpack.c.0.s8 %v8183
    %v8185 = vlaneseq
    %v8186 = vshrl.u32 %v8185, 7
    %v8187 = vsub.s32 %v8184, %v8186
    %v8188 = vrot.slane %v8174, %v8187
    %v8189 = vcombine.low %v8156, %v8172
    %v8190 = vcombine.high %v8156, %v8172
    %v8192 = vunpack.c.l.s4 1934713408
    %v8193 = vunpack.c.0.s8 %v8192
    %v8194 = vlaneseq
    %v8195 = vshrl.u32 %v8194, 7
    %v8196 = vsub.s32 %v8193, %v8195
    %v8197 = vrot.slane %v8189, %v8196
    %v8199 = vunpack.c.l.s4 1934713408
    %v8200 = vunpack.c.0.s8 %v8199
    %v8201 = vlaneseq
    %v8202 = vshrl.u32 %v8201, 7
    %v8203 = vsub.s32 %v8200, %v8202
    %v8204 = vrot.slane %v8190, %v8203
    %v8205 = vcombine.high %v8181, 0.0
    %v8206 = vcombine.high %v8188, 0.0
    %v8207 = vcombine.high %v8197, 0.0
    %v8208 = vcombine.high %v8204, 0.0
    %v8209 = vcombine.low %v7919, %v8065
    %v8210 = vcombine.high %v7919, %v8065
    %v8212 = vunpack.c.l.s4 1983009808
    %v8213 = vunpack.c.0.s8 %v8212
    %v8214 = vlaneseq
    %v8215 = vshrl.u32 %v8214, 7
    %v8216 = vsub.s32 %v8213, %v8215
    %v8217 = vrot.slane %v8209, %v8216
    %v8219 = vunpack.c.l.s4 1983009808
    %v8220 = vunpack.c.0.s8 %v8219
    %v8221 = vlaneseq
    %v8222 = vshrl.u32 %v8221, 7
    %v8223 = vsub.s32 %v8220, %v8222
    %v8224 = vrot.slane %v8210, %v8223
    %v8225 = vcombine.low %v7992, %v8138
    %v8226 = vcombine.high %v7992, %v8138
    %v8228 = vunpack.c.l.s4 1983009808
    %v8229 = vunpack.c.0.s8 %v8228
    %v8230 = vlaneseq
    %v8231 = vshrl.u32 %v8230, 7
    %v8232 = vsub.s32 %v8229, %v8231
    %v8233 = vrot.slane %v8225, %v8232
    %v8235 = vunpack.c.l.s4 1983009808
    %v8236 = vunpack.c.0.s8 %v8235
    %v8237 = vlaneseq
    %v8238 = vshrl.u32 %v8237, 7
    %v8239 = vsub.s32 %v8236, %v8238
    %v8240 = vrot.slane %v8226, %v8239
    %v8241 = vcombine.low %v8217, %v8233
    %v8242 = vcombine.high %v8217, %v8233
    %v8244 = vunpack.c.l.s4 1934713408
    %v8245 = vunpack.c.0.s8 %v8244
    %v8246 = vlaneseq
    %v8247 = vshrl.u32 %v8246, 7
    %v8248 = vsub.s32 %v8245, %v8247
    %v8249 = vrot.slane %v8241, %v8248
    %v8251 = vunpack.c.l.s4 1934713408
    %v8252 = vunpack.c.0.s8 %v8251
    %v8253 = vlaneseq
    %v8254 = vshrl.u32 %v8253, 7
    %v8255 = vsub.s32 %v8252, %v8254
    %v8256 = vrot.slane %v8242, %v8255
    %v8257 = vcombine.low %v8224, %v8240
    %v8258 = vcombine.high %v8224, %v8240
    %v8260 = vunpack.c.l.s4 1934713408
    %v8261 = vunpack.c.0.s8 %v8260
    %v8262 = vlaneseq
    %v8263 = vshrl.u32 %v8262, 7
    %v8264 = vsub.s32 %v8261, %v8263
    %v8265 = vrot.slane %v8257, %v8264
    %v8267 = vunpack.c.l.s4 1934713408
    %v8268 = vunpack.c.0.s8 %v8267
    %v8269 = vlaneseq
    %v8270 = vshrl.u32 %v8269, 7
    %v8271 = vsub.s32 %v8268, %v8270
    %v8272 = vrot.slane %v8258, %v8271
    %v8273 = vcombine.high %v8249, 0.0
    %v8274 = vcombine.high %v8256, 0.0
    %v8275 = vcombine.high %v8265, 0.0
    %v8276 = vcombine.high %v8272, 0.0
    %v8277 = vcombine.low %v8181, %v8188
    %v8279 = vunpack.c.l.s4 1983009808
    %v8280 = vunpack.c.0.s8 %v8279
    %v8281 = vlaneseq
    %v8282 = vshrl.u32 %v8281, 7
    %v8283 = vsub.s32 %v8280, %v8282
    %v8284 = vrot.slane %v8277, %v8283
    %v8285 = vcombine.low %v8205, %v8206
    %v8287 = vunpack.c.l.s4 1983009808
    %v8288 = vunpack.c.0.s8 %v8287
    %v8289 = vlaneseq
    %v8290 = vshrl.u32 %v8289, 7
    %v8291 = vsub.s32 %v8288, %v8290
    %v8292 = vrot.slane %v8285, %v8291
    %v8293 = vcombine.low %v8197, %v8204
    %v8295 = vunpack.c.l.s4 1983009808
    %v8296 = vunpack.c.0.s8 %v8295
    %v8297 = vlaneseq
    %v8298 = vshrl.u32 %v8297, 7
    %v8299 = vsub.s32 %v8296, %v8298
    %v8300 = vrot.slane %v8293, %v8299
    %v8301 = vcombine.low %v8207, %v8208
    %v8303 = vunpack.c.l.s4 1983009808
    %v8304 = vunpack.c.0.s8 %v8303
    %v8305 = vlaneseq
    %v8306 = vshrl.u32 %v8305, 7
    %v8307 = vsub.s32 %v8304, %v8306
    %v8308 = vrot.slane %v8301, %v8307
    %v8309 = vcombine.low %v8284, %v8292
    %v8310 = vcombine.high %v8284, %v8292
    %v8312 = vunpack.c.l.s4 1934713408
    %v8313 = vunpack.c.0.s8 %v8312
    %v8314 = vlaneseq
    %v8315 = vshrl.u32 %v8314, 7
    %v8316 = vsub.s32 %v8313, %v8315
    %v8317 = vrot.slane %v8309, %v8316
    %v8319 = vunpack.c.l.s4 1934713408
    %v8320 = vunpack.c.0.s8 %v8319
    %v8321 = vlaneseq
    %v8322 = vshrl.u32 %v8321, 7
    %v8323 = vsub.s32 %v8320, %v8322
    %v8324 = vrot.slane %v8310, %v8323
    %v8325 = vcombine.low %v8300, %v8308
    %v8326 = vcombine.high %v8300, %v8308
    %v8328 = vunpack.c.l.s4 1934713408
    %v8329 = vunpack.c.0.s8 %v8328
    %v8330 = vlaneseq
    %v8331 = vshrl.u32 %v8330, 7
    %v8332 = vsub.s32 %v8329, %v8331
    %v8333 = vrot.slane %v8325, %v8332
    %v8335 = vunpack.c.l.s4 1934713408
    %v8336 = vunpack.c.0.s8 %v8335
    %v8337 = vlaneseq
    %v8338 = vshrl.u32 %v8337, 7
    %v8339 = vsub.s32 %v8336, %v8338
    %v8340 = vrot.slane %v8326, %v8339
    %v8341 = vcombine.low %v8317, %v8333
    %v8342 = vcombine.high %v8317, %v8333
    %v8343 = vcombine.low %v8324, %v8340
    %v8344 = vcombine.high %v8324, %v8340
    %v8345 = vcombine.low %v8249, %v8256
    %v8347 = vunpack.c.l.s4 1983009808
    %v8348 = vunpack.c.0.s8 %v8347
    %v8349 = vlaneseq
    %v8350 = vshrl.u32 %v8349, 7
    %v8351 = vsub.s32 %v8348, %v8350
    %v8352 = vrot.slane %v8345, %v8351
    %v8353 = vcombine.low %v8273, %v8274
    %v8355 = vunpack.c.l.s4 1983009808
    %v8356 = vunpack.c.0.s8 %v8355
    %v8357 = vlaneseq
    %v8358 = vshrl.u32 %v8357, 7
    %v8359 = vsub.s32 %v8356, %v8358
    %v8360 = vrot.slane %v8353, %v8359
    %v8361 = vcombine.low %v8265, %v8272
    %v8363 = vunpack.c.l.s4 1983009808
    %v8364 = vunpack.c.0.s8 %v8363
    %v8365 = vlaneseq
    %v8366 = vshrl.u32 %v8365, 7
    %v8367 = vsub.s32 %v8364, %v8366
    %v8368 = vrot.slane %v8361, %v8367
    %v8369 = vcombine.low %v8275, %v8276
    %v8371 = vunpack.c.l.s4 1983009808
    %v8372 = vunpack.c.0.s8 %v8371
    %v8373 = vlaneseq
    %v8374 = vshrl.u32 %v8373, 7
    %v8375 = vsub.s32 %v8372, %v8374
    %v8376 = vrot.slane %v8369, %v8375
    %v8377 = vcombine.low %v8352, %v8360
    %v8378 = vcombine.high %v8352, %v8360
    %v8380 = vunpack.c.l.s4 1934713408
    %v8381 = vunpack.c.0.s8 %v8380
    %v8382 = vlaneseq
    %v8383 = vshrl.u32 %v8382, 7
    %v8384 = vsub.s32 %v8381, %v8383
    %v8385 = vrot.slane %v8377, %v8384
    %v8387 = vunpack.c.l.s4 1934713408
    %v8388 = vunpack.c.0.s8 %v8387
    %v8389 = vlaneseq
    %v8390 = vshrl.u32 %v8389, 7
    %v8391 = vsub.s32 %v8388, %v8390
    %v8392 = vrot.slane %v8378, %v8391
    %v8393 = vcombine.low %v8368, %v8376
    %v8394 = vcombine.high %v8368, %v8376
    %v8396 = vunpack.c.l.s4 1934713408
    %v8397 = vunpack.c.0.s8 %v8396
    %v8398 = vlaneseq
    %v8399 = vshrl.u32 %v8398, 7
    %v8400 = vsub.s32 %v8397, %v8399
    %v8401 = vrot.slane %v8393, %v8400
    %v8403 = vunpack.c.l.s4 1934713408
    %v8404 = vunpack.c.0.s8 %v8403
    %v8405 = vlaneseq
    %v8406 = vshrl.u32 %v8405, 7
    %v8407 = vsub.s32 %v8404, %v8406
    %v8408 = vrot.slane %v8394, %v8407
    %v8409 = vcombine.low %v8385, %v8401
    %v8410 = vcombine.high %v8385, %v8401
    %v8411 = vcombine.low %v8392, %v8408
    %v8412 = vcombine.high %v8392, %v8408
    %8415 = vrot.lane.b32.xlu0 %v8342, 8
    %v8416 = vpop.permute.xlu0 %8415
    %8417 = vrot.lane.b32.xlu0 %v8410, 8
    %v8418 = vpop.permute.xlu0 %8417
    %8423 = vrot.lane.b32.xlu0 %v8343, 16
    %v8424 = vpop.permute.xlu0 %8423
    %8425 = vrot.lane.b32.xlu0 %v8411, 16
    %v8426 = vpop.permute.xlu0 %8425
    %8431 = vrot.lane.b32.xlu0 %v8344, 24
    %v8432 = vpop.permute.xlu0 %8431
    %8433 = vrot.lane.b32.xlu0 %v8412, 24
    %v8434 = vpop.permute.xlu0 %8433
    %v8437 = vsel %vm2657, %v8341, %v8416
    %v8438 = vsel %vm2657, %v8409, %v8418
    %v8439 = vsel %vm4254, %v8437, %v8424
    %v8440 = vsel %vm4254, %v8438, %v8426
    %v8441 = vsel %vm4257, %v8439, %v8432
    %v8442 = vsel %vm4257, %v8440, %v8434
    %s8443 = scalar_lea.vmem [#allocation11], 32
    %v8444 = vld [vmem:[%s8443] sm:$0xff]
    %v8445 = vld [vmem:[%s8443 + $0x8] sm:$0xff]
    %v8446 = vld [vmem:[%s8443 + $0x10] sm:$0xff]
    %v8447 = vld [vmem:[%s8443 + $0x18] sm:$0xff]
    %s8448 = scalar_lea.vmem %s16, 1
    %v8449 = vld [vmem:[%s8448] sm:$0x1]
    %v8451 = vlaneseq
    %v8452 = vshrl.u32 %v8451, 7
    %v8453 = vsub.s32 0, %v8452
    %v8454 = vrot.slane %v8449, %v8453
    %v8457 = vsel %vm166, %v8441, 0
    %v8460 = vsel %vm166, %v8442, 0
    %8462 = vmatprep.subr.mxu0 0.0
    %8463 = vmatpush1.msra.mxu0 %v8444
    %8464 = vmatprep.subr.mxu0 0.0
    %8465 = vmatpush1.msra.mxu0 %v8445
    %8466 = vmatprep.subr.mxu0 0.0
    %8467 = vmatpush1.msra.mxu0 %v8446
    %8468 = vmatprep.subr.mxu0 0.0
    %8469 = vmatpush1.msra.mxu0 %v8447
    %8470 = vmatprep.subr.mxu0 0.0
    %8471 = vmatpush1.msra.mxu0 0.0
    %8472 = vmatprep.subr.mxu0 0.0
    %8473 = vmatpush1.msra.mxu0 0.0
    %8474 = vmatprep.subr.mxu0 0.0
    %8475 = vmatpush1.msra.mxu0 0.0
    %8476 = vmatprep.subr.mxu0 0.0
    %8477 = vmatpush1.msra.mxu0 0.0
    %8478 = vmatprep.subr.mxu0 0.0
    %8479 = vmatpush1.msra.mxu0 0.0
    %8480 = vmatprep.subr.mxu0 0.0
    %8481 = vmatpush1.msra.mxu0 0.0
    %8482 = vmatprep.subr.mxu0 0.0
    %8483 = vmatpush1.msra.mxu0 0.0
    %8484 = vmatprep.subr.mxu0 0.0
    %8485 = vmatpush1.msra.mxu0 0.0
    %8486 = vmatprep.subr.mxu0 0.0
    %8487 = vmatpush1.msra.mxu0 0.0
    %8488 = vmatprep.subr.mxu0 0.0
    %8489 = vmatpush1.msra.mxu0 0.0
    %8490 = vmatprep.subr.mxu0 0.0
    %8491 = vmatpush1.msra.mxu0 0.0
    %8492 = vmatprep.subr.mxu0 0.0
    %8493 = vmatpush1.msra.mxu0 0.0
    %8494 = vmatprep.subr.mxu0 0.0
    %8495 = vmatpush1.msra.mxu0 0.0
    %8496 = vmatprep.subr.mxu0 0.0
    %8497 = vmatpush1.msra.mxu0 0.0
    %8498 = vmatprep.subr.mxu0 0.0
    %8499 = vmatpush1.msra.mxu0 0.0
    %8500 = vmatprep.subr.mxu0 0.0
    %8501 = vmatpush1.msra.mxu0 0.0
    %8502 = vmatprep.subr.mxu0 0.0
    %8503 = vmatpush1.msra.mxu0 0.0
    %8504 = vmatprep.subr.mxu0 0.0
    %8505 = vmatpush1.msra.mxu0 0.0
    %8506 = vmatprep.subr.mxu0 0.0
    %8507 = vmatpush1.msra.mxu0 0.0
    %8508 = vmatprep.subr.mxu0 0.0
    %8509 = vmatpush1.msra.mxu0 0.0
    %8510 = vmatprep.subr.mxu0 0.0
    %8511 = vmatpush1.msra.mxu0 0.0
    %8512 = vmatprep.subr.mxu0 0.0
    %8513 = vmatpush1.msra.mxu0 0.0
    %8514 = vmatprep.subr.mxu0 0.0
    %8515 = vmatpush1.msra.mxu0 0.0
    %8516 = vmatprep.subr.mxu0 0.0
    %8517 = vmatpush1.msra.mxu0 0.0
    %8518 = vmatprep.subr.mxu0 0.0
    %8519 = vmatpush1.msra.mxu0 0.0
    %8520 = vmatprep.subr.mxu0 0.0
    %8521 = vmatpush1.msra.mxu0 0.0
    %8522 = vmatprep.subr.mxu0 0.0
    %8523 = vmatpush1.msra.mxu0 0.0
    %8524 = vmatprep.subr.mxu0 0.0
    %8525 = vmatpush1.msra.mxu0 0.0
    %8526 = vmatprep.mubr.f32.mxu0 0.0
    %8527 = vmatmul.mubr.f32.gmra.mrb[0].mxu0 %v8457
    %v8528 = vpop.f32.mrb[0].mxu0
    %v8529 = vadd.f32 %v8454, %v8528
    %v8530 = vpop.f32.mrb[0].mxu0
    %8531 = vmatprep.mubr.f32.mxu0 0.0
    %8532 = vmatmul.mubr.f32.gmra.mrb[0].mxu0 %v8460
    %v8533 = vpop.f32.mrb[0].mxu0
    %v8534 = vadd.f32 %v8454, %v8533
    %v8535 = vpop.f32.mrb[0].mxu0
    %8536 = vdwg.mxu0
    %v8537 = vmul.f32 %v8529, %v8529
    %v8538 = vmul.f32 %v8534, %v8534
    %v8539 = vsel %vm166, %v8537, 0.0
    %8540 = vadd.xlane.f32.xlu0 %v8539
    %v8541 = vpop.xlane.xlu0 %8540
    %v8542 = vsel %vm166, %v8538, 0.0
    %8543 = vadd.xlane.f32.xlu0 %v8542
    %v8544 = vpop.xlane.xlu0 %8543
    %v8545 = vmul.f32 %v8541, %v173
    %v8546 = vmul.f32 %v8544, %v173
    %v8547 = vadd.f32 %v8545, 1e-05
    %v8548 = vadd.f32 %v8546, 1e-05
    %v8549 = vrsqrt.pop %v8547
    %v8550 = vrsqrt.pop %v8548
    %v8551 = vmul.f32 %v8529, %v8549
    %v8552 = vmul.f32 %v8534, %v8550
    %s8553 = scalar_lea.vmem %s1, 2
    %v8554 = vld [vmem:[%s8553] sm:$0x1]
    %v8556 = vlaneseq
    %v8557 = vshrl.u32 %v8556, 7
    %v8558 = vsub.s32 0, %v8557
    %v8559 = vrot.slane %v8554, %v8558
    %v8561 = vmul.f32 %v8551, %v8559
    %v8562 = vmul.f32 %v8552, %v8559
    %s8563 = scalar_lea.vmem [#allocation2], 64
    %v8564 = vld [vmem:[%s8563] sm:$0xff]
    %v8565 = vld [vmem:[%s8563 + $0x8] sm:$0xff]
    %v8566 = vld [vmem:[%s8563 + $0x10] sm:$0xff]
    %v8567 = vld [vmem:[%s8563 + $0x18] sm:$0xff]
    %v8569 = vsel %vm166, %v8561, 0
    %v8572 = vsel %vm166, %v8562, 0
    %8574 = vmatprep.subr.mxu0 0.0
    %8575 = vmatpush1.msra.mxu0 %v8564
    %8576 = vmatprep.subr.mxu0 0.0
    %8577 = vmatpush1.msra.mxu0 %v8565
    %8578 = vmatprep.subr.mxu0 0.0
    %8579 = vmatpush1.msra.mxu0 %v8566
    %8580 = vmatprep.subr.mxu0 0.0
    %8581 = vmatpush1.msra.mxu0 %v8567
    %8582 = vmatprep.subr.mxu0 0.0
    %8583 = vmatpush1.msra.mxu0 0.0
    %8584 = vmatprep.subr.mxu0 0.0
    %8585 = vmatpush1.msra.mxu0 0.0
    %8586 = vmatprep.subr.mxu0 0.0
    %8587 = vmatpush1.msra.mxu0 0.0
    %8588 = vmatprep.subr.mxu0 0.0
    %8589 = vmatpush1.msra.mxu0 0.0
    %8590 = vmatprep.subr.mxu0 0.0
    %8591 = vmatpush1.msra.mxu0 0.0
    %8592 = vmatprep.subr.mxu0 0.0
    %8593 = vmatpush1.msra.mxu0 0.0
    %8594 = vmatprep.subr.mxu0 0.0
    %8595 = vmatpush1.msra.mxu0 0.0
    %8596 = vmatprep.subr.mxu0 0.0
    %8597 = vmatpush1.msra.mxu0 0.0
    %8598 = vmatprep.subr.mxu0 0.0
    %8599 = vmatpush1.msra.mxu0 0.0
    %8600 = vmatprep.subr.mxu0 0.0
    %8601 = vmatpush1.msra.mxu0 0.0
    %8602 = vmatprep.subr.mxu0 0.0
    %8603 = vmatpush1.msra.mxu0 0.0
    %8604 = vmatprep.subr.mxu0 0.0
    %8605 = vmatpush1.msra.mxu0 0.0
    %8606 = vmatprep.subr.mxu0 0.0
    %8607 = vmatpush1.msra.mxu0 0.0
    %8608 = vmatprep.subr.mxu0 0.0
    %8609 = vmatpush1.msra.mxu0 0.0
    %8610 = vmatprep.subr.mxu0 0.0
    %8611 = vmatpush1.msra.mxu0 0.0
    %8612 = vmatprep.subr.mxu0 0.0
    %8613 = vmatpush1.msra.mxu0 0.0
    %8614 = vmatprep.subr.mxu0 0.0
    %8615 = vmatpush1.msra.mxu0 0.0
    %8616 = vmatprep.subr.mxu0 0.0
    %8617 = vmatpush1.msra.mxu0 0.0
    %8618 = vmatprep.subr.mxu0 0.0
    %8619 = vmatpush1.msra.mxu0 0.0
    %8620 = vmatprep.subr.mxu0 0.0
    %8621 = vmatpush1.msra.mxu0 0.0
    %8622 = vmatprep.subr.mxu0 0.0
    %8623 = vmatpush1.msra.mxu0 0.0
    %8624 = vmatprep.subr.mxu0 0.0
    %8625 = vmatpush1.msra.mxu0 0.0
    %8626 = vmatprep.subr.mxu0 0.0
    %8627 = vmatpush1.msra.mxu0 0.0
    %8628 = vmatprep.subr.mxu0 0.0
    %8629 = vmatpush1.msra.mxu0 0.0
    %8630 = vmatprep.subr.mxu0 0.0
    %8631 = vmatpush1.msra.mxu0 0.0
    %8632 = vmatprep.subr.mxu0 0.0
    %8633 = vmatpush1.msra.mxu0 0.0
    %8634 = vmatprep.subr.mxu0 0.0
    %8635 = vmatpush1.msra.mxu0 0.0
    %8636 = vmatprep.subr.mxu0 0.0
    %8637 = vmatpush1.msra.mxu0 0.0
    %8638 = vmatprep.mubr.f32.mxu0 0.0
    %8639 = vmatmul.mubr.f32.gmra.mrb[0].mxu0 %v8569
    %v8640 = vpop.f32.mrb[0].mxu0
    %v8641 = vadd.f32 0.0, %v8640
    %v8642 = vpop.f32.mrb[0].mxu0
    %8643 = vmatprep.mubr.f32.mxu0 0.0
    %8644 = vmatmul.mubr.f32.gmra.mrb[0].mxu0 %v8572
    %v8645 = vpop.f32.mrb[0].mxu0
    %v8646 = vadd.f32 0.0, %v8645
    %v8647 = vpop.f32.mrb[0].mxu0
    %8648 = vdwg.mxu0
    %s8649 = scalar_lea.vmem [#allocation5], 8
    %v8650 = vld [vmem:[%s8649] sm:$0xf]
    %v8651 = vlaneseq
    %v8652 = vshrl.u32 %v8651, 7
    %v8653 = vsub.s32 3, %v8652
    %v8654 = vrot.slane %v8650, %v8653
    %v8655 = vmul.f32 %v8641, %v8654
    %v8656 = vmul.f32 %v8646, %v8654
    %v8659 = vrot.slane %v8641, 5
    %v8660 = vrot.slane %v8646, 5
    %v8663 = vsel %vm289, 0.0, %v8659
    %v8664 = vsel %vm289, 0.0, %v8660
    %v8665 = vlaneseq
    %v8666 = vshrl.u32 %v8665, 7
    %v8667 = vsub.s32 0, %v8666
    %v8668 = vrot.slane %v8650, %v8667
    %v8669 = vmul.f32 %v8663, %v8668
    %v8670 = vmul.f32 %v8664, %v8668
    %v8671 = vadd.f32 %v8655, %v8669
    %v8672 = vadd.f32 %v8656, %v8670
    %v8673 = vrot.slane %v8641, 6
    %v8674 = vrot.slane %v8646, 6
    %v8677 = vsel %vm304, 0.0, %v8673
    %v8678 = vsel %vm304, 0.0, %v8674
    %v8679 = vlaneseq
    %v8680 = vshrl.u32 %v8679, 7
    %v8681 = vsub.s32 1, %v8680
    %v8682 = vrot.slane %v8650, %v8681
    %v8683 = vmul.f32 %v8677, %v8682
    %v8684 = vmul.f32 %v8678, %v8682
    %v8685 = vadd.f32 %v8671, %v8683
    %v8686 = vadd.f32 %v8672, %v8684
    %v8687 = vrot.slane %v8641, 7
    %v8688 = vrot.slane %v8646, 7
    %v8691 = vsel %vm319, 0.0, %v8687
    %v8692 = vsel %vm319, 0.0, %v8688
    %v8693 = vlaneseq
    %v8694 = vshrl.u32 %v8693, 7
    %v8695 = vsub.s32 2, %v8694
    %v8696 = vrot.slane %v8650, %v8695
    %v8697 = vmul.f32 %v8691, %v8696
    %v8698 = vmul.f32 %v8692, %v8696
    %v8699 = vadd.f32 %v8685, %v8697
    %v8700 = vadd.f32 %v8686, %v8698
    %s8701 = scalar_lea.vmem %s4, 2
    %v8702 = vld [vmem:[%s8701] sm:$0x1]
    %v8704 = vlaneseq
    %v8705 = vshrl.u32 %v8704, 7
    %v8706 = vsub.s32 0, %v8705
    %v8707 = vrot.slane %v8702, %v8706
    %v8709 = vadd.f32 %v8699, %v8707
    %v8710 = vadd.f32 %v8700, %v8707
    %v8711 = vxor.u32 %v8709, 2147483648
    %v8712 = vxor.u32 %v8710, 2147483648
    %v8713 = vmul.f32 %v8711, 1.442695
    %v8714 = vpow.pop %v8713
    %v8715 = vmul.f32 %v8712, 1.442695
    %v8716 = vpow.pop %v8715
    %v8717 = vadd.f32 %v8714, 1.0
    %v8718 = vadd.f32 %v8716, 1.0
    %v8719 = vrcp.pop %v8717
    %v8720 = vmul.f32 1.0, %v8719
    %v8721 = vrcp.pop %v8718
    %v8722 = vmul.f32 1.0, %v8721
    %v8723 = vmul.f32 %v8709, %v8720
    %v8724 = vmul.f32 %v8710, %v8722
    %s8725 = scalar_lea.vmem [#allocation7], 128
    %v8726 = vld [vmem:[%s8725] sm:$0xff]
    %v8727 = vld [vmem:[%s8725 + $0x8] sm:$0xff]
    %v8728 = vld [vmem:[%s8725 + $0x10] sm:$0xff]
    %v8729 = vld [vmem:[%s8725 + $0x18] sm:$0xff]
    %v8730 = vld [vmem:[%s8725 + $0x20] sm:$0xff]
    %v8731 = vld [vmem:[%s8725 + $0x28] sm:$0xff]
    %v8732 = vld [vmem:[%s8725 + $0x30] sm:$0xff]
    %v8733 = vld [vmem:[%s8725 + $0x38] sm:$0xff]
    %v8735 = vsel %vm361, %v8723, 0
    %v8738 = vsel %vm361, %v8724, 0
    %8740 = vmatprep.subr.mxu0 0.0
    %8741 = vmatpush1.msra.mxu0 %v8726
    %8742 = vmatprep.subr.mxu0 0.0
    %8743 = vmatpush1.msra.mxu0 %v8727
    %8744 = vmatprep.subr.mxu0 0.0
    %8745 = vmatpush1.msra.mxu0 %v8728
    %8746 = vmatprep.subr.mxu0 0.0
    %8747 = vmatpush1.msra.mxu0 %v8729
    %8748 = vmatprep.subr.mxu0 0.0
    %8749 = vmatpush1.msra.mxu0 %v8730
    %8750 = vmatprep.subr.mxu0 0.0
    %8751 = vmatpush1.msra.mxu0 %v8731
    %8752 = vmatprep.subr.mxu0 0.0
    %8753 = vmatpush1.msra.mxu0 %v8732
    %8754 = vmatprep.subr.mxu0 0.0
    %8755 = vmatpush1.msra.mxu0 %v8733
    %8756 = vmatprep.subr.mxu0 0.0
    %8757 = vmatpush1.msra.mxu0 0.0
    %8758 = vmatprep.subr.mxu0 0.0
    %8759 = vmatpush1.msra.mxu0 0.0
    %8760 = vmatprep.subr.mxu0 0.0
    %8761 = vmatpush1.msra.mxu0 0.0
    %8762 = vmatprep.subr.mxu0 0.0
    %8763 = vmatpush1.msra.mxu0 0.0
    %8764 = vmatprep.subr.mxu0 0.0
    %8765 = vmatpush1.msra.mxu0 0.0
    %8766 = vmatprep.subr.mxu0 0.0
    %8767 = vmatpush1.msra.mxu0 0.0
    %8768 = vmatprep.subr.mxu0 0.0
    %8769 = vmatpush1.msra.mxu0 0.0
    %8770 = vmatprep.subr.mxu0 0.0
    %8771 = vmatpush1.msra.mxu0 0.0
    %8772 = vmatprep.subr.mxu0 0.0
    %8773 = vmatpush1.msra.mxu0 0.0
    %8774 = vmatprep.subr.mxu0 0.0
    %8775 = vmatpush1.msra.mxu0 0.0
    %8776 = vmatprep.subr.mxu0 0.0
    %8777 = vmatpush1.msra.mxu0 0.0
    %8778 = vmatprep.subr.mxu0 0.0
    %8779 = vmatpush1.msra.mxu0 0.0
    %8780 = vmatprep.subr.mxu0 0.0
    %8781 = vmatpush1.msra.mxu0 0.0
    %8782 = vmatprep.subr.mxu0 0.0
    %8783 = vmatpush1.msra.mxu0 0.0
    %8784 = vmatprep.subr.mxu0 0.0
    %8785 = vmatpush1.msra.mxu0 0.0
    %8786 = vmatprep.subr.mxu0 0.0
    %8787 = vmatpush1.msra.mxu0 0.0
    %8788 = vmatprep.subr.mxu0 0.0
    %8789 = vmatpush1.msra.mxu0 0.0
    %8790 = vmatprep.subr.mxu0 0.0
    %8791 = vmatpush1.msra.mxu0 0.0
    %8792 = vmatprep.subr.mxu0 0.0
    %8793 = vmatpush1.msra.mxu0 0.0
    %8794 = vmatprep.subr.mxu0 0.0
    %8795 = vmatpush1.msra.mxu0 0.0
    %8796 = vmatprep.subr.mxu0 0.0
    %8797 = vmatpush1.msra.mxu0 0.0
    %8798 = vmatprep.subr.mxu0 0.0
    %8799 = vmatpush1.msra.mxu0 0.0
    %8800 = vmatprep.subr.mxu0 0.0
    %8801 = vmatpush1.msra.mxu0 0.0
    %8802 = vmatprep.subr.mxu0 0.0
    %8803 = vmatpush1.msra.mxu0 0.0
    %8804 = vmatprep.mubr.f32.mxu0 0.0
    %8805 = vmatmul.mubr.f32.gmra.mrb[0].mxu0 %v8735
    %v8806 = vpop.f32.mrb[0].mxu0
    %v8807 = vadd.f32 0.0, %v8806
    %v8808 = vpop.f32.mrb[0].mxu0
    %8809 = vmatprep.mubr.f32.mxu0 0.0
    %8810 = vmatmul.mubr.f32.gmra.mrb[0].mxu0 %v8738
    %v8811 = vpop.f32.mrb[0].mxu0
    %v8812 = vadd.f32 0.0, %v8811
    %v8813 = vpop.f32.mrb[0].mxu0
    %8814 = vdwg.mxu0
    %s8815 = scalar_lea.vmem %s6, 8
    %v8816 = vld [vmem:[%s8815] sm:$0xf]
    %s8817 = scalar_lea.vmem %s7, 2
    %v8818 = vld [vmem:[%s8817] sm:$0x1]
    %v8820 = vlaneseq
    %v8821 = vshrl.u32 %v8820, 7
    %v8822 = vsub.s32 0, %v8821
    %v8823 = vrot.slane %v8818, %v8822
    %v8826 = vsel %vm451, %v8807, 0
    %v8829 = vsel %vm451, %v8812, 0
    %v8832 = vsel %vm458, %v8816, 0
    %8834 = vmatprep.subr.mxu0 0.0
    %8835 = vmatpush1.msra.mxu0 %v8832
    %8836 = vmatprep.subr.mxu0 0.0
    %8837 = vmatpush1.msra.mxu0 0.0
    %8838 = vmatprep.subr.mxu0 0.0
    %8839 = vmatpush1.msra.mxu0 0.0
    %8840 = vmatprep.subr.mxu0 0.0
    %8841 = vmatpush1.msra.mxu0 0.0
    %8842 = vmatprep.subr.mxu0 0.0
    %8843 = vmatpush1.msra.mxu0 0.0
    %8844 = vmatprep.subr.mxu0 0.0
    %8845 = vmatpush1.msra.mxu0 0.0
    %8846 = vmatprep.subr.mxu0 0.0
    %8847 = vmatpush1.msra.mxu0 0.0
    %8848 = vmatprep.subr.mxu0 0.0
    %8849 = vmatpush1.msra.mxu0 0.0
    %8850 = vmatprep.subr.mxu0 0.0
    %8851 = vmatpush1.msra.mxu0 0.0
    %8852 = vmatprep.subr.mxu0 0.0
    %8853 = vmatpush1.msra.mxu0 0.0
    %8854 = vmatprep.subr.mxu0 0.0
    %8855 = vmatpush1.msra.mxu0 0.0
    %8856 = vmatprep.subr.mxu0 0.0
    %8857 = vmatpush1.msra.mxu0 0.0
    %8858 = vmatprep.subr.mxu0 0.0
    %8859 = vmatpush1.msra.mxu0 0.0
    %8860 = vmatprep.subr.mxu0 0.0
    %8861 = vmatpush1.msra.mxu0 0.0
    %8862 = vmatprep.subr.mxu0 0.0
    %8863 = vmatpush1.msra.mxu0 0.0
    %8864 = vmatprep.subr.mxu0 0.0
    %8865 = vmatpush1.msra.mxu0 0.0
    %8866 = vmatprep.subr.mxu0 0.0
    %8867 = vmatpush1.msra.mxu0 0.0
    %8868 = vmatprep.subr.mxu0 0.0
    %8869 = vmatpush1.msra.mxu0 0.0
    %8870 = vmatprep.subr.mxu0 0.0
    %8871 = vmatpush1.msra.mxu0 0.0
    %8872 = vmatprep.subr.mxu0 0.0
    %8873 = vmatpush1.msra.mxu0 0.0
    %8874 = vmatprep.subr.mxu0 0.0
    %8875 = vmatpush1.msra.mxu0 0.0
    %8876 = vmatprep.subr.mxu0 0.0
    %8877 = vmatpush1.msra.mxu0 0.0
    %8878 = vmatprep.subr.mxu0 0.0
    %8879 = vmatpush1.msra.mxu0 0.0
    %8880 = vmatprep.subr.mxu0 0.0
    %8881 = vmatpush1.msra.mxu0 0.0
    %8882 = vmatprep.subr.mxu0 0.0
    %8883 = vmatpush1.msra.mxu0 0.0
    %8884 = vmatprep.subr.mxu0 0.0
    %8885 = vmatpush1.msra.mxu0 0.0
    %8886 = vmatprep.subr.mxu0 0.0
    %8887 = vmatpush1.msra.mxu0 0.0
    %8888 = vmatprep.subr.mxu0 0.0
    %8889 = vmatpush1.msra.mxu0 0.0
    %8890 = vmatprep.subr.mxu0 0.0
    %8891 = vmatpush1.msra.mxu0 0.0
    %8892 = vmatprep.subr.mxu0 0.0
    %8893 = vmatpush1.msra.mxu0 0.0
    %8894 = vmatprep.subr.mxu0 0.0
    %8895 = vmatpush1.msra.mxu0 0.0
    %8896 = vmatprep.subr.mxu0 0.0
    %8897 = vmatpush1.msra.mxu0 0.0
    %8898 = vmatprep.mubr.f32.mxu0 0.0
    %8899 = vmatmul.mubr.f32.gmra.mrb[0].mxu0 %v8826
    %v8900 = vpop.f32.mrb[0].mxu0
    %v8901 = vadd.f32 %v8823, %v8900
    %v8902 = vpop.f32.mrb[0].mxu0
    %8903 = vmatprep.mubr.f32.mxu0 0.0
    %8904 = vmatmul.mubr.f32.gmra.mrb[0].mxu0 %v8829
    %v8905 = vpop.f32.mrb[0].mxu0
    %v8906 = vadd.f32 %v8823, %v8905
    %v8907 = vpop.f32.mrb[0].mxu0
    %8908 = vdwg.mxu0
    %vm8909 = vcmp.gt.f32.partialorder %v8901, 20.0
    %vm8910 = vcmp.gt.f32.partialorder %v8906, 20.0
    %v8911 = vmin.f32 %v8901, 20.0
    %v8912 = vmin.f32 %v8906, 20.0
    %v8913 = vmul.f32 %v8911, 1.442695
    %v8914 = vpow.pop %v8913
    %v8915 = vmul.f32 %v8912, 1.442695
    %v8916 = vpow.pop %v8915
    %v8917 = vadd.f32 %v8914, 1.0
    %v8918 = vlog2.pop %v8917
    %v8919 = vmul.f32 %v8918, 0.6931472
    %v8920 = vmul.f32 -0.5, %v8914
    %v8921 = vadd.f32 %v8920, 1.0
    %v8922 = vmul.f32 %v8921, %v8914
    %v8923 = vand.u32 2147483647, %v8914
    %vm8924 = vcmp.lt.f32.partialorder %v8923, 0.0004427343
    %v8925 = vsel %vm8924, %v8922, %v8919
    %v8926 = vadd.f32 %v8916, 1.0
    %v8927 = vlog2.pop %v8926
    %v8928 = vmul.f32 %v8927, 0.6931472
    %v8929 = vmul.f32 -0.5, %v8916
    %v8930 = vadd.f32 %v8929, 1.0
    %v8931 = vmul.f32 %v8930, %v8916
    %v8932 = vand.u32 2147483647, %v8916
    %vm8933 = vcmp.lt.f32.partialorder %v8932, 0.0004427343
    %v8934 = vsel %vm8933, %v8931, %v8928
    %v8935 = vsel %vm8909, %v8901, %v8925
    %v8936 = vsel %vm8910, %v8906, %v8934
    %s8937 = scalar_lea.vmem [#allocation8], 16
    %v8938 = vld [vmem:[%s8937] sm:$0xff]
    %v8941 = vcombine.high %v8935, %v8935
    %v8943 = vunpack.c.l.s4 1966171168
    %v8944 = vunpack.c.0.s8 %v8943
    %v8945 = vlaneseq
    %v8946 = vshrl.u32 %v8945, 7
    %v8947 = vsub.s32 %v8944, %v8946
    %v8948 = vrot.slane %v8935, %v8947
    %v8950 = vunpack.c.l.s4 1966171168
    %v8951 = vunpack.c.0.s8 %v8950
    %v8952 = vlaneseq
    %v8953 = vshrl.u32 %v8952, 7
    %v8954 = vsub.s32 %v8951, %v8953
    %v8955 = vrot.slane %v8941, %v8954
    %v8956 = vcombine.high %v8948, %v8948
    %v8957 = vcombine.high %v8955, %v8955
    %v8959 = vunpack.c.l.s4 1966171168
    %v8960 = vunpack.c.0.s8 %v8959
    %v8961 = vlaneseq
    %v8962 = vshrl.u32 %v8961, 7
    %v8963 = vsub.s32 %v8960, %v8962
    %v8964 = vrot.slane %v8948, %v8963
    %v8966 = vunpack.c.l.s4 1966171168
    %v8967 = vunpack.c.0.s8 %v8966
    %v8968 = vlaneseq
    %v8969 = vshrl.u32 %v8968, 7
    %v8970 = vsub.s32 %v8967, %v8969
    %v8971 = vrot.slane %v8955, %v8970
    %v8973 = vunpack.c.l.s4 1966171168
    %v8974 = vunpack.c.0.s8 %v8973
    %v8975 = vlaneseq
    %v8976 = vshrl.u32 %v8975, 7
    %v8977 = vsub.s32 %v8974, %v8976
    %v8978 = vrot.slane %v8956, %v8977
    %v8980 = vunpack.c.l.s4 1966171168
    %v8981 = vunpack.c.0.s8 %v8980
    %v8982 = vlaneseq
    %v8983 = vshrl.u32 %v8982, 7
    %v8984 = vsub.s32 %v8981, %v8983
    %v8985 = vrot.slane %v8957, %v8984
    %v8986 = vcombine.high %v8964, %v8964
    %v8987 = vcombine.high %v8971, %v8971
    %v8988 = vcombine.high %v8978, %v8978
    %v8989 = vcombine.high %v8985, %v8985
    %v8990 = vcombine.high %v8936, %v8936
    %v8992 = vunpack.c.l.s4 1966171168
    %v8993 = vunpack.c.0.s8 %v8992
    %v8994 = vlaneseq
    %v8995 = vshrl.u32 %v8994, 7
    %v8996 = vsub.s32 %v8993, %v8995
    %v8997 = vrot.slane %v8936, %v8996
    %v8999 = vunpack.c.l.s4 1966171168
    %v9000 = vunpack.c.0.s8 %v8999
    %v9001 = vlaneseq
    %v9002 = vshrl.u32 %v9001, 7
    %v9003 = vsub.s32 %v9000, %v9002
    %v9004 = vrot.slane %v8990, %v9003
    %v9005 = vcombine.high %v8997, %v8997
    %v9006 = vcombine.high %v9004, %v9004
    %v9008 = vunpack.c.l.s4 1966171168
    %v9009 = vunpack.c.0.s8 %v9008
    %v9010 = vlaneseq
    %v9011 = vshrl.u32 %v9010, 7
    %v9012 = vsub.s32 %v9009, %v9011
    %v9013 = vrot.slane %v8997, %v9012
    %v9015 = vunpack.c.l.s4 1966171168
    %v9016 = vunpack.c.0.s8 %v9015
    %v9017 = vlaneseq
    %v9018 = vshrl.u32 %v9017, 7
    %v9019 = vsub.s32 %v9016, %v9018
    %v9020 = vrot.slane %v9004, %v9019
    %v9022 = vunpack.c.l.s4 1966171168
    %v9023 = vunpack.c.0.s8 %v9022
    %v9024 = vlaneseq
    %v9025 = vshrl.u32 %v9024, 7
    %v9026 = vsub.s32 %v9023, %v9025
    %v9027 = vrot.slane %v9005, %v9026
    %v9029 = vunpack.c.l.s4 1966171168
    %v9030 = vunpack.c.0.s8 %v9029
    %v9031 = vlaneseq
    %v9032 = vshrl.u32 %v9031, 7
    %v9033 = vsub.s32 %v9030, %v9032
    %v9034 = vrot.slane %v9006, %v9033
    %v9035 = vcombine.high %v9013, %v9013
    %v9036 = vcombine.high %v9020, %v9020
    %v9037 = vcombine.high %v9027, %v9027
    %v9038 = vcombine.high %v9034, %v9034
    %v9039 = vlaneseq
    %v9040 = vshrl.u32 %v9039, 7
    %v9041 = vsub.s32 0, %v9040
    %v9042 = vrot.slane %v8964, %v9041
    %v9043 = vlaneseq
    %v9044 = vshrl.u32 %v9043, 7
    %v9045 = vsub.s32 0, %v9044
    %v9046 = vrot.slane %v8978, %v9045
    %v9047 = vlaneseq
    %v9048 = vshrl.u32 %v9047, 7
    %v9049 = vsub.s32 0, %v9048
    %v9050 = vrot.slane %v8986, %v9049
    %v9051 = vlaneseq
    %v9052 = vshrl.u32 %v9051, 7
    %v9053 = vsub.s32 0, %v9052
    %v9054 = vrot.slane %v8988, %v9053
    %v9055 = vlaneseq
    %v9056 = vshrl.u32 %v9055, 7
    %v9057 = vsub.s32 0, %v9056
    %v9058 = vrot.slane %v8971, %v9057
    %v9059 = vlaneseq
    %v9060 = vshrl.u32 %v9059, 7
    %v9061 = vsub.s32 0, %v9060
    %v9062 = vrot.slane %v8985, %v9061
    %v9063 = vlaneseq
    %v9064 = vshrl.u32 %v9063, 7
    %v9065 = vsub.s32 0, %v9064
    %v9066 = vrot.slane %v8987, %v9065
    %v9067 = vlaneseq
    %v9068 = vshrl.u32 %v9067, 7
    %v9069 = vsub.s32 0, %v9068
    %v9070 = vrot.slane %v8989, %v9069
    %v9071 = vlaneseq
    %v9072 = vshrl.u32 %v9071, 7
    %v9073 = vsub.s32 0, %v9072
    %v9074 = vrot.slane %v9013, %v9073
    %v9075 = vlaneseq
    %v9076 = vshrl.u32 %v9075, 7
    %v9077 = vsub.s32 0, %v9076
    %v9078 = vrot.slane %v9027, %v9077
    %v9079 = vlaneseq
    %v9080 = vshrl.u32 %v9079, 7
    %v9081 = vsub.s32 0, %v9080
    %v9082 = vrot.slane %v9035, %v9081
    %v9083 = vlaneseq
    %v9084 = vshrl.u32 %v9083, 7
    %v9085 = vsub.s32 0, %v9084
    %v9086 = vrot.slane %v9037, %v9085
    %v9087 = vlaneseq
    %v9088 = vshrl.u32 %v9087, 7
    %v9089 = vsub.s32 0, %v9088
    %v9090 = vrot.slane %v9020, %v9089
    %v9091 = vlaneseq
    %v9092 = vshrl.u32 %v9091, 7
    %v9093 = vsub.s32 0, %v9092
    %v9094 = vrot.slane %v9034, %v9093
    %v9095 = vlaneseq
    %v9096 = vshrl.u32 %v9095, 7
    %v9097 = vsub.s32 0, %v9096
    %v9098 = vrot.slane %v9036, %v9097
    %v9099 = vlaneseq
    %v9100 = vshrl.u32 %v9099, 7
    %v9101 = vsub.s32 0, %v9100
    %v9102 = vrot.slane %v9038, %v9101
    %v9119 = vmul.f32 %v8938, %v9042
    %v9120 = vmul.f32 %v8938, %v9046
    %v9121 = vmul.f32 %v8938, %v9050
    %v9122 = vmul.f32 %v8938, %v9054
    %v9123 = vmul.f32 %v8938, %v9058
    %v9124 = vmul.f32 %v8938, %v9062
    %v9125 = vmul.f32 %v8938, %v9066
    %v9126 = vmul.f32 %v8938, %v9070
    %v9127 = vmul.f32 %v8938, %v9074
    %v9128 = vmul.f32 %v8938, %v9078
    %v9129 = vmul.f32 %v8938, %v9082
    %v9130 = vmul.f32 %v8938, %v9086
    %v9131 = vmul.f32 %v8938, %v9090
    %v9132 = vmul.f32 %v8938, %v9094
    %v9133 = vmul.f32 %v8938, %v9098
    %v9134 = vmul.f32 %v8938, %v9102
    %v9135 = vmul.f32 %v9119, 1.442695
    %v9136 = vpow.pop %v9135
    %v9137 = vmul.f32 %v9120, 1.442695
    %v9138 = vpow.pop %v9137
    %v9139 = vmul.f32 %v9121, 1.442695
    %v9140 = vpow.pop %v9139
    %v9141 = vmul.f32 %v9122, 1.442695
    %v9142 = vpow.pop %v9141
    %v9143 = vmul.f32 %v9123, 1.442695
    %v9144 = vpow.pop %v9143
    %v9145 = vmul.f32 %v9124, 1.442695
    %v9146 = vpow.pop %v9145
    %v9147 = vmul.f32 %v9125, 1.442695
    %v9148 = vpow.pop %v9147
    %v9149 = vmul.f32 %v9126, 1.442695
    %v9150 = vpow.pop %v9149
    %v9151 = vmul.f32 %v9127, 1.442695
    %v9152 = vpow.pop %v9151
    %v9153 = vmul.f32 %v9128, 1.442695
    %v9154 = vpow.pop %v9153
    %v9155 = vmul.f32 %v9129, 1.442695
    %v9156 = vpow.pop %v9155
    %v9157 = vmul.f32 %v9130, 1.442695
    %v9158 = vpow.pop %v9157
    %v9159 = vmul.f32 %v9131, 1.442695
    %v9160 = vpow.pop %v9159
    %v9161 = vmul.f32 %v9132, 1.442695
    %v9162 = vpow.pop %v9161
    %v9163 = vmul.f32 %v9133, 1.442695
    %v9164 = vpow.pop %v9163
    %v9165 = vmul.f32 %v9134, 1.442695
    %v9166 = vpow.pop %v9165
    %v9167 = vmul.f32 %v8935, %v8723
    %v9168 = vmul.f32 %v8936, %v8724
    %v9169 = vlaneseq
    %v9170 = vshrl.u32 %v9169, 7
    %v9171 = vsub.s32 0, %v9170
    %v9172 = vrot.slane %v8807, %v9171
    %s9174 = sor.u32 256, 4
    %9175 = vbcast.lane.b32.xlu0 %v9172, %s9174
    %v9176 = vpop.permute.xlu0 %9175
    %v9177 = vlaneseq
    %v9178 = vshrl.u32 %v9177, 7
    %v9179 = vsub.s32 1, %v9178
    %v9180 = vrot.slane %v8807, %v9179
    %s9182 = sor.u32 256, 4
    %9183 = vbcast.lane.b32.xlu0 %v9180, %s9182
    %v9184 = vpop.permute.xlu0 %9183
    %v9185 = vlaneseq
    %v9186 = vshrl.u32 %v9185, 7
    %v9187 = vsub.s32 2, %v9186
    %v9188 = vrot.slane %v8807, %v9187
    %s9190 = sor.u32 256, 4
    %9191 = vbcast.lane.b32.xlu0 %v9188, %s9190
    %v9192 = vpop.permute.xlu0 %9191
    %v9193 = vlaneseq
    %v9194 = vshrl.u32 %v9193, 7
    %v9195 = vsub.s32 3, %v9194
    %v9196 = vrot.slane %v8807, %v9195
    %s9198 = sor.u32 256, 4
    %9199 = vbcast.lane.b32.xlu0 %v9196, %s9198
    %v9200 = vpop.permute.xlu0 %9199
    %v9201 = vlaneseq
    %v9202 = vshrl.u32 %v9201, 7
    %v9203 = vsub.s32 4, %v9202
    %v9204 = vrot.slane %v8807, %v9203
    %s9206 = sor.u32 256, 4
    %9207 = vbcast.lane.b32.xlu0 %v9204, %s9206
    %v9208 = vpop.permute.xlu0 %9207
    %v9209 = vlaneseq
    %v9210 = vshrl.u32 %v9209, 7
    %v9211 = vsub.s32 5, %v9210
    %v9212 = vrot.slane %v8807, %v9211
    %s9214 = sor.u32 256, 4
    %9215 = vbcast.lane.b32.xlu0 %v9212, %s9214
    %v9216 = vpop.permute.xlu0 %9215
    %v9217 = vlaneseq
    %v9218 = vshrl.u32 %v9217, 7
    %v9219 = vsub.s32 6, %v9218
    %v9220 = vrot.slane %v8807, %v9219
    %s9222 = sor.u32 256, 4
    %9223 = vbcast.lane.b32.xlu0 %v9220, %s9222
    %v9224 = vpop.permute.xlu0 %9223
    %v9225 = vlaneseq
    %v9226 = vshrl.u32 %v9225, 7
    %v9227 = vsub.s32 7, %v9226
    %v9228 = vrot.slane %v8807, %v9227
    %s9230 = sor.u32 256, 4
    %9231 = vbcast.lane.b32.xlu0 %v9228, %s9230
    %v9232 = vpop.permute.xlu0 %9231
    %v9233 = vlaneseq
    %v9234 = vshrl.u32 %v9233, 7
    %v9235 = vsub.s32 0, %v9234
    %v9236 = vrot.slane %v8812, %v9235
    %s9238 = sor.u32 256, 4
    %9239 = vbcast.lane.b32.xlu0 %v9236, %s9238
    %v9240 = vpop.permute.xlu0 %9239
    %v9241 = vlaneseq
    %v9242 = vshrl.u32 %v9241, 7
    %v9243 = vsub.s32 1, %v9242
    %v9244 = vrot.slane %v8812, %v9243
    %s9246 = sor.u32 256, 4
    %9247 = vbcast.lane.b32.xlu0 %v9244, %s9246
    %v9248 = vpop.permute.xlu0 %9247
    %v9249 = vlaneseq
    %v9250 = vshrl.u32 %v9249, 7
    %v9251 = vsub.s32 2, %v9250
    %v9252 = vrot.slane %v8812, %v9251
    %s9254 = sor.u32 256, 4
    %9255 = vbcast.lane.b32.xlu0 %v9252, %s9254
    %v9256 = vpop.permute.xlu0 %9255
    %v9257 = vlaneseq
    %v9258 = vshrl.u32 %v9257, 7
    %v9259 = vsub.s32 3, %v9258
    %v9260 = vrot.slane %v8812, %v9259
    %s9262 = sor.u32 256, 4
    %9263 = vbcast.lane.b32.xlu0 %v9260, %s9262
    %v9264 = vpop.permute.xlu0 %9263
    %v9265 = vlaneseq
    %v9266 = vshrl.u32 %v9265, 7
    %v9267 = vsub.s32 4, %v9266
    %v9268 = vrot.slane %v8812, %v9267
    %s9270 = sor.u32 256, 4
    %9271 = vbcast.lane.b32.xlu0 %v9268, %s9270
    %v9272 = vpop.permute.xlu0 %9271
    %v9273 = vlaneseq
    %v9274 = vshrl.u32 %v9273, 7
    %v9275 = vsub.s32 5, %v9274
    %v9276 = vrot.slane %v8812, %v9275
    %s9278 = sor.u32 256, 4
    %9279 = vbcast.lane.b32.xlu0 %v9276, %s9278
    %v9280 = vpop.permute.xlu0 %9279
    %v9281 = vlaneseq
    %v9282 = vshrl.u32 %v9281, 7
    %v9283 = vsub.s32 6, %v9282
    %v9284 = vrot.slane %v8812, %v9283
    %s9286 = sor.u32 256, 4
    %9287 = vbcast.lane.b32.xlu0 %v9284, %s9286
    %v9288 = vpop.permute.xlu0 %9287
    %v9289 = vlaneseq
    %v9290 = vshrl.u32 %v9289, 7
    %v9291 = vsub.s32 7, %v9290
    %v9292 = vrot.slane %v8812, %v9291
    %s9294 = sor.u32 256, 4
    %9295 = vbcast.lane.b32.xlu0 %v9292, %s9294
    %v9296 = vpop.permute.xlu0 %9295
    %v9299 = vcombine.high %v9167, %v9167
    %v9301 = vunpack.c.l.s4 1966171168
    %v9302 = vunpack.c.0.s8 %v9301
    %v9303 = vlaneseq
    %v9304 = vshrl.u32 %v9303, 7
    %v9305 = vsub.s32 %v9302, %v9304
    %v9306 = vrot.slane %v9167, %v9305
    %v9308 = vunpack.c.l.s4 1966171168
    %v9309 = vunpack.c.0.s8 %v9308
    %v9310 = vlaneseq
    %v9311 = vshrl.u32 %v9310, 7
    %v9312 = vsub.s32 %v9309, %v9311
    %v9313 = vrot.slane %v9299, %v9312
    %v9314 = vcombine.high %v9306, %v9306
    %v9315 = vcombine.high %v9313, %v9313
    %v9317 = vunpack.c.l.s4 1966171168
    %v9318 = vunpack.c.0.s8 %v9317
    %v9319 = vlaneseq
    %v9320 = vshrl.u32 %v9319, 7
    %v9321 = vsub.s32 %v9318, %v9320
    %v9322 = vrot.slane %v9306, %v9321
    %v9324 = vunpack.c.l.s4 1966171168
    %v9325 = vunpack.c.0.s8 %v9324
    %v9326 = vlaneseq
    %v9327 = vshrl.u32 %v9326, 7
    %v9328 = vsub.s32 %v9325, %v9327
    %v9329 = vrot.slane %v9313, %v9328
    %v9331 = vunpack.c.l.s4 1966171168
    %v9332 = vunpack.c.0.s8 %v9331
    %v9333 = vlaneseq
    %v9334 = vshrl.u32 %v9333, 7
    %v9335 = vsub.s32 %v9332, %v9334
    %v9336 = vrot.slane %v9314, %v9335
    %v9338 = vunpack.c.l.s4 1966171168
    %v9339 = vunpack.c.0.s8 %v9338
    %v9340 = vlaneseq
    %v9341 = vshrl.u32 %v9340, 7
    %v9342 = vsub.s32 %v9339, %v9341
    %v9343 = vrot.slane %v9315, %v9342
    %v9344 = vcombine.high %v9322, %v9322
    %v9345 = vcombine.high %v9329, %v9329
    %v9346 = vcombine.high %v9336, %v9336
    %v9347 = vcombine.high %v9343, %v9343
    %v9348 = vcombine.high %v9168, %v9168
    %v9350 = vunpack.c.l.s4 1966171168
    %v9351 = vunpack.c.0.s8 %v9350
    %v9352 = vlaneseq
    %v9353 = vshrl.u32 %v9352, 7
    %v9354 = vsub.s32 %v9351, %v9353
    %v9355 = vrot.slane %v9168, %v9354
    %v9357 = vunpack.c.l.s4 1966171168
    %v9358 = vunpack.c.0.s8 %v9357
    %v9359 = vlaneseq
    %v9360 = vshrl.u32 %v9359, 7
    %v9361 = vsub.s32 %v9358, %v9360
    %v9362 = vrot.slane %v9348, %v9361
    %v9363 = vcombine.high %v9355, %v9355
    %v9364 = vcombine.high %v9362, %v9362
    %v9366 = vunpack.c.l.s4 1966171168
    %v9367 = vunpack.c.0.s8 %v9366
    %v9368 = vlaneseq
    %v9369 = vshrl.u32 %v9368, 7
    %v9370 = vsub.s32 %v9367, %v9369
    %v9371 = vrot.slane %v9355, %v9370
    %v9373 = vunpack.c.l.s4 1966171168
    %v9374 = vunpack.c.0.s8 %v9373
    %v9375 = vlaneseq
    %v9376 = vshrl.u32 %v9375, 7
    %v9377 = vsub.s32 %v9374, %v9376
    %v9378 = vrot.slane %v9362, %v9377
    %v9380 = vunpack.c.l.s4 1966171168
    %v9381 = vunpack.c.0.s8 %v9380
    %v9382 = vlaneseq
    %v9383 = vshrl.u32 %v9382, 7
    %v9384 = vsub.s32 %v9381, %v9383
    %v9385 = vrot.slane %v9363, %v9384
    %v9387 = vunpack.c.l.s4 1966171168
    %v9388 = vunpack.c.0.s8 %v9387
    %v9389 = vlaneseq
    %v9390 = vshrl.u32 %v9389, 7
    %v9391 = vsub.s32 %v9388, %v9390
    %v9392 = vrot.slane %v9364, %v9391
    %v9393 = vcombine.high %v9371, %v9371
    %v9394 = vcombine.high %v9378, %v9378
    %v9395 = vcombine.high %v9385, %v9385
    %v9396 = vcombine.high %v9392, %v9392
    %v9397 = vlaneseq
    %v9398 = vshrl.u32 %v9397, 7
    %v9399 = vsub.s32 0, %v9398
    %v9400 = vrot.slane %v9322, %v9399
    %v9401 = vlaneseq
    %v9402 = vshrl.u32 %v9401, 7
    %v9403 = vsub.s32 0, %v9402
    %v9404 = vrot.slane %v9336, %v9403
    %v9405 = vlaneseq
    %v9406 = vshrl.u32 %v9405, 7
    %v9407 = vsub.s32 0, %v9406
    %v9408 = vrot.slane %v9344, %v9407
    %v9409 = vlaneseq
    %v9410 = vshrl.u32 %v9409, 7
    %v9411 = vsub.s32 0, %v9410
    %v9412 = vrot.slane %v9346, %v9411
    %v9413 = vlaneseq
    %v9414 = vshrl.u32 %v9413, 7
    %v9415 = vsub.s32 0, %v9414
    %v9416 = vrot.slane %v9329, %v9415
    %v9417 = vlaneseq
    %v9418 = vshrl.u32 %v9417, 7
    %v9419 = vsub.s32 0, %v9418
    %v9420 = vrot.slane %v9343, %v9419
    %v9421 = vlaneseq
    %v9422 = vshrl.u32 %v9421, 7
    %v9423 = vsub.s32 0, %v9422
    %v9424 = vrot.slane %v9345, %v9423
    %v9425 = vlaneseq
    %v9426 = vshrl.u32 %v9425, 7
    %v9427 = vsub.s32 0, %v9426
    %v9428 = vrot.slane %v9347, %v9427
    %v9429 = vlaneseq
    %v9430 = vshrl.u32 %v9429, 7
    %v9431 = vsub.s32 0, %v9430
    %v9432 = vrot.slane %v9371, %v9431
    %v9433 = vlaneseq
    %v9434 = vshrl.u32 %v9433, 7
    %v9435 = vsub.s32 0, %v9434
    %v9436 = vrot.slane %v9385, %v9435
    %v9437 = vlaneseq
    %v9438 = vshrl.u32 %v9437, 7
    %v9439 = vsub.s32 0, %v9438
    %v9440 = vrot.slane %v9393, %v9439
    %v9441 = vlaneseq
    %v9442 = vshrl.u32 %v9441, 7
    %v9443 = vsub.s32 0, %v9442
    %v9444 = vrot.slane %v9395, %v9443
    %v9445 = vlaneseq
    %v9446 = vshrl.u32 %v9445, 7
    %v9447 = vsub.s32 0, %v9446
    %v9448 = vrot.slane %v9378, %v9447
    %v9449 = vlaneseq
    %v9450 = vshrl.u32 %v9449, 7
    %v9451 = vsub.s32 0, %v9450
    %v9452 = vrot.slane %v9392, %v9451
    %v9453 = vlaneseq
    %v9454 = vshrl.u32 %v9453, 7
    %v9455 = vsub.s32 0, %v9454
    %v9456 = vrot.slane %v9394, %v9455
    %v9457 = vlaneseq
    %v9458 = vshrl.u32 %v9457, 7
    %v9459 = vsub.s32 0, %v9458
    %v9460 = vrot.slane %v9396, %v9459
    %v9477 = vmul.f32 %v9176, %v9400
    %v9478 = vmul.f32 %v9184, %v9404
    %v9479 = vmul.f32 %v9192, %v9408
    %v9480 = vmul.f32 %v9200, %v9412
    %v9481 = vmul.f32 %v9208, %v9416
    %v9482 = vmul.f32 %v9216, %v9420
    %v9483 = vmul.f32 %v9224, %v9424
    %v9484 = vmul.f32 %v9232, %v9428
    %v9485 = vmul.f32 %v9240, %v9432
    %v9486 = vmul.f32 %v9248, %v9436
    %v9487 = vmul.f32 %v9256, %v9440
    %v9488 = vmul.f32 %v9264, %v9444
    %v9489 = vmul.f32 %v9272, %v9448
    %v9490 = vmul.f32 %v9280, %v9452
    %v9491 = vmul.f32 %v9288, %v9456
    %v9492 = vmul.f32 %v9296, %v9460
    %v9493 = vmul.f32 %v9136, 0.0
    %v9494 = vmul.f32 %v9152, 0.0
    %v9495 = vadd.f32 %v9493, %v9477
    %v9496 = vadd.f32 %v9494, %v9485
    %v9497 = vmul.f32 %v9138, %v9495
    %v9498 = vmul.f32 %v9154, %v9496
    %v9499 = vadd.f32 %v9497, %v9478
    %v9500 = vadd.f32 %v9498, %v9486
    %v9501 = vmul.f32 %v9140, %v9499
    %v9502 = vmul.f32 %v9156, %v9500
    %v9503 = vadd.f32 %v9501, %v9479
    %v9504 = vadd.f32 %v9502, %v9487
    %v9505 = vmul.f32 %v9142, %v9503
    %v9506 = vmul.f32 %v9158, %v9504
    %v9507 = vadd.f32 %v9505, %v9480
    %v9508 = vadd.f32 %v9506, %v9488
    %v9509 = vmul.f32 %v9144, %v9507
    %v9510 = vmul.f32 %v9160, %v9508
    %v9511 = vadd.f32 %v9509, %v9481
    %v9512 = vadd.f32 %v9510, %v9489
    %v9513 = vmul.f32 %v9146, %v9511
    %v9514 = vmul.f32 %v9162, %v9512
    %v9515 = vadd.f32 %v9513, %v9482
    %v9516 = vadd.f32 %v9514, %v9490
    %v9517 = vmul.f32 %v9148, %v9515
    %v9518 = vmul.f32 %v9164, %v9516
    %v9519 = vadd.f32 %v9517, %v9483
    %v9520 = vadd.f32 %v9518, %v9491
    %v9521 = vmul.f32 %v9150, %v9519
    %v9522 = vmul.f32 %v9166, %v9520
    %v9523 = vadd.f32 %v9521, %v9484
    %v9524 = vadd.f32 %v9522, %v9492
    %s9526 = sor.u32 256, 12
    %9527 = vbcast.lane.b32.xlu0 %v9172, %s9526
    %v9528 = vpop.permute.xlu0 %9527
    %s9530 = sor.u32 256, 12
    %9531 = vbcast.lane.b32.xlu0 %v9180, %s9530
    %v9532 = vpop.permute.xlu0 %9531
    %s9534 = sor.u32 256, 12
    %9535 = vbcast.lane.b32.xlu0 %v9188, %s9534
    %v9536 = vpop.permute.xlu0 %9535
    %s9538 = sor.u32 256, 12
    %9539 = vbcast.lane.b32.xlu0 %v9196, %s9538
    %v9540 = vpop.permute.xlu0 %9539
    %s9542 = sor.u32 256, 12
    %9543 = vbcast.lane.b32.xlu0 %v9204, %s9542
    %v9544 = vpop.permute.xlu0 %9543
    %s9546 = sor.u32 256, 12
    %9547 = vbcast.lane.b32.xlu0 %v9212, %s9546
    %v9548 = vpop.permute.xlu0 %9547
    %s9550 = sor.u32 256, 12
    %9551 = vbcast.lane.b32.xlu0 %v9220, %s9550
    %v9552 = vpop.permute.xlu0 %9551
    %s9554 = sor.u32 256, 12
    %9555 = vbcast.lane.b32.xlu0 %v9228, %s9554
    %v9556 = vpop.permute.xlu0 %9555
    %s9558 = sor.u32 256, 12
    %9559 = vbcast.lane.b32.xlu0 %v9236, %s9558
    %v9560 = vpop.permute.xlu0 %9559
    %s9562 = sor.u32 256, 12
    %9563 = vbcast.lane.b32.xlu0 %v9244, %s9562
    %v9564 = vpop.permute.xlu0 %9563
    %s9566 = sor.u32 256, 12
    %9567 = vbcast.lane.b32.xlu0 %v9252, %s9566
    %v9568 = vpop.permute.xlu0 %9567
    %s9570 = sor.u32 256, 12
    %9571 = vbcast.lane.b32.xlu0 %v9260, %s9570
    %v9572 = vpop.permute.xlu0 %9571
    %s9574 = sor.u32 256, 12
    %9575 = vbcast.lane.b32.xlu0 %v9268, %s9574
    %v9576 = vpop.permute.xlu0 %9575
    %s9578 = sor.u32 256, 12
    %9579 = vbcast.lane.b32.xlu0 %v9276, %s9578
    %v9580 = vpop.permute.xlu0 %9579
    %s9582 = sor.u32 256, 12
    %9583 = vbcast.lane.b32.xlu0 %v9284, %s9582
    %v9584 = vpop.permute.xlu0 %9583
    %s9586 = sor.u32 256, 12
    %9587 = vbcast.lane.b32.xlu0 %v9292, %s9586
    %v9588 = vpop.permute.xlu0 %9587
    %v9589 = vmul.f32 %v9528, %v9495
    %v9590 = vmul.f32 %v9532, %v9499
    %v9591 = vmul.f32 %v9536, %v9503
    %v9592 = vmul.f32 %v9540, %v9507
    %v9593 = vmul.f32 %v9544, %v9511
    %v9594 = vmul.f32 %v9548, %v9515
    %v9595 = vmul.f32 %v9552, %v9519
    %v9596 = vmul.f32 %v9556, %v9523
    %v9597 = vmul.f32 %v9560, %v9496
    %v9598 = vmul.f32 %v9564, %v9500
    %v9599 = vmul.f32 %v9568, %v9504
    %v9600 = vmul.f32 %v9572, %v9508
    %v9601 = vmul.f32 %v9576, %v9512
    %v9602 = vmul.f32 %v9580, %v9516
    %v9603 = vmul.f32 %v9584, %v9520
    %v9604 = vmul.f32 %v9588, %v9524
    %v9605 = vsel %vm361, %v9589, 0.0
    %v9606 = vrot.slane %v9605, 4
    %v9607 = vadd.f32 %v9605, %v9606
    %v9608 = vrot.slane %v9607, 2
    %v9609 = vadd.f32 %v9607, %v9608
    %v9610 = vrot.slane %v9609, 1
    %v9611 = vadd.f32 %v9609, %v9610
    %v9612 = vsel %vm361, %v9590, 0.0
    %v9613 = vrot.slane %v9612, 4
    %v9614 = vadd.f32 %v9612, %v9613
    %v9615 = vrot.slane %v9614, 2
    %v9616 = vadd.f32 %v9614, %v9615
    %v9617 = vrot.slane %v9616, 1
    %v9618 = vadd.f32 %v9616, %v9617
    %v9619 = vsel %vm361, %v9591, 0.0
    %v9620 = vrot.slane %v9619, 4
    %v9621 = vadd.f32 %v9619, %v9620
    %v9622 = vrot.slane %v9621, 2
    %v9623 = vadd.f32 %v9621, %v9622
    %v9624 = vrot.slane %v9623, 1
    %v9625 = vadd.f32 %v9623, %v9624
    %v9626 = vsel %vm361, %v9592, 0.0
    %v9627 = vrot.slane %v9626, 4
    %v9628 = vadd.f32 %v9626, %v9627
    %v9629 = vrot.slane %v9628, 2
    %v9630 = vadd.f32 %v9628, %v9629
    %v9631 = vrot.slane %v9630, 1
    %v9632 = vadd.f32 %v9630, %v9631
    %v9633 = vsel %vm361, %v9593, 0.0
    %v9634 = vrot.slane %v9633, 4
    %v9635 = vadd.f32 %v9633, %v9634
    %v9636 = vrot.slane %v9635, 2
    %v9637 = vadd.f32 %v9635, %v9636
    %v9638 = vrot.slane %v9637, 1
    %v9639 = vadd.f32 %v9637, %v9638
    %v9640 = vsel %vm361, %v9594, 0.0
    %v9641 = vrot.slane %v9640, 4
    %v9642 = vadd.f32 %v9640, %v9641
    %v9643 = vrot.slane %v9642, 2
    %v9644 = vadd.f32 %v9642, %v9643
    %v9645 = vrot.slane %v9644, 1
    %v9646 = vadd.f32 %v9644, %v9645
    %v9647 = vsel %vm361, %v9595, 0.0
    %v9648 = vrot.slane %v9647, 4
    %v9649 = vadd.f32 %v9647, %v9648
    %v9650 = vrot.slane %v9649, 2
    %v9651 = vadd.f32 %v9649, %v9650
    %v9652 = vrot.slane %v9651, 1
    %v9653 = vadd.f32 %v9651, %v9652
    %v9654 = vsel %vm361, %v9596, 0.0
    %v9655 = vrot.slane %v9654, 4
    %v9656 = vadd.f32 %v9654, %v9655
    %v9657 = vrot.slane %v9656, 2
    %v9658 = vadd.f32 %v9656, %v9657
    %v9659 = vrot.slane %v9658, 1
    %v9660 = vadd.f32 %v9658, %v9659
    %v9661 = vsel %vm361, %v9597, 0.0
    %v9662 = vrot.slane %v9661, 4
    %v9663 = vadd.f32 %v9661, %v9662
    %v9664 = vrot.slane %v9663, 2
    %v9665 = vadd.f32 %v9663, %v9664
    %v9666 = vrot.slane %v9665, 1
    %v9667 = vadd.f32 %v9665, %v9666
    %v9668 = vsel %vm361, %v9598, 0.0
    %v9669 = vrot.slane %v9668, 4
    %v9670 = vadd.f32 %v9668, %v9669
    %v9671 = vrot.slane %v9670, 2
    %v9672 = vadd.f32 %v9670, %v9671
    %v9673 = vrot.slane %v9672, 1
    %v9674 = vadd.f32 %v9672, %v9673
    %v9675 = vsel %vm361, %v9599, 0.0
    %v9676 = vrot.slane %v9675, 4
    %v9677 = vadd.f32 %v9675, %v9676
    %v9678 = vrot.slane %v9677, 2
    %v9679 = vadd.f32 %v9677, %v9678
    %v9680 = vrot.slane %v9679, 1
    %v9681 = vadd.f32 %v9679, %v9680
    %v9682 = vsel %vm361, %v9600, 0.0
    %v9683 = vrot.slane %v9682, 4
    %v9684 = vadd.f32 %v9682, %v9683
    %v9685 = vrot.slane %v9684, 2
    %v9686 = vadd.f32 %v9684, %v9685
    %v9687 = vrot.slane %v9686, 1
    %v9688 = vadd.f32 %v9686, %v9687
    %v9689 = vsel %vm361, %v9601, 0.0
    %v9690 = vrot.slane %v9689, 4
    %v9691 = vadd.f32 %v9689, %v9690
    %v9692 = vrot.slane %v9691, 2
    %v9693 = vadd.f32 %v9691, %v9692
    %v9694 = vrot.slane %v9693, 1
    %v9695 = vadd.f32 %v9693, %v9694
    %v9696 = vsel %vm361, %v9602, 0.0
    %v9697 = vrot.slane %v9696, 4
    %v9698 = vadd.f32 %v9696, %v9697
    %v9699 = vrot.slane %v9698, 2
    %v9700 = vadd.f32 %v9698, %v9699
    %v9701 = vrot.slane %v9700, 1
    %v9702 = vadd.f32 %v9700, %v9701
    %v9703 = vsel %vm361, %v9603, 0.0
    %v9704 = vrot.slane %v9703, 4
    %v9705 = vadd.f32 %v9703, %v9704
    %v9706 = vrot.slane %v9705, 2
    %v9707 = vadd.f32 %v9705, %v9706
    %v9708 = vrot.slane %v9707, 1
    %v9709 = vadd.f32 %v9707, %v9708
    %v9710 = vsel %vm361, %v9604, 0.0
    %v9711 = vrot.slane %v9710, 4
    %v9712 = vadd.f32 %v9710, %v9711
    %v9713 = vrot.slane %v9712, 2
    %v9714 = vadd.f32 %v9712, %v9713
    %v9715 = vrot.slane %v9714, 1
    %v9716 = vadd.f32 %v9714, %v9715
    %s9717 = scalar_lea.vmem %s9, 2
    %v9718 = vld [vmem:[%s9717] sm:$0x1]
    %v9720 = vlaneseq
    %v9721 = vshrl.u32 %v9720, 7
    %v9722 = vsub.s32 0, %v9721
    %v9723 = vrot.slane %v9718, %v9722
    %v9725 = vmul.f32 %v9723, %v8723
    %v9726 = vmul.f32 %v9723, %v8724
    %v9729 = vrot.slane %v9725, 1
    %v9730 = vrot.slane %v9725, 2
    %v9731 = vrot.slane %v9725, 3
    %v9732 = vrot.slane %v9725, 4
    %v9733 = vrot.slane %v9725, 5
    %v9734 = vrot.slane %v9725, 6
    %v9735 = vrot.slane %v9725, 7
    %v9736 = vrot.slane %v9726, 1
    %v9737 = vrot.slane %v9726, 2
    %v9738 = vrot.slane %v9726, 3
    %v9739 = vrot.slane %v9726, 4
    %v9740 = vrot.slane %v9726, 5
    %v9741 = vrot.slane %v9726, 6
    %v9742 = vrot.slane %v9726, 7
    %v9759 = vadd.f32 %v9611, %v9725
    %v9760 = vadd.f32 %v9618, %v9729
    %v9761 = vadd.f32 %v9625, %v9730
    %v9762 = vadd.f32 %v9632, %v9731
    %v9763 = vadd.f32 %v9639, %v9732
    %v9764 = vadd.f32 %v9646, %v9733
    %v9765 = vadd.f32 %v9653, %v9734
    %v9766 = vadd.f32 %v9660, %v9735
    %v9767 = vadd.f32 %v9667, %v9726
    %v9768 = vadd.f32 %v9674, %v9736
    %v9769 = vadd.f32 %v9681, %v9737
    %v9770 = vadd.f32 %v9688, %v9738
    %v9771 = vadd.f32 %v9695, %v9739
    %v9772 = vadd.f32 %v9702, %v9740
    %v9773 = vadd.f32 %v9709, %v9741
    %v9774 = vadd.f32 %v9716, %v9742
    %v9775 = vxor.u32 %v8641, 2147483648
    %v9776 = vxor.u32 %v8646, 2147483648
    %v9777 = vmul.f32 %v9775, 1.442695
    %v9778 = vpow.pop %v9777
    %v9779 = vmul.f32 %v9776, 1.442695
    %v9780 = vpow.pop %v9779
    %v9781 = vadd.f32 %v9778, 1.0
    %v9782 = vadd.f32 %v9780, 1.0
    %v9783 = vrcp.pop %v9781
    %v9784 = vmul.f32 1.0, %v9783
    %v9785 = vrcp.pop %v9782
    %v9786 = vmul.f32 1.0, %v9785
    %v9787 = vmul.f32 %v8641, %v9784
    %v9788 = vmul.f32 %v8646, %v9786
    %v9791 = vrot.slane %v9787, 1
    %v9792 = vrot.slane %v9787, 2
    %v9793 = vrot.slane %v9787, 3
    %v9794 = vrot.slane %v9787, 4
    %v9795 = vrot.slane %v9787, 5
    %v9796 = vrot.slane %v9787, 6
    %v9797 = vrot.slane %v9787, 7
    %v9798 = vrot.slane %v9788, 1
    %v9799 = vrot.slane %v9788, 2
    %v9800 = vrot.slane %v9788, 3
    %v9801 = vrot.slane %v9788, 4
    %v9802 = vrot.slane %v9788, 5
    %v9803 = vrot.slane %v9788, 6
    %v9804 = vrot.slane %v9788, 7
    %9805 = vrot.lane.b32.xlu0 %v9787, 64
    %v9806 = vpop.permute.xlu0 %9805
    %9807 = vrot.lane.b32.xlu0 %v9791, 64
    %v9808 = vpop.permute.xlu0 %9807
    %9809 = vrot.lane.b32.xlu0 %v9792, 64
    %v9810 = vpop.permute.xlu0 %9809
    %9811 = vrot.lane.b32.xlu0 %v9793, 64
    %v9812 = vpop.permute.xlu0 %9811
    %9813 = vrot.lane.b32.xlu0 %v9794, 64
    %v9814 = vpop.permute.xlu0 %9813
    %9815 = vrot.lane.b32.xlu0 %v9795, 64
    %v9816 = vpop.permute.xlu0 %9815
    %9817 = vrot.lane.b32.xlu0 %v9796, 64
    %v9818 = vpop.permute.xlu0 %9817
    %9819 = vrot.lane.b32.xlu0 %v9797, 64
    %v9820 = vpop.permute.xlu0 %9819
    %9821 = vrot.lane.b32.xlu0 %v9788, 64
    %v9822 = vpop.permute.xlu0 %9821
    %9823 = vrot.lane.b32.xlu0 %v9798, 64
    %v9824 = vpop.permute.xlu0 %9823
    %9825 = vrot.lane.b32.xlu0 %v9799, 64
    %v9826 = vpop.permute.xlu0 %9825
    %9827 = vrot.lane.b32.xlu0 %v9800, 64
    %v9828 = vpop.permute.xlu0 %9827
    %9829 = vrot.lane.b32.xlu0 %v9801, 64
    %v9830 = vpop.permute.xlu0 %9829
    %9831 = vrot.lane.b32.xlu0 %v9802, 64
    %v9832 = vpop.permute.xlu0 %9831
    %9833 = vrot.lane.b32.xlu0 %v9803, 64
    %v9834 = vpop.permute.xlu0 %9833
    %9835 = vrot.lane.b32.xlu0 %v9804, 64
    %v9836 = vpop.permute.xlu0 %9835
    %v9853 = vmul.f32 %v9759, %v9806
    %v9854 = vmul.f32 %v9760, %v9808
    %v9855 = vmul.f32 %v9761, %v9810
    %v9856 = vmul.f32 %v9762, %v9812
    %v9857 = vmul.f32 %v9763, %v9814
    %v9858 = vmul.f32 %v9764, %v9816
    %v9859 = vmul.f32 %v9765, %v9818
    %v9860 = vmul.f32 %v9766, %v9820
    %v9861 = vmul.f32 %v9767, %v9822
    %v9862 = vmul.f32 %v9768, %v9824
    %v9863 = vmul.f32 %v9769, %v9826
    %v9864 = vmul.f32 %v9770, %v9828
    %v9865 = vmul.f32 %v9771, %v9830
    %v9866 = vmul.f32 %v9772, %v9832
    %v9867 = vmul.f32 %v9773, %v9834
    %v9868 = vmul.f32 %v9774, %v9836
    %s9869 = scalar_lea.vmem %s10, 128
    %v9870 = vld [vmem:[%s9869] sm:$0xff]
    %v9871 = vld [vmem:[%s9869 + $0x8] sm:$0xff]
    %v9872 = vld [vmem:[%s9869 + $0x10] sm:$0xff]
    %v9873 = vld [vmem:[%s9869 + $0x18] sm:$0xff]
    %v9874 = vld [vmem:[%s9869 + $0x20] sm:$0xff]
    %v9875 = vld [vmem:[%s9869 + $0x28] sm:$0xff]
    %v9876 = vld [vmem:[%s9869 + $0x30] sm:$0xff]
    %v9877 = vld [vmem:[%s9869 + $0x38] sm:$0xff]
    %v9894 = vrot.slane %v9854, 7
    %v9895 = vsel %vm1520, %v9894, %v9853
    %v9896 = vrot.slane %v9855, 6
    %v9897 = vsel %vm1523, %v9896, %v9895
    %v9898 = vrot.slane %v9856, 5
    %v9899 = vsel %vm1526, %v9898, %v9897
    %v9900 = vrot.slane %v9857, 4
    %v9901 = vsel %vm1529, %v9900, %v9899
    %v9902 = vrot.slane %v9858, 3
    %v9903 = vsel %vm1532, %v9902, %v9901
    %v9904 = vrot.slane %v9859, 2
    %v9905 = vsel %vm1535, %v9904, %v9903
    %v9906 = vrot.slane %v9860, 1
    %v9907 = vsel %vm1538, %v9906, %v9905
    %v9908 = vrot.slane %v9862, 7
    %v9909 = vsel %vm1520, %v9908, %v9861
    %v9910 = vrot.slane %v9863, 6
    %v9911 = vsel %vm1523, %v9910, %v9909
    %v9912 = vrot.slane %v9864, 5
    %v9913 = vsel %vm1526, %v9912, %v9911
    %v9914 = vrot.slane %v9865, 4
    %v9915 = vsel %vm1529, %v9914, %v9913
    %v9916 = vrot.slane %v9866, 3
    %v9917 = vsel %vm1532, %v9916, %v9915
    %v9918 = vrot.slane %v9867, 2
    %v9919 = vsel %vm1535, %v9918, %v9917
    %v9920 = vrot.slane %v9868, 1
    %v9921 = vsel %vm1538, %v9920, %v9919
    %v9922 = vsel %vm361, %v9907, 0
    %v9924 = vsel %vm361, %v9921, 0
    %9926 = vmatprep.subr.mxu0 0.0
    %9927 = vmatpush1.msra.mxu0 %v9870
    %9928 = vmatprep.subr.mxu0 0.0
    %9929 = vmatpush1.msra.mxu0 %v9871
    %9930 = vmatprep.subr.mxu0 0.0
    %9931 = vmatpush1.msra.mxu0 %v9872
    %9932 = vmatprep.subr.mxu0 0.0
    %9933 = vmatpush1.msra.mxu0 %v9873
    %9934 = vmatprep.subr.mxu0 0.0
    %9935 = vmatpush1.msra.mxu0 %v9874
    %9936 = vmatprep.subr.mxu0 0.0
    %9937 = vmatpush1.msra.mxu0 %v9875
    %9938 = vmatprep.subr.mxu0 0.0
    %9939 = vmatpush1.msra.mxu0 %v9876
    %9940 = vmatprep.subr.mxu0 0.0
    %9941 = vmatpush1.msra.mxu0 %v9877
    %9942 = vmatprep.subr.mxu0 0.0
    %9943 = vmatpush1.msra.mxu0 0.0
    %9944 = vmatprep.subr.mxu0 0.0
    %9945 = vmatpush1.msra.mxu0 0.0
    %9946 = vmatprep.subr.mxu0 0.0
    %9947 = vmatpush1.msra.mxu0 0.0
    %9948 = vmatprep.subr.mxu0 0.0
    %9949 = vmatpush1.msra.mxu0 0.0
    %9950 = vmatprep.subr.mxu0 0.0
    %9951 = vmatpush1.msra.mxu0 0.0
    %9952 = vmatprep.subr.mxu0 0.0
    %9953 = vmatpush1.msra.mxu0 0.0
    %9954 = vmatprep.subr.mxu0 0.0
    %9955 = vmatpush1.msra.mxu0 0.0
    %9956 = vmatprep.subr.mxu0 0.0
    %9957 = vmatpush1.msra.mxu0 0.0
    %9958 = vmatprep.subr.mxu0 0.0
    %9959 = vmatpush1.msra.mxu0 0.0
    %9960 = vmatprep.subr.mxu0 0.0
    %9961 = vmatpush1.msra.mxu0 0.0
    %9962 = vmatprep.subr.mxu0 0.0
    %9963 = vmatpush1.msra.mxu0 0.0
    %9964 = vmatprep.subr.mxu0 0.0
    %9965 = vmatpush1.msra.mxu0 0.0
    %9966 = vmatprep.subr.mxu0 0.0
    %9967 = vmatpush1.msra.mxu0 0.0
    %9968 = vmatprep.subr.mxu0 0.0
    %9969 = vmatpush1.msra.mxu0 0.0
    %9970 = vmatprep.subr.mxu0 0.0
    %9971 = vmatpush1.msra.mxu0 0.0
    %9972 = vmatprep.subr.mxu0 0.0
    %9973 = vmatpush1.msra.mxu0 0.0
    %9974 = vmatprep.subr.mxu0 0.0
    %9975 = vmatpush1.msra.mxu0 0.0
    %9976 = vmatprep.subr.mxu0 0.0
    %9977 = vmatpush1.msra.mxu0 0.0
    %9978 = vmatprep.subr.mxu0 0.0
    %9979 = vmatpush1.msra.mxu0 0.0
    %9980 = vmatprep.subr.mxu0 0.0
    %9981 = vmatpush1.msra.mxu0 0.0
    %9982 = vmatprep.subr.mxu0 0.0
    %9983 = vmatpush1.msra.mxu0 0.0
    %9984 = vmatprep.subr.mxu0 0.0
    %9985 = vmatpush1.msra.mxu0 0.0
    %9986 = vmatprep.subr.mxu0 0.0
    %9987 = vmatpush1.msra.mxu0 0.0
    %9988 = vmatprep.subr.mxu0 0.0
    %9989 = vmatpush1.msra.mxu0 0.0
    %9990 = vmatprep.mubr.f32.mxu0 0.0
    %9991 = vmatmul.mubr.f32.gmra.mrb[0].mxu0 %v9922
    %v9992 = vpop.f32.mrb[0].mxu0
    %v9993 = vadd.f32 0.0, %v9992
    %v9994 = vpop.f32.mrb[0].mxu0
    %9995 = vmatprep.mubr.f32.mxu0 0.0
    %9996 = vmatmul.mubr.f32.gmra.mrb[0].mxu0 %v9924
    %v9997 = vpop.f32.mrb[0].mxu0
    %v9998 = vadd.f32 0.0, %v9997
    %v9999 = vpop.f32.mrb[0].mxu0
    %10000 = vdwg.mxu0
    %v10001 = vadd.f32 %v8529, %v9993
    %v10002 = vadd.f32 %v8534, %v9998
    %s10003 = scalar_lea.vmem %s18, 32
    %10004 = vst.msk [vmem:[%s10003] sm:$0xff] %vm166, %v10001
    %10005 = vst.msk [vmem:[%s10003 + $0x8] sm:$0xff] %vm166, %v10002
    %v10006 = vld [vmem:[#allocation13] sm:$0xff]
    %v10007 = vld [vmem:[#allocation13 + $0x8] sm:$0xff]
    %v10008 = vld [vmem:[#allocation13 + $0x10] sm:$0xff]
    %v10009 = vld [vmem:[#allocation13 + $0x18] sm:$0xff]
    %v10011 = vsel %vm166, %v10001, 0
    %v10014 = vsel %vm166, %v10002, 0
    %10016 = vmatprep.subr.mxu0 0.0
    %10017 = vmatpush1.msra.mxu0 %v10006
    %10018 = vmatprep.subr.mxu0 0.0
    %10019 = vmatpush1.msra.mxu0 %v10007
    %10020 = vmatprep.subr.mxu0 0.0
    %10021 = vmatpush1.msra.mxu0 %v10008
    %10022 = vmatprep.subr.mxu0 0.0
    %10023 = vmatpush1.msra.mxu0 %v10009
    %10024 = vmatprep.subr.mxu0 0.0
    %10025 = vmatpush1.msra.mxu0 0.0
    %10026 = vmatprep.subr.mxu0 0.0
    %10027 = vmatpush1.msra.mxu0 0.0
    %10028 = vmatprep.subr.mxu0 0.0
    %10029 = vmatpush1.msra.mxu0 0.0
    %10030 = vmatprep.subr.mxu0 0.0
    %10031 = vmatpush1.msra.mxu0 0.0
    %10032 = vmatprep.subr.mxu0 0.0
    %10033 = vmatpush1.msra.mxu0 0.0
    %10034 = vmatprep.subr.mxu0 0.0
    %10035 = vmatpush1.msra.mxu0 0.0
    %10036 = vmatprep.subr.mxu0 0.0
    %10037 = vmatpush1.msra.mxu0 0.0
    %10038 = vmatprep.subr.mxu0 0.0
    %10039 = vmatpush1.msra.mxu0 0.0
    %10040 = vmatprep.subr.mxu0 0.0
    %10041 = vmatpush1.msra.mxu0 0.0
    %10042 = vmatprep.subr.mxu0 0.0
    %10043 = vmatpush1.msra.mxu0 0.0
    %10044 = vmatprep.subr.mxu0 0.0
    %10045 = vmatpush1.msra.mxu0 0.0
    %10046 = vmatprep.subr.mxu0 0.0
    %10047 = vmatpush1.msra.mxu0 0.0
    %10048 = vmatprep.subr.mxu0 0.0
    %10049 = vmatpush1.msra.mxu0 0.0
    %10050 = vmatprep.subr.mxu0 0.0
    %10051 = vmatpush1.msra.mxu0 0.0
    %10052 = vmatprep.subr.mxu0 0.0
    %10053 = vmatpush1.msra.mxu0 0.0
    %10054 = vmatprep.subr.mxu0 0.0
    %10055 = vmatpush1.msra.mxu0 0.0
    %10056 = vmatprep.subr.mxu0 0.0
    %10057 = vmatpush1.msra.mxu0 0.0
    %10058 = vmatprep.subr.mxu0 0.0
    %10059 = vmatpush1.msra.mxu0 0.0
    %10060 = vmatprep.subr.mxu0 0.0
    %10061 = vmatpush1.msra.mxu0 0.0
    %10062 = vmatprep.subr.mxu0 0.0
    %10063 = vmatpush1.msra.mxu0 0.0
    %10064 = vmatprep.subr.mxu0 0.0
    %10065 = vmatpush1.msra.mxu0 0.0
    %10066 = vmatprep.subr.mxu0 0.0
    %10067 = vmatpush1.msra.mxu0 0.0
    %10068 = vmatprep.subr.mxu0 0.0
    %10069 = vmatpush1.msra.mxu0 0.0
    %10070 = vmatprep.subr.mxu0 0.0
    %10071 = vmatpush1.msra.mxu0 0.0
    %10072 = vmatprep.subr.mxu0 0.0
    %10073 = vmatpush1.msra.mxu0 0.0
    %10074 = vmatprep.subr.mxu0 0.0
    %10075 = vmatpush1.msra.mxu0 0.0
    %10076 = vmatprep.subr.mxu0 0.0
    %10077 = vmatpush1.msra.mxu0 0.0
    %10078 = vmatprep.subr.mxu0 0.0
    %10079 = vmatpush1.msra.mxu0 0.0
    %10080 = vmatprep.mubr.f32.mxu0 0.0
    %10081 = vmatmul.mubr.f32.gmra.mrb[0].mxu0 %v10011
    %v10082 = vpop.f32.mrb[0].mxu0
    %v10083 = vadd.f32 0.0, %v10082
    %v10084 = vpop.f32.mrb[0].mxu0
    %10085 = vmatprep.mubr.f32.mxu0 0.0
    %10086 = vmatmul.mubr.f32.gmra.mrb[0].mxu0 %v10014
    %v10087 = vpop.f32.mrb[0].mxu0
    %v10088 = vadd.f32 0.0, %v10087
    %v10089 = vpop.f32.mrb[0].mxu0
    %10090 = vdwg.mxu0
    %10091 = vst.msk [vmem:[#allocation14] sm:$0xff] %vm361, %v10083
    %10092 = vst.msk [vmem:[#allocation14 + $0x8] sm:$0xff] %vm361, %v10088
    // Predicated region
    $region102: #{_lambda_.1} parent=1 // pred_check
      _
    $region103: #{_lambda_.1} parent=1 // pred_check_branch
      %10094 = sbr.rel (0) target = $region105
    $region104: #{_lambda_.1} parent=1 // pred_region
      _
    $region105: #{_lambda_.1} parent=1 // pred_fallthru
      _
    // Predicated region
    $region106: #{_lambda_.1} parent=1 // pred_check
      _
    $region107: #{_lambda_.1} parent=1 // pred_check_branch
      %10096 = sbr.rel (0) target = $region109
    $region108: #{_lambda_.1} parent=1 // pred_region
      %s10098 = ssub.s32 256, 256
      %10099 = vsyncadd [#allocation4], %s10098
      %s10100 = sshll.u32 [#allocation14], 4
      %s10101 = int_to_ptr.vmem [resolvable:$true] %s10100
      %10106 = dma.vmem_to_hbm [thread:$0]  %s10101, 256, %s19, [#allocation4], 128, 128, 8
    $region109: #{_lambda_.1} parent=1 // pred_fallthru
      _
    // Predicated region
    $region110: #{_lambda_.1} parent=1 // pred_check
      _
    $region111: #{_lambda_.1} parent=1 // pred_check_branch
      %10108 = sbr.rel (0) target = $region113
    $region112: #{_lambda_.1} parent=1 // pred_region
      _
    $region113: #{_lambda_.1} parent=1 // pred_fallthru
      _
    // Predicated region
    $region114: #{_lambda_.1} parent=1 // pred_check
      _
    $region115: #{_lambda_.1} parent=1 // pred_check_branch
      %10110 = sbr.rel (0) target = $region117
    $region116: #{_lambda_.1} parent=1 // pred_region
      %10111 = dma.done [#allocation4], 256
    $region117: #{_lambda_.1} parent=1 // pred_fallthru
      _
    %10112 = vsyncpa [#allocation3], 1
    %10113 = vsyncpa [#allocation6], 1
    %10114 = vsyncpa [#allocation9], 1
    %10115 = vsyncpa [#allocation12], 1
    %10116 = vsyncpa [#allocation4], 1

</llo_original>
